<compile_context>
chip_gen: v7x
topology: tpu7x:2x2x1
jax: 0.10.0
libtpu: 0.0.40
codegen_flags: <defaults>
</compile_context>

<pallas_src>
import math

import jax
import jax.numpy as jnp
import numpy as np
from jax import lax
from jax.experimental import pallas as pl
from jax.experimental.pallas import tpu as pltpu


def _col_pad(C, W):
    """Left/right column padding so that (a) the interior starts on a 128-lane-aligned
    offset and (b) the padded row length WP*C is a multiple of 128 lanes."""
    g = math.gcd(C, 128)
    align = max(128 // g, 1)          # columns per 128-lane boundary (C=32 -> 4)
    pad_l = align                      # >= 1 conv pad column, left offset 128-aligned
    total = W + pad_l + 1              # need >= 1 right conv pad column
    pad_r = 1 + ((-total) % align)
    return pad_l, pad_r


def _make_kernel(pad_left_cols):
    def kernel(x_ref, w1_ref, b1_ref, w2_ref, b2_ref,
               f1w_ref, f1b_ref, f2w_ref, f2b_ref,
               out_ref, xpad_ref, h1pad_ref):
        B, H, WC = x_ref.shape                 # (B_blk, H, W*C) lane-dense
        WPC = w1_ref.shape[1]                  # padded row length in lanes
        C = f2b_ref.shape[1]
        W = WC // C
        M = B * H
        PL = pad_left_cols * C                 # 128-aligned interior lane offset
        sdt = xpad_ref.dtype                   # staging / MXU operand dtype

        xv = x_ref[...]                        # (B, H, WC) f32 — also the residual

        def stage_padded(dst_ref, interior):
            # Zero border rows / halo lanes, then write the interior.  All lane offsets
            # (0, PL, PL+WC) are multiples of 128 -> unmasked, unrotated stores, and
            # every byte the conv matmuls read is written every step (megacore-safe).
            zr = jnp.zeros((B, 1, WPC), sdt)
            dst_ref[:, 0:1, :] = zr
            dst_ref[:, H + 1:H + 2, :] = zr
            dst_ref[:, 1:H + 1, 0:PL] = jnp.zeros((B, H, PL), sdt)
            dst_ref[:, 1:H + 1, PL + WC:WPC] = jnp.zeros((B, H, WPC - PL - WC), sdt)
            dst_ref[:, 1:H + 1, PL:PL + WC] = interior

        def conv3x3(src_ref, w_ref, b_ref):
            # 3x3 conv (with eval-mode BN scale folded into the weights) as 3 MXU
            # matmuls over whole padded rows; the horizontal taps live in the
            # block-Toeplitz weight, so no im2col staging is needed at all.
            acc = jnp.zeros((M, WC), jnp.float32)
            for dy in range(3):
                rows = src_ref[:, dy:dy + H, :].reshape(M, WPC)
                acc = acc + jnp.dot(rows, w_ref[dy],
                                    preferred_element_type=jnp.float32)
            return acc + b_ref[...]

        # ---- conv1 (+BN1 folded) + ReLU
        stage_padded(xpad_ref, xv.astype(sdt))
        h1 = jnp.maximum(conv3x3(xpad_ref, w1_ref, b1_ref), 0.0)       # (M, WC) f32

        # ---- conv2 (+BN2 folded)
        stage_padded(h1pad_ref, h1.reshape(B, H, WC).astype(sdt))
        y2 = conv3x3(h1pad_ref, w2_ref, b2_ref)                        # (M, WC) f32
        y2b = y2.reshape(B, H, WC)

        # ---- SE: global average pool over (H, W)
        pr = jnp.sum(y2b, axis=1)                                      # (B, WC)
        if (W & (W - 1)) == 0:                                         # tree-reduce lanes
            width = WC
            while width > C:
                width //= 2
                pr = pr[:, :width] + pr[:, width:2 * width]
            pooled = pr
        else:
            pooled = pr[:, 0:C]
            for w in range(1, W):
                pooled = pooled + pr[:, w * C:(w + 1) * C]
        pooled = pooled * (1.0 / (H * W))                              # (B, C) f32

        # ---- SE FCs, vectorized on the VPU/XLU (Cr = C // 16 is tiny)
        z = jnp.maximum(
            jnp.sum(pooled[:, None, :] * f1w_ref[...][None, :, :], axis=-1)
            + f1b_ref[...], 0.0)                                       # (B, Cr)
        gate = jax.nn.sigmoid(
            jnp.sum(z[:, :, None] * f2w_ref[...][None, :, :], axis=1)
            + f2b_ref[...])                                            # (B, C)
        gate_wc = jnp.concatenate([gate] * W, axis=-1)                 # (B, W*C)

        # ---- channel gate * y2 + residual, final ReLU: one lane-dense store
        out_ref[...] = jnp.maximum(
            y2b * gate_wc[:, None, :] + xv.astype(jnp.float32), 0.0
        ).astype(out_ref.dtype)

    return kernel


def se_residual_block(x_nchw, kernel_params, *, operand_dtype=jnp.bfloat16,
                      batch_block=None, vmem_limit_bytes=32 * 1024 * 1024,
                      block_vmem_budget=4 * 1024 * 1024):
    """x_nchw: (N, C, H, W) — matches the PyTorch module's input layout."""
    w1T, b1, w2T, b2, f1w, f1b, f2w, f2b = kernel_params
    N, C, H, W = x_nchw.shape
    WC = W * C
    WPC = int(w1T.shape[1])
    pad_l, pad_r = _col_pad(C, W)
    assert WPC == (W + pad_l + pad_r) * C, "kernel params don't match input width"
    Cr = int(f1w.shape[0])

    if batch_block is None:
        # Size the per-step block from a VMEM budget (amortizes per-step pipeline
        # overhead) while keeping >= 2 grid steps so megacore can shard the axis.
        itemsize = jnp.dtype(operand_dtype).itemsize
        per_img = (2 * H * WC * 4) * 2 + 2 * (H + 2) * WPC * itemsize
        batch_block = 1
        for d in range(1, N + 1):
            if N % d:
                continue
            if N >= 2 and N // d < 2:
                continue
            if d * per_img <= block_vmem_budget:
                batch_block = d
    assert N % batch_block == 0
    n_blocks = N // batch_block

    # NHWC with W folded into the lane dim (trailing dim W*C, multiple of 128).
    x = jnp.transpose(x_nchw, (0, 2, 3, 1)).reshape(N, H, WC)
    kernel = _make_kernel(pad_l)

    # NOTE: the (3, WP*C, W*C) conv weights are grid-invariant (constant index map), so
    # Pallas fetches them from HBM only once; on v7x with large C, add
    # pipeline_mode=pl.Buffered(1) to those specs to drop the unused second buffer.
    out = pl.pallas_call(
        kernel,
        out_shape=jax.ShapeDtypeStruct((N, H, WC), x_nchw.dtype),
        grid_spec=pltpu.PrefetchScalarGridSpec(
            num_scalar_prefetch=0,
            grid=(n_blocks,),
            in_specs=[
                pl.BlockSpec((batch_block, H, WC), lambda b: (b, 0, 0)),
                pl.BlockSpec((3, WPC, WC), lambda b: (0, 0, 0)),
                pl.BlockSpec((1, WC), lambda b: (0, 0)),
                pl.BlockSpec((3, WPC, WC), lambda b: (0, 0, 0)),
                pl.BlockSpec((1, WC), lambda b: (0, 0)),
                pl.BlockSpec((Cr, C), lambda b: (0, 0)),
                pl.BlockSpec((1, Cr), lambda b: (0, 0)),
                pl.BlockSpec((Cr, C), lambda b: (0, 0)),
                pl.BlockSpec((1, C), lambda b: (0, 0)),
            ],
            out_specs=pl.BlockSpec((batch_block, H, WC), lambda b: (b, 0, 0)),
            scratch_shapes=[
                pltpu.VMEM((batch_block, H + 2, WPC), operand_dtype),   # padded x
                pltpu.VMEM((batch_block, H + 2, WPC), operand_dtype),   # padded h1
            ],
        ),
        compiler_params=pltpu.CompilerParams(
            dimension_semantics=("parallel",),
            vmem_limit_bytes=vmem_limit_bytes),
    )(x, w1T.astype(operand_dtype), b1, w2T.astype(operand_dtype), b2,
      f1w, f1b, f2w, f2b)

    out = out.reshape(N, H, W, C)
    return jnp.transpose(out, (0, 3, 1, 2))                            # back to NCHW


def init_params(key, C, reduction=16):
    """Deterministic synthetic parameters in PyTorch layout:
    conv weight (Cout, Cin, 3, 3), conv bias (C,), BN (gamma, beta, running_mean,
    running_var), Linear weight (out, in), Linear bias (out,)."""
    Cr = max(C // reduction, 1)
    ks = jax.random.split(key, 16)
    n = jax.random.normal
    w1 = n(ks[0], (C, C, 3, 3), jnp.float32) * 0.05
    bc1 = n(ks[1], (C,), jnp.float32) * 0.05
    g1 = 1.0 + 0.1 * n(ks[2], (C,), jnp.float32)
    beta1 = 0.1 * n(ks[3], (C,), jnp.float32)
    m1 = 0.1 * n(ks[4], (C,), jnp.float32)
    v1 = 1.0 + 0.2 * jax.random.uniform(ks[5], (C,), jnp.float32)
    w2 = n(ks[6], (C, C, 3, 3), jnp.float32) * 0.05
    bc2 = n(ks[7], (C,), jnp.float32) * 0.05
    g2 = 1.0 + 0.1 * n(ks[8], (C,), jnp.float32)
    beta2 = 0.1 * n(ks[9], (C,), jnp.float32)
    m2 = 0.1 * n(ks[10], (C,), jnp.float32)
    v2 = 1.0 + 0.2 * jax.random.uniform(ks[11], (C,), jnp.float32)
    fc1_w = n(ks[12], (Cr, C), jnp.float32) / jnp.sqrt(C)
    fc1_b = 0.1 * n(ks[13], (Cr,), jnp.float32)
    fc2_w = n(ks[14], (C, Cr), jnp.float32) / jnp.sqrt(Cr)
    fc2_b = 0.1 * n(ks[15], (C,), jnp.float32)
    return (w1, bc1, g1, beta1, m1, v1,
            w2, bc2, g2, beta2, m2, v2,
            fc1_w, fc1_b, fc2_w, fc2_b)


def fold_params(params, width, eps=1e-5):
    """Host-side prep: fold eval-mode BN into each conv (scale -> weights, shift ->
    per-channel bias) and expand each 3x3 conv into 3 block-Toeplitz matrices
    (WP*C, W*C), one per vertical tap, so the kernel's convs are plain row-slab
    matmuls with a lane-dense (W-folded) output.  SE weights laid out as (Cr, C)."""
    (w1, bc1, g1, beta1, m1, v1,
     w2, bc2, g2, beta2, m2, v2,
     fc1_w, fc1_b, fc2_w, fc2_b) = params
    C = int(w1.shape[0])
    Cr = int(fc1_w.shape[0])
    W = int(width)
    pad_l, pad_r = _col_pad(C, W)
    WP = W + pad_l + pad_r

    def conv_to_toeplitz(w, bc, g, beta, m, v):
        s = np.asarray(g) / np.sqrt(np.asarray(v) + eps)                     # (Cout,)
        we = np.transpose(np.asarray(w), (2, 3, 1, 0)) * s[None, None, None, :]
        be = s * (np.asarray(bc) - np.asarray(m)) + np.asarray(beta)
        T = np.zeros((3, WP * C, W * C), np.float32)
        for dy in range(3):
            for dx in range(3):
                blk = we[dy, dx]                                             # (Cin, Cout)
                for w_ in range(W):
                    p = w_ + (pad_l - 1) + dx                                # padded col
                    T[dy, p * C:(p + 1) * C, w_ * C:(w_ + 1) * C] = blk
        b_tiled = np.tile(be, W).reshape(1, W * C).astype(np.float32)
        return jnp.asarray(T), jnp.asarray(b_tiled)

    w1T, b1 = conv_to_toeplitz(w1, bc1, g1, beta1, m1, v1)
    w2T, b2 = conv_to_toeplitz(w2, bc2, g2, beta2, m2, v2)
    return (w1T, b1, w2T, b2,
            jnp.asarray(fc1_w, jnp.float32),                                 # (Cr, C)
            jnp.asarray(fc1_b, jnp.float32).reshape(1, Cr),
            jnp.asarray(jnp.transpose(fc2_w), jnp.float32),                  # (Cr, C)
            jnp.asarray(fc2_b, jnp.float32).reshape(1, C))


def ref_forward(x_nchw, params, eps=1e-5):
    """Pure-JAX reference with PyTorch (eval-mode BN) semantics, for verification."""
    (w1, bc1, g1, beta1, m1, v1,
     w2, bc2, g2, beta2, m2, v2,
     fc1_w, fc1_b, fc2_w, fc2_b) = params
    x = x_nchw.astype(jnp.float32)

    def conv_bn(h, w, bc, g, beta, m, v):
        y = lax.conv_general_dilated(h, w, (1, 1), 'SAME',
                                     dimension_numbers=('NCHW', 'OIHW', 'NCHW'))
        y = y + bc[None, :, None, None]
        s = g / jnp.sqrt(v + eps)
        return y * s[None, :, None, None] + (beta - s * m)[None, :, None, None]

    h1 = jnp.maximum(conv_bn(x, w1, bc1, g1, beta1, m1, v1), 0.0)
    y2 = conv_bn(h1, w2, bc2, g2, beta2, m2, v2)
    pooled = jnp.mean(y2, axis=(2, 3))                                       # (N, C)
    z = jnp.maximum(pooled @ fc1_w.T + fc1_b, 0.0)
    gate = jax.nn.sigmoid(z @ fc2_w.T + fc2_b)                               # (N, C)
    return jnp.maximum(y2 * gate[:, :, None, None] + x, 0.0)


if __name__ == "__main__":
    key = jax.random.PRNGKey(0)
    N, C, H, W = 2, 32, 16, 16                                  # SE hidden = C // 16 = 2
    kx, kp = jax.random.split(key)
    x = jax.random.normal(kx, (N, C, H, W), jnp.float32)
    params = init_params(kp, C, reduction=16)
    kparams = fold_params(params, W)

    ref = jax.block_until_ready(ref_forward(x, params))

    # f32-operand path — tight correctness check against the PyTorch-semantics reference
    out_f32 = jax.block_until_ready(
        se_residual_block(x, kparams, operand_dtype=jnp.float32))
    assert out_f32.shape == (N, C, H, W)
    assert jnp.allclose(out_f32, ref, rtol=1e-3, atol=1e-3), \
        "Pallas kernel (f32 operands) mismatch vs JAX reference"

    # default bf16 MXU-operand path (f32 accumulation / epilogue) — loose check
    out_bf16 = jax.block_until_ready(se_residual_block(x, kparams))
    assert out_bf16.shape == (N, C, H, W)
    assert float(jnp.max(jnp.abs(out_bf16 - ref))) < 1e-1, \
        "Pallas kernel (bf16 operands) mismatch vs JAX reference"

    print("KERNEL_OK")
</pallas_src>

<mosaic_0001>
module attributes {stable_mosaic.version = 11 : i64} {
  func.func @kernel(%arg0: i32, %arg1: memref<1x16x512xf32, #tpu.memory_space<vmem>>, %arg2: memref<3x768x512xf32, #tpu.memory_space<vmem>>, %arg3: memref<1x512xf32, #tpu.memory_space<vmem>>, %arg4: memref<3x768x512xf32, #tpu.memory_space<vmem>>, %arg5: memref<1x512xf32, #tpu.memory_space<vmem>>, %arg6: memref<2x32xf32, #tpu.memory_space<vmem>>, %arg7: memref<1x2xf32, #tpu.memory_space<vmem>>, %arg8: memref<2x32xf32, #tpu.memory_space<vmem>>, %arg9: memref<1x32xf32, #tpu.memory_space<vmem>>, %arg10: memref<1x16x512xf32, #tpu.memory_space<vmem>>, %arg11: memref<1x18x768xf32, #tpu.memory_space<vmem>>, %arg12: memref<1x18x768xf32, #tpu.memory_space<vmem>>) attributes {dimension_semantics = [#tpu.dimension_semantics<parallel>], iteration_bounds = array<i64: 2>, scalar_prefetch = 0 : i64, scratch_operands = 2 : i64, tpu.core_type = #tpu.core_type<tc>, window_params = [{transform_indices = @transform_0, window_bounds = array<i64: 1, 16, 512>}, {pipeline_mode = #tpu.pipeline_mode<synchronous>, transform_indices = @transform_1, window_bounds = array<i64: 3, 768, 512>}, {pipeline_mode = #tpu.pipeline_mode<synchronous>, transform_indices = @transform_2, window_bounds = array<i64: 1, 512>}, {pipeline_mode = #tpu.pipeline_mode<synchronous>, transform_indices = @transform_3, window_bounds = array<i64: 3, 768, 512>}, {pipeline_mode = #tpu.pipeline_mode<synchronous>, transform_indices = @transform_4, window_bounds = array<i64: 1, 512>}, {pipeline_mode = #tpu.pipeline_mode<synchronous>, transform_indices = @transform_5, window_bounds = array<i64: 2, 32>}, {pipeline_mode = #tpu.pipeline_mode<synchronous>, transform_indices = @transform_6, window_bounds = array<i64: 1, 2>}, {pipeline_mode = #tpu.pipeline_mode<synchronous>, transform_indices = @transform_7, window_bounds = array<i64: 2, 32>}, {pipeline_mode = #tpu.pipeline_mode<synchronous>, transform_indices = @transform_8, window_bounds = array<i64: 1, 32>}, {transform_indices = @transform_9, window_bounds = array<i64: 1, 16, 512>}]} {
    %c0 = arith.constant 0 : index
    %c0_0 = arith.constant 0 : index
    %c0_1 = arith.constant 0 : index
    %0 = vector.load %arg1[%c0, %c0_0, %c0_1] : memref<1x16x512xf32, #tpu.memory_space<vmem>>, vector<1x16x512xf32>
    %cst = arith.constant 0.000000e+00 : f32
    %1 = vector.broadcast %cst : f32 to vector<1x1x768xf32>
    %c0_2 = arith.constant 0 : index
    %c0_3 = arith.constant 0 : index
    %c0_4 = arith.constant 0 : index
    %2 = vector.load %arg11[%c0_2, %c0_3, %c0_4] : memref<1x18x768xf32, #tpu.memory_space<vmem>>, vector<1x1x768xf32>
    tpu.vector_store %arg11[%c0_2, %c0_3, %c0_4], %1 {strides = array<i32>} : memref<1x18x768xf32, #tpu.memory_space<vmem>>, vector<1x1x768xf32>,
    %c0_5 = arith.constant 0 : index
    %c17 = arith.constant 17 : index
    %c0_6 = arith.constant 0 : index
    %3 = vector.load %arg11[%c0_5, %c17, %c0_6] : memref<1x18x768xf32, #tpu.memory_space<vmem>>, vector<1x1x768xf32>
    tpu.vector_store %arg11[%c0_5, %c17, %c0_6], %1 {strides = array<i32>} : memref<1x18x768xf32, #tpu.memory_space<vmem>>, vector<1x1x768xf32>,
    %cst_7 = arith.constant 0.000000e+00 : f32
    %4 = vector.broadcast %cst_7 : f32 to vector<1x16x128xf32>
    %c0_8 = arith.constant 0 : index
    %c1 = arith.constant 1 : index
    %c0_9 = arith.constant 0 : index
    %5 = vector.load %arg11[%c0_8, %c1, %c0_9] : memref<1x18x768xf32, #tpu.memory_space<vmem>>, vector<1x16x128xf32>
    tpu.vector_store %arg11[%c0_8, %c1, %c0_9], %4 {strides = array<i32>} : memref<1x18x768xf32, #tpu.memory_space<vmem>>, vector<1x16x128xf32>,
    %cst_10 = arith.constant 0.000000e+00 : f32
    %6 = vector.broadcast %cst_10 : f32 to vector<1x16x128xf32>
    %c0_11 = arith.constant 0 : index
    %c1_12 = arith.constant 1 : index
    %c640 = arith.constant 640 : index
    %7 = vector.load %arg11[%c0_11, %c1_12, %c640] : memref<1x18x768xf32, #tpu.memory_space<vmem>>, vector<1x16x128xf32>
    tpu.vector_store %arg11[%c0_11, %c1_12, %c640], %6 {strides = array<i32>} : memref<1x18x768xf32, #tpu.memory_space<vmem>>, vector<1x16x128xf32>,
    %c0_13 = arith.constant 0 : index
    %c1_14 = arith.constant 1 : index
    %c128 = arith.constant 128 : index
    %8 = vector.load %arg11[%c0_13, %c1_14, %c128] : memref<1x18x768xf32, #tpu.memory_space<vmem>>, vector<1x16x512xf32>
    tpu.vector_store %arg11[%c0_13, %c1_14, %c128], %0 {strides = array<i32>} : memref<1x18x768xf32, #tpu.memory_space<vmem>>, vector<1x16x512xf32>,
    %cst_15 = arith.constant 0.000000e+00 : f32
    %9 = vector.broadcast %cst_15 : f32 to vector<16x512xf32>
    %c0_16 = arith.constant 0 : index
    %c0_17 = arith.constant 0 : index
    %c0_18 = arith.constant 0 : index
    %10 = vector.load %arg11[%c0_16, %c0_17, %c0_18] : memref<1x18x768xf32, #tpu.memory_space<vmem>>, vector<1x16x768xf32>
    %11 = vector.shape_cast %10 : vector<1x16x768xf32> to vector<16x768xf32>
    %c0_19 = arith.constant 0 : index
    %c0_20 = arith.constant 0 : index
    %c0_21 = arith.constant 0 : index
    %12 = vector.load %arg2[%c0_19, %c0_20, %c0_21] : memref<3x768x512xf32, #tpu.memory_space<vmem>>, vector<1x768x512xf32>
    %13 = vector.shape_cast %12 : vector<1x768x512xf32> to vector<768x512xf32>
    %cst_22 = arith.constant dense<0.000000e+00> : vector<16x512xf32>
    %14 = tpu.matmul %11, %13, %cst_22 {dimension_numbers = #tpu.dot_dimension_numbers<[1], [0], [0], [1], [0, 0, 1, 1], [], []>} : vector<16x768xf32>, vector<768x512xf32>, vector<16x512xf32> -> vector<16x512xf32>
    %15 = arith.addf %9, %14 : vector<16x512xf32>
    %c0_23 = arith.constant 0 : index
    %c1_24 = arith.constant 1 : index
    %c0_25 = arith.constant 0 : index
    %16 = vector.load %arg11[%c0_23, %c1_24, %c0_25] : memref<1x18x768xf32, #tpu.memory_space<vmem>>, vector<1x16x768xf32>
    %17 = vector.shape_cast %16 : vector<1x16x768xf32> to vector<16x768xf32>
    %c1_26 = arith.constant 1 : index
    %c0_27 = arith.constant 0 : index
    %c0_28 = arith.constant 0 : index
    %18 = vector.load %arg2[%c1_26, %c0_27, %c0_28] : memref<3x768x512xf32, #tpu.memory_space<vmem>>, vector<1x768x512xf32>
    %19 = vector.shape_cast %18 : vector<1x768x512xf32> to vector<768x512xf32>
    %cst_29 = arith.constant dense<0.000000e+00> : vector<16x512xf32>
    %20 = tpu.matmul %17, %19, %cst_29 {dimension_numbers = #tpu.dot_dimension_numbers<[1], [0], [0], [1], [0, 0, 1, 1], [], []>} : vector<16x768xf32>, vector<768x512xf32>, vector<16x512xf32> -> vector<16x512xf32>
    %21 = arith.addf %15, %20 : vector<16x512xf32>
    %c0_30 = arith.constant 0 : index
    %c2 = arith.constant 2 : index
    %c0_31 = arith.constant 0 : index
    %22 = vector.load %arg11[%c0_30, %c2, %c0_31] : memref<1x18x768xf32, #tpu.memory_space<vmem>>, vector<1x16x768xf32>
    %23 = vector.shape_cast %22 : vector<1x16x768xf32> to vector<16x768xf32>
    %c2_32 = arith.constant 2 : index
    %c0_33 = arith.constant 0 : index
    %c0_34 = arith.constant 0 : index
    %24 = vector.load %arg2[%c2_32, %c0_33, %c0_34] : memref<3x768x512xf32, #tpu.memory_space<vmem>>, vector<1x768x512xf32>
    %25 = vector.shape_cast %24 : vector<1x768x512xf32> to vector<768x512xf32>
    %cst_35 = arith.constant dense<0.000000e+00> : vector<16x512xf32>
    %26 = tpu.matmul %23, %25, %cst_35 {dimension_numbers = #tpu.dot_dimension_numbers<[1], [0], [0], [1], [0, 0, 1, 1], [], []>} : vector<16x768xf32>, vector<768x512xf32>, vector<16x512xf32> -> vector<16x512xf32>
    %27 = arith.addf %21, %26 : vector<16x512xf32>
    %c0_36 = arith.constant 0 : index
    %c0_37 = arith.constant 0 : index
    %28 = vector.load %arg3[%c0_36, %c0_37] : memref<1x512xf32, #tpu.memory_space<vmem>>, vector<1x512xf32>
    %29 = vector.broadcast %28 : vector<1x512xf32> to vector<16x512xf32>
    %30 = arith.addf %27, %29 : vector<16x512xf32>
    %cst_38 = arith.constant 0.000000e+00 : f32
    %31 = vector.broadcast %cst_38 : f32 to vector<16x512xf32>
    %32 = arith.maximumf %30, %31 : vector<16x512xf32>
    %33 = vector.shape_cast %32 : vector<16x512xf32> to vector<1x16x512xf32>
    %cst_39 = arith.constant 0.000000e+00 : f32
    %34 = vector.broadcast %cst_39 : f32 to vector<1x1x768xf32>
    %c0_40 = arith.constant 0 : index
    %c0_41 = arith.constant 0 : index
    %c0_42 = arith.constant 0 : index
    %35 = vector.load %arg12[%c0_40, %c0_41, %c0_42] : memref<1x18x768xf32, #tpu.memory_space<vmem>>, vector<1x1x768xf32>
    tpu.vector_store %arg12[%c0_40, %c0_41, %c0_42], %34 {strides = array<i32>} : memref<1x18x768xf32, #tpu.memory_space<vmem>>, vector<1x1x768xf32>,
    %c0_43 = arith.constant 0 : index
    %c17_44 = arith.constant 17 : index
    %c0_45 = arith.constant 0 : index
    %36 = vector.load %arg12[%c0_43, %c17_44, %c0_45] : memref<1x18x768xf32, #tpu.memory_space<vmem>>, vector<1x1x768xf32>
    tpu.vector_store %arg12[%c0_43, %c17_44, %c0_45], %34 {strides = array<i32>} : memref<1x18x768xf32, #tpu.memory_space<vmem>>, vector<1x1x768xf32>,
    %cst_46 = arith.constant 0.000000e+00 : f32
    %37 = vector.broadcast %cst_46 : f32 to vector<1x16x128xf32>
    %c0_47 = arith.constant 0 : index
    %c1_48 = arith.constant 1 : index
    %c0_49 = arith.constant 0 : index
    %38 = vector.load %arg12[%c0_47, %c1_48, %c0_49] : memref<1x18x768xf32, #tpu.memory_space<vmem>>, vector<1x16x128xf32>
    tpu.vector_store %arg12[%c0_47, %c1_48, %c0_49], %37 {strides = array<i32>} : memref<1x18x768xf32, #tpu.memory_space<vmem>>, vector<1x16x128xf32>,
    %cst_50 = arith.constant 0.000000e+00 : f32
    %39 = vector.broadcast %cst_50 : f32 to vector<1x16x128xf32>
    %c0_51 = arith.constant 0 : index
    %c1_52 = arith.constant 1 : index
    %c640_53 = arith.constant 640 : index
    %40 = vector.load %arg12[%c0_51, %c1_52, %c640_53] : memref<1x18x768xf32, #tpu.memory_space<vmem>>, vector<1x16x128xf32>
    tpu.vector_store %arg12[%c0_51, %c1_52, %c640_53], %39 {strides = array<i32>} : memref<1x18x768xf32, #tpu.memory_space<vmem>>, vector<1x16x128xf32>,
    %c0_54 = arith.constant 0 : index
    %c1_55 = arith.constant 1 : index
    %c128_56 = arith.constant 128 : index
    %41 = vector.load %arg12[%c0_54, %c1_55, %c128_56] : memref<1x18x768xf32, #tpu.memory_space<vmem>>, vector<1x16x512xf32>
    tpu.vector_store %arg12[%c0_54, %c1_55, %c128_56], %33 {strides = array<i32>} : memref<1x18x768xf32, #tpu.memory_space<vmem>>, vector<1x16x512xf32>,
    %cst_57 = arith.constant 0.000000e+00 : f32
    %42 = vector.broadcast %cst_57 : f32 to vector<16x512xf32>
    %c0_58 = arith.constant 0 : index
    %c0_59 = arith.constant 0 : index
    %c0_60 = arith.constant 0 : index
    %43 = vector.load %arg12[%c0_58, %c0_59, %c0_60] : memref<1x18x768xf32, #tpu.memory_space<vmem>>, vector<1x16x768xf32>
    %44 = vector.shape_cast %43 : vector<1x16x768xf32> to vector<16x768xf32>
    %c0_61 = arith.constant 0 : index
    %c0_62 = arith.constant 0 : index
    %c0_63 = arith.constant 0 : index
    %45 = vector.load %arg4[%c0_61, %c0_62, %c0_63] : memref<3x768x512xf32, #tpu.memory_space<vmem>>, vector<1x768x512xf32>
    %46 = vector.shape_cast %45 : vector<1x768x512xf32> to vector<768x512xf32>
    %cst_64 = arith.constant dense<0.000000e+00> : vector<16x512xf32>
    %47 = tpu.matmul %44, %46, %cst_64 {dimension_numbers = #tpu.dot_dimension_numbers<[1], [0], [0], [1], [0, 0, 1, 1], [], []>} : vector<16x768xf32>, vector<768x512xf32>, vector<16x512xf32> -> vector<16x512xf32>
    %48 = arith.addf %42, %47 : vector<16x512xf32>
    %c0_65 = arith.constant 0 : index
    %c1_66 = arith.constant 1 : index
    %c0_67 = arith.constant 0 : index
    %49 = vector.load %arg12[%c0_65, %c1_66, %c0_67] : memref<1x18x768xf32, #tpu.memory_space<vmem>>, vector<1x16x768xf32>
    %50 = vector.shape_cast %49 : vector<1x16x768xf32> to vector<16x768xf32>
    %c1_68 = arith.constant 1 : index
    %c0_69 = arith.constant 0 : index
    %c0_70 = arith.constant 0 : index
    %51 = vector.load %arg4[%c1_68, %c0_69, %c0_70] : memref<3x768x512xf32, #tpu.memory_space<vmem>>, vector<1x768x512xf32>
    %52 = vector.shape_cast %51 : vector<1x768x512xf32> to vector<768x512xf32>
    %cst_71 = arith.constant dense<0.000000e+00> : vector<16x512xf32>
    %53 = tpu.matmul %50, %52, %cst_71 {dimension_numbers = #tpu.dot_dimension_numbers<[1], [0], [0], [1], [0, 0, 1, 1], [], []>} : vector<16x768xf32>, vector<768x512xf32>, vector<16x512xf32> -> vector<16x512xf32>
    %54 = arith.addf %48, %53 : vector<16x512xf32>
    %c0_72 = arith.constant 0 : index
    %c2_73 = arith.constant 2 : index
    %c0_74 = arith.constant 0 : index
    %55 = vector.load %arg12[%c0_72, %c2_73, %c0_74] : memref<1x18x768xf32, #tpu.memory_space<vmem>>, vector<1x16x768xf32>
    %56 = vector.shape_cast %55 : vector<1x16x768xf32> to vector<16x768xf32>
    %c2_75 = arith.constant 2 : index
    %c0_76 = arith.constant 0 : index
    %c0_77 = arith.constant 0 : index
    %57 = vector.load %arg4[%c2_75, %c0_76, %c0_77] : memref<3x768x512xf32, #tpu.memory_space<vmem>>, vector<1x768x512xf32>
    %58 = vector.shape_cast %57 : vector<1x768x512xf32> to vector<768x512xf32>
    %cst_78 = arith.constant dense<0.000000e+00> : vector<16x512xf32>
    %59 = tpu.matmul %56, %58, %cst_78 {dimension_numbers = #tpu.dot_dimension_numbers<[1], [0], [0], [1], [0, 0, 1, 1], [], []>} : vector<16x768xf32>, vector<768x512xf32>, vector<16x512xf32> -> vector<16x512xf32>
    %60 = arith.addf %54, %59 : vector<16x512xf32>
    %c0_79 = arith.constant 0 : index
    %c0_80 = arith.constant 0 : index
    %61 = vector.load %arg5[%c0_79, %c0_80] : memref<1x512xf32, #tpu.memory_space<vmem>>, vector<1x512xf32>
    %62 = vector.broadcast %61 : vector<1x512xf32> to vector<16x512xf32>
    %63 = arith.addf %60, %62 : vector<16x512xf32>
    %64 = vector.shape_cast %63 : vector<16x512xf32> to vector<1x16x512xf32>
    %cst_81 = arith.constant dense<0.000000e+00> : vector<1x512xf32>
    %65 = vector.multi_reduction <add>, %64, %cst_81 [1] : vector<1x16x512xf32> to vector<1x512xf32>
    %66 = vector.extract_strided_slice %65 {offsets = [0, 0], sizes = [1, 256], strides = [1, 1]} : vector<1x512xf32> to vector<1x256xf32>
    %67 = vector.extract_strided_slice %65 {offsets = [0, 256], sizes = [1, 256], strides = [1, 1]} : vector<1x512xf32> to vector<1x256xf32>
    %68 = arith.addf %66, %67 : vector<1x256xf32>
    %69 = vector.extract_strided_slice %68 {offsets = [0, 0], sizes = [1, 128], strides = [1, 1]} : vector<1x256xf32> to vector<1x128xf32>
    %70 = vector.extract_strided_slice %68 {offsets = [0, 128], sizes = [1, 128], strides = [1, 1]} : vector<1x256xf32> to vector<1x128xf32>
    %71 = arith.addf %69, %70 : vector<1x128xf32>
    %72 = vector.extract_strided_slice %71 {offsets = [0, 0], sizes = [1, 64], strides = [1, 1]} : vector<1x128xf32> to vector<1x64xf32>
    %73 = vector.extract_strided_slice %71 {offsets = [0, 64], sizes = [1, 64], strides = [1, 1]} : vector<1x128xf32> to vector<1x64xf32>
    %74 = arith.addf %72, %73 : vector<1x64xf32>
    %75 = vector.extract_strided_slice %74 {offsets = [0, 0], sizes = [1, 32], strides = [1, 1]} : vector<1x64xf32> to vector<1x32xf32>
    %76 = vector.extract_strided_slice %74 {offsets = [0, 32], sizes = [1, 32], strides = [1, 1]} : vector<1x64xf32> to vector<1x32xf32>
    %77 = arith.addf %75, %76 : vector<1x32xf32>
    %cst_82 = arith.constant 3.906250e-03 : f32
    %78 = vector.broadcast %cst_82 : f32 to vector<1x32xf32>
    %79 = arith.mulf %77, %78 : vector<1x32xf32>
    %80 = vector.shape_cast %79 : vector<1x32xf32> to vector<1x1x32xf32>
    %c0_83 = arith.constant 0 : index
    %c0_84 = arith.constant 0 : index
    %81 = vector.load %arg6[%c0_83, %c0_84] : memref<2x32xf32, #tpu.memory_space<vmem>>, vector<2x32xf32>
    %82 = vector.shape_cast %81 : vector<2x32xf32> to vector<1x2x32xf32>
    %83 = vector.broadcast %80 : vector<1x1x32xf32> to vector<1x2x32xf32>
    %84 = arith.mulf %83, %82 : vector<1x2x32xf32>
    %cst_85 = arith.constant dense<0.000000e+00> : vector<1x2xf32>
    %85 = vector.multi_reduction <add>, %84, %cst_85 [2] : vector<1x2x32xf32> to vector<1x2xf32>
    %c0_86 = arith.constant 0 : index
    %c0_87 = arith.constant 0 : index
    %86 = vector.load %arg7[%c0_86, %c0_87] : memref<1x2xf32, #tpu.memory_space<vmem>>, vector<1x2xf32>
    %87 = arith.addf %85, %86 : vector<1x2xf32>
    %cst_88 = arith.constant 0.000000e+00 : f32
    %88 = vector.broadcast %cst_88 : f32 to vector<1x2xf32>
    %89 = arith.maximumf %87, %88 : vector<1x2xf32>
    %90 = vector.shape_cast %89 : vector<1x2xf32> to vector<1x2x1xf32>
    %c0_89 = arith.constant 0 : index
    %c0_90 = arith.constant 0 : index
    %91 = vector.load %arg8[%c0_89, %c0_90] : memref<2x32xf32, #tpu.memory_space<vmem>>, vector<2x32xf32>
    %92 = vector.shape_cast %91 : vector<2x32xf32> to vector<1x2x32xf32>
    %93 = vector.broadcast %90 : vector<1x2x1xf32> to vector<1x2x32xf32>
    %94 = arith.mulf %93, %92 : vector<1x2x32xf32>
    %cst_91 = arith.constant dense<0.000000e+00> : vector<1x32xf32>
    %95 = vector.multi_reduction <add>, %94, %cst_91 [1] : vector<1x2x32xf32> to vector<1x32xf32>
    %c0_92 = arith.constant 0 : index
    %c0_93 = arith.constant 0 : index
    %96 = vector.load %arg9[%c0_92, %c0_93] : memref<1x32xf32, #tpu.memory_space<vmem>>, vector<1x32xf32>
    %97 = arith.addf %95, %96 : vector<1x32xf32>
    %98 = arith.negf %97 : vector<1x32xf32>
    %99 = math.exp %98 : vector<1x32xf32>
    %cst_94 = arith.constant 1.000000e+00 : f32
    %100 = vector.broadcast %cst_94 : f32 to vector<1x32xf32>
    %101 = arith.addf %100, %99 : vector<1x32xf32>
    %102 = arith.divf %100, %101 : vector<1x32xf32>
    %103 = tpu.concatenate %102, %102, %102, %102, %102, %102, %102, %102, %102, %102, %102, %102, %102, %102, %102, %102 in 1 : vector<1x32xf32>, vector<1x32xf32>, vector<1x32xf32>, vector<1x32xf32>, vector<1x32xf32>, vector<1x32xf32>, vector<1x32xf32>, vector<1x32xf32>, vector<1x32xf32>, vector<1x32xf32>, vector<1x32xf32>, vector<1x32xf32>, vector<1x32xf32>, vector<1x32xf32>, vector<1x32xf32>, vector<1x32xf32> -> vector<1x512xf32>
    %104 = vector.shape_cast %103 : vector<1x512xf32> to vector<1x1x512xf32>
    %105 = vector.broadcast %104 : vector<1x1x512xf32> to vector<1x16x512xf32>
    %106 = arith.mulf %64, %105 : vector<1x16x512xf32>
    %107 = arith.addf %106, %0 : vector<1x16x512xf32>
    %cst_95 = arith.constant 0.000000e+00 : f32
    %108 = vector.broadcast %cst_95 : f32 to vector<1x16x512xf32>
    %109 = arith.maximumf %107, %108 : vector<1x16x512xf32>
    %c0_96 = arith.constant 0 : index
    %c0_97 = arith.constant 0 : index
    %c0_98 = arith.constant 0 : index
    %110 = vector.load %arg10[%c0_96, %c0_97, %c0_98] : memref<1x16x512xf32, #tpu.memory_space<vmem>>, vector<1x16x512xf32>
    tpu.vector_store %arg10[%c0_96, %c0_97, %c0_98], %109 {strides = array<i32>} : memref<1x16x512xf32, #tpu.memory_space<vmem>>, vector<1x16x512xf32>,
    return
  }
  func.func @transform_0(%arg0: i32) -> (i32, i32, i32) {
    %c0_i32 = arith.constant 0 : i32
    %c0_i32_0 = arith.constant 0 : i32
    %c0_i32_1 = arith.constant 0 : i32
    return %arg0, %c0_i32, %c0_i32_0 : i32, i32, i32
  }
  func.func @transform_1(%arg0: i32) -> (i32, i32, i32) {
    %c0_i32 = arith.constant 0 : i32
    %c0_i32_0 = arith.constant 0 : i32
    %c0_i32_1 = arith.constant 0 : i32
    %c0_i32_2 = arith.constant 0 : i32
    return %c0_i32, %c0_i32_0, %c0_i32_1 : i32, i32, i32
  }
  func.func @transform_2(%arg0: i32) -> (i32, i32) {
    %c0_i32 = arith.constant 0 : i32
    %c0_i32_0 = arith.constant 0 : i32
    %c0_i32_1 = arith.constant 0 : i32
    return %c0_i32, %c0_i32_0 : i32, i32
  }
  func.func @transform_3(%arg0: i32) -> (i32, i32, i32) {
    %c0_i32 = arith.constant 0 : i32
    %c0_i32_0 = arith.constant 0 : i32
    %c0_i32_1 = arith.constant 0 : i32
    %c0_i32_2 = arith.constant 0 : i32
    return %c0_i32, %c0_i32_0, %c0_i32_1 : i32, i32, i32
  }
  func.func @transform_4(%arg0: i32) -> (i32, i32) {
    %c0_i32 = arith.constant 0 : i32
    %c0_i32_0 = arith.constant 0 : i32
    %c0_i32_1 = arith.constant 0 : i32
    return %c0_i32, %c0_i32_0 : i32, i32
  }
  func.func @transform_5(%arg0: i32) -> (i32, i32) {
    %c0_i32 = arith.constant 0 : i32
    %c0_i32_0 = arith.constant 0 : i32
    %c0_i32_1 = arith.constant 0 : i32
    return %c0_i32, %c0_i32_0 : i32, i32
  }
  func.func @transform_6(%arg0: i32) -> (i32, i32) {
    %c0_i32 = arith.constant 0 : i32
    %c0_i32_0 = arith.constant 0 : i32
    %c0_i32_1 = arith.constant 0 : i32
    return %c0_i32, %c0_i32_0 : i32, i32
  }
  func.func @transform_7(%arg0: i32) -> (i32, i32) {
    %c0_i32 = arith.constant 0 : i32
    %c0_i32_0 = arith.constant 0 : i32
    %c0_i32_1 = arith.constant 0 : i32
    return %c0_i32, %c0_i32_0 : i32, i32
  }
  func.func @transform_8(%arg0: i32) -> (i32, i32) {
    %c0_i32 = arith.constant 0 : i32
    %c0_i32_0 = arith.constant 0 : i32
    %c0_i32_1 = arith.constant 0 : i32
    return %c0_i32, %c0_i32_0 : i32, i32
  }
  func.func @transform_9(%arg0: i32) -> (i32, i32, i32) {
    %c0_i32 = arith.constant 0 : i32
    %c0_i32_0 = arith.constant 0 : i32
    %c0_i32_1 = arith.constant 0 : i32
    return %arg0, %c0_i32, %c0_i32_0 : i32, i32, i32
  }
}

</mosaic_0001>

<llo_original>
// kernel: tpu_custom_call.1
$region0: #{tpu_custom_call.1}
  #allocation0 [shape = 'u32[]', space=smem, size = 0x4, offset = 0x4, fixed_abs, tag = 'smem constant byte address 0x4 - core index']
  #allocation1 [shape = 'u32[144,128]{1,0:T(1,128)}', space=vmem, size = 0x12000, scoped, tag = 'internal scratch']
  #allocation2 [shape = 'f32[1,18,768]{2,1,0:T(8,128)}', space=vmem, size = 0x12000, scoped, tag = 'scratch operand']
  #allocation3 [shape = 'f32[1,18,768]{2,1,0:T(8,128)}', space=vmem, size = 0x12000, scoped, tag = 'scratch operand']
  %s0 = inlined_call_operand.hbm [shape: f32[2,16,512], index: 0, kind: input, shape index: {}]
  %s1 = inlined_call_operand.hbm [shape: f32[3,768,512], index: 1, kind: input, shape index: {}]
  %s2 = inlined_call_operand.hbm [shape: f32[1,512], index: 2, kind: input, shape index: {}]
  %s3 = inlined_call_operand.hbm [shape: f32[3,768,512], index: 3, kind: input, shape index: {}]
  %s4 = inlined_call_operand.hbm [shape: f32[1,512], index: 4, kind: input, shape index: {}]
  %s5 = inlined_call_operand.hbm [shape: f32[2,32], index: 5, kind: input, shape index: {}]
  %s6 = inlined_call_operand.hbm [shape: f32[1,2], index: 6, kind: input, shape index: {}]
  %s7 = inlined_call_operand.hbm [shape: f32[2,32], index: 7, kind: input, shape index: {}]
  %s8 = inlined_call_operand.hbm [shape: f32[1,32], index: 8, kind: input, shape index: {}]
  %s9 = inlined_call_operand.hbm [shape: f32[2,16,512], index: 9, kind: output, shape index: {}]
  %s10 = sld [smem:[#allocation0]]
  $region105: #{tpu_custom_call.1} parent=0
    _
  %s12 = ssub.s32 1, %s10
  %s13 = scalar_select 0, %s12, %s10
  $region1: #{tpu_custom_call.1} parent=0
    #allocation4 [shape = 'u8[65536]{0}', space=vmem, size = 0x10000, scoped, tag = 'input window, operand 0']
    #allocation5 [shape = 's32[2]{0}', space=sflag, size = 0x8, scoped, tag = 'scoped memory for tpu_custom_call.1']
    #allocation6 [shape = 's32[2]{0}', space=sflag, size = 0x8, scoped, tag = 'scoped memory for tpu_custom_call.1']
    #allocation7 [shape = 'u8[4718592]{0}', space=vmem, size = 0x480000, scoped, tag = 'input window, operand 1, single buffered']
    #allocation8 [shape = 's32[1]{0}', space=sflag, size = 0x4, scoped, tag = 'scoped memory for tpu_custom_call.1']
    #allocation9 [shape = 'u8[2048]{0}', space=vmem, size = 0x800, scoped, tag = 'input window, operand 2, single buffered']
    #allocation10 [shape = 'u8[4718592]{0}', space=vmem, size = 0x480000, scoped, tag = 'input window, operand 3, single buffered']
    #allocation11 [shape = 's32[1]{0}', space=sflag, size = 0x4, scoped, tag = 'scoped memory for tpu_custom_call.1']
    #allocation12 [shape = 'u8[2048]{0}', space=vmem, size = 0x800, scoped, tag = 'input window, operand 4, single buffered']
    #allocation13 [shape = 'u8[1024]{0}', space=vmem, size = 0x400, scoped, tag = 'input window, operand 5, single buffered']
    #allocation14 [shape = 's32[1]{0}', space=sflag, size = 0x4, scoped, tag = 'scoped memory for tpu_custom_call.1']
    #allocation15 [shape = 'u8[512]{0}', space=vmem, size = 0x400, scoped, tag = 'input window, operand 6, single buffered']
    #allocation16 [shape = 'u8[1024]{0}', space=vmem, size = 0x400, scoped, tag = 'input window, operand 7, single buffered']
    #allocation17 [shape = 's32[1]{0}', space=sflag, size = 0x4, scoped, tag = 'scoped memory for tpu_custom_call.1']
    #allocation18 [shape = 'u8[512]{0}', space=vmem, size = 0x400, scoped, tag = 'input window, operand 8, single buffered']
    #allocation19 [shape = 'u8[65536]{0}', space=vmem, size = 0x10000, scoped, tag = 'output window, operand 0']
    %14 = vsyncpa [#allocation5], 0
    %s15 = scalar_lea.sflag [#allocation5], 1
    %16 = vsyncpa %s15, 0
    %17 = vsyncpa [#allocation8], 0
    %18 = vsyncpa [#allocation11], 0
    %19 = vsyncpa [#allocation14], 0
    %20 = vsyncpa [#allocation17], 0
    %21 = vsyncpa [#allocation6], 0
    %s22 = scalar_lea.sflag [#allocation6], 1
    %23 = vsyncpa %s22, 0
    loop: start=0, step=1, limit=4
    $region2: #{tpu_custom_call.1} parent=1 // loop_pre_header
      _
    $region3: #{tpu_custom_call.1} parent=1 // loop_header
      %s25 = sphi 0, %s29
      %p26 = scmp.ge.s32.totalorder %s25, 4
      %s35 = sphi 0, %s37
      %s38 = sphi 0, %s35
      %s39 = sphi 0, %s38
      %s55 = sphi 0, %s39
      %s59 = sphi 0, %s59
      %s61 = sphi 0, %s59
      %s62 = sphi 0, %s61
      %s76 = sphi 0, %s62
      %s80 = sphi 0, %s80
      %s82 = sphi 0, %s80
      %s83 = sphi 0, %s82
      %s97 = sphi 0, %s83
      %s101 = sphi 0, %s101
      %s103 = sphi 0, %s101
      %s104 = sphi 0, %s103
      %s118 = sphi 0, %s104
      %s122 = sphi 0, %s122
      %s124 = sphi 0, %s122
      %s125 = sphi 0, %s124
      %s139 = sphi 0, %s125
      %s143 = sphi 0, %s143
      %s145 = sphi 0, %s143
      %s146 = sphi 0, %s145
      %s160 = sphi 0, %s146
      %s164 = sphi 0, %s164
      %s166 = sphi 0, %s164
      %s167 = sphi 0, %s166
      %s181 = sphi 0, %s167
      %s185 = sphi 0, %s185
      %s187 = sphi 0, %s185
      %s188 = sphi 0, %s187
      %s202 = sphi 0, %s188
      %s206 = sphi 0, %s206
      %s208 = sphi 0, %s206
      %s209 = sphi 0, %s208
      %s223 = sphi 0, %s209
      %s229 = sphi 0, %s231
      %s232 = sphi 0, %s229
      %s233 = sphi 0, %s232
      %s249 = sphi 0, %s233
    $region4: #{tpu_custom_call.1} parent=1 // loop_header_branch
      %28 = sbr.rel (%p26) target = $region8
    $region5: #{tpu_custom_call.1} parent=1 // loop_body
      %s30 = ssub.s32 %s25, 1
      %s31 = ssub.s32 %s25, 2
      %s32 = sadd.s32 %s25, 1
      %s33 = ssub.s32 %s25, %s32
      %p34 = scmp.eq.s32.totalorder %s33, 0
      %s36 = sadd.s32 %s35, 1
      %s37 = scalar_select %p34, %s35, %s36
      %p40 = pneg %p34
      %p41 = scmp.eq.s32.totalorder %s25, 1
      %p42 = por %p40, %p41
      %p43 = scmp.ne.s32.totalorder %s35, %s38
      %p44 = scmp.eq.s32.totalorder %s25, 0
      %p45 = por %p43, %p44
      %p46 = scmp.ne.s32.totalorder %s35, %s38
      %p47 = scmp.eq.s32.totalorder %s30, 1
      %p48 = por %p46, %p47
      %p49 = scmp.ne.s32.totalorder %s38, %s39
      %p50 = scmp.eq.s32.totalorder %s30, 0
      %p51 = por %p49, %p50
      %p52 = scmp.ne.s32.totalorder %s38, %s39
      %p53 = scmp.eq.s32.totalorder %s31, 1
      %p54 = por %p52, %p53
      %p56 = scmp.ne.s32.totalorder %s39, %s55
      %p57 = scmp.eq.s32.totalorder %s31, 0
      %p58 = por %p56, %p57
      %s60 = sadd.s32 %s59, 1
      %p63 = scmp.eq.s32.totalorder %s25, 1
      %p64 = scmp.ne.s32.totalorder %s59, %s61
      %p65 = scmp.eq.s32.totalorder %s25, 0
      %p66 = por %p64, %p65
      %p67 = scmp.ne.s32.totalorder %s59, %s61
      %p68 = scmp.eq.s32.totalorder %s30, 1
      %p69 = por %p67, %p68
      %p70 = scmp.ne.s32.totalorder %s61, %s62
      %p71 = scmp.eq.s32.totalorder %s30, 0
      %p72 = por %p70, %p71
      %p73 = scmp.ne.s32.totalorder %s61, %s62
      %p74 = scmp.eq.s32.totalorder %s31, 1
      %p75 = por %p73, %p74
      %p77 = scmp.ne.s32.totalorder %s62, %s76
      %p78 = scmp.eq.s32.totalorder %s31, 0
      %p79 = por %p77, %p78
      %s81 = sadd.s32 %s80, 1
      %p84 = scmp.eq.s32.totalorder %s25, 1
      %p85 = scmp.ne.s32.totalorder %s80, %s82
      %p86 = scmp.eq.s32.totalorder %s25, 0
      %p87 = por %p85, %p86
      %p88 = scmp.ne.s32.totalorder %s80, %s82
      %p89 = scmp.eq.s32.totalorder %s30, 1
      %p90 = por %p88, %p89
      %p91 = scmp.ne.s32.totalorder %s82, %s83
      %p92 = scmp.eq.s32.totalorder %s30, 0
      %p93 = por %p91, %p92
      %p94 = scmp.ne.s32.totalorder %s82, %s83
      %p95 = scmp.eq.s32.totalorder %s31, 1
      %p96 = por %p94, %p95
      %p98 = scmp.ne.s32.totalorder %s83, %s97
      %p99 = scmp.eq.s32.totalorder %s31, 0
      %p100 = por %p98, %p99
      %s102 = sadd.s32 %s101, 1
      %p105 = scmp.eq.s32.totalorder %s25, 1
      %p106 = scmp.ne.s32.totalorder %s101, %s103
      %p107 = scmp.eq.s32.totalorder %s25, 0
      %p108 = por %p106, %p107
      %p109 = scmp.ne.s32.totalorder %s101, %s103
      %p110 = scmp.eq.s32.totalorder %s30, 1
      %p111 = por %p109, %p110
      %p112 = scmp.ne.s32.totalorder %s103, %s104
      %p113 = scmp.eq.s32.totalorder %s30, 0
      %p114 = por %p112, %p113
      %p115 = scmp.ne.s32.totalorder %s103, %s104
      %p116 = scmp.eq.s32.totalorder %s31, 1
      %p117 = por %p115, %p116
      %p119 = scmp.ne.s32.totalorder %s104, %s118
      %p120 = scmp.eq.s32.totalorder %s31, 0
      %p121 = por %p119, %p120
      %s123 = sadd.s32 %s122, 1
      %p126 = scmp.eq.s32.totalorder %s25, 1
      %p127 = scmp.ne.s32.totalorder %s122, %s124
      %p128 = scmp.eq.s32.totalorder %s25, 0
      %p129 = por %p127, %p128
      %p130 = scmp.ne.s32.totalorder %s122, %s124
      %p131 = scmp.eq.s32.totalorder %s30, 1
      %p132 = por %p130, %p131
      %p133 = scmp.ne.s32.totalorder %s124, %s125
      %p134 = scmp.eq.s32.totalorder %s30, 0
      %p135 = por %p133, %p134
      %p136 = scmp.ne.s32.totalorder %s124, %s125
      %p137 = scmp.eq.s32.totalorder %s31, 1
      %p138 = por %p136, %p137
      %p140 = scmp.ne.s32.totalorder %s125, %s139
      %p141 = scmp.eq.s32.totalorder %s31, 0
      %p142 = por %p140, %p141
      %s144 = sadd.s32 %s143, 1
      %p147 = scmp.eq.s32.totalorder %s25, 1
      %p148 = scmp.ne.s32.totalorder %s143, %s145
      %p149 = scmp.eq.s32.totalorder %s25, 0
      %p150 = por %p148, %p149
      %p151 = scmp.ne.s32.totalorder %s143, %s145
      %p152 = scmp.eq.s32.totalorder %s30, 1
      %p153 = por %p151, %p152
      %p154 = scmp.ne.s32.totalorder %s145, %s146
      %p155 = scmp.eq.s32.totalorder %s30, 0
      %p156 = por %p154, %p155
      %p157 = scmp.ne.s32.totalorder %s145, %s146
      %p158 = scmp.eq.s32.totalorder %s31, 1
      %p159 = por %p157, %p158
      %p161 = scmp.ne.s32.totalorder %s146, %s160
      %p162 = scmp.eq.s32.totalorder %s31, 0
      %p163 = por %p161, %p162
      %s165 = sadd.s32 %s164, 1
      %p168 = scmp.eq.s32.totalorder %s25, 1
      %p169 = scmp.ne.s32.totalorder %s164, %s166
      %p170 = scmp.eq.s32.totalorder %s25, 0
      %p171 = por %p169, %p170
      %p172 = scmp.ne.s32.totalorder %s164, %s166
      %p173 = scmp.eq.s32.totalorder %s30, 1
      %p174 = por %p172, %p173
      %p175 = scmp.ne.s32.totalorder %s166, %s167
      %p176 = scmp.eq.s32.totalorder %s30, 0
      %p177 = por %p175, %p176
      %p178 = scmp.ne.s32.totalorder %s166, %s167
      %p179 = scmp.eq.s32.totalorder %s31, 1
      %p180 = por %p178, %p179
      %p182 = scmp.ne.s32.totalorder %s167, %s181
      %p183 = scmp.eq.s32.totalorder %s31, 0
      %p184 = por %p182, %p183
      %s186 = sadd.s32 %s185, 1
      %p189 = scmp.eq.s32.totalorder %s25, 1
      %p190 = scmp.ne.s32.totalorder %s185, %s187
      %p191 = scmp.eq.s32.totalorder %s25, 0
      %p192 = por %p190, %p191
      %p193 = scmp.ne.s32.totalorder %s185, %s187
      %p194 = scmp.eq.s32.totalorder %s30, 1
      %p195 = por %p193, %p194
      %p196 = scmp.ne.s32.totalorder %s187, %s188
      %p197 = scmp.eq.s32.totalorder %s30, 0
      %p198 = por %p196, %p197
      %p199 = scmp.ne.s32.totalorder %s187, %s188
      %p200 = scmp.eq.s32.totalorder %s31, 1
      %p201 = por %p199, %p200
      %p203 = scmp.ne.s32.totalorder %s188, %s202
      %p204 = scmp.eq.s32.totalorder %s31, 0
      %p205 = por %p203, %p204
      %s207 = sadd.s32 %s206, 1
      %p210 = scmp.eq.s32.totalorder %s25, 1
      %p211 = scmp.ne.s32.totalorder %s206, %s208
      %p212 = scmp.eq.s32.totalorder %s25, 0
      %p213 = por %p211, %p212
      %p214 = scmp.ne.s32.totalorder %s206, %s208
      %p215 = scmp.eq.s32.totalorder %s30, 1
      %p216 = por %p214, %p215
      %p217 = scmp.ne.s32.totalorder %s208, %s209
      %p218 = scmp.eq.s32.totalorder %s30, 0
      %p219 = por %p217, %p218
      %p220 = scmp.ne.s32.totalorder %s208, %s209
      %p221 = scmp.eq.s32.totalorder %s31, 1
      %p222 = por %p220, %p221
      %p224 = scmp.ne.s32.totalorder %s209, %s223
      %p225 = scmp.eq.s32.totalorder %s31, 0
      %p226 = por %p224, %p225
      %s227 = ssub.s32 %s25, %s32
      %p228 = scmp.eq.s32.totalorder %s227, 0
      %s230 = sadd.s32 %s229, 1
      %s231 = scalar_select %p228, %s229, %s230
      %p234 = pneg %p228
      %p235 = scmp.eq.s32.totalorder %s25, 1
      %p236 = por %p234, %p235
      %p237 = scmp.ne.s32.totalorder %s229, %s232
      %p238 = scmp.eq.s32.totalorder %s25, 0
      %p239 = por %p237, %p238
      %p240 = scmp.ne.s32.totalorder %s229, %s232
      %p241 = scmp.eq.s32.totalorder %s30, 1
      %p242 = por %p240, %p241
      %p243 = scmp.ne.s32.totalorder %s232, %s233
      %p244 = scmp.eq.s32.totalorder %s30, 0
      %p245 = por %p243, %p244
      %p246 = scmp.ne.s32.totalorder %s232, %s233
      %p247 = scmp.eq.s32.totalorder %s31, 1
      %p248 = por %p246, %p247
      %p250 = scmp.ne.s32.totalorder %s233, %s249
      %p251 = scmp.eq.s32.totalorder %s31, 0
      %p252 = por %p250, %p251
      %p253 = scmp.le.s32.totalorder 1, %s25
      %p254 = scmp.lt.s32.totalorder %s25, 3
      %p255 = pnand %p253, %p254
      %p256 = pneg %p255
      // Predicated region
      $region9: #{tpu_custom_call.1} parent=5 // pred_check
        _
      $region10: #{tpu_custom_call.1} parent=5 // pred_check_branch
        %258 = sbr.rel (%p255) target = $region12
      $region11: #{tpu_custom_call.1} parent=5 // pred_region
        %s259 = ssub.s32 %s25, 1
        // Predicated region
        $region13: #{tpu_custom_call.1} parent=11 // pred_check
          %p260 = pneg %p72
        $region14: #{tpu_custom_call.1} parent=11 // pred_check_branch
          %262 = sbr.rel (%p260) target = $region16
        $region15: #{tpu_custom_call.1} parent=11 // pred_region
          %s264 = ssub.s32 147456, 147456
          %265 = vsyncadd [#allocation8], %s264
          %s266 = sshll.u32 [#allocation7], 4
          %s267 = int_to_ptr.vmem [resolvable:$true] %s266
          %272 = dma.hbm_to_vmem [thread:$0]  %s1, 147456, %s267, [#allocation8], 512, 512, 32
        $region16: #{tpu_custom_call.1} parent=11 // pred_fallthru
          _
        // Predicated region
        $region17: #{tpu_custom_call.1} parent=11 // pred_check
          %p273 = pneg %p93
        $region18: #{tpu_custom_call.1} parent=11 // pred_check_branch
          %275 = sbr.rel (%p273) target = $region20
        $region19: #{tpu_custom_call.1} parent=11 // pred_region
          %s277 = ssub.s32 64, 64
          %278 = vsyncadd [#allocation8], %s277
          %s280 = sshll.u32 [#allocation9], 4
          %s281 = int_to_ptr.vmem [resolvable:$true] %s280
          %283 = dma.hbm_to_vmem [thread:$0]  %s2, 64, %s281, [#allocation8]
        $region20: #{tpu_custom_call.1} parent=11 // pred_fallthru
          _
        // Predicated region
        $region21: #{tpu_custom_call.1} parent=11 // pred_check
          %p284 = pneg %p114
        $region22: #{tpu_custom_call.1} parent=11 // pred_check_branch
          %286 = sbr.rel (%p284) target = $region24
        $region23: #{tpu_custom_call.1} parent=11 // pred_region
          %s288 = ssub.s32 147456, 147456
          %289 = vsyncadd [#allocation11], %s288
          %s290 = sshll.u32 [#allocation10], 4
          %s291 = int_to_ptr.vmem [resolvable:$true] %s290
          %296 = dma.hbm_to_vmem [thread:$0]  %s3, 147456, %s291, [#allocation11], 512, 512, 32
        $region24: #{tpu_custom_call.1} parent=11 // pred_fallthru
          _
        // Predicated region
        $region25: #{tpu_custom_call.1} parent=11 // pred_check
          %p297 = pneg %p135
        $region26: #{tpu_custom_call.1} parent=11 // pred_check_branch
          %299 = sbr.rel (%p297) target = $region28
        $region27: #{tpu_custom_call.1} parent=11 // pred_region
          %s301 = ssub.s32 64, 64
          %302 = vsyncadd [#allocation11], %s301
          %s304 = sshll.u32 [#allocation12], 4
          %s305 = int_to_ptr.vmem [resolvable:$true] %s304
          %307 = dma.hbm_to_vmem [thread:$0]  %s4, 64, %s305, [#allocation11]
        $region28: #{tpu_custom_call.1} parent=11 // pred_fallthru
          _
        // Predicated region
        $region29: #{tpu_custom_call.1} parent=11 // pred_check
          %p308 = pneg %p156
        $region30: #{tpu_custom_call.1} parent=11 // pred_check_branch
          %310 = sbr.rel (%p308) target = $region32
        $region31: #{tpu_custom_call.1} parent=11 // pred_region
          %s312 = ssub.s32 32, 32
          %313 = vsyncadd [#allocation14], %s312
          %s315 = sshll.u32 [#allocation13], 4
          %s316 = int_to_ptr.vmem [resolvable:$true] %s315
          %318 = dma.hbm_to_vmem [thread:$0]  %s5, 32, %s316, [#allocation14]
        $region32: #{tpu_custom_call.1} parent=11 // pred_fallthru
          _
        // Predicated region
        $region33: #{tpu_custom_call.1} parent=11 // pred_check
          %p319 = pneg %p177
        $region34: #{tpu_custom_call.1} parent=11 // pred_check_branch
          %321 = sbr.rel (%p319) target = $region36
        $region35: #{tpu_custom_call.1} parent=11 // pred_region
          %s323 = ssub.s32 16, 16
          %324 = vsyncadd [#allocation14], %s323
          %s326 = sshll.u32 [#allocation15], 4
          %s327 = int_to_ptr.vmem [resolvable:$true] %s326
          %329 = dma.hbm_to_vmem [thread:$0]  %s6, 16, %s327, [#allocation14]
        $region36: #{tpu_custom_call.1} parent=11 // pred_fallthru
          _
        // Predicated region
        $region37: #{tpu_custom_call.1} parent=11 // pred_check
          %p330 = pneg %p198
        $region38: #{tpu_custom_call.1} parent=11 // pred_check_branch
          %332 = sbr.rel (%p330) target = $region40
        $region39: #{tpu_custom_call.1} parent=11 // pred_region
          %s334 = ssub.s32 32, 32
          %335 = vsyncadd [#allocation17], %s334
          %s337 = sshll.u32 [#allocation16], 4
          %s338 = int_to_ptr.vmem [resolvable:$true] %s337
          %340 = dma.hbm_to_vmem [thread:$0]  %s7, 32, %s338, [#allocation17]
        $region40: #{tpu_custom_call.1} parent=11 // pred_fallthru
          _
        // Predicated region
        $region41: #{tpu_custom_call.1} parent=11 // pred_check
          %p341 = pneg %p219
        $region42: #{tpu_custom_call.1} parent=11 // pred_check_branch
          %343 = sbr.rel (%p341) target = $region44
        $region43: #{tpu_custom_call.1} parent=11 // pred_region
          %s345 = ssub.s32 16, 16
          %346 = vsyncadd [#allocation17], %s345
          %s348 = sshll.u32 [#allocation18], 4
          %s349 = int_to_ptr.vmem [resolvable:$true] %s348
          %351 = dma.hbm_to_vmem [thread:$0]  %s8, 16, %s349, [#allocation17]
        $region44: #{tpu_custom_call.1} parent=11 // pred_fallthru
          _
      $region12: #{tpu_custom_call.1} parent=5 // pred_fallthru
        _
      %p352 = scmp.lt.s32.totalorder %s25, 2
      // Predicated region
      $region45: #{tpu_custom_call.1} parent=5 // pred_check
        %p353 = pneg %p352
      $region46: #{tpu_custom_call.1} parent=5 // pred_check_branch
        %355 = sbr.rel (%p353) target = $region48
      $region47: #{tpu_custom_call.1} parent=5 // pred_region
        // Predicated region
        $region49: #{tpu_custom_call.1} parent=47 // pred_check
          %p356 = pneg %p45
        $region50: #{tpu_custom_call.1} parent=47 // pred_check_branch
          %358 = sbr.rel (%p356) target = $region52
        $region51: #{tpu_custom_call.1} parent=47 // pred_region
          %s359 = sand.u32 %s35, 1
          %s360 = scalar_lea.sflag [#allocation5], %s359
          %s361 = sand.u32 %s35, 1
          %s362 = smul.addr %s361, 64
          %s363 = scalar_lea.vmem [#allocation4], %s362
          %s365 = ssub.s32 1024, 1024
          %366 = vsyncadd %s360, %s365
          %s367 = smul.addr %s25, 8
          %s368 = smul.addr %s367, 128
          %s369 = scalar_lea.hbm %s0, %s368
          %s370 = sshll.u32 %s363, 4
          %s371 = int_to_ptr.vmem [resolvable:$true] %s370
          %376 = dma.hbm_to_vmem [thread:$0]  %s369, 1024, %s371, %s360, 512, 512, 32
        $region52: #{tpu_custom_call.1} parent=47 // pred_fallthru
          _
      $region48: #{tpu_custom_call.1} parent=5 // pred_fallthru
        _
      %p377 = scmp.le.s32.totalorder 1, %s25
      %p378 = scmp.lt.s32.totalorder %s25, 3
      %p379 = pnand %p377, %p378
      %p380 = pneg %p379
      // Predicated region
      $region53: #{tpu_custom_call.1} parent=5 // pred_check
        _
      $region54: #{tpu_custom_call.1} parent=5 // pred_check_branch
        %382 = sbr.rel (%p379) target = $region56
      $region55: #{tpu_custom_call.1} parent=5 // pred_region
        %s383 = ssub.s32 %s25, 1
        %s384 = sand.u32 %s38, 1
        %s385 = scalar_lea.sflag [#allocation5], %s384
        %s386 = sand.u32 %s38, 1
        %s387 = smul.addr %s386, 64
        %s388 = scalar_lea.vmem [#allocation4], %s387
        // Predicated region
        $region57: #{tpu_custom_call.1} parent=55 // pred_check
          %p389 = pneg %p51
        $region58: #{tpu_custom_call.1} parent=55 // pred_check_branch
          %391 = sbr.rel (%p389) target = $region60
        $region59: #{tpu_custom_call.1} parent=55 // pred_region
          %392 = dma.done %s385, 1024
        $region60: #{tpu_custom_call.1} parent=55 // pred_fallthru
          _
        // Predicated region
        $region61: #{tpu_custom_call.1} parent=55 // pred_check
          %p393 = pneg %p72
        $region62: #{tpu_custom_call.1} parent=55 // pred_check_branch
          %395 = sbr.rel (%p393) target = $region64
        $region63: #{tpu_custom_call.1} parent=55 // pred_region
          %396 = dma.done [#allocation8], 147456
        $region64: #{tpu_custom_call.1} parent=55 // pred_fallthru
          _
        // Predicated region
        $region65: #{tpu_custom_call.1} parent=55 // pred_check
          %p397 = pneg %p93
        $region66: #{tpu_custom_call.1} parent=55 // pred_check_branch
          %399 = sbr.rel (%p397) target = $region68
        $region67: #{tpu_custom_call.1} parent=55 // pred_region
          %400 = dma.done [#allocation8], 64
        $region68: #{tpu_custom_call.1} parent=55 // pred_fallthru
          _
        // Predicated region
        $region69: #{tpu_custom_call.1} parent=55 // pred_check
          %p401 = pneg %p114
        $region70: #{tpu_custom_call.1} parent=55 // pred_check_branch
          %403 = sbr.rel (%p401) target = $region72
        $region71: #{tpu_custom_call.1} parent=55 // pred_region
          %404 = dma.done [#allocation11], 147456
        $region72: #{tpu_custom_call.1} parent=55 // pred_fallthru
          _
        // Predicated region
        $region73: #{tpu_custom_call.1} parent=55 // pred_check
          %p405 = pneg %p135
        $region74: #{tpu_custom_call.1} parent=55 // pred_check_branch
          %407 = sbr.rel (%p405) target = $region76
        $region75: #{tpu_custom_call.1} parent=55 // pred_region
          %408 = dma.done [#allocation11], 64
        $region76: #{tpu_custom_call.1} parent=55 // pred_fallthru
          _
        // Predicated region
        $region77: #{tpu_custom_call.1} parent=55 // pred_check
          %p409 = pneg %p156
        $region78: #{tpu_custom_call.1} parent=55 // pred_check_branch
          %411 = sbr.rel (%p409) target = $region80
        $region79: #{tpu_custom_call.1} parent=55 // pred_region
          %412 = dma.done [#allocation14], 32
        $region80: #{tpu_custom_call.1} parent=55 // pred_fallthru
          _
        // Predicated region
        $region81: #{tpu_custom_call.1} parent=55 // pred_check
          %p413 = pneg %p177
        $region82: #{tpu_custom_call.1} parent=55 // pred_check_branch
          %415 = sbr.rel (%p413) target = $region84
        $region83: #{tpu_custom_call.1} parent=55 // pred_region
          %416 = dma.done [#allocation14], 16
        $region84: #{tpu_custom_call.1} parent=55 // pred_fallthru
          _
        // Predicated region
        $region85: #{tpu_custom_call.1} parent=55 // pred_check
          %p417 = pneg %p198
        $region86: #{tpu_custom_call.1} parent=55 // pred_check_branch
          %419 = sbr.rel (%p417) target = $region88
        $region87: #{tpu_custom_call.1} parent=55 // pred_region
          %420 = dma.done [#allocation17], 32
        $region88: #{tpu_custom_call.1} parent=55 // pred_fallthru
          _
        // Predicated region
        $region89: #{tpu_custom_call.1} parent=55 // pred_check
          %p421 = pneg %p219
        $region90: #{tpu_custom_call.1} parent=55 // pred_check_branch
          %423 = sbr.rel (%p421) target = $region92
        $region91: #{tpu_custom_call.1} parent=55 // pred_region
          %424 = dma.done [#allocation17], 16
        $region92: #{tpu_custom_call.1} parent=55 // pred_fallthru
          _
        %s425 = sand.u32 %s38, 1
        %s426 = scalar_lea.sflag [#allocation5], %s425
        %s427 = sand.u32 %s38, 1
        %s428 = smul.addr %s427, 64
        %s429 = scalar_lea.vmem [#allocation4], %s428
        %p430 = pneg %p51
        %p431 = pneg %p48
        %p432 = pneg %p72
        %p433 = pneg %p69
        %p434 = pneg %p93
        %p435 = pneg %p90
        %p436 = pneg %p114
        %p437 = pneg %p111
        %p438 = pneg %p135
        %p439 = pneg %p132
        %p440 = pneg %p156
        %p441 = pneg %p153
        %p442 = pneg %p177
        %p443 = pneg %p174
        %p444 = pneg %p198
        %p445 = pneg %p195
        %p446 = pneg %p219
        %p447 = pneg %p216
        %p448 = pneg %p245
        %p449 = pneg %p242
        %s450 = sand.u32 %s232, 1
        %s451 = scalar_lea.sflag [#allocation6], %s450
        %s452 = sand.u32 %s232, 1
        %s453 = smul.addr %s452, 64
        %s454 = scalar_lea.vmem [#allocation19], %s453
        %v455 = vld [vmem:[%s388] sm:$0xff]
        %v456 = vld [vmem:[%s388 + $0x8] sm:$0xff]
        %v457 = vld [vmem:[%s388 + $0x10] sm:$0xff]
        %v458 = vld [vmem:[%s388 + $0x18] sm:$0xff]
        %v459 = vld [vmem:[%s388 + $0x20] sm:$0xff]
        %v460 = vld [vmem:[%s388 + $0x28] sm:$0xff]
        %v461 = vld [vmem:[%s388 + $0x30] sm:$0xff]
        %v462 = vld [vmem:[%s388 + $0x38] sm:$0xff]
        %v463 = vlaneseq
        %vm464 = vcmp.ge.s32.totalorder %v463, 0
        %vm465 = vcmp.lt.s32.totalorder %v463, 768
        %vm466 = vmand %vm464, %vm465
        %467 = vst.msk [vmem:[#allocation2] ss:$8 sm:$0xf] %vm466, 0.0
        %468 = vst.msk [vmem:[#allocation2] ss:$8 sm:$0x30] %vm466, 0.0
        %s469 = scalar_lea.vmem [#allocation2], 97
        %470 = vst.msk [vmem:[%s469] ss:$8 sm:$0xf] %vm466, 0.0
        %471 = vst.msk [vmem:[%s469] ss:$8 sm:$0x30] %vm466, 0.0
        %472 = vst [vmem:[#allocation2] sm:$0xfe] 0.0
        %473 = vst [vmem:[#allocation2 + $0x30] sm:$0xff] 0.0
        %474 = vst [vmem:[#allocation2 + $0x60] sm:$0x1] 0.0
        %475 = vst [vmem:[#allocation2 + $0x28] sm:$0xfe] 0.0
        %476 = vst [vmem:[#allocation2 + $0x58] sm:$0xff] 0.0
        %477 = vst [vmem:[#allocation2 + $0x88] sm:$0x1] 0.0
        %vm486 = vcmask 1040384
        %v487 = vrot.slane %v455, 7
        %v488 = vrot.slane %v456, 7
        %v489 = vrot.slane %v457, 7
        %v490 = vrot.slane %v458, 7
        %v491 = vrot.slane %v459, 7
        %v492 = vsel %vm486, %v487, %v491
        %v493 = vrot.slane %v460, 7
        %v494 = vsel %vm486, %v488, %v493
        %v495 = vrot.slane %v461, 7
        %v496 = vsel %vm486, %v489, %v495
        %v497 = vrot.slane %v462, 7
        %v498 = vsel %vm486, %v490, %v497
        %511 = vst [vmem:[#allocation2 + $0x8] sm:$0xfe] %v487
        %512 = vst [vmem:[#allocation2 + $0x10] sm:$0xfe] %v488
        %513 = vst [vmem:[#allocation2 + $0x18] sm:$0xfe] %v489
        %514 = vst [vmem:[#allocation2 + $0x20] sm:$0xfe] %v490
        %515 = vst [vmem:[#allocation2 + $0x38] sm:$0xff] %v492
        %516 = vst [vmem:[#allocation2 + $0x40] sm:$0xff] %v494
        %517 = vst [vmem:[#allocation2 + $0x48] sm:$0xff] %v496
        %518 = vst [vmem:[#allocation2 + $0x50] sm:$0xff] %v498
        %519 = vst [vmem:[#allocation2 + $0x68] sm:$0x1] %v491
        %520 = vst [vmem:[#allocation2 + $0x70] sm:$0x1] %v493
        %521 = vst [vmem:[#allocation2 + $0x78] sm:$0x1] %v495
        %522 = vst [vmem:[#allocation2 + $0x80] sm:$0x1] %v497
        %v523 = vld [vmem:[#allocation2] sm:$0xff]
        %v524 = vld [vmem:[#allocation2 + $0x8] sm:$0xff]
        %v525 = vld [vmem:[#allocation2 + $0x10] sm:$0xff]
        %v526 = vld [vmem:[#allocation2 + $0x18] sm:$0xff]
        %v527 = vld [vmem:[#allocation2 + $0x20] sm:$0xff]
        %v528 = vld [vmem:[#allocation2 + $0x28] sm:$0xff]
        %v529 = vld [vmem:[#allocation2 + $0x30] sm:$0xff]
        %v530 = vld [vmem:[#allocation2 + $0x38] sm:$0xff]
        %v531 = vld [vmem:[#allocation2 + $0x40] sm:$0xff]
        %v532 = vld [vmem:[#allocation2 + $0x48] sm:$0xff]
        %v533 = vld [vmem:[#allocation2 + $0x50] sm:$0xff]
        %v534 = vld [vmem:[#allocation2 + $0x58] sm:$0xff]
        %v535 = vld [vmem:[#allocation7] sm:$0xff]
        %v536 = vld [vmem:[#allocation7 + $0x8] sm:$0xff]
        %v537 = vld [vmem:[#allocation7 + $0x10] sm:$0xff]
        %v538 = vld [vmem:[#allocation7 + $0x18] sm:$0xff]
        %v539 = vld [vmem:[#allocation7 + $0x20] sm:$0xff]
        %v540 = vld [vmem:[#allocation7 + $0x28] sm:$0xff]
        %v541 = vld [vmem:[#allocation7 + $0x30] sm:$0xff]
        %v542 = vld [vmem:[#allocation7 + $0x38] sm:$0xff]
        %v543 = vld [vmem:[#allocation7 + $0x40] sm:$0xff]
        %v544 = vld [vmem:[#allocation7 + $0x48] sm:$0xff]
        %v545 = vld [vmem:[#allocation7 + $0x50] sm:$0xff]
        %v546 = vld [vmem:[#allocation7 + $0x58] sm:$0xff]
        %v547 = vld [vmem:[#allocation7 + $0x60] sm:$0xff]
        %v548 = vld [vmem:[#allocation7 + $0x68] sm:$0xff]
        %v549 = vld [vmem:[#allocation7 + $0x70] sm:$0xff]
        %v550 = vld [vmem:[#allocation7 + $0x78] sm:$0xff]
        %v551 = vld [vmem:[#allocation7 + $0x80] sm:$0xff]
        %v552 = vld [vmem:[#allocation7 + $0x88] sm:$0xff]
        %v553 = vld [vmem:[#allocation7 + $0x90] sm:$0xff]
        %v554 = vld [vmem:[#allocation7 + $0x98] sm:$0xff]
        %v555 = vld [vmem:[#allocation7 + $0xa0] sm:$0xff]
        %v556 = vld [vmem:[#allocation7 + $0xa8] sm:$0xff]
        %v557 = vld [vmem:[#allocation7 + $0xb0] sm:$0xff]
        %v558 = vld [vmem:[#allocation7 + $0xb8] sm:$0xff]
        %v559 = vld [vmem:[#allocation7 + $0xc0] sm:$0xff]
        %v560 = vld [vmem:[#allocation7 + $0xc8] sm:$0xff]
        %v561 = vld [vmem:[#allocation7 + $0xd0] sm:$0xff]
        %v562 = vld [vmem:[#allocation7 + $0xd8] sm:$0xff]
        %v563 = vld [vmem:[#allocation7 + $0xe0] sm:$0xff]
        %v564 = vld [vmem:[#allocation7 + $0xe8] sm:$0xff]
        %v565 = vld [vmem:[#allocation7 + $0xf0] sm:$0xff]
        %v566 = vld [vmem:[#allocation7 + $0xf8] sm:$0xff]
        %v567 = vld [vmem:[#allocation7 + $0x100] sm:$0xff]
        %v568 = vld [vmem:[#allocation7 + $0x108] sm:$0xff]
        %v569 = vld [vmem:[#allocation7 + $0x110] sm:$0xff]
        %v570 = vld [vmem:[#allocation7 + $0x118] sm:$0xff]
        %v571 = vld [vmem:[#allocation7 + $0x120] sm:$0xff]
        %v572 = vld [vmem:[#allocation7 + $0x128] sm:$0xff]
        %v573 = vld [vmem:[#allocation7 + $0x130] sm:$0xff]
        %v574 = vld [vmem:[#allocation7 + $0x138] sm:$0xff]
        %v575 = vld [vmem:[#allocation7 + $0x140] sm:$0xff]
        %v576 = vld [vmem:[#allocation7 + $0x148] sm:$0xff]
        %v577 = vld [vmem:[#allocation7 + $0x150] sm:$0xff]
        %v578 = vld [vmem:[#allocation7 + $0x158] sm:$0xff]
        %v579 = vld [vmem:[#allocation7 + $0x160] sm:$0xff]
        %v580 = vld [vmem:[#allocation7 + $0x168] sm:$0xff]
        %v581 = vld [vmem:[#allocation7 + $0x170] sm:$0xff]
        %v582 = vld [vmem:[#allocation7 + $0x178] sm:$0xff]
        %v583 = vld [vmem:[#allocation7 + $0x180] sm:$0xff]
        %v584 = vld [vmem:[#allocation7 + $0x188] sm:$0xff]
        %v585 = vld [vmem:[#allocation7 + $0x190] sm:$0xff]
        %v586 = vld [vmem:[#allocation7 + $0x198] sm:$0xff]
        %v587 = vld [vmem:[#allocation7 + $0x1a0] sm:$0xff]
        %v588 = vld [vmem:[#allocation7 + $0x1a8] sm:$0xff]
        %v589 = vld [vmem:[#allocation7 + $0x1b0] sm:$0xff]
        %v590 = vld [vmem:[#allocation7 + $0x1b8] sm:$0xff]
        %v591 = vld [vmem:[#allocation7 + $0x1c0] sm:$0xff]
        %v592 = vld [vmem:[#allocation7 + $0x1c8] sm:$0xff]
        %v593 = vld [vmem:[#allocation7 + $0x1d0] sm:$0xff]
        %v594 = vld [vmem:[#allocation7 + $0x1d8] sm:$0xff]
        %v595 = vld [vmem:[#allocation7 + $0x1e0] sm:$0xff]
        %v596 = vld [vmem:[#allocation7 + $0x1e8] sm:$0xff]
        %v597 = vld [vmem:[#allocation7 + $0x1f0] sm:$0xff]
        %v598 = vld [vmem:[#allocation7 + $0x1f8] sm:$0xff]
        %v599 = vld [vmem:[#allocation7 + $0x200] sm:$0xff]
        %v600 = vld [vmem:[#allocation7 + $0x208] sm:$0xff]
        %v601 = vld [vmem:[#allocation7 + $0x210] sm:$0xff]
        %v602 = vld [vmem:[#allocation7 + $0x218] sm:$0xff]
        %v603 = vld [vmem:[#allocation7 + $0x220] sm:$0xff]
        %v604 = vld [vmem:[#allocation7 + $0x228] sm:$0xff]
        %v605 = vld [vmem:[#allocation7 + $0x230] sm:$0xff]
        %v606 = vld [vmem:[#allocation7 + $0x238] sm:$0xff]
        %v607 = vld [vmem:[#allocation7 + $0x240] sm:$0xff]
        %v608 = vld [vmem:[#allocation7 + $0x248] sm:$0xff]
        %v609 = vld [vmem:[#allocation7 + $0x250] sm:$0xff]
        %v610 = vld [vmem:[#allocation7 + $0x258] sm:$0xff]
        %v611 = vld [vmem:[#allocation7 + $0x260] sm:$0xff]
        %v612 = vld [vmem:[#allocation7 + $0x268] sm:$0xff]
        %v613 = vld [vmem:[#allocation7 + $0x270] sm:$0xff]
        %v614 = vld [vmem:[#allocation7 + $0x278] sm:$0xff]
        %v615 = vld [vmem:[#allocation7 + $0x280] sm:$0xff]
        %v616 = vld [vmem:[#allocation7 + $0x288] sm:$0xff]
        %v617 = vld [vmem:[#allocation7 + $0x290] sm:$0xff]
        %v618 = vld [vmem:[#allocation7 + $0x298] sm:$0xff]
        %v619 = vld [vmem:[#allocation7 + $0x2a0] sm:$0xff]
        %v620 = vld [vmem:[#allocation7 + $0x2a8] sm:$0xff]
        %v621 = vld [vmem:[#allocation7 + $0x2b0] sm:$0xff]
        %v622 = vld [vmem:[#allocation7 + $0x2b8] sm:$0xff]
        %v623 = vld [vmem:[#allocation7 + $0x2c0] sm:$0xff]
        %v624 = vld [vmem:[#allocation7 + $0x2c8] sm:$0xff]
        %v625 = vld [vmem:[#allocation7 + $0x2d0] sm:$0xff]
        %v626 = vld [vmem:[#allocation7 + $0x2d8] sm:$0xff]
        %v627 = vld [vmem:[#allocation7 + $0x2e0] sm:$0xff]
        %v628 = vld [vmem:[#allocation7 + $0x2e8] sm:$0xff]
        %v629 = vld [vmem:[#allocation7 + $0x2f0] sm:$0xff]
        %v630 = vld [vmem:[#allocation7 + $0x2f8] sm:$0xff]
        %v631 = vld [vmem:[#allocation7 + $0x300] sm:$0xff]
        %v632 = vld [vmem:[#allocation7 + $0x308] sm:$0xff]
        %v633 = vld [vmem:[#allocation7 + $0x310] sm:$0xff]
        %v634 = vld [vmem:[#allocation7 + $0x318] sm:$0xff]
        %v635 = vld [vmem:[#allocation7 + $0x320] sm:$0xff]
        %v636 = vld [vmem:[#allocation7 + $0x328] sm:$0xff]
        %v637 = vld [vmem:[#allocation7 + $0x330] sm:$0xff]
        %v638 = vld [vmem:[#allocation7 + $0x338] sm:$0xff]
        %v639 = vld [vmem:[#allocation7 + $0x340] sm:$0xff]
        %v640 = vld [vmem:[#allocation7 + $0x348] sm:$0xff]
        %v641 = vld [vmem:[#allocation7 + $0x350] sm:$0xff]
        %v642 = vld [vmem:[#allocation7 + $0x358] sm:$0xff]
        %v643 = vld [vmem:[#allocation7 + $0x360] sm:$0xff]
        %v644 = vld [vmem:[#allocation7 + $0x368] sm:$0xff]
        %v645 = vld [vmem:[#allocation7 + $0x370] sm:$0xff]
        %v646 = vld [vmem:[#allocation7 + $0x378] sm:$0xff]
        %v647 = vld [vmem:[#allocation7 + $0x380] sm:$0xff]
        %v648 = vld [vmem:[#allocation7 + $0x388] sm:$0xff]
        %v649 = vld [vmem:[#allocation7 + $0x390] sm:$0xff]
        %v650 = vld [vmem:[#allocation7 + $0x398] sm:$0xff]
        %v651 = vld [vmem:[#allocation7 + $0x3a0] sm:$0xff]
        %v652 = vld [vmem:[#allocation7 + $0x3a8] sm:$0xff]
        %v653 = vld [vmem:[#allocation7 + $0x3b0] sm:$0xff]
        %v654 = vld [vmem:[#allocation7 + $0x3b8] sm:$0xff]
        %v655 = vld [vmem:[#allocation7 + $0x3c0] sm:$0xff]
        %v656 = vld [vmem:[#allocation7 + $0x3c8] sm:$0xff]
        %v657 = vld [vmem:[#allocation7 + $0x3d0] sm:$0xff]
        %v658 = vld [vmem:[#allocation7 + $0x3d8] sm:$0xff]
        %v659 = vld [vmem:[#allocation7 + $0x3e0] sm:$0xff]
        %v660 = vld [vmem:[#allocation7 + $0x3e8] sm:$0xff]
        %v661 = vld [vmem:[#allocation7 + $0x3f0] sm:$0xff]
        %v662 = vld [vmem:[#allocation7 + $0x3f8] sm:$0xff]
        %v663 = vld [vmem:[#allocation7 + $0x400] sm:$0xff]
        %v664 = vld [vmem:[#allocation7 + $0x408] sm:$0xff]
        %v665 = vld [vmem:[#allocation7 + $0x410] sm:$0xff]
        %v666 = vld [vmem:[#allocation7 + $0x418] sm:$0xff]
        %v667 = vld [vmem:[#allocation7 + $0x420] sm:$0xff]
        %v668 = vld [vmem:[#allocation7 + $0x428] sm:$0xff]
        %v669 = vld [vmem:[#allocation7 + $0x430] sm:$0xff]
        %v670 = vld [vmem:[#allocation7 + $0x438] sm:$0xff]
        %v671 = vld [vmem:[#allocation7 + $0x440] sm:$0xff]
        %v672 = vld [vmem:[#allocation7 + $0x448] sm:$0xff]
        %v673 = vld [vmem:[#allocation7 + $0x450] sm:$0xff]
        %v674 = vld [vmem:[#allocation7 + $0x458] sm:$0xff]
        %v675 = vld [vmem:[#allocation7 + $0x460] sm:$0xff]
        %v676 = vld [vmem:[#allocation7 + $0x468] sm:$0xff]
        %v677 = vld [vmem:[#allocation7 + $0x470] sm:$0xff]
        %v678 = vld [vmem:[#allocation7 + $0x478] sm:$0xff]
        %v679 = vld [vmem:[#allocation7 + $0x480] sm:$0xff]
        %v680 = vld [vmem:[#allocation7 + $0x488] sm:$0xff]
        %v681 = vld [vmem:[#allocation7 + $0x490] sm:$0xff]
        %v682 = vld [vmem:[#allocation7 + $0x498] sm:$0xff]
        %v683 = vld [vmem:[#allocation7 + $0x4a0] sm:$0xff]
        %v684 = vld [vmem:[#allocation7 + $0x4a8] sm:$0xff]
        %v685 = vld [vmem:[#allocation7 + $0x4b0] sm:$0xff]
        %v686 = vld [vmem:[#allocation7 + $0x4b8] sm:$0xff]
        %v687 = vld [vmem:[#allocation7 + $0x4c0] sm:$0xff]
        %v688 = vld [vmem:[#allocation7 + $0x4c8] sm:$0xff]
        %v689 = vld [vmem:[#allocation7 + $0x4d0] sm:$0xff]
        %v690 = vld [vmem:[#allocation7 + $0x4d8] sm:$0xff]
        %v691 = vld [vmem:[#allocation7 + $0x4e0] sm:$0xff]
        %v692 = vld [vmem:[#allocation7 + $0x4e8] sm:$0xff]
        %v693 = vld [vmem:[#allocation7 + $0x4f0] sm:$0xff]
        %v694 = vld [vmem:[#allocation7 + $0x4f8] sm:$0xff]
        %v695 = vld [vmem:[#allocation7 + $0x500] sm:$0xff]
        %v696 = vld [vmem:[#allocation7 + $0x508] sm:$0xff]
        %v697 = vld [vmem:[#allocation7 + $0x510] sm:$0xff]
        %v698 = vld [vmem:[#allocation7 + $0x518] sm:$0xff]
        %v699 = vld [vmem:[#allocation7 + $0x520] sm:$0xff]
        %v700 = vld [vmem:[#allocation7 + $0x528] sm:$0xff]
        %v701 = vld [vmem:[#allocation7 + $0x530] sm:$0xff]
        %v702 = vld [vmem:[#allocation7 + $0x538] sm:$0xff]
        %v703 = vld [vmem:[#allocation7 + $0x540] sm:$0xff]
        %v704 = vld [vmem:[#allocation7 + $0x548] sm:$0xff]
        %v705 = vld [vmem:[#allocation7 + $0x550] sm:$0xff]
        %v706 = vld [vmem:[#allocation7 + $0x558] sm:$0xff]
        %v707 = vld [vmem:[#allocation7 + $0x560] sm:$0xff]
        %v708 = vld [vmem:[#allocation7 + $0x568] sm:$0xff]
        %v709 = vld [vmem:[#allocation7 + $0x570] sm:$0xff]
        %v710 = vld [vmem:[#allocation7 + $0x578] sm:$0xff]
        %v711 = vld [vmem:[#allocation7 + $0x580] sm:$0xff]
        %v712 = vld [vmem:[#allocation7 + $0x588] sm:$0xff]
        %v713 = vld [vmem:[#allocation7 + $0x590] sm:$0xff]
        %v714 = vld [vmem:[#allocation7 + $0x598] sm:$0xff]
        %v715 = vld [vmem:[#allocation7 + $0x5a0] sm:$0xff]
        %v716 = vld [vmem:[#allocation7 + $0x5a8] sm:$0xff]
        %v717 = vld [vmem:[#allocation7 + $0x5b0] sm:$0xff]
        %v718 = vld [vmem:[#allocation7 + $0x5b8] sm:$0xff]
        %v719 = vld [vmem:[#allocation7 + $0x5c0] sm:$0xff]
        %v720 = vld [vmem:[#allocation7 + $0x5c8] sm:$0xff]
        %v721 = vld [vmem:[#allocation7 + $0x5d0] sm:$0xff]
        %v722 = vld [vmem:[#allocation7 + $0x5d8] sm:$0xff]
        %v723 = vld [vmem:[#allocation7 + $0x5e0] sm:$0xff]
        %v724 = vld [vmem:[#allocation7 + $0x5e8] sm:$0xff]
        %v725 = vld [vmem:[#allocation7 + $0x5f0] sm:$0xff]
        %v726 = vld [vmem:[#allocation7 + $0x5f8] sm:$0xff]
        %v727 = vld [vmem:[#allocation7 + $0x600] sm:$0xff]
        %v728 = vld [vmem:[#allocation7 + $0x608] sm:$0xff]
        %v729 = vld [vmem:[#allocation7 + $0x610] sm:$0xff]
        %v730 = vld [vmem:[#allocation7 + $0x618] sm:$0xff]
        %v731 = vld [vmem:[#allocation7 + $0x620] sm:$0xff]
        %v732 = vld [vmem:[#allocation7 + $0x628] sm:$0xff]
        %v733 = vld [vmem:[#allocation7 + $0x630] sm:$0xff]
        %v734 = vld [vmem:[#allocation7 + $0x638] sm:$0xff]
        %v735 = vld [vmem:[#allocation7 + $0x640] sm:$0xff]
        %v736 = vld [vmem:[#allocation7 + $0x648] sm:$0xff]
        %v737 = vld [vmem:[#allocation7 + $0x650] sm:$0xff]
        %v738 = vld [vmem:[#allocation7 + $0x658] sm:$0xff]
        %v739 = vld [vmem:[#allocation7 + $0x660] sm:$0xff]
        %v740 = vld [vmem:[#allocation7 + $0x668] sm:$0xff]
        %v741 = vld [vmem:[#allocation7 + $0x670] sm:$0xff]
        %v742 = vld [vmem:[#allocation7 + $0x678] sm:$0xff]
        %v743 = vld [vmem:[#allocation7 + $0x680] sm:$0xff]
        %v744 = vld [vmem:[#allocation7 + $0x688] sm:$0xff]
        %v745 = vld [vmem:[#allocation7 + $0x690] sm:$0xff]
        %v746 = vld [vmem:[#allocation7 + $0x698] sm:$0xff]
        %v747 = vld [vmem:[#allocation7 + $0x6a0] sm:$0xff]
        %v748 = vld [vmem:[#allocation7 + $0x6a8] sm:$0xff]
        %v749 = vld [vmem:[#allocation7 + $0x6b0] sm:$0xff]
        %v750 = vld [vmem:[#allocation7 + $0x6b8] sm:$0xff]
        %v751 = vld [vmem:[#allocation7 + $0x6c0] sm:$0xff]
        %v752 = vld [vmem:[#allocation7 + $0x6c8] sm:$0xff]
        %v753 = vld [vmem:[#allocation7 + $0x6d0] sm:$0xff]
        %v754 = vld [vmem:[#allocation7 + $0x6d8] sm:$0xff]
        %v755 = vld [vmem:[#allocation7 + $0x6e0] sm:$0xff]
        %v756 = vld [vmem:[#allocation7 + $0x6e8] sm:$0xff]
        %v757 = vld [vmem:[#allocation7 + $0x6f0] sm:$0xff]
        %v758 = vld [vmem:[#allocation7 + $0x6f8] sm:$0xff]
        %v759 = vld [vmem:[#allocation7 + $0x700] sm:$0xff]
        %v760 = vld [vmem:[#allocation7 + $0x708] sm:$0xff]
        %v761 = vld [vmem:[#allocation7 + $0x710] sm:$0xff]
        %v762 = vld [vmem:[#allocation7 + $0x718] sm:$0xff]
        %v763 = vld [vmem:[#allocation7 + $0x720] sm:$0xff]
        %v764 = vld [vmem:[#allocation7 + $0x728] sm:$0xff]
        %v765 = vld [vmem:[#allocation7 + $0x730] sm:$0xff]
        %v766 = vld [vmem:[#allocation7 + $0x738] sm:$0xff]
        %v767 = vld [vmem:[#allocation7 + $0x740] sm:$0xff]
        %v768 = vld [vmem:[#allocation7 + $0x748] sm:$0xff]
        %v769 = vld [vmem:[#allocation7 + $0x750] sm:$0xff]
        %v770 = vld [vmem:[#allocation7 + $0x758] sm:$0xff]
        %v771 = vld [vmem:[#allocation7 + $0x760] sm:$0xff]
        %v772 = vld [vmem:[#allocation7 + $0x768] sm:$0xff]
        %v773 = vld [vmem:[#allocation7 + $0x770] sm:$0xff]
        %v774 = vld [vmem:[#allocation7 + $0x778] sm:$0xff]
        %v775 = vld [vmem:[#allocation7 + $0x780] sm:$0xff]
        %v776 = vld [vmem:[#allocation7 + $0x788] sm:$0xff]
        %v777 = vld [vmem:[#allocation7 + $0x790] sm:$0xff]
        %v778 = vld [vmem:[#allocation7 + $0x798] sm:$0xff]
        %v779 = vld [vmem:[#allocation7 + $0x7a0] sm:$0xff]
        %v780 = vld [vmem:[#allocation7 + $0x7a8] sm:$0xff]
        %v781 = vld [vmem:[#allocation7 + $0x7b0] sm:$0xff]
        %v782 = vld [vmem:[#allocation7 + $0x7b8] sm:$0xff]
        %v783 = vld [vmem:[#allocation7 + $0x7c0] sm:$0xff]
        %v784 = vld [vmem:[#allocation7 + $0x7c8] sm:$0xff]
        %v785 = vld [vmem:[#allocation7 + $0x7d0] sm:$0xff]
        %v786 = vld [vmem:[#allocation7 + $0x7d8] sm:$0xff]
        %v787 = vld [vmem:[#allocation7 + $0x7e0] sm:$0xff]
        %v788 = vld [vmem:[#allocation7 + $0x7e8] sm:$0xff]
        %v789 = vld [vmem:[#allocation7 + $0x7f0] sm:$0xff]
        %v790 = vld [vmem:[#allocation7 + $0x7f8] sm:$0xff]
        %v791 = vld [vmem:[#allocation7 + $0x800] sm:$0xff]
        %v792 = vld [vmem:[#allocation7 + $0x808] sm:$0xff]
        %v793 = vld [vmem:[#allocation7 + $0x810] sm:$0xff]
        %v794 = vld [vmem:[#allocation7 + $0x818] sm:$0xff]
        %v795 = vld [vmem:[#allocation7 + $0x820] sm:$0xff]
        %v796 = vld [vmem:[#allocation7 + $0x828] sm:$0xff]
        %v797 = vld [vmem:[#allocation7 + $0x830] sm:$0xff]
        %v798 = vld [vmem:[#allocation7 + $0x838] sm:$0xff]
        %v799 = vld [vmem:[#allocation7 + $0x840] sm:$0xff]
        %v800 = vld [vmem:[#allocation7 + $0x848] sm:$0xff]
        %v801 = vld [vmem:[#allocation7 + $0x850] sm:$0xff]
        %v802 = vld [vmem:[#allocation7 + $0x858] sm:$0xff]
        %v803 = vld [vmem:[#allocation7 + $0x860] sm:$0xff]
        %v804 = vld [vmem:[#allocation7 + $0x868] sm:$0xff]
        %v805 = vld [vmem:[#allocation7 + $0x870] sm:$0xff]
        %v806 = vld [vmem:[#allocation7 + $0x878] sm:$0xff]
        %v807 = vld [vmem:[#allocation7 + $0x880] sm:$0xff]
        %v808 = vld [vmem:[#allocation7 + $0x888] sm:$0xff]
        %v809 = vld [vmem:[#allocation7 + $0x890] sm:$0xff]
        %v810 = vld [vmem:[#allocation7 + $0x898] sm:$0xff]
        %v811 = vld [vmem:[#allocation7 + $0x8a0] sm:$0xff]
        %v812 = vld [vmem:[#allocation7 + $0x8a8] sm:$0xff]
        %v813 = vld [vmem:[#allocation7 + $0x8b0] sm:$0xff]
        %v814 = vld [vmem:[#allocation7 + $0x8b8] sm:$0xff]
        %v815 = vld [vmem:[#allocation7 + $0x8c0] sm:$0xff]
        %v816 = vld [vmem:[#allocation7 + $0x8c8] sm:$0xff]
        %v817 = vld [vmem:[#allocation7 + $0x8d0] sm:$0xff]
        %v818 = vld [vmem:[#allocation7 + $0x8d8] sm:$0xff]
        %v819 = vld [vmem:[#allocation7 + $0x8e0] sm:$0xff]
        %v820 = vld [vmem:[#allocation7 + $0x8e8] sm:$0xff]
        %v821 = vld [vmem:[#allocation7 + $0x8f0] sm:$0xff]
        %v822 = vld [vmem:[#allocation7 + $0x8f8] sm:$0xff]
        %v823 = vld [vmem:[#allocation7 + $0x900] sm:$0xff]
        %v824 = vld [vmem:[#allocation7 + $0x908] sm:$0xff]
        %v825 = vld [vmem:[#allocation7 + $0x910] sm:$0xff]
        %v826 = vld [vmem:[#allocation7 + $0x918] sm:$0xff]
        %v827 = vld [vmem:[#allocation7 + $0x920] sm:$0xff]
        %v828 = vld [vmem:[#allocation7 + $0x928] sm:$0xff]
        %v829 = vld [vmem:[#allocation7 + $0x930] sm:$0xff]
        %v830 = vld [vmem:[#allocation7 + $0x938] sm:$0xff]
        %v831 = vld [vmem:[#allocation7 + $0x940] sm:$0xff]
        %v832 = vld [vmem:[#allocation7 + $0x948] sm:$0xff]
        %v833 = vld [vmem:[#allocation7 + $0x950] sm:$0xff]
        %v834 = vld [vmem:[#allocation7 + $0x958] sm:$0xff]
        %v835 = vld [vmem:[#allocation7 + $0x960] sm:$0xff]
        %v836 = vld [vmem:[#allocation7 + $0x968] sm:$0xff]
        %v837 = vld [vmem:[#allocation7 + $0x970] sm:$0xff]
        %v838 = vld [vmem:[#allocation7 + $0x978] sm:$0xff]
        %v839 = vld [vmem:[#allocation7 + $0x980] sm:$0xff]
        %v840 = vld [vmem:[#allocation7 + $0x988] sm:$0xff]
        %v841 = vld [vmem:[#allocation7 + $0x990] sm:$0xff]
        %v842 = vld [vmem:[#allocation7 + $0x998] sm:$0xff]
        %v843 = vld [vmem:[#allocation7 + $0x9a0] sm:$0xff]
        %v844 = vld [vmem:[#allocation7 + $0x9a8] sm:$0xff]
        %v845 = vld [vmem:[#allocation7 + $0x9b0] sm:$0xff]
        %v846 = vld [vmem:[#allocation7 + $0x9b8] sm:$0xff]
        %v847 = vld [vmem:[#allocation7 + $0x9c0] sm:$0xff]
        %v848 = vld [vmem:[#allocation7 + $0x9c8] sm:$0xff]
        %v849 = vld [vmem:[#allocation7 + $0x9d0] sm:$0xff]
        %v850 = vld [vmem:[#allocation7 + $0x9d8] sm:$0xff]
        %v851 = vld [vmem:[#allocation7 + $0x9e0] sm:$0xff]
        %v852 = vld [vmem:[#allocation7 + $0x9e8] sm:$0xff]
        %v853 = vld [vmem:[#allocation7 + $0x9f0] sm:$0xff]
        %v854 = vld [vmem:[#allocation7 + $0x9f8] sm:$0xff]
        %v855 = vld [vmem:[#allocation7 + $0xa00] sm:$0xff]
        %v856 = vld [vmem:[#allocation7 + $0xa08] sm:$0xff]
        %v857 = vld [vmem:[#allocation7 + $0xa10] sm:$0xff]
        %v858 = vld [vmem:[#allocation7 + $0xa18] sm:$0xff]
        %v859 = vld [vmem:[#allocation7 + $0xa20] sm:$0xff]
        %v860 = vld [vmem:[#allocation7 + $0xa28] sm:$0xff]
        %v861 = vld [vmem:[#allocation7 + $0xa30] sm:$0xff]
        %v862 = vld [vmem:[#allocation7 + $0xa38] sm:$0xff]
        %v863 = vld [vmem:[#allocation7 + $0xa40] sm:$0xff]
        %v864 = vld [vmem:[#allocation7 + $0xa48] sm:$0xff]
        %v865 = vld [vmem:[#allocation7 + $0xa50] sm:$0xff]
        %v866 = vld [vmem:[#allocation7 + $0xa58] sm:$0xff]
        %v867 = vld [vmem:[#allocation7 + $0xa60] sm:$0xff]
        %v868 = vld [vmem:[#allocation7 + $0xa68] sm:$0xff]
        %v869 = vld [vmem:[#allocation7 + $0xa70] sm:$0xff]
        %v870 = vld [vmem:[#allocation7 + $0xa78] sm:$0xff]
        %v871 = vld [vmem:[#allocation7 + $0xa80] sm:$0xff]
        %v872 = vld [vmem:[#allocation7 + $0xa88] sm:$0xff]
        %v873 = vld [vmem:[#allocation7 + $0xa90] sm:$0xff]
        %v874 = vld [vmem:[#allocation7 + $0xa98] sm:$0xff]
        %v875 = vld [vmem:[#allocation7 + $0xaa0] sm:$0xff]
        %v876 = vld [vmem:[#allocation7 + $0xaa8] sm:$0xff]
        %v877 = vld [vmem:[#allocation7 + $0xab0] sm:$0xff]
        %v878 = vld [vmem:[#allocation7 + $0xab8] sm:$0xff]
        %v879 = vld [vmem:[#allocation7 + $0xac0] sm:$0xff]
        %v880 = vld [vmem:[#allocation7 + $0xac8] sm:$0xff]
        %v881 = vld [vmem:[#allocation7 + $0xad0] sm:$0xff]
        %v882 = vld [vmem:[#allocation7 + $0xad8] sm:$0xff]
        %v883 = vld [vmem:[#allocation7 + $0xae0] sm:$0xff]
        %v884 = vld [vmem:[#allocation7 + $0xae8] sm:$0xff]
        %v885 = vld [vmem:[#allocation7 + $0xaf0] sm:$0xff]
        %v886 = vld [vmem:[#allocation7 + $0xaf8] sm:$0xff]
        %v887 = vld [vmem:[#allocation7 + $0xb00] sm:$0xff]
        %v888 = vld [vmem:[#allocation7 + $0xb08] sm:$0xff]
        %v889 = vld [vmem:[#allocation7 + $0xb10] sm:$0xff]
        %v890 = vld [vmem:[#allocation7 + $0xb18] sm:$0xff]
        %v891 = vld [vmem:[#allocation7 + $0xb20] sm:$0xff]
        %v892 = vld [vmem:[#allocation7 + $0xb28] sm:$0xff]
        %v893 = vld [vmem:[#allocation7 + $0xb30] sm:$0xff]
        %v894 = vld [vmem:[#allocation7 + $0xb38] sm:$0xff]
        %v895 = vld [vmem:[#allocation7 + $0xb40] sm:$0xff]
        %v896 = vld [vmem:[#allocation7 + $0xb48] sm:$0xff]
        %v897 = vld [vmem:[#allocation7 + $0xb50] sm:$0xff]
        %v898 = vld [vmem:[#allocation7 + $0xb58] sm:$0xff]
        %v899 = vld [vmem:[#allocation7 + $0xb60] sm:$0xff]
        %v900 = vld [vmem:[#allocation7 + $0xb68] sm:$0xff]
        %v901 = vld [vmem:[#allocation7 + $0xb70] sm:$0xff]
        %v902 = vld [vmem:[#allocation7 + $0xb78] sm:$0xff]
        %v903 = vld [vmem:[#allocation7 + $0xb80] sm:$0xff]
        %v904 = vld [vmem:[#allocation7 + $0xb88] sm:$0xff]
        %v905 = vld [vmem:[#allocation7 + $0xb90] sm:$0xff]
        %v906 = vld [vmem:[#allocation7 + $0xb98] sm:$0xff]
        %v907 = vld [vmem:[#allocation7 + $0xba0] sm:$0xff]
        %v908 = vld [vmem:[#allocation7 + $0xba8] sm:$0xff]
        %v909 = vld [vmem:[#allocation7 + $0xbb0] sm:$0xff]
        %v910 = vld [vmem:[#allocation7 + $0xbb8] sm:$0xff]
        %v911 = vld [vmem:[#allocation7 + $0xbc0] sm:$0xff]
        %v912 = vld [vmem:[#allocation7 + $0xbc8] sm:$0xff]
        %v913 = vld [vmem:[#allocation7 + $0xbd0] sm:$0xff]
        %v914 = vld [vmem:[#allocation7 + $0xbd8] sm:$0xff]
        %v915 = vld [vmem:[#allocation7 + $0xbe0] sm:$0xff]
        %v916 = vld [vmem:[#allocation7 + $0xbe8] sm:$0xff]
        %v917 = vld [vmem:[#allocation7 + $0xbf0] sm:$0xff]
        %v918 = vld [vmem:[#allocation7 + $0xbf8] sm:$0xff]
        %v919 = vld [vmem:[#allocation2] sm:$0xfe]
        %v920 = vld [vmem:[#allocation2 + $0x8] sm:$0xfe]
        %v921 = vld [vmem:[#allocation2 + $0x10] sm:$0xfe]
        %v922 = vld [vmem:[#allocation2 + $0x18] sm:$0xfe]
        %v923 = vld [vmem:[#allocation2 + $0x20] sm:$0xfe]
        %v924 = vld [vmem:[#allocation2 + $0x28] sm:$0xfe]
        %v925 = vld [vmem:[#allocation2 + $0x60] sm:$0x1]
        %v926 = vld [vmem:[#allocation2 + $0x68] sm:$0x1]
        %v927 = vld [vmem:[#allocation2 + $0x70] sm:$0x1]
        %v928 = vld [vmem:[#allocation2 + $0x78] sm:$0x1]
        %v929 = vld [vmem:[#allocation2 + $0x80] sm:$0x1]
        %v930 = vld [vmem:[#allocation2 + $0x88] sm:$0x1]
        %s931 = scalar_lea.vmem [#allocation7], 3072
        %v932 = vld [vmem:[%s931] sm:$0xff]
        %v933 = vld [vmem:[%s931 + $0x8] sm:$0xff]
        %v934 = vld [vmem:[%s931 + $0x10] sm:$0xff]
        %v935 = vld [vmem:[%s931 + $0x18] sm:$0xff]
        %v936 = vld [vmem:[%s931 + $0x20] sm:$0xff]
        %v937 = vld [vmem:[%s931 + $0x28] sm:$0xff]
        %v938 = vld [vmem:[%s931 + $0x30] sm:$0xff]
        %v939 = vld [vmem:[%s931 + $0x38] sm:$0xff]
        %v940 = vld [vmem:[%s931 + $0x40] sm:$0xff]
        %v941 = vld [vmem:[%s931 + $0x48] sm:$0xff]
        %v942 = vld [vmem:[%s931 + $0x50] sm:$0xff]
        %v943 = vld [vmem:[%s931 + $0x58] sm:$0xff]
        %v944 = vld [vmem:[%s931 + $0x60] sm:$0xff]
        %v945 = vld [vmem:[%s931 + $0x68] sm:$0xff]
        %v946 = vld [vmem:[%s931 + $0x70] sm:$0xff]
        %v947 = vld [vmem:[%s931 + $0x78] sm:$0xff]
        %v948 = vld [vmem:[%s931 + $0x80] sm:$0xff]
        %v949 = vld [vmem:[%s931 + $0x88] sm:$0xff]
        %v950 = vld [vmem:[%s931 + $0x90] sm:$0xff]
        %v951 = vld [vmem:[%s931 + $0x98] sm:$0xff]
        %v952 = vld [vmem:[%s931 + $0xa0] sm:$0xff]
        %v953 = vld [vmem:[%s931 + $0xa8] sm:$0xff]
        %v954 = vld [vmem:[%s931 + $0xb0] sm:$0xff]
        %v955 = vld [vmem:[%s931 + $0xb8] sm:$0xff]
        %v956 = vld [vmem:[%s931 + $0xc0] sm:$0xff]
        %v957 = vld [vmem:[%s931 + $0xc8] sm:$0xff]
        %v958 = vld [vmem:[%s931 + $0xd0] sm:$0xff]
        %v959 = vld [vmem:[%s931 + $0xd8] sm:$0xff]
        %v960 = vld [vmem:[%s931 + $0xe0] sm:$0xff]
        %v961 = vld [vmem:[%s931 + $0xe8] sm:$0xff]
        %v962 = vld [vmem:[%s931 + $0xf0] sm:$0xff]
        %v963 = vld [vmem:[%s931 + $0xf8] sm:$0xff]
        %v964 = vld [vmem:[%s931 + $0x100] sm:$0xff]
        %v965 = vld [vmem:[%s931 + $0x108] sm:$0xff]
        %v966 = vld [vmem:[%s931 + $0x110] sm:$0xff]
        %v967 = vld [vmem:[%s931 + $0x118] sm:$0xff]
        %v968 = vld [vmem:[%s931 + $0x120] sm:$0xff]
        %v969 = vld [vmem:[%s931 + $0x128] sm:$0xff]
        %v970 = vld [vmem:[%s931 + $0x130] sm:$0xff]
        %v971 = vld [vmem:[%s931 + $0x138] sm:$0xff]
        %v972 = vld [vmem:[%s931 + $0x140] sm:$0xff]
        %v973 = vld [vmem:[%s931 + $0x148] sm:$0xff]
        %v974 = vld [vmem:[%s931 + $0x150] sm:$0xff]
        %v975 = vld [vmem:[%s931 + $0x158] sm:$0xff]
        %v976 = vld [vmem:[%s931 + $0x160] sm:$0xff]
        %v977 = vld [vmem:[%s931 + $0x168] sm:$0xff]
        %v978 = vld [vmem:[%s931 + $0x170] sm:$0xff]
        %v979 = vld [vmem:[%s931 + $0x178] sm:$0xff]
        %v980 = vld [vmem:[%s931 + $0x180] sm:$0xff]
        %v981 = vld [vmem:[%s931 + $0x188] sm:$0xff]
        %v982 = vld [vmem:[%s931 + $0x190] sm:$0xff]
        %v983 = vld [vmem:[%s931 + $0x198] sm:$0xff]
        %v984 = vld [vmem:[%s931 + $0x1a0] sm:$0xff]
        %v985 = vld [vmem:[%s931 + $0x1a8] sm:$0xff]
        %v986 = vld [vmem:[%s931 + $0x1b0] sm:$0xff]
        %v987 = vld [vmem:[%s931 + $0x1b8] sm:$0xff]
        %v988 = vld [vmem:[%s931 + $0x1c0] sm:$0xff]
        %v989 = vld [vmem:[%s931 + $0x1c8] sm:$0xff]
        %v990 = vld [vmem:[%s931 + $0x1d0] sm:$0xff]
        %v991 = vld [vmem:[%s931 + $0x1d8] sm:$0xff]
        %v992 = vld [vmem:[%s931 + $0x1e0] sm:$0xff]
        %v993 = vld [vmem:[%s931 + $0x1e8] sm:$0xff]
        %v994 = vld [vmem:[%s931 + $0x1f0] sm:$0xff]
        %v995 = vld [vmem:[%s931 + $0x1f8] sm:$0xff]
        %v996 = vld [vmem:[%s931 + $0x200] sm:$0xff]
        %v997 = vld [vmem:[%s931 + $0x208] sm:$0xff]
        %v998 = vld [vmem:[%s931 + $0x210] sm:$0xff]
        %v999 = vld [vmem:[%s931 + $0x218] sm:$0xff]
        %v1000 = vld [vmem:[%s931 + $0x220] sm:$0xff]
        %v1001 = vld [vmem:[%s931 + $0x228] sm:$0xff]
        %v1002 = vld [vmem:[%s931 + $0x230] sm:$0xff]
        %v1003 = vld [vmem:[%s931 + $0x238] sm:$0xff]
        %v1004 = vld [vmem:[%s931 + $0x240] sm:$0xff]
        %v1005 = vld [vmem:[%s931 + $0x248] sm:$0xff]
        %v1006 = vld [vmem:[%s931 + $0x250] sm:$0xff]
        %v1007 = vld [vmem:[%s931 + $0x258] sm:$0xff]
        %v1008 = vld [vmem:[%s931 + $0x260] sm:$0xff]
        %v1009 = vld [vmem:[%s931 + $0x268] sm:$0xff]
        %v1010 = vld [vmem:[%s931 + $0x270] sm:$0xff]
        %v1011 = vld [vmem:[%s931 + $0x278] sm:$0xff]
        %v1012 = vld [vmem:[%s931 + $0x280] sm:$0xff]
        %v1013 = vld [vmem:[%s931 + $0x288] sm:$0xff]
        %v1014 = vld [vmem:[%s931 + $0x290] sm:$0xff]
        %v1015 = vld [vmem:[%s931 + $0x298] sm:$0xff]
        %v1016 = vld [vmem:[%s931 + $0x2a0] sm:$0xff]
        %v1017 = vld [vmem:[%s931 + $0x2a8] sm:$0xff]
        %v1018 = vld [vmem:[%s931 + $0x2b0] sm:$0xff]
        %v1019 = vld [vmem:[%s931 + $0x2b8] sm:$0xff]
        %v1020 = vld [vmem:[%s931 + $0x2c0] sm:$0xff]
        %v1021 = vld [vmem:[%s931 + $0x2c8] sm:$0xff]
        %v1022 = vld [vmem:[%s931 + $0x2d0] sm:$0xff]
        %v1023 = vld [vmem:[%s931 + $0x2d8] sm:$0xff]
        %v1024 = vld [vmem:[%s931 + $0x2e0] sm:$0xff]
        %v1025 = vld [vmem:[%s931 + $0x2e8] sm:$0xff]
        %v1026 = vld [vmem:[%s931 + $0x2f0] sm:$0xff]
        %v1027 = vld [vmem:[%s931 + $0x2f8] sm:$0xff]
        %v1028 = vld [vmem:[%s931 + $0x300] sm:$0xff]
        %v1029 = vld [vmem:[%s931 + $0x308] sm:$0xff]
        %v1030 = vld [vmem:[%s931 + $0x310] sm:$0xff]
        %v1031 = vld [vmem:[%s931 + $0x318] sm:$0xff]
        %v1032 = vld [vmem:[%s931 + $0x320] sm:$0xff]
        %v1033 = vld [vmem:[%s931 + $0x328] sm:$0xff]
        %v1034 = vld [vmem:[%s931 + $0x330] sm:$0xff]
        %v1035 = vld [vmem:[%s931 + $0x338] sm:$0xff]
        %v1036 = vld [vmem:[%s931 + $0x340] sm:$0xff]
        %v1037 = vld [vmem:[%s931 + $0x348] sm:$0xff]
        %v1038 = vld [vmem:[%s931 + $0x350] sm:$0xff]
        %v1039 = vld [vmem:[%s931 + $0x358] sm:$0xff]
        %v1040 = vld [vmem:[%s931 + $0x360] sm:$0xff]
        %v1041 = vld [vmem:[%s931 + $0x368] sm:$0xff]
        %v1042 = vld [vmem:[%s931 + $0x370] sm:$0xff]
        %v1043 = vld [vmem:[%s931 + $0x378] sm:$0xff]
        %v1044 = vld [vmem:[%s931 + $0x380] sm:$0xff]
        %v1045 = vld [vmem:[%s931 + $0x388] sm:$0xff]
        %v1046 = vld [vmem:[%s931 + $0x390] sm:$0xff]
        %v1047 = vld [vmem:[%s931 + $0x398] sm:$0xff]
        %v1048 = vld [vmem:[%s931 + $0x3a0] sm:$0xff]
        %v1049 = vld [vmem:[%s931 + $0x3a8] sm:$0xff]
        %v1050 = vld [vmem:[%s931 + $0x3b0] sm:$0xff]
        %v1051 = vld [vmem:[%s931 + $0x3b8] sm:$0xff]
        %v1052 = vld [vmem:[%s931 + $0x3c0] sm:$0xff]
        %v1053 = vld [vmem:[%s931 + $0x3c8] sm:$0xff]
        %v1054 = vld [vmem:[%s931 + $0x3d0] sm:$0xff]
        %v1055 = vld [vmem:[%s931 + $0x3d8] sm:$0xff]
        %v1056 = vld [vmem:[%s931 + $0x3e0] sm:$0xff]
        %v1057 = vld [vmem:[%s931 + $0x3e8] sm:$0xff]
        %v1058 = vld [vmem:[%s931 + $0x3f0] sm:$0xff]
        %v1059 = vld [vmem:[%s931 + $0x3f8] sm:$0xff]
        %v1060 = vld [vmem:[%s931 + $0x400] sm:$0xff]
        %v1061 = vld [vmem:[%s931 + $0x408] sm:$0xff]
        %v1062 = vld [vmem:[%s931 + $0x410] sm:$0xff]
        %v1063 = vld [vmem:[%s931 + $0x418] sm:$0xff]
        %v1064 = vld [vmem:[%s931 + $0x420] sm:$0xff]
        %v1065 = vld [vmem:[%s931 + $0x428] sm:$0xff]
        %v1066 = vld [vmem:[%s931 + $0x430] sm:$0xff]
        %v1067 = vld [vmem:[%s931 + $0x438] sm:$0xff]
        %v1068 = vld [vmem:[%s931 + $0x440] sm:$0xff]
        %v1069 = vld [vmem:[%s931 + $0x448] sm:$0xff]
        %v1070 = vld [vmem:[%s931 + $0x450] sm:$0xff]
        %v1071 = vld [vmem:[%s931 + $0x458] sm:$0xff]
        %v1072 = vld [vmem:[%s931 + $0x460] sm:$0xff]
        %v1073 = vld [vmem:[%s931 + $0x468] sm:$0xff]
        %v1074 = vld [vmem:[%s931 + $0x470] sm:$0xff]
        %v1075 = vld [vmem:[%s931 + $0x478] sm:$0xff]
        %v1076 = vld [vmem:[%s931 + $0x480] sm:$0xff]
        %v1077 = vld [vmem:[%s931 + $0x488] sm:$0xff]
        %v1078 = vld [vmem:[%s931 + $0x490] sm:$0xff]
        %v1079 = vld [vmem:[%s931 + $0x498] sm:$0xff]
        %v1080 = vld [vmem:[%s931 + $0x4a0] sm:$0xff]
        %v1081 = vld [vmem:[%s931 + $0x4a8] sm:$0xff]
        %v1082 = vld [vmem:[%s931 + $0x4b0] sm:$0xff]
        %v1083 = vld [vmem:[%s931 + $0x4b8] sm:$0xff]
        %v1084 = vld [vmem:[%s931 + $0x4c0] sm:$0xff]
        %v1085 = vld [vmem:[%s931 + $0x4c8] sm:$0xff]
        %v1086 = vld [vmem:[%s931 + $0x4d0] sm:$0xff]
        %v1087 = vld [vmem:[%s931 + $0x4d8] sm:$0xff]
        %v1088 = vld [vmem:[%s931 + $0x4e0] sm:$0xff]
        %v1089 = vld [vmem:[%s931 + $0x4e8] sm:$0xff]
        %v1090 = vld [vmem:[%s931 + $0x4f0] sm:$0xff]
        %v1091 = vld [vmem:[%s931 + $0x4f8] sm:$0xff]
        %v1092 = vld [vmem:[%s931 + $0x500] sm:$0xff]
        %v1093 = vld [vmem:[%s931 + $0x508] sm:$0xff]
        %v1094 = vld [vmem:[%s931 + $0x510] sm:$0xff]
        %v1095 = vld [vmem:[%s931 + $0x518] sm:$0xff]
        %v1096 = vld [vmem:[%s931 + $0x520] sm:$0xff]
        %v1097 = vld [vmem:[%s931 + $0x528] sm:$0xff]
        %v1098 = vld [vmem:[%s931 + $0x530] sm:$0xff]
        %v1099 = vld [vmem:[%s931 + $0x538] sm:$0xff]
        %v1100 = vld [vmem:[%s931 + $0x540] sm:$0xff]
        %v1101 = vld [vmem:[%s931 + $0x548] sm:$0xff]
        %v1102 = vld [vmem:[%s931 + $0x550] sm:$0xff]
        %v1103 = vld [vmem:[%s931 + $0x558] sm:$0xff]
        %v1104 = vld [vmem:[%s931 + $0x560] sm:$0xff]
        %v1105 = vld [vmem:[%s931 + $0x568] sm:$0xff]
        %v1106 = vld [vmem:[%s931 + $0x570] sm:$0xff]
        %v1107 = vld [vmem:[%s931 + $0x578] sm:$0xff]
        %v1108 = vld [vmem:[%s931 + $0x580] sm:$0xff]
        %v1109 = vld [vmem:[%s931 + $0x588] sm:$0xff]
        %v1110 = vld [vmem:[%s931 + $0x590] sm:$0xff]
        %v1111 = vld [vmem:[%s931 + $0x598] sm:$0xff]
        %v1112 = vld [vmem:[%s931 + $0x5a0] sm:$0xff]
        %v1113 = vld [vmem:[%s931 + $0x5a8] sm:$0xff]
        %v1114 = vld [vmem:[%s931 + $0x5b0] sm:$0xff]
        %v1115 = vld [vmem:[%s931 + $0x5b8] sm:$0xff]
        %v1116 = vld [vmem:[%s931 + $0x5c0] sm:$0xff]
        %v1117 = vld [vmem:[%s931 + $0x5c8] sm:$0xff]
        %v1118 = vld [vmem:[%s931 + $0x5d0] sm:$0xff]
        %v1119 = vld [vmem:[%s931 + $0x5d8] sm:$0xff]
        %v1120 = vld [vmem:[%s931 + $0x5e0] sm:$0xff]
        %v1121 = vld [vmem:[%s931 + $0x5e8] sm:$0xff]
        %v1122 = vld [vmem:[%s931 + $0x5f0] sm:$0xff]
        %v1123 = vld [vmem:[%s931 + $0x5f8] sm:$0xff]
        %v1124 = vld [vmem:[%s931 + $0x600] sm:$0xff]
        %v1125 = vld [vmem:[%s931 + $0x608] sm:$0xff]
        %v1126 = vld [vmem:[%s931 + $0x610] sm:$0xff]
        %v1127 = vld [vmem:[%s931 + $0x618] sm:$0xff]
        %v1128 = vld [vmem:[%s931 + $0x620] sm:$0xff]
        %v1129 = vld [vmem:[%s931 + $0x628] sm:$0xff]
        %v1130 = vld [vmem:[%s931 + $0x630] sm:$0xff]
        %v1131 = vld [vmem:[%s931 + $0x638] sm:$0xff]
        %v1132 = vld [vmem:[%s931 + $0x640] sm:$0xff]
        %v1133 = vld [vmem:[%s931 + $0x648] sm:$0xff]
        %v1134 = vld [vmem:[%s931 + $0x650] sm:$0xff]
        %v1135 = vld [vmem:[%s931 + $0x658] sm:$0xff]
        %v1136 = vld [vmem:[%s931 + $0x660] sm:$0xff]
        %v1137 = vld [vmem:[%s931 + $0x668] sm:$0xff]
        %v1138 = vld [vmem:[%s931 + $0x670] sm:$0xff]
        %v1139 = vld [vmem:[%s931 + $0x678] sm:$0xff]
        %v1140 = vld [vmem:[%s931 + $0x680] sm:$0xff]
        %v1141 = vld [vmem:[%s931 + $0x688] sm:$0xff]
        %v1142 = vld [vmem:[%s931 + $0x690] sm:$0xff]
        %v1143 = vld [vmem:[%s931 + $0x698] sm:$0xff]
        %v1144 = vld [vmem:[%s931 + $0x6a0] sm:$0xff]
        %v1145 = vld [vmem:[%s931 + $0x6a8] sm:$0xff]
        %v1146 = vld [vmem:[%s931 + $0x6b0] sm:$0xff]
        %v1147 = vld [vmem:[%s931 + $0x6b8] sm:$0xff]
        %v1148 = vld [vmem:[%s931 + $0x6c0] sm:$0xff]
        %v1149 = vld [vmem:[%s931 + $0x6c8] sm:$0xff]
        %v1150 = vld [vmem:[%s931 + $0x6d0] sm:$0xff]
        %v1151 = vld [vmem:[%s931 + $0x6d8] sm:$0xff]
        %v1152 = vld [vmem:[%s931 + $0x6e0] sm:$0xff]
        %v1153 = vld [vmem:[%s931 + $0x6e8] sm:$0xff]
        %v1154 = vld [vmem:[%s931 + $0x6f0] sm:$0xff]
        %v1155 = vld [vmem:[%s931 + $0x6f8] sm:$0xff]
        %v1156 = vld [vmem:[%s931 + $0x700] sm:$0xff]
        %v1157 = vld [vmem:[%s931 + $0x708] sm:$0xff]
        %v1158 = vld [vmem:[%s931 + $0x710] sm:$0xff]
        %v1159 = vld [vmem:[%s931 + $0x718] sm:$0xff]
        %v1160 = vld [vmem:[%s931 + $0x720] sm:$0xff]
        %v1161 = vld [vmem:[%s931 + $0x728] sm:$0xff]
        %v1162 = vld [vmem:[%s931 + $0x730] sm:$0xff]
        %v1163 = vld [vmem:[%s931 + $0x738] sm:$0xff]
        %v1164 = vld [vmem:[%s931 + $0x740] sm:$0xff]
        %v1165 = vld [vmem:[%s931 + $0x748] sm:$0xff]
        %v1166 = vld [vmem:[%s931 + $0x750] sm:$0xff]
        %v1167 = vld [vmem:[%s931 + $0x758] sm:$0xff]
        %v1168 = vld [vmem:[%s931 + $0x760] sm:$0xff]
        %v1169 = vld [vmem:[%s931 + $0x768] sm:$0xff]
        %v1170 = vld [vmem:[%s931 + $0x770] sm:$0xff]
        %v1171 = vld [vmem:[%s931 + $0x778] sm:$0xff]
        %v1172 = vld [vmem:[%s931 + $0x780] sm:$0xff]
        %v1173 = vld [vmem:[%s931 + $0x788] sm:$0xff]
        %v1174 = vld [vmem:[%s931 + $0x790] sm:$0xff]
        %v1175 = vld [vmem:[%s931 + $0x798] sm:$0xff]
        %v1176 = vld [vmem:[%s931 + $0x7a0] sm:$0xff]
        %v1177 = vld [vmem:[%s931 + $0x7a8] sm:$0xff]
        %v1178 = vld [vmem:[%s931 + $0x7b0] sm:$0xff]
        %v1179 = vld [vmem:[%s931 + $0x7b8] sm:$0xff]
        %v1180 = vld [vmem:[%s931 + $0x7c0] sm:$0xff]
        %v1181 = vld [vmem:[%s931 + $0x7c8] sm:$0xff]
        %v1182 = vld [vmem:[%s931 + $0x7d0] sm:$0xff]
        %v1183 = vld [vmem:[%s931 + $0x7d8] sm:$0xff]
        %v1184 = vld [vmem:[%s931 + $0x7e0] sm:$0xff]
        %v1185 = vld [vmem:[%s931 + $0x7e8] sm:$0xff]
        %v1186 = vld [vmem:[%s931 + $0x7f0] sm:$0xff]
        %v1187 = vld [vmem:[%s931 + $0x7f8] sm:$0xff]
        %v1188 = vld [vmem:[%s931 + $0x800] sm:$0xff]
        %v1189 = vld [vmem:[%s931 + $0x808] sm:$0xff]
        %v1190 = vld [vmem:[%s931 + $0x810] sm:$0xff]
        %v1191 = vld [vmem:[%s931 + $0x818] sm:$0xff]
        %v1192 = vld [vmem:[%s931 + $0x820] sm:$0xff]
        %v1193 = vld [vmem:[%s931 + $0x828] sm:$0xff]
        %v1194 = vld [vmem:[%s931 + $0x830] sm:$0xff]
        %v1195 = vld [vmem:[%s931 + $0x838] sm:$0xff]
        %v1196 = vld [vmem:[%s931 + $0x840] sm:$0xff]
        %v1197 = vld [vmem:[%s931 + $0x848] sm:$0xff]
        %v1198 = vld [vmem:[%s931 + $0x850] sm:$0xff]
        %v1199 = vld [vmem:[%s931 + $0x858] sm:$0xff]
        %v1200 = vld [vmem:[%s931 + $0x860] sm:$0xff]
        %v1201 = vld [vmem:[%s931 + $0x868] sm:$0xff]
        %v1202 = vld [vmem:[%s931 + $0x870] sm:$0xff]
        %v1203 = vld [vmem:[%s931 + $0x878] sm:$0xff]
        %v1204 = vld [vmem:[%s931 + $0x880] sm:$0xff]
        %v1205 = vld [vmem:[%s931 + $0x888] sm:$0xff]
        %v1206 = vld [vmem:[%s931 + $0x890] sm:$0xff]
        %v1207 = vld [vmem:[%s931 + $0x898] sm:$0xff]
        %v1208 = vld [vmem:[%s931 + $0x8a0] sm:$0xff]
        %v1209 = vld [vmem:[%s931 + $0x8a8] sm:$0xff]
        %v1210 = vld [vmem:[%s931 + $0x8b0] sm:$0xff]
        %v1211 = vld [vmem:[%s931 + $0x8b8] sm:$0xff]
        %v1212 = vld [vmem:[%s931 + $0x8c0] sm:$0xff]
        %v1213 = vld [vmem:[%s931 + $0x8c8] sm:$0xff]
        %v1214 = vld [vmem:[%s931 + $0x8d0] sm:$0xff]
        %v1215 = vld [vmem:[%s931 + $0x8d8] sm:$0xff]
        %v1216 = vld [vmem:[%s931 + $0x8e0] sm:$0xff]
        %v1217 = vld [vmem:[%s931 + $0x8e8] sm:$0xff]
        %v1218 = vld [vmem:[%s931 + $0x8f0] sm:$0xff]
        %v1219 = vld [vmem:[%s931 + $0x8f8] sm:$0xff]
        %v1220 = vld [vmem:[%s931 + $0x900] sm:$0xff]
        %v1221 = vld [vmem:[%s931 + $0x908] sm:$0xff]
        %v1222 = vld [vmem:[%s931 + $0x910] sm:$0xff]
        %v1223 = vld [vmem:[%s931 + $0x918] sm:$0xff]
        %v1224 = vld [vmem:[%s931 + $0x920] sm:$0xff]
        %v1225 = vld [vmem:[%s931 + $0x928] sm:$0xff]
        %v1226 = vld [vmem:[%s931 + $0x930] sm:$0xff]
        %v1227 = vld [vmem:[%s931 + $0x938] sm:$0xff]
        %v1228 = vld [vmem:[%s931 + $0x940] sm:$0xff]
        %v1229 = vld [vmem:[%s931 + $0x948] sm:$0xff]
        %v1230 = vld [vmem:[%s931 + $0x950] sm:$0xff]
        %v1231 = vld [vmem:[%s931 + $0x958] sm:$0xff]
        %v1232 = vld [vmem:[%s931 + $0x960] sm:$0xff]
        %v1233 = vld [vmem:[%s931 + $0x968] sm:$0xff]
        %v1234 = vld [vmem:[%s931 + $0x970] sm:$0xff]
        %v1235 = vld [vmem:[%s931 + $0x978] sm:$0xff]
        %v1236 = vld [vmem:[%s931 + $0x980] sm:$0xff]
        %v1237 = vld [vmem:[%s931 + $0x988] sm:$0xff]
        %v1238 = vld [vmem:[%s931 + $0x990] sm:$0xff]
        %v1239 = vld [vmem:[%s931 + $0x998] sm:$0xff]
        %v1240 = vld [vmem:[%s931 + $0x9a0] sm:$0xff]
        %v1241 = vld [vmem:[%s931 + $0x9a8] sm:$0xff]
        %v1242 = vld [vmem:[%s931 + $0x9b0] sm:$0xff]
        %v1243 = vld [vmem:[%s931 + $0x9b8] sm:$0xff]
        %v1244 = vld [vmem:[%s931 + $0x9c0] sm:$0xff]
        %v1245 = vld [vmem:[%s931 + $0x9c8] sm:$0xff]
        %v1246 = vld [vmem:[%s931 + $0x9d0] sm:$0xff]
        %v1247 = vld [vmem:[%s931 + $0x9d8] sm:$0xff]
        %v1248 = vld [vmem:[%s931 + $0x9e0] sm:$0xff]
        %v1249 = vld [vmem:[%s931 + $0x9e8] sm:$0xff]
        %v1250 = vld [vmem:[%s931 + $0x9f0] sm:$0xff]
        %v1251 = vld [vmem:[%s931 + $0x9f8] sm:$0xff]
        %v1252 = vld [vmem:[%s931 + $0xa00] sm:$0xff]
        %v1253 = vld [vmem:[%s931 + $0xa08] sm:$0xff]
        %v1254 = vld [vmem:[%s931 + $0xa10] sm:$0xff]
        %v1255 = vld [vmem:[%s931 + $0xa18] sm:$0xff]
        %v1256 = vld [vmem:[%s931 + $0xa20] sm:$0xff]
        %v1257 = vld [vmem:[%s931 + $0xa28] sm:$0xff]
        %v1258 = vld [vmem:[%s931 + $0xa30] sm:$0xff]
        %v1259 = vld [vmem:[%s931 + $0xa38] sm:$0xff]
        %v1260 = vld [vmem:[%s931 + $0xa40] sm:$0xff]
        %v1261 = vld [vmem:[%s931 + $0xa48] sm:$0xff]
        %v1262 = vld [vmem:[%s931 + $0xa50] sm:$0xff]
        %v1263 = vld [vmem:[%s931 + $0xa58] sm:$0xff]
        %v1264 = vld [vmem:[%s931 + $0xa60] sm:$0xff]
        %v1265 = vld [vmem:[%s931 + $0xa68] sm:$0xff]
        %v1266 = vld [vmem:[%s931 + $0xa70] sm:$0xff]
        %v1267 = vld [vmem:[%s931 + $0xa78] sm:$0xff]
        %v1268 = vld [vmem:[%s931 + $0xa80] sm:$0xff]
        %v1269 = vld [vmem:[%s931 + $0xa88] sm:$0xff]
        %v1270 = vld [vmem:[%s931 + $0xa90] sm:$0xff]
        %v1271 = vld [vmem:[%s931 + $0xa98] sm:$0xff]
        %v1272 = vld [vmem:[%s931 + $0xaa0] sm:$0xff]
        %v1273 = vld [vmem:[%s931 + $0xaa8] sm:$0xff]
        %v1274 = vld [vmem:[%s931 + $0xab0] sm:$0xff]
        %v1275 = vld [vmem:[%s931 + $0xab8] sm:$0xff]
        %v1276 = vld [vmem:[%s931 + $0xac0] sm:$0xff]
        %v1277 = vld [vmem:[%s931 + $0xac8] sm:$0xff]
        %v1278 = vld [vmem:[%s931 + $0xad0] sm:$0xff]
        %v1279 = vld [vmem:[%s931 + $0xad8] sm:$0xff]
        %v1280 = vld [vmem:[%s931 + $0xae0] sm:$0xff]
        %v1281 = vld [vmem:[%s931 + $0xae8] sm:$0xff]
        %v1282 = vld [vmem:[%s931 + $0xaf0] sm:$0xff]
        %v1283 = vld [vmem:[%s931 + $0xaf8] sm:$0xff]
        %v1284 = vld [vmem:[%s931 + $0xb00] sm:$0xff]
        %v1285 = vld [vmem:[%s931 + $0xb08] sm:$0xff]
        %v1286 = vld [vmem:[%s931 + $0xb10] sm:$0xff]
        %v1287 = vld [vmem:[%s931 + $0xb18] sm:$0xff]
        %v1288 = vld [vmem:[%s931 + $0xb20] sm:$0xff]
        %v1289 = vld [vmem:[%s931 + $0xb28] sm:$0xff]
        %v1290 = vld [vmem:[%s931 + $0xb30] sm:$0xff]
        %v1291 = vld [vmem:[%s931 + $0xb38] sm:$0xff]
        %v1292 = vld [vmem:[%s931 + $0xb40] sm:$0xff]
        %v1293 = vld [vmem:[%s931 + $0xb48] sm:$0xff]
        %v1294 = vld [vmem:[%s931 + $0xb50] sm:$0xff]
        %v1295 = vld [vmem:[%s931 + $0xb58] sm:$0xff]
        %v1296 = vld [vmem:[%s931 + $0xb60] sm:$0xff]
        %v1297 = vld [vmem:[%s931 + $0xb68] sm:$0xff]
        %v1298 = vld [vmem:[%s931 + $0xb70] sm:$0xff]
        %v1299 = vld [vmem:[%s931 + $0xb78] sm:$0xff]
        %v1300 = vld [vmem:[%s931 + $0xb80] sm:$0xff]
        %v1301 = vld [vmem:[%s931 + $0xb88] sm:$0xff]
        %v1302 = vld [vmem:[%s931 + $0xb90] sm:$0xff]
        %v1303 = vld [vmem:[%s931 + $0xb98] sm:$0xff]
        %v1304 = vld [vmem:[%s931 + $0xba0] sm:$0xff]
        %v1305 = vld [vmem:[%s931 + $0xba8] sm:$0xff]
        %v1306 = vld [vmem:[%s931 + $0xbb0] sm:$0xff]
        %v1307 = vld [vmem:[%s931 + $0xbb8] sm:$0xff]
        %v1308 = vld [vmem:[%s931 + $0xbc0] sm:$0xff]
        %v1309 = vld [vmem:[%s931 + $0xbc8] sm:$0xff]
        %v1310 = vld [vmem:[%s931 + $0xbd0] sm:$0xff]
        %v1311 = vld [vmem:[%s931 + $0xbd8] sm:$0xff]
        %v1312 = vld [vmem:[%s931 + $0xbe0] sm:$0xff]
        %v1313 = vld [vmem:[%s931 + $0xbe8] sm:$0xff]
        %v1314 = vld [vmem:[%s931 + $0xbf0] sm:$0xff]
        %v1315 = vld [vmem:[%s931 + $0xbf8] sm:$0xff]
        %vm1334 = vcmask 1046528
        %v1335 = vrot.slane %v919, 1
        %v1336 = vrot.slane %v529, 1
        %v1337 = vsel %vm1334, %v1335, %v1336
        %v1338 = vrot.slane %v920, 1
        %v1339 = vrot.slane %v530, 1
        %v1340 = vsel %vm1334, %v1338, %v1339
        %v1341 = vrot.slane %v921, 1
        %v1342 = vrot.slane %v531, 1
        %v1343 = vsel %vm1334, %v1341, %v1342
        %v1344 = vrot.slane %v922, 1
        %v1345 = vrot.slane %v532, 1
        %v1346 = vsel %vm1334, %v1344, %v1345
        %v1347 = vrot.slane %v923, 1
        %v1348 = vrot.slane %v533, 1
        %v1349 = vsel %vm1334, %v1347, %v1348
        %v1350 = vrot.slane %v924, 1
        %v1351 = vrot.slane %v534, 1
        %v1352 = vsel %vm1334, %v1350, %v1351
        %v1353 = vrot.slane %v925, 1
        %v1354 = vsel %vm1334, %v1336, %v1353
        %v1355 = vrot.slane %v926, 1
        %v1356 = vsel %vm1334, %v1339, %v1355
        %v1357 = vrot.slane %v927, 1
        %v1358 = vsel %vm1334, %v1342, %v1357
        %v1359 = vrot.slane %v928, 1
        %v1360 = vsel %vm1334, %v1345, %v1359
        %v1361 = vrot.slane %v929, 1
        %v1362 = vsel %vm1334, %v1348, %v1361
        %v1363 = vrot.slane %v930, 1
        %v1364 = vsel %vm1334, %v1351, %v1363
        %1377 = vmatprep.subr.mxu0 %v933
        %1378 = vmatpush1.msra.mxu0 %v932
        %1379 = vmatprep.subr.mxu0 %v937
        %1380 = vmatpush1.msra.mxu0 %v936
        %1381 = vmatprep.subr.mxu0 %v941
        %1382 = vmatpush1.msra.mxu0 %v940
        %1383 = vmatprep.subr.mxu0 %v945
        %1384 = vmatpush1.msra.mxu0 %v944
        %1385 = vmatprep.subr.mxu0 %v949
        %1386 = vmatpush1.msra.mxu0 %v948
        %1387 = vmatprep.subr.mxu0 %v953
        %1388 = vmatpush1.msra.mxu0 %v952
        %1389 = vmatprep.subr.mxu0 %v957
        %1390 = vmatpush1.msra.mxu0 %v956
        %1391 = vmatprep.subr.mxu0 %v961
        %1392 = vmatpush1.msra.mxu0 %v960
        %1393 = vmatprep.subr.mxu0 %v965
        %1394 = vmatpush1.msra.mxu0 %v964
        %1395 = vmatprep.subr.mxu0 %v969
        %1396 = vmatpush1.msra.mxu0 %v968
        %1397 = vmatprep.subr.mxu0 %v973
        %1398 = vmatpush1.msra.mxu0 %v972
        %1399 = vmatprep.subr.mxu0 %v977
        %1400 = vmatpush1.msra.mxu0 %v976
        %1401 = vmatprep.subr.mxu0 %v981
        %1402 = vmatpush1.msra.mxu0 %v980
        %1403 = vmatprep.subr.mxu0 %v985
        %1404 = vmatpush1.msra.mxu0 %v984
        %1405 = vmatprep.subr.mxu0 %v989
        %1406 = vmatpush1.msra.mxu0 %v988
        %1407 = vmatprep.subr.mxu0 %v993
        %1408 = vmatpush1.msra.mxu0 %v992
        %1409 = vmatprep.subr.mxu0 %v997
        %1410 = vmatpush1.msra.mxu0 %v996
        %1411 = vmatprep.subr.mxu0 %v1001
        %1412 = vmatpush1.msra.mxu0 %v1000
        %1413 = vmatprep.subr.mxu0 %v1005
        %1414 = vmatpush1.msra.mxu0 %v1004
        %1415 = vmatprep.subr.mxu0 %v1009
        %1416 = vmatpush1.msra.mxu0 %v1008
        %1417 = vmatprep.subr.mxu0 %v1013
        %1418 = vmatpush1.msra.mxu0 %v1012
        %1419 = vmatprep.subr.mxu0 %v1017
        %1420 = vmatpush1.msra.mxu0 %v1016
        %1421 = vmatprep.subr.mxu0 %v1021
        %1422 = vmatpush1.msra.mxu0 %v1020
        %1423 = vmatprep.subr.mxu0 %v1025
        %1424 = vmatpush1.msra.mxu0 %v1024
        %1425 = vmatprep.subr.mxu0 %v1029
        %1426 = vmatpush1.msra.mxu0 %v1028
        %1427 = vmatprep.subr.mxu0 %v1033
        %1428 = vmatpush1.msra.mxu0 %v1032
        %1429 = vmatprep.subr.mxu0 %v1037
        %1430 = vmatpush1.msra.mxu0 %v1036
        %1431 = vmatprep.subr.mxu0 %v1041
        %1432 = vmatpush1.msra.mxu0 %v1040
        %1433 = vmatprep.subr.mxu0 %v1045
        %1434 = vmatpush1.msra.mxu0 %v1044
        %1435 = vmatprep.subr.mxu0 %v1049
        %1436 = vmatpush1.msra.mxu0 %v1048
        %1437 = vmatprep.subr.mxu0 %v1053
        %1438 = vmatpush1.msra.mxu0 %v1052
        %1439 = vmatprep.subr.mxu0 %v1057
        %1440 = vmatpush1.msra.mxu0 %v1056
        %1441 = vmatprep.mubr.f32.mxu0 %v1340
        %1442 = vmatmul.mubr.f32.gmra.mrb[0].mxu0 %v1337
        %v1443 = vpop.f32.mrb[0].mxu0
        %v1444 = vadd.f32 0.0, %v1443
        %v1445 = vpop.f32.mrb[0].mxu0
        %v1446 = vadd.f32 0.0, %v1445
        %1447 = vmatprep.mubr.f32.mxu0 %v1356
        %1448 = vmatmul.mubr.f32.gmra.mrb[0].mxu0 %v1354
        %v1449 = vpop.f32.mrb[0].mxu0
        %v1450 = vadd.f32 0.0, %v1449
        %v1451 = vpop.f32.mrb[0].mxu0
        %v1452 = vadd.f32 0.0, %v1451
        %1453 = vdwg.mxu0
        %1454 = vmatprep.subr.mxu0 %v1061
        %1455 = vmatpush1.msra.mxu0 %v1060
        %1456 = vmatprep.subr.mxu0 %v1065
        %1457 = vmatpush1.msra.mxu0 %v1064
        %1458 = vmatprep.subr.mxu0 %v1069
        %1459 = vmatpush1.msra.mxu0 %v1068
        %1460 = vmatprep.subr.mxu0 %v1073
        %1461 = vmatpush1.msra.mxu0 %v1072
        %1462 = vmatprep.subr.mxu0 %v1077
        %1463 = vmatpush1.msra.mxu0 %v1076
        %1464 = vmatprep.subr.mxu0 %v1081
        %1465 = vmatpush1.msra.mxu0 %v1080
        %1466 = vmatprep.subr.mxu0 %v1085
        %1467 = vmatpush1.msra.mxu0 %v1084
        %1468 = vmatprep.subr.mxu0 %v1089
        %1469 = vmatpush1.msra.mxu0 %v1088
        %1470 = vmatprep.subr.mxu0 %v1093
        %1471 = vmatpush1.msra.mxu0 %v1092
        %1472 = vmatprep.subr.mxu0 %v1097
        %1473 = vmatpush1.msra.mxu0 %v1096
        %1474 = vmatprep.subr.mxu0 %v1101
        %1475 = vmatpush1.msra.mxu0 %v1100
        %1476 = vmatprep.subr.mxu0 %v1105
        %1477 = vmatpush1.msra.mxu0 %v1104
        %1478 = vmatprep.subr.mxu0 %v1109
        %1479 = vmatpush1.msra.mxu0 %v1108
        %1480 = vmatprep.subr.mxu0 %v1113
        %1481 = vmatpush1.msra.mxu0 %v1112
        %1482 = vmatprep.subr.mxu0 %v1117
        %1483 = vmatpush1.msra.mxu0 %v1116
        %1484 = vmatprep.subr.mxu0 %v1121
        %1485 = vmatpush1.msra.mxu0 %v1120
        %1486 = vmatprep.subr.mxu0 %v1125
        %1487 = vmatpush1.msra.mxu0 %v1124
        %1488 = vmatprep.subr.mxu0 %v1129
        %1489 = vmatpush1.msra.mxu0 %v1128
        %1490 = vmatprep.subr.mxu0 %v1133
        %1491 = vmatpush1.msra.mxu0 %v1132
        %1492 = vmatprep.subr.mxu0 %v1137
        %1493 = vmatpush1.msra.mxu0 %v1136
        %1494 = vmatprep.subr.mxu0 %v1141
        %1495 = vmatpush1.msra.mxu0 %v1140
        %1496 = vmatprep.subr.mxu0 %v1145
        %1497 = vmatpush1.msra.mxu0 %v1144
        %1498 = vmatprep.subr.mxu0 %v1149
        %1499 = vmatpush1.msra.mxu0 %v1148
        %1500 = vmatprep.subr.mxu0 %v1153
        %1501 = vmatpush1.msra.mxu0 %v1152
        %1502 = vmatprep.subr.mxu0 %v1157
        %1503 = vmatpush1.msra.mxu0 %v1156
        %1504 = vmatprep.subr.mxu0 %v1161
        %1505 = vmatpush1.msra.mxu0 %v1160
        %1506 = vmatprep.subr.mxu0 %v1165
        %1507 = vmatpush1.msra.mxu0 %v1164
        %1508 = vmatprep.subr.mxu0 %v1169
        %1509 = vmatpush1.msra.mxu0 %v1168
        %1510 = vmatprep.subr.mxu0 %v1173
        %1511 = vmatpush1.msra.mxu0 %v1172
        %1512 = vmatprep.subr.mxu0 %v1177
        %1513 = vmatpush1.msra.mxu0 %v1176
        %1514 = vmatprep.subr.mxu0 %v1181
        %1515 = vmatpush1.msra.mxu0 %v1180
        %1516 = vmatprep.subr.mxu0 %v1185
        %1517 = vmatpush1.msra.mxu0 %v1184
        %1518 = vmatprep.mubr.f32.mxu0 %v1346
        %1519 = vmatmul.mubr.f32.gmra.mrb[0].mxu0 %v1343
        %v1520 = vpop.f32.mrb[0].mxu0
        %v1521 = vadd.f32 %v1444, %v1520
        %v1522 = vpop.f32.mrb[0].mxu0
        %v1523 = vadd.f32 %v1446, %v1522
        %1524 = vmatprep.mubr.f32.mxu0 %v1360
        %1525 = vmatmul.mubr.f32.gmra.mrb[0].mxu0 %v1358
        %v1526 = vpop.f32.mrb[0].mxu0
        %v1527 = vadd.f32 %v1450, %v1526
        %v1528 = vpop.f32.mrb[0].mxu0
        %v1529 = vadd.f32 %v1452, %v1528
        %1530 = vdwg.mxu0
        %1531 = vmatprep.subr.mxu0 %v1189
        %1532 = vmatpush1.msra.mxu0 %v1188
        %1533 = vmatprep.subr.mxu0 %v1193
        %1534 = vmatpush1.msra.mxu0 %v1192
        %1535 = vmatprep.subr.mxu0 %v1197
        %1536 = vmatpush1.msra.mxu0 %v1196
        %1537 = vmatprep.subr.mxu0 %v1201
        %1538 = vmatpush1.msra.mxu0 %v1200
        %1539 = vmatprep.subr.mxu0 %v1205
        %1540 = vmatpush1.msra.mxu0 %v1204
        %1541 = vmatprep.subr.mxu0 %v1209
        %1542 = vmatpush1.msra.mxu0 %v1208
        %1543 = vmatprep.subr.mxu0 %v1213
        %1544 = vmatpush1.msra.mxu0 %v1212
        %1545 = vmatprep.subr.mxu0 %v1217
        %1546 = vmatpush1.msra.mxu0 %v1216
        %1547 = vmatprep.subr.mxu0 %v1221
        %1548 = vmatpush1.msra.mxu0 %v1220
        %1549 = vmatprep.subr.mxu0 %v1225
        %1550 = vmatpush1.msra.mxu0 %v1224
        %1551 = vmatprep.subr.mxu0 %v1229
        %1552 = vmatpush1.msra.mxu0 %v1228
        %1553 = vmatprep.subr.mxu0 %v1233
        %1554 = vmatpush1.msra.mxu0 %v1232
        %1555 = vmatprep.subr.mxu0 %v1237
        %1556 = vmatpush1.msra.mxu0 %v1236
        %1557 = vmatprep.subr.mxu0 %v1241
        %1558 = vmatpush1.msra.mxu0 %v1240
        %1559 = vmatprep.subr.mxu0 %v1245
        %1560 = vmatpush1.msra.mxu0 %v1244
        %1561 = vmatprep.subr.mxu0 %v1249
        %1562 = vmatpush1.msra.mxu0 %v1248
        %1563 = vmatprep.subr.mxu0 %v1253
        %1564 = vmatpush1.msra.mxu0 %v1252
        %1565 = vmatprep.subr.mxu0 %v1257
        %1566 = vmatpush1.msra.mxu0 %v1256
        %1567 = vmatprep.subr.mxu0 %v1261
        %1568 = vmatpush1.msra.mxu0 %v1260
        %1569 = vmatprep.subr.mxu0 %v1265
        %1570 = vmatpush1.msra.mxu0 %v1264
        %1571 = vmatprep.subr.mxu0 %v1269
        %1572 = vmatpush1.msra.mxu0 %v1268
        %1573 = vmatprep.subr.mxu0 %v1273
        %1574 = vmatpush1.msra.mxu0 %v1272
        %1575 = vmatprep.subr.mxu0 %v1277
        %1576 = vmatpush1.msra.mxu0 %v1276
        %1577 = vmatprep.subr.mxu0 %v1281
        %1578 = vmatpush1.msra.mxu0 %v1280
        %1579 = vmatprep.subr.mxu0 %v1285
        %1580 = vmatpush1.msra.mxu0 %v1284
        %1581 = vmatprep.subr.mxu0 %v1289
        %1582 = vmatpush1.msra.mxu0 %v1288
        %1583 = vmatprep.subr.mxu0 %v1293
        %1584 = vmatpush1.msra.mxu0 %v1292
        %1585 = vmatprep.subr.mxu0 %v1297
        %1586 = vmatpush1.msra.mxu0 %v1296
        %1587 = vmatprep.subr.mxu0 %v1301
        %1588 = vmatpush1.msra.mxu0 %v1300
        %1589 = vmatprep.subr.mxu0 %v1305
        %1590 = vmatpush1.msra.mxu0 %v1304
        %1591 = vmatprep.subr.mxu0 %v1309
        %1592 = vmatpush1.msra.mxu0 %v1308
        %1593 = vmatprep.subr.mxu0 %v1313
        %1594 = vmatpush1.msra.mxu0 %v1312
        %1595 = vmatprep.mubr.f32.mxu0 %v1352
        %1596 = vmatmul.mubr.f32.gmra.mrb[0].mxu0 %v1349
        %v1597 = vpop.f32.mrb[0].mxu0
        %v1598 = vadd.f32 %v1521, %v1597
        %v1599 = vpop.f32.mrb[0].mxu0
        %v1600 = vadd.f32 %v1523, %v1599
        %1601 = vmatprep.mubr.f32.mxu0 %v1364
        %1602 = vmatmul.mubr.f32.gmra.mrb[0].mxu0 %v1362
        %v1603 = vpop.f32.mrb[0].mxu0
        %v1604 = vadd.f32 %v1527, %v1603
        %v1605 = vpop.f32.mrb[0].mxu0
        %v1606 = vadd.f32 %v1529, %v1605
        %1607 = vdwg.mxu0
        %1608 = vmatprep.subr.mxu0 %v935
        %1609 = vmatpush1.msra.mxu0 %v934
        %1610 = vmatprep.subr.mxu0 %v939
        %1611 = vmatpush1.msra.mxu0 %v938
        %1612 = vmatprep.subr.mxu0 %v943
        %1613 = vmatpush1.msra.mxu0 %v942
        %1614 = vmatprep.subr.mxu0 %v947
        %1615 = vmatpush1.msra.mxu0 %v946
        %1616 = vmatprep.subr.mxu0 %v951
        %1617 = vmatpush1.msra.mxu0 %v950
        %1618 = vmatprep.subr.mxu0 %v955
        %1619 = vmatpush1.msra.mxu0 %v954
        %1620 = vmatprep.subr.mxu0 %v959
        %1621 = vmatpush1.msra.mxu0 %v958
        %1622 = vmatprep.subr.mxu0 %v963
        %1623 = vmatpush1.msra.mxu0 %v962
        %1624 = vmatprep.subr.mxu0 %v967
        %1625 = vmatpush1.msra.mxu0 %v966
        %1626 = vmatprep.subr.mxu0 %v971
        %1627 = vmatpush1.msra.mxu0 %v970
        %1628 = vmatprep.subr.mxu0 %v975
        %1629 = vmatpush1.msra.mxu0 %v974
        %1630 = vmatprep.subr.mxu0 %v979
        %1631 = vmatpush1.msra.mxu0 %v978
        %1632 = vmatprep.subr.mxu0 %v983
        %1633 = vmatpush1.msra.mxu0 %v982
        %1634 = vmatprep.subr.mxu0 %v987
        %1635 = vmatpush1.msra.mxu0 %v986
        %1636 = vmatprep.subr.mxu0 %v991
        %1637 = vmatpush1.msra.mxu0 %v990
        %1638 = vmatprep.subr.mxu0 %v995
        %1639 = vmatpush1.msra.mxu0 %v994
        %1640 = vmatprep.subr.mxu0 %v999
        %1641 = vmatpush1.msra.mxu0 %v998
        %1642 = vmatprep.subr.mxu0 %v1003
        %1643 = vmatpush1.msra.mxu0 %v1002
        %1644 = vmatprep.subr.mxu0 %v1007
        %1645 = vmatpush1.msra.mxu0 %v1006
        %1646 = vmatprep.subr.mxu0 %v1011
        %1647 = vmatpush1.msra.mxu0 %v1010
        %1648 = vmatprep.subr.mxu0 %v1015
        %1649 = vmatpush1.msra.mxu0 %v1014
        %1650 = vmatprep.subr.mxu0 %v1019
        %1651 = vmatpush1.msra.mxu0 %v1018
        %1652 = vmatprep.subr.mxu0 %v1023
        %1653 = vmatpush1.msra.mxu0 %v1022
        %1654 = vmatprep.subr.mxu0 %v1027
        %1655 = vmatpush1.msra.mxu0 %v1026
        %1656 = vmatprep.subr.mxu0 %v1031
        %1657 = vmatpush1.msra.mxu0 %v1030
        %1658 = vmatprep.subr.mxu0 %v1035
        %1659 = vmatpush1.msra.mxu0 %v1034
        %1660 = vmatprep.subr.mxu0 %v1039
        %1661 = vmatpush1.msra.mxu0 %v1038
        %1662 = vmatprep.subr.mxu0 %v1043
        %1663 = vmatpush1.msra.mxu0 %v1042
        %1664 = vmatprep.subr.mxu0 %v1047
        %1665 = vmatpush1.msra.mxu0 %v1046
        %1666 = vmatprep.subr.mxu0 %v1051
        %1667 = vmatpush1.msra.mxu0 %v1050
        %1668 = vmatprep.subr.mxu0 %v1055
        %1669 = vmatpush1.msra.mxu0 %v1054
        %1670 = vmatprep.subr.mxu0 %v1059
        %1671 = vmatpush1.msra.mxu0 %v1058
        %1672 = vmatprep.mubr.f32.mxu0 %v1340
        %1673 = vmatmul.mubr.f32.gmra.mrb[0].mxu0 %v1337
        %v1674 = vpop.f32.mrb[0].mxu0
        %v1675 = vadd.f32 0.0, %v1674
        %v1676 = vpop.f32.mrb[0].mxu0
        %v1677 = vadd.f32 0.0, %v1676
        %1678 = vmatprep.mubr.f32.mxu0 %v1356
        %1679 = vmatmul.mubr.f32.gmra.mrb[0].mxu0 %v1354
        %v1680 = vpop.f32.mrb[0].mxu0
        %v1681 = vadd.f32 0.0, %v1680
        %v1682 = vpop.f32.mrb[0].mxu0
        %v1683 = vadd.f32 0.0, %v1682
        %1684 = vdwg.mxu0
        %1685 = vmatprep.subr.mxu0 %v1063
        %1686 = vmatpush1.msra.mxu0 %v1062
        %1687 = vmatprep.subr.mxu0 %v1067
        %1688 = vmatpush1.msra.mxu0 %v1066
        %1689 = vmatprep.subr.mxu0 %v1071
        %1690 = vmatpush1.msra.mxu0 %v1070
        %1691 = vmatprep.subr.mxu0 %v1075
        %1692 = vmatpush1.msra.mxu0 %v1074
        %1693 = vmatprep.subr.mxu0 %v1079
        %1694 = vmatpush1.msra.mxu0 %v1078
        %1695 = vmatprep.subr.mxu0 %v1083
        %1696 = vmatpush1.msra.mxu0 %v1082
        %1697 = vmatprep.subr.mxu0 %v1087
        %1698 = vmatpush1.msra.mxu0 %v1086
        %1699 = vmatprep.subr.mxu0 %v1091
        %1700 = vmatpush1.msra.mxu0 %v1090
        %1701 = vmatprep.subr.mxu0 %v1095
        %1702 = vmatpush1.msra.mxu0 %v1094
        %1703 = vmatprep.subr.mxu0 %v1099
        %1704 = vmatpush1.msra.mxu0 %v1098
        %1705 = vmatprep.subr.mxu0 %v1103
        %1706 = vmatpush1.msra.mxu0 %v1102
        %1707 = vmatprep.subr.mxu0 %v1107
        %1708 = vmatpush1.msra.mxu0 %v1106
        %1709 = vmatprep.subr.mxu0 %v1111
        %1710 = vmatpush1.msra.mxu0 %v1110
        %1711 = vmatprep.subr.mxu0 %v1115
        %1712 = vmatpush1.msra.mxu0 %v1114
        %1713 = vmatprep.subr.mxu0 %v1119
        %1714 = vmatpush1.msra.mxu0 %v1118
        %1715 = vmatprep.subr.mxu0 %v1123
        %1716 = vmatpush1.msra.mxu0 %v1122
        %1717 = vmatprep.subr.mxu0 %v1127
        %1718 = vmatpush1.msra.mxu0 %v1126
        %1719 = vmatprep.subr.mxu0 %v1131
        %1720 = vmatpush1.msra.mxu0 %v1130
        %1721 = vmatprep.subr.mxu0 %v1135
        %1722 = vmatpush1.msra.mxu0 %v1134
        %1723 = vmatprep.subr.mxu0 %v1139
        %1724 = vmatpush1.msra.mxu0 %v1138
        %1725 = vmatprep.subr.mxu0 %v1143
        %1726 = vmatpush1.msra.mxu0 %v1142
        %1727 = vmatprep.subr.mxu0 %v1147
        %1728 = vmatpush1.msra.mxu0 %v1146
        %1729 = vmatprep.subr.mxu0 %v1151
        %1730 = vmatpush1.msra.mxu0 %v1150
        %1731 = vmatprep.subr.mxu0 %v1155
        %1732 = vmatpush1.msra.mxu0 %v1154
        %1733 = vmatprep.subr.mxu0 %v1159
        %1734 = vmatpush1.msra.mxu0 %v1158
        %1735 = vmatprep.subr.mxu0 %v1163
        %1736 = vmatpush1.msra.mxu0 %v1162
        %1737 = vmatprep.subr.mxu0 %v1167
        %1738 = vmatpush1.msra.mxu0 %v1166
        %1739 = vmatprep.subr.mxu0 %v1171
        %1740 = vmatpush1.msra.mxu0 %v1170
        %1741 = vmatprep.subr.mxu0 %v1175
        %1742 = vmatpush1.msra.mxu0 %v1174
        %1743 = vmatprep.subr.mxu0 %v1179
        %1744 = vmatpush1.msra.mxu0 %v1178
        %1745 = vmatprep.subr.mxu0 %v1183
        %1746 = vmatpush1.msra.mxu0 %v1182
        %1747 = vmatprep.subr.mxu0 %v1187
        %1748 = vmatpush1.msra.mxu0 %v1186
        %1749 = vmatprep.mubr.f32.mxu0 %v1346
        %1750 = vmatmul.mubr.f32.gmra.mrb[0].mxu0 %v1343
        %v1751 = vpop.f32.mrb[0].mxu0
        %v1752 = vadd.f32 %v1675, %v1751
        %v1753 = vpop.f32.mrb[0].mxu0
        %v1754 = vadd.f32 %v1677, %v1753
        %1755 = vmatprep.mubr.f32.mxu0 %v1360
        %1756 = vmatmul.mubr.f32.gmra.mrb[0].mxu0 %v1358
        %v1757 = vpop.f32.mrb[0].mxu0
        %v1758 = vadd.f32 %v1681, %v1757
        %v1759 = vpop.f32.mrb[0].mxu0
        %v1760 = vadd.f32 %v1683, %v1759
        %1761 = vdwg.mxu0
        %1762 = vmatprep.subr.mxu0 %v1191
        %1763 = vmatpush1.msra.mxu0 %v1190
        %1764 = vmatprep.subr.mxu0 %v1195
        %1765 = vmatpush1.msra.mxu0 %v1194
        %1766 = vmatprep.subr.mxu0 %v1199
        %1767 = vmatpush1.msra.mxu0 %v1198
        %1768 = vmatprep.subr.mxu0 %v1203
        %1769 = vmatpush1.msra.mxu0 %v1202
        %1770 = vmatprep.subr.mxu0 %v1207
        %1771 = vmatpush1.msra.mxu0 %v1206
        %1772 = vmatprep.subr.mxu0 %v1211
        %1773 = vmatpush1.msra.mxu0 %v1210
        %1774 = vmatprep.subr.mxu0 %v1215
        %1775 = vmatpush1.msra.mxu0 %v1214
        %1776 = vmatprep.subr.mxu0 %v1219
        %1777 = vmatpush1.msra.mxu0 %v1218
        %1778 = vmatprep.subr.mxu0 %v1223
        %1779 = vmatpush1.msra.mxu0 %v1222
        %1780 = vmatprep.subr.mxu0 %v1227
        %1781 = vmatpush1.msra.mxu0 %v1226
        %1782 = vmatprep.subr.mxu0 %v1231
        %1783 = vmatpush1.msra.mxu0 %v1230
        %1784 = vmatprep.subr.mxu0 %v1235
        %1785 = vmatpush1.msra.mxu0 %v1234
        %1786 = vmatprep.subr.mxu0 %v1239
        %1787 = vmatpush1.msra.mxu0 %v1238
        %1788 = vmatprep.subr.mxu0 %v1243
        %1789 = vmatpush1.msra.mxu0 %v1242
        %1790 = vmatprep.subr.mxu0 %v1247
        %1791 = vmatpush1.msra.mxu0 %v1246
        %1792 = vmatprep.subr.mxu0 %v1251
        %1793 = vmatpush1.msra.mxu0 %v1250
        %1794 = vmatprep.subr.mxu0 %v1255
        %1795 = vmatpush1.msra.mxu0 %v1254
        %1796 = vmatprep.subr.mxu0 %v1259
        %1797 = vmatpush1.msra.mxu0 %v1258
        %1798 = vmatprep.subr.mxu0 %v1263
        %1799 = vmatpush1.msra.mxu0 %v1262
        %1800 = vmatprep.subr.mxu0 %v1267
        %1801 = vmatpush1.msra.mxu0 %v1266
        %1802 = vmatprep.subr.mxu0 %v1271
        %1803 = vmatpush1.msra.mxu0 %v1270
        %1804 = vmatprep.subr.mxu0 %v1275
        %1805 = vmatpush1.msra.mxu0 %v1274
        %1806 = vmatprep.subr.mxu0 %v1279
        %1807 = vmatpush1.msra.mxu0 %v1278
        %1808 = vmatprep.subr.mxu0 %v1283
        %1809 = vmatpush1.msra.mxu0 %v1282
        %1810 = vmatprep.subr.mxu0 %v1287
        %1811 = vmatpush1.msra.mxu0 %v1286
        %1812 = vmatprep.subr.mxu0 %v1291
        %1813 = vmatpush1.msra.mxu0 %v1290
        %1814 = vmatprep.subr.mxu0 %v1295
        %1815 = vmatpush1.msra.mxu0 %v1294
        %1816 = vmatprep.subr.mxu0 %v1299
        %1817 = vmatpush1.msra.mxu0 %v1298
        %1818 = vmatprep.subr.mxu0 %v1303
        %1819 = vmatpush1.msra.mxu0 %v1302
        %1820 = vmatprep.subr.mxu0 %v1307
        %1821 = vmatpush1.msra.mxu0 %v1306
        %1822 = vmatprep.subr.mxu0 %v1311
        %1823 = vmatpush1.msra.mxu0 %v1310
        %1824 = vmatprep.subr.mxu0 %v1315
        %1825 = vmatpush1.msra.mxu0 %v1314
        %1826 = vmatprep.mubr.f32.mxu0 %v1352
        %1827 = vmatmul.mubr.f32.gmra.mrb[0].mxu0 %v1349
        %v1828 = vpop.f32.mrb[0].mxu0
        %v1829 = vadd.f32 %v1752, %v1828
        %v1830 = vpop.f32.mrb[0].mxu0
        %v1831 = vadd.f32 %v1754, %v1830
        %1832 = vmatprep.mubr.f32.mxu0 %v1364
        %1833 = vmatmul.mubr.f32.gmra.mrb[0].mxu0 %v1362
        %v1834 = vpop.f32.mrb[0].mxu0
        %v1835 = vadd.f32 %v1758, %v1834
        %v1836 = vpop.f32.mrb[0].mxu0
        %v1837 = vadd.f32 %v1760, %v1836
        %1838 = vdwg.mxu0
        %1839 = vmatprep.subr.mxu0 %v536
        %1840 = vmatpush1.msra.mxu0 %v535
        %1841 = vmatprep.subr.mxu0 %v540
        %1842 = vmatpush1.msra.mxu0 %v539
        %1843 = vmatprep.subr.mxu0 %v544
        %1844 = vmatpush1.msra.mxu0 %v543
        %1845 = vmatprep.subr.mxu0 %v548
        %1846 = vmatpush1.msra.mxu0 %v547
        %1847 = vmatprep.subr.mxu0 %v552
        %1848 = vmatpush1.msra.mxu0 %v551
        %1849 = vmatprep.subr.mxu0 %v556
        %1850 = vmatpush1.msra.mxu0 %v555
        %1851 = vmatprep.subr.mxu0 %v560
        %1852 = vmatpush1.msra.mxu0 %v559
        %1853 = vmatprep.subr.mxu0 %v564
        %1854 = vmatpush1.msra.mxu0 %v563
        %1855 = vmatprep.subr.mxu0 %v568
        %1856 = vmatpush1.msra.mxu0 %v567
        %1857 = vmatprep.subr.mxu0 %v572
        %1858 = vmatpush1.msra.mxu0 %v571
        %1859 = vmatprep.subr.mxu0 %v576
        %1860 = vmatpush1.msra.mxu0 %v575
        %1861 = vmatprep.subr.mxu0 %v580
        %1862 = vmatpush1.msra.mxu0 %v579
        %1863 = vmatprep.subr.mxu0 %v584
        %1864 = vmatpush1.msra.mxu0 %v583
        %1865 = vmatprep.subr.mxu0 %v588
        %1866 = vmatpush1.msra.mxu0 %v587
        %1867 = vmatprep.subr.mxu0 %v592
        %1868 = vmatpush1.msra.mxu0 %v591
        %1869 = vmatprep.subr.mxu0 %v596
        %1870 = vmatpush1.msra.mxu0 %v595
        %1871 = vmatprep.subr.mxu0 %v600
        %1872 = vmatpush1.msra.mxu0 %v599
        %1873 = vmatprep.subr.mxu0 %v604
        %1874 = vmatpush1.msra.mxu0 %v603
        %1875 = vmatprep.subr.mxu0 %v608
        %1876 = vmatpush1.msra.mxu0 %v607
        %1877 = vmatprep.subr.mxu0 %v612
        %1878 = vmatpush1.msra.mxu0 %v611
        %1879 = vmatprep.subr.mxu0 %v616
        %1880 = vmatpush1.msra.mxu0 %v615
        %1881 = vmatprep.subr.mxu0 %v620
        %1882 = vmatpush1.msra.mxu0 %v619
        %1883 = vmatprep.subr.mxu0 %v624
        %1884 = vmatpush1.msra.mxu0 %v623
        %1885 = vmatprep.subr.mxu0 %v628
        %1886 = vmatpush1.msra.mxu0 %v627
        %1887 = vmatprep.subr.mxu0 %v632
        %1888 = vmatpush1.msra.mxu0 %v631
        %1889 = vmatprep.subr.mxu0 %v636
        %1890 = vmatpush1.msra.mxu0 %v635
        %1891 = vmatprep.subr.mxu0 %v640
        %1892 = vmatpush1.msra.mxu0 %v639
        %1893 = vmatprep.subr.mxu0 %v644
        %1894 = vmatpush1.msra.mxu0 %v643
        %1895 = vmatprep.subr.mxu0 %v648
        %1896 = vmatpush1.msra.mxu0 %v647
        %1897 = vmatprep.subr.mxu0 %v652
        %1898 = vmatpush1.msra.mxu0 %v651
        %1899 = vmatprep.subr.mxu0 %v656
        %1900 = vmatpush1.msra.mxu0 %v655
        %1901 = vmatprep.subr.mxu0 %v660
        %1902 = vmatpush1.msra.mxu0 %v659
        %1903 = vmatprep.mubr.f32.mxu0 %v524
        %1904 = vmatmul.mubr.f32.gmra.mrb[0].mxu0 %v523
        %v1905 = vpop.f32.mrb[0].mxu0
        %v1906 = vadd.f32 %v1598, %v1905
        %v1907 = vpop.f32.mrb[0].mxu0
        %v1908 = vadd.f32 %v1600, %v1907
        %1909 = vmatprep.mubr.f32.mxu0 %v530
        %1910 = vmatmul.mubr.f32.gmra.mrb[0].mxu0 %v529
        %v1911 = vpop.f32.mrb[0].mxu0
        %v1912 = vadd.f32 %v1604, %v1911
        %v1913 = vpop.f32.mrb[0].mxu0
        %v1914 = vadd.f32 %v1606, %v1913
        %1915 = vdwg.mxu0
        %1916 = vmatprep.subr.mxu0 %v664
        %1917 = vmatpush1.msra.mxu0 %v663
        %1918 = vmatprep.subr.mxu0 %v668
        %1919 = vmatpush1.msra.mxu0 %v667
        %1920 = vmatprep.subr.mxu0 %v672
        %1921 = vmatpush1.msra.mxu0 %v671
        %1922 = vmatprep.subr.mxu0 %v676
        %1923 = vmatpush1.msra.mxu0 %v675
        %1924 = vmatprep.subr.mxu0 %v680
        %1925 = vmatpush1.msra.mxu0 %v679
        %1926 = vmatprep.subr.mxu0 %v684
        %1927 = vmatpush1.msra.mxu0 %v683
        %1928 = vmatprep.subr.mxu0 %v688
        %1929 = vmatpush1.msra.mxu0 %v687
        %1930 = vmatprep.subr.mxu0 %v692
        %1931 = vmatpush1.msra.mxu0 %v691
        %1932 = vmatprep.subr.mxu0 %v696
        %1933 = vmatpush1.msra.mxu0 %v695
        %1934 = vmatprep.subr.mxu0 %v700
        %1935 = vmatpush1.msra.mxu0 %v699
        %1936 = vmatprep.subr.mxu0 %v704
        %1937 = vmatpush1.msra.mxu0 %v703
        %1938 = vmatprep.subr.mxu0 %v708
        %1939 = vmatpush1.msra.mxu0 %v707
        %1940 = vmatprep.subr.mxu0 %v712
        %1941 = vmatpush1.msra.mxu0 %v711
        %1942 = vmatprep.subr.mxu0 %v716
        %1943 = vmatpush1.msra.mxu0 %v715
        %1944 = vmatprep.subr.mxu0 %v720
        %1945 = vmatpush1.msra.mxu0 %v719
        %1946 = vmatprep.subr.mxu0 %v724
        %1947 = vmatpush1.msra.mxu0 %v723
        %1948 = vmatprep.subr.mxu0 %v728
        %1949 = vmatpush1.msra.mxu0 %v727
        %1950 = vmatprep.subr.mxu0 %v732
        %1951 = vmatpush1.msra.mxu0 %v731
        %1952 = vmatprep.subr.mxu0 %v736
        %1953 = vmatpush1.msra.mxu0 %v735
        %1954 = vmatprep.subr.mxu0 %v740
        %1955 = vmatpush1.msra.mxu0 %v739
        %1956 = vmatprep.subr.mxu0 %v744
        %1957 = vmatpush1.msra.mxu0 %v743
        %1958 = vmatprep.subr.mxu0 %v748
        %1959 = vmatpush1.msra.mxu0 %v747
        %1960 = vmatprep.subr.mxu0 %v752
        %1961 = vmatpush1.msra.mxu0 %v751
        %1962 = vmatprep.subr.mxu0 %v756
        %1963 = vmatpush1.msra.mxu0 %v755
        %1964 = vmatprep.subr.mxu0 %v760
        %1965 = vmatpush1.msra.mxu0 %v759
        %1966 = vmatprep.subr.mxu0 %v764
        %1967 = vmatpush1.msra.mxu0 %v763
        %1968 = vmatprep.subr.mxu0 %v768
        %1969 = vmatpush1.msra.mxu0 %v767
        %1970 = vmatprep.subr.mxu0 %v772
        %1971 = vmatpush1.msra.mxu0 %v771
        %1972 = vmatprep.subr.mxu0 %v776
        %1973 = vmatpush1.msra.mxu0 %v775
        %1974 = vmatprep.subr.mxu0 %v780
        %1975 = vmatpush1.msra.mxu0 %v779
        %1976 = vmatprep.subr.mxu0 %v784
        %1977 = vmatpush1.msra.mxu0 %v783
        %1978 = vmatprep.subr.mxu0 %v788
        %1979 = vmatpush1.msra.mxu0 %v787
        %1980 = vmatprep.mubr.f32.mxu0 %v526
        %1981 = vmatmul.mubr.f32.gmra.mrb[0].mxu0 %v525
        %v1982 = vpop.f32.mrb[0].mxu0
        %v1983 = vadd.f32 %v1906, %v1982
        %v1984 = vpop.f32.mrb[0].mxu0
        %v1985 = vadd.f32 %v1908, %v1984
        %1986 = vmatprep.mubr.f32.mxu0 %v532
        %1987 = vmatmul.mubr.f32.gmra.mrb[0].mxu0 %v531
        %v1988 = vpop.f32.mrb[0].mxu0
        %v1989 = vadd.f32 %v1912, %v1988
        %v1990 = vpop.f32.mrb[0].mxu0
        %v1991 = vadd.f32 %v1914, %v1990
        %1992 = vdwg.mxu0
        %1993 = vmatprep.subr.mxu0 %v792
        %1994 = vmatpush1.msra.mxu0 %v791
        %1995 = vmatprep.subr.mxu0 %v796
        %1996 = vmatpush1.msra.mxu0 %v795
        %1997 = vmatprep.subr.mxu0 %v800
        %1998 = vmatpush1.msra.mxu0 %v799
        %1999 = vmatprep.subr.mxu0 %v804
        %2000 = vmatpush1.msra.mxu0 %v803
        %2001 = vmatprep.subr.mxu0 %v808
        %2002 = vmatpush1.msra.mxu0 %v807
        %2003 = vmatprep.subr.mxu0 %v812
        %2004 = vmatpush1.msra.mxu0 %v811
        %2005 = vmatprep.subr.mxu0 %v816
        %2006 = vmatpush1.msra.mxu0 %v815
        %2007 = vmatprep.subr.mxu0 %v820
        %2008 = vmatpush1.msra.mxu0 %v819
        %2009 = vmatprep.subr.mxu0 %v824
        %2010 = vmatpush1.msra.mxu0 %v823
        %2011 = vmatprep.subr.mxu0 %v828
        %2012 = vmatpush1.msra.mxu0 %v827
        %2013 = vmatprep.subr.mxu0 %v832
        %2014 = vmatpush1.msra.mxu0 %v831
        %2015 = vmatprep.subr.mxu0 %v836
        %2016 = vmatpush1.msra.mxu0 %v835
        %2017 = vmatprep.subr.mxu0 %v840
        %2018 = vmatpush1.msra.mxu0 %v839
        %2019 = vmatprep.subr.mxu0 %v844
        %2020 = vmatpush1.msra.mxu0 %v843
        %2021 = vmatprep.subr.mxu0 %v848
        %2022 = vmatpush1.msra.mxu0 %v847
        %2023 = vmatprep.subr.mxu0 %v852
        %2024 = vmatpush1.msra.mxu0 %v851
        %2025 = vmatprep.subr.mxu0 %v856
        %2026 = vmatpush1.msra.mxu0 %v855
        %2027 = vmatprep.subr.mxu0 %v860
        %2028 = vmatpush1.msra.mxu0 %v859
        %2029 = vmatprep.subr.mxu0 %v864
        %2030 = vmatpush1.msra.mxu0 %v863
        %2031 = vmatprep.subr.mxu0 %v868
        %2032 = vmatpush1.msra.mxu0 %v867
        %2033 = vmatprep.subr.mxu0 %v872
        %2034 = vmatpush1.msra.mxu0 %v871
        %2035 = vmatprep.subr.mxu0 %v876
        %2036 = vmatpush1.msra.mxu0 %v875
        %2037 = vmatprep.subr.mxu0 %v880
        %2038 = vmatpush1.msra.mxu0 %v879
        %2039 = vmatprep.subr.mxu0 %v884
        %2040 = vmatpush1.msra.mxu0 %v883
        %2041 = vmatprep.subr.mxu0 %v888
        %2042 = vmatpush1.msra.mxu0 %v887
        %2043 = vmatprep.subr.mxu0 %v892
        %2044 = vmatpush1.msra.mxu0 %v891
        %2045 = vmatprep.subr.mxu0 %v896
        %2046 = vmatpush1.msra.mxu0 %v895
        %2047 = vmatprep.subr.mxu0 %v900
        %2048 = vmatpush1.msra.mxu0 %v899
        %2049 = vmatprep.subr.mxu0 %v904
        %2050 = vmatpush1.msra.mxu0 %v903
        %2051 = vmatprep.subr.mxu0 %v908
        %2052 = vmatpush1.msra.mxu0 %v907
        %2053 = vmatprep.subr.mxu0 %v912
        %2054 = vmatpush1.msra.mxu0 %v911
        %2055 = vmatprep.subr.mxu0 %v916
        %2056 = vmatpush1.msra.mxu0 %v915
        %2057 = vmatprep.mubr.f32.mxu0 %v528
        %2058 = vmatmul.mubr.f32.gmra.mrb[0].mxu0 %v527
        %v2059 = vpop.f32.mrb[0].mxu0
        %v2060 = vadd.f32 %v1983, %v2059
        %v2061 = vpop.f32.mrb[0].mxu0
        %v2062 = vadd.f32 %v1985, %v2061
        %2063 = vmatprep.mubr.f32.mxu0 %v534
        %2064 = vmatmul.mubr.f32.gmra.mrb[0].mxu0 %v533
        %v2065 = vpop.f32.mrb[0].mxu0
        %v2066 = vadd.f32 %v1989, %v2065
        %v2067 = vpop.f32.mrb[0].mxu0
        %v2068 = vadd.f32 %v1991, %v2067
        %2069 = vdwg.mxu0
        %2070 = vmatprep.subr.mxu0 %v538
        %2071 = vmatpush1.msra.mxu0 %v537
        %2072 = vmatprep.subr.mxu0 %v542
        %2073 = vmatpush1.msra.mxu0 %v541
        %2074 = vmatprep.subr.mxu0 %v546
        %2075 = vmatpush1.msra.mxu0 %v545
        %2076 = vmatprep.subr.mxu0 %v550
        %2077 = vmatpush1.msra.mxu0 %v549
        %2078 = vmatprep.subr.mxu0 %v554
        %2079 = vmatpush1.msra.mxu0 %v553
        %2080 = vmatprep.subr.mxu0 %v558
        %2081 = vmatpush1.msra.mxu0 %v557
        %2082 = vmatprep.subr.mxu0 %v562
        %2083 = vmatpush1.msra.mxu0 %v561
        %2084 = vmatprep.subr.mxu0 %v566
        %2085 = vmatpush1.msra.mxu0 %v565
        %2086 = vmatprep.subr.mxu0 %v570
        %2087 = vmatpush1.msra.mxu0 %v569
        %2088 = vmatprep.subr.mxu0 %v574
        %2089 = vmatpush1.msra.mxu0 %v573
        %2090 = vmatprep.subr.mxu0 %v578
        %2091 = vmatpush1.msra.mxu0 %v577
        %2092 = vmatprep.subr.mxu0 %v582
        %2093 = vmatpush1.msra.mxu0 %v581
        %2094 = vmatprep.subr.mxu0 %v586
        %2095 = vmatpush1.msra.mxu0 %v585
        %2096 = vmatprep.subr.mxu0 %v590
        %2097 = vmatpush1.msra.mxu0 %v589
        %2098 = vmatprep.subr.mxu0 %v594
        %2099 = vmatpush1.msra.mxu0 %v593
        %2100 = vmatprep.subr.mxu0 %v598
        %2101 = vmatpush1.msra.mxu0 %v597
        %2102 = vmatprep.subr.mxu0 %v602
        %2103 = vmatpush1.msra.mxu0 %v601
        %2104 = vmatprep.subr.mxu0 %v606
        %2105 = vmatpush1.msra.mxu0 %v605
        %2106 = vmatprep.subr.mxu0 %v610
        %2107 = vmatpush1.msra.mxu0 %v609
        %2108 = vmatprep.subr.mxu0 %v614
        %2109 = vmatpush1.msra.mxu0 %v613
        %2110 = vmatprep.subr.mxu0 %v618
        %2111 = vmatpush1.msra.mxu0 %v617
        %2112 = vmatprep.subr.mxu0 %v622
        %2113 = vmatpush1.msra.mxu0 %v621
        %2114 = vmatprep.subr.mxu0 %v626
        %2115 = vmatpush1.msra.mxu0 %v625
        %2116 = vmatprep.subr.mxu0 %v630
        %2117 = vmatpush1.msra.mxu0 %v629
        %2118 = vmatprep.subr.mxu0 %v634
        %2119 = vmatpush1.msra.mxu0 %v633
        %2120 = vmatprep.subr.mxu0 %v638
        %2121 = vmatpush1.msra.mxu0 %v637
        %2122 = vmatprep.subr.mxu0 %v642
        %2123 = vmatpush1.msra.mxu0 %v641
        %2124 = vmatprep.subr.mxu0 %v646
        %2125 = vmatpush1.msra.mxu0 %v645
        %2126 = vmatprep.subr.mxu0 %v650
        %2127 = vmatpush1.msra.mxu0 %v649
        %2128 = vmatprep.subr.mxu0 %v654
        %2129 = vmatpush1.msra.mxu0 %v653
        %2130 = vmatprep.subr.mxu0 %v658
        %2131 = vmatpush1.msra.mxu0 %v657
        %2132 = vmatprep.subr.mxu0 %v662
        %2133 = vmatpush1.msra.mxu0 %v661
        %2134 = vmatprep.mubr.f32.mxu0 %v524
        %2135 = vmatmul.mubr.f32.gmra.mrb[0].mxu0 %v523
        %v2136 = vpop.f32.mrb[0].mxu0
        %v2137 = vadd.f32 %v1829, %v2136
        %v2138 = vpop.f32.mrb[0].mxu0
        %v2139 = vadd.f32 %v1831, %v2138
        %2140 = vmatprep.mubr.f32.mxu0 %v530
        %2141 = vmatmul.mubr.f32.gmra.mrb[0].mxu0 %v529
        %v2142 = vpop.f32.mrb[0].mxu0
        %v2143 = vadd.f32 %v1835, %v2142
        %v2144 = vpop.f32.mrb[0].mxu0
        %v2145 = vadd.f32 %v1837, %v2144
        %2146 = vdwg.mxu0
        %2147 = vmatprep.subr.mxu0 %v666
        %2148 = vmatpush1.msra.mxu0 %v665
        %2149 = vmatprep.subr.mxu0 %v670
        %2150 = vmatpush1.msra.mxu0 %v669
        %2151 = vmatprep.subr.mxu0 %v674
        %2152 = vmatpush1.msra.mxu0 %v673
        %2153 = vmatprep.subr.mxu0 %v678
        %2154 = vmatpush1.msra.mxu0 %v677
        %2155 = vmatprep.subr.mxu0 %v682
        %2156 = vmatpush1.msra.mxu0 %v681
        %2157 = vmatprep.subr.mxu0 %v686
        %2158 = vmatpush1.msra.mxu0 %v685
        %2159 = vmatprep.subr.mxu0 %v690
        %2160 = vmatpush1.msra.mxu0 %v689
        %2161 = vmatprep.subr.mxu0 %v694
        %2162 = vmatpush1.msra.mxu0 %v693
        %2163 = vmatprep.subr.mxu0 %v698
        %2164 = vmatpush1.msra.mxu0 %v697
        %2165 = vmatprep.subr.mxu0 %v702
        %2166 = vmatpush1.msra.mxu0 %v701
        %2167 = vmatprep.subr.mxu0 %v706
        %2168 = vmatpush1.msra.mxu0 %v705
        %2169 = vmatprep.subr.mxu0 %v710
        %2170 = vmatpush1.msra.mxu0 %v709
        %2171 = vmatprep.subr.mxu0 %v714
        %2172 = vmatpush1.msra.mxu0 %v713
        %2173 = vmatprep.subr.mxu0 %v718
        %2174 = vmatpush1.msra.mxu0 %v717
        %2175 = vmatprep.subr.mxu0 %v722
        %2176 = vmatpush1.msra.mxu0 %v721
        %2177 = vmatprep.subr.mxu0 %v726
        %2178 = vmatpush1.msra.mxu0 %v725
        %2179 = vmatprep.subr.mxu0 %v730
        %2180 = vmatpush1.msra.mxu0 %v729
        %2181 = vmatprep.subr.mxu0 %v734
        %2182 = vmatpush1.msra.mxu0 %v733
        %2183 = vmatprep.subr.mxu0 %v738
        %2184 = vmatpush1.msra.mxu0 %v737
        %2185 = vmatprep.subr.mxu0 %v742
        %2186 = vmatpush1.msra.mxu0 %v741
        %2187 = vmatprep.subr.mxu0 %v746
        %2188 = vmatpush1.msra.mxu0 %v745
        %2189 = vmatprep.subr.mxu0 %v750
        %2190 = vmatpush1.msra.mxu0 %v749
        %2191 = vmatprep.subr.mxu0 %v754
        %2192 = vmatpush1.msra.mxu0 %v753
        %2193 = vmatprep.subr.mxu0 %v758
        %2194 = vmatpush1.msra.mxu0 %v757
        %2195 = vmatprep.subr.mxu0 %v762
        %2196 = vmatpush1.msra.mxu0 %v761
        %2197 = vmatprep.subr.mxu0 %v766
        %2198 = vmatpush1.msra.mxu0 %v765
        %2199 = vmatprep.subr.mxu0 %v770
        %2200 = vmatpush1.msra.mxu0 %v769
        %2201 = vmatprep.subr.mxu0 %v774
        %2202 = vmatpush1.msra.mxu0 %v773
        %2203 = vmatprep.subr.mxu0 %v778
        %2204 = vmatpush1.msra.mxu0 %v777
        %2205 = vmatprep.subr.mxu0 %v782
        %2206 = vmatpush1.msra.mxu0 %v781
        %2207 = vmatprep.subr.mxu0 %v786
        %2208 = vmatpush1.msra.mxu0 %v785
        %2209 = vmatprep.subr.mxu0 %v790
        %2210 = vmatpush1.msra.mxu0 %v789
        %2211 = vmatprep.mubr.f32.mxu0 %v526
        %2212 = vmatmul.mubr.f32.gmra.mrb[0].mxu0 %v525
        %v2213 = vpop.f32.mrb[0].mxu0
        %v2214 = vadd.f32 %v2137, %v2213
        %v2215 = vpop.f32.mrb[0].mxu0
        %v2216 = vadd.f32 %v2139, %v2215
        %2217 = vmatprep.mubr.f32.mxu0 %v532
        %2218 = vmatmul.mubr.f32.gmra.mrb[0].mxu0 %v531
        %v2219 = vpop.f32.mrb[0].mxu0
        %v2220 = vadd.f32 %v2143, %v2219
        %v2221 = vpop.f32.mrb[0].mxu0
        %v2222 = vadd.f32 %v2145, %v2221
        %2223 = vdwg.mxu0
        %2224 = vmatprep.subr.mxu0 %v794
        %2225 = vmatpush1.msra.mxu0 %v793
        %2226 = vmatprep.subr.mxu0 %v798
        %2227 = vmatpush1.msra.mxu0 %v797
        %2228 = vmatprep.subr.mxu0 %v802
        %2229 = vmatpush1.msra.mxu0 %v801
        %2230 = vmatprep.subr.mxu0 %v806
        %2231 = vmatpush1.msra.mxu0 %v805
        %2232 = vmatprep.subr.mxu0 %v810
        %2233 = vmatpush1.msra.mxu0 %v809
        %2234 = vmatprep.subr.mxu0 %v814
        %2235 = vmatpush1.msra.mxu0 %v813
        %2236 = vmatprep.subr.mxu0 %v818
        %2237 = vmatpush1.msra.mxu0 %v817
        %2238 = vmatprep.subr.mxu0 %v822
        %2239 = vmatpush1.msra.mxu0 %v821
        %2240 = vmatprep.subr.mxu0 %v826
        %2241 = vmatpush1.msra.mxu0 %v825
        %2242 = vmatprep.subr.mxu0 %v830
        %2243 = vmatpush1.msra.mxu0 %v829
        %2244 = vmatprep.subr.mxu0 %v834
        %2245 = vmatpush1.msra.mxu0 %v833
        %2246 = vmatprep.subr.mxu0 %v838
        %2247 = vmatpush1.msra.mxu0 %v837
        %2248 = vmatprep.subr.mxu0 %v842
        %2249 = vmatpush1.msra.mxu0 %v841
        %2250 = vmatprep.subr.mxu0 %v846
        %2251 = vmatpush1.msra.mxu0 %v845
        %2252 = vmatprep.subr.mxu0 %v850
        %2253 = vmatpush1.msra.mxu0 %v849
        %2254 = vmatprep.subr.mxu0 %v854
        %2255 = vmatpush1.msra.mxu0 %v853
        %2256 = vmatprep.subr.mxu0 %v858
        %2257 = vmatpush1.msra.mxu0 %v857
        %2258 = vmatprep.subr.mxu0 %v862
        %2259 = vmatpush1.msra.mxu0 %v861
        %2260 = vmatprep.subr.mxu0 %v866
        %2261 = vmatpush1.msra.mxu0 %v865
        %2262 = vmatprep.subr.mxu0 %v870
        %2263 = vmatpush1.msra.mxu0 %v869
        %2264 = vmatprep.subr.mxu0 %v874
        %2265 = vmatpush1.msra.mxu0 %v873
        %2266 = vmatprep.subr.mxu0 %v878
        %2267 = vmatpush1.msra.mxu0 %v877
        %2268 = vmatprep.subr.mxu0 %v882
        %2269 = vmatpush1.msra.mxu0 %v881
        %2270 = vmatprep.subr.mxu0 %v886
        %2271 = vmatpush1.msra.mxu0 %v885
        %2272 = vmatprep.subr.mxu0 %v890
        %2273 = vmatpush1.msra.mxu0 %v889
        %2274 = vmatprep.subr.mxu0 %v894
        %2275 = vmatpush1.msra.mxu0 %v893
        %2276 = vmatprep.subr.mxu0 %v898
        %2277 = vmatpush1.msra.mxu0 %v897
        %2278 = vmatprep.subr.mxu0 %v902
        %2279 = vmatpush1.msra.mxu0 %v901
        %2280 = vmatprep.subr.mxu0 %v906
        %2281 = vmatpush1.msra.mxu0 %v905
        %2282 = vmatprep.subr.mxu0 %v910
        %2283 = vmatpush1.msra.mxu0 %v909
        %2284 = vmatprep.subr.mxu0 %v914
        %2285 = vmatpush1.msra.mxu0 %v913
        %2286 = vmatprep.subr.mxu0 %v918
        %2287 = vmatpush1.msra.mxu0 %v917
        %2288 = vmatprep.mubr.f32.mxu0 %v528
        %2289 = vmatmul.mubr.f32.gmra.mrb[0].mxu0 %v527
        %v2290 = vpop.f32.mrb[0].mxu0
        %v2291 = vadd.f32 %v2214, %v2290
        %v2292 = vpop.f32.mrb[0].mxu0
        %v2293 = vadd.f32 %v2216, %v2292
        %2294 = vmatprep.mubr.f32.mxu0 %v534
        %2295 = vmatmul.mubr.f32.gmra.mrb[0].mxu0 %v533
        %v2296 = vpop.f32.mrb[0].mxu0
        %v2297 = vadd.f32 %v2220, %v2296
        %v2298 = vpop.f32.mrb[0].mxu0
        %v2299 = vadd.f32 %v2222, %v2298
        %2300 = vdwg.mxu0
        %v2301 = vld [vmem:[#allocation2] sm:$0xfc]
        %v2302 = vld [vmem:[#allocation2 + $0x8] sm:$0xfc]
        %v2303 = vld [vmem:[#allocation2 + $0x10] sm:$0xfc]
        %v2304 = vld [vmem:[#allocation2 + $0x18] sm:$0xfc]
        %v2305 = vld [vmem:[#allocation2 + $0x20] sm:$0xfc]
        %v2306 = vld [vmem:[#allocation2 + $0x28] sm:$0xfc]
        %v2307 = vld [vmem:[#allocation2 + $0x60] sm:$0x3]
        %v2308 = vld [vmem:[#allocation2 + $0x68] sm:$0x3]
        %v2309 = vld [vmem:[#allocation2 + $0x70] sm:$0x3]
        %v2310 = vld [vmem:[#allocation2 + $0x78] sm:$0x3]
        %v2311 = vld [vmem:[#allocation2 + $0x80] sm:$0x3]
        %v2312 = vld [vmem:[#allocation2 + $0x88] sm:$0x3]
        %s2313 = scalar_lea.vmem [#allocation7], 6144
        %v2314 = vld [vmem:[%s2313] sm:$0xff]
        %v2315 = vld [vmem:[%s2313 + $0x8] sm:$0xff]
        %v2316 = vld [vmem:[%s2313 + $0x10] sm:$0xff]
        %v2317 = vld [vmem:[%s2313 + $0x18] sm:$0xff]
        %v2318 = vld [vmem:[%s2313 + $0x20] sm:$0xff]
        %v2319 = vld [vmem:[%s2313 + $0x28] sm:$0xff]
        %v2320 = vld [vmem:[%s2313 + $0x30] sm:$0xff]
        %v2321 = vld [vmem:[%s2313 + $0x38] sm:$0xff]
        %v2322 = vld [vmem:[%s2313 + $0x40] sm:$0xff]
        %v2323 = vld [vmem:[%s2313 + $0x48] sm:$0xff]
        %v2324 = vld [vmem:[%s2313 + $0x50] sm:$0xff]
        %v2325 = vld [vmem:[%s2313 + $0x58] sm:$0xff]
        %v2326 = vld [vmem:[%s2313 + $0x60] sm:$0xff]
        %v2327 = vld [vmem:[%s2313 + $0x68] sm:$0xff]
        %v2328 = vld [vmem:[%s2313 + $0x70] sm:$0xff]
        %v2329 = vld [vmem:[%s2313 + $0x78] sm:$0xff]
        %v2330 = vld [vmem:[%s2313 + $0x80] sm:$0xff]
        %v2331 = vld [vmem:[%s2313 + $0x88] sm:$0xff]
        %v2332 = vld [vmem:[%s2313 + $0x90] sm:$0xff]
        %v2333 = vld [vmem:[%s2313 + $0x98] sm:$0xff]
        %v2334 = vld [vmem:[%s2313 + $0xa0] sm:$0xff]
        %v2335 = vld [vmem:[%s2313 + $0xa8] sm:$0xff]
        %v2336 = vld [vmem:[%s2313 + $0xb0] sm:$0xff]
        %v2337 = vld [vmem:[%s2313 + $0xb8] sm:$0xff]
        %v2338 = vld [vmem:[%s2313 + $0xc0] sm:$0xff]
        %v2339 = vld [vmem:[%s2313 + $0xc8] sm:$0xff]
        %v2340 = vld [vmem:[%s2313 + $0xd0] sm:$0xff]
        %v2341 = vld [vmem:[%s2313 + $0xd8] sm:$0xff]
        %v2342 = vld [vmem:[%s2313 + $0xe0] sm:$0xff]
        %v2343 = vld [vmem:[%s2313 + $0xe8] sm:$0xff]
        %v2344 = vld [vmem:[%s2313 + $0xf0] sm:$0xff]
        %v2345 = vld [vmem:[%s2313 + $0xf8] sm:$0xff]
        %v2346 = vld [vmem:[%s2313 + $0x100] sm:$0xff]
        %v2347 = vld [vmem:[%s2313 + $0x108] sm:$0xff]
        %v2348 = vld [vmem:[%s2313 + $0x110] sm:$0xff]
        %v2349 = vld [vmem:[%s2313 + $0x118] sm:$0xff]
        %v2350 = vld [vmem:[%s2313 + $0x120] sm:$0xff]
        %v2351 = vld [vmem:[%s2313 + $0x128] sm:$0xff]
        %v2352 = vld [vmem:[%s2313 + $0x130] sm:$0xff]
        %v2353 = vld [vmem:[%s2313 + $0x138] sm:$0xff]
        %v2354 = vld [vmem:[%s2313 + $0x140] sm:$0xff]
        %v2355 = vld [vmem:[%s2313 + $0x148] sm:$0xff]
        %v2356 = vld [vmem:[%s2313 + $0x150] sm:$0xff]
        %v2357 = vld [vmem:[%s2313 + $0x158] sm:$0xff]
        %v2358 = vld [vmem:[%s2313 + $0x160] sm:$0xff]
        %v2359 = vld [vmem:[%s2313 + $0x168] sm:$0xff]
        %v2360 = vld [vmem:[%s2313 + $0x170] sm:$0xff]
        %v2361 = vld [vmem:[%s2313 + $0x178] sm:$0xff]
        %v2362 = vld [vmem:[%s2313 + $0x180] sm:$0xff]
        %v2363 = vld [vmem:[%s2313 + $0x188] sm:$0xff]
        %v2364 = vld [vmem:[%s2313 + $0x190] sm:$0xff]
        %v2365 = vld [vmem:[%s2313 + $0x198] sm:$0xff]
        %v2366 = vld [vmem:[%s2313 + $0x1a0] sm:$0xff]
        %v2367 = vld [vmem:[%s2313 + $0x1a8] sm:$0xff]
        %v2368 = vld [vmem:[%s2313 + $0x1b0] sm:$0xff]
        %v2369 = vld [vmem:[%s2313 + $0x1b8] sm:$0xff]
        %v2370 = vld [vmem:[%s2313 + $0x1c0] sm:$0xff]
        %v2371 = vld [vmem:[%s2313 + $0x1c8] sm:$0xff]
        %v2372 = vld [vmem:[%s2313 + $0x1d0] sm:$0xff]
        %v2373 = vld [vmem:[%s2313 + $0x1d8] sm:$0xff]
        %v2374 = vld [vmem:[%s2313 + $0x1e0] sm:$0xff]
        %v2375 = vld [vmem:[%s2313 + $0x1e8] sm:$0xff]
        %v2376 = vld [vmem:[%s2313 + $0x1f0] sm:$0xff]
        %v2377 = vld [vmem:[%s2313 + $0x1f8] sm:$0xff]
        %v2378 = vld [vmem:[%s2313 + $0x200] sm:$0xff]
        %v2379 = vld [vmem:[%s2313 + $0x208] sm:$0xff]
        %v2380 = vld [vmem:[%s2313 + $0x210] sm:$0xff]
        %v2381 = vld [vmem:[%s2313 + $0x218] sm:$0xff]
        %v2382 = vld [vmem:[%s2313 + $0x220] sm:$0xff]
        %v2383 = vld [vmem:[%s2313 + $0x228] sm:$0xff]
        %v2384 = vld [vmem:[%s2313 + $0x230] sm:$0xff]
        %v2385 = vld [vmem:[%s2313 + $0x238] sm:$0xff]
        %v2386 = vld [vmem:[%s2313 + $0x240] sm:$0xff]
        %v2387 = vld [vmem:[%s2313 + $0x248] sm:$0xff]
        %v2388 = vld [vmem:[%s2313 + $0x250] sm:$0xff]
        %v2389 = vld [vmem:[%s2313 + $0x258] sm:$0xff]
        %v2390 = vld [vmem:[%s2313 + $0x260] sm:$0xff]
        %v2391 = vld [vmem:[%s2313 + $0x268] sm:$0xff]
        %v2392 = vld [vmem:[%s2313 + $0x270] sm:$0xff]
        %v2393 = vld [vmem:[%s2313 + $0x278] sm:$0xff]
        %v2394 = vld [vmem:[%s2313 + $0x280] sm:$0xff]
        %v2395 = vld [vmem:[%s2313 + $0x288] sm:$0xff]
        %v2396 = vld [vmem:[%s2313 + $0x290] sm:$0xff]
        %v2397 = vld [vmem:[%s2313 + $0x298] sm:$0xff]
        %v2398 = vld [vmem:[%s2313 + $0x2a0] sm:$0xff]
        %v2399 = vld [vmem:[%s2313 + $0x2a8] sm:$0xff]
        %v2400 = vld [vmem:[%s2313 + $0x2b0] sm:$0xff]
        %v2401 = vld [vmem:[%s2313 + $0x2b8] sm:$0xff]
        %v2402 = vld [vmem:[%s2313 + $0x2c0] sm:$0xff]
        %v2403 = vld [vmem:[%s2313 + $0x2c8] sm:$0xff]
        %v2404 = vld [vmem:[%s2313 + $0x2d0] sm:$0xff]
        %v2405 = vld [vmem:[%s2313 + $0x2d8] sm:$0xff]
        %v2406 = vld [vmem:[%s2313 + $0x2e0] sm:$0xff]
        %v2407 = vld [vmem:[%s2313 + $0x2e8] sm:$0xff]
        %v2408 = vld [vmem:[%s2313 + $0x2f0] sm:$0xff]
        %v2409 = vld [vmem:[%s2313 + $0x2f8] sm:$0xff]
        %v2410 = vld [vmem:[%s2313 + $0x300] sm:$0xff]
        %v2411 = vld [vmem:[%s2313 + $0x308] sm:$0xff]
        %v2412 = vld [vmem:[%s2313 + $0x310] sm:$0xff]
        %v2413 = vld [vmem:[%s2313 + $0x318] sm:$0xff]
        %v2414 = vld [vmem:[%s2313 + $0x320] sm:$0xff]
        %v2415 = vld [vmem:[%s2313 + $0x328] sm:$0xff]
        %v2416 = vld [vmem:[%s2313 + $0x330] sm:$0xff]
        %v2417 = vld [vmem:[%s2313 + $0x338] sm:$0xff]
        %v2418 = vld [vmem:[%s2313 + $0x340] sm:$0xff]
        %v2419 = vld [vmem:[%s2313 + $0x348] sm:$0xff]
        %v2420 = vld [vmem:[%s2313 + $0x350] sm:$0xff]
        %v2421 = vld [vmem:[%s2313 + $0x358] sm:$0xff]
        %v2422 = vld [vmem:[%s2313 + $0x360] sm:$0xff]
        %v2423 = vld [vmem:[%s2313 + $0x368] sm:$0xff]
        %v2424 = vld [vmem:[%s2313 + $0x370] sm:$0xff]
        %v2425 = vld [vmem:[%s2313 + $0x378] sm:$0xff]
        %v2426 = vld [vmem:[%s2313 + $0x380] sm:$0xff]
        %v2427 = vld [vmem:[%s2313 + $0x388] sm:$0xff]
        %v2428 = vld [vmem:[%s2313 + $0x390] sm:$0xff]
        %v2429 = vld [vmem:[%s2313 + $0x398] sm:$0xff]
        %v2430 = vld [vmem:[%s2313 + $0x3a0] sm:$0xff]
        %v2431 = vld [vmem:[%s2313 + $0x3a8] sm:$0xff]
        %v2432 = vld [vmem:[%s2313 + $0x3b0] sm:$0xff]
        %v2433 = vld [vmem:[%s2313 + $0x3b8] sm:$0xff]
        %v2434 = vld [vmem:[%s2313 + $0x3c0] sm:$0xff]
        %v2435 = vld [vmem:[%s2313 + $0x3c8] sm:$0xff]
        %v2436 = vld [vmem:[%s2313 + $0x3d0] sm:$0xff]
        %v2437 = vld [vmem:[%s2313 + $0x3d8] sm:$0xff]
        %v2438 = vld [vmem:[%s2313 + $0x3e0] sm:$0xff]
        %v2439 = vld [vmem:[%s2313 + $0x3e8] sm:$0xff]
        %v2440 = vld [vmem:[%s2313 + $0x3f0] sm:$0xff]
        %v2441 = vld [vmem:[%s2313 + $0x3f8] sm:$0xff]
        %v2442 = vld [vmem:[%s2313 + $0x400] sm:$0xff]
        %v2443 = vld [vmem:[%s2313 + $0x408] sm:$0xff]
        %v2444 = vld [vmem:[%s2313 + $0x410] sm:$0xff]
        %v2445 = vld [vmem:[%s2313 + $0x418] sm:$0xff]
        %v2446 = vld [vmem:[%s2313 + $0x420] sm:$0xff]
        %v2447 = vld [vmem:[%s2313 + $0x428] sm:$0xff]
        %v2448 = vld [vmem:[%s2313 + $0x430] sm:$0xff]
        %v2449 = vld [vmem:[%s2313 + $0x438] sm:$0xff]
        %v2450 = vld [vmem:[%s2313 + $0x440] sm:$0xff]
        %v2451 = vld [vmem:[%s2313 + $0x448] sm:$0xff]
        %v2452 = vld [vmem:[%s2313 + $0x450] sm:$0xff]
        %v2453 = vld [vmem:[%s2313 + $0x458] sm:$0xff]
        %v2454 = vld [vmem:[%s2313 + $0x460] sm:$0xff]
        %v2455 = vld [vmem:[%s2313 + $0x468] sm:$0xff]
        %v2456 = vld [vmem:[%s2313 + $0x470] sm:$0xff]
        %v2457 = vld [vmem:[%s2313 + $0x478] sm:$0xff]
        %v2458 = vld [vmem:[%s2313 + $0x480] sm:$0xff]
        %v2459 = vld [vmem:[%s2313 + $0x488] sm:$0xff]
        %v2460 = vld [vmem:[%s2313 + $0x490] sm:$0xff]
        %v2461 = vld [vmem:[%s2313 + $0x498] sm:$0xff]
        %v2462 = vld [vmem:[%s2313 + $0x4a0] sm:$0xff]
        %v2463 = vld [vmem:[%s2313 + $0x4a8] sm:$0xff]
        %v2464 = vld [vmem:[%s2313 + $0x4b0] sm:$0xff]
        %v2465 = vld [vmem:[%s2313 + $0x4b8] sm:$0xff]
        %v2466 = vld [vmem:[%s2313 + $0x4c0] sm:$0xff]
        %v2467 = vld [vmem:[%s2313 + $0x4c8] sm:$0xff]
        %v2468 = vld [vmem:[%s2313 + $0x4d0] sm:$0xff]
        %v2469 = vld [vmem:[%s2313 + $0x4d8] sm:$0xff]
        %v2470 = vld [vmem:[%s2313 + $0x4e0] sm:$0xff]
        %v2471 = vld [vmem:[%s2313 + $0x4e8] sm:$0xff]
        %v2472 = vld [vmem:[%s2313 + $0x4f0] sm:$0xff]
        %v2473 = vld [vmem:[%s2313 + $0x4f8] sm:$0xff]
        %v2474 = vld [vmem:[%s2313 + $0x500] sm:$0xff]
        %v2475 = vld [vmem:[%s2313 + $0x508] sm:$0xff]
        %v2476 = vld [vmem:[%s2313 + $0x510] sm:$0xff]
        %v2477 = vld [vmem:[%s2313 + $0x518] sm:$0xff]
        %v2478 = vld [vmem:[%s2313 + $0x520] sm:$0xff]
        %v2479 = vld [vmem:[%s2313 + $0x528] sm:$0xff]
        %v2480 = vld [vmem:[%s2313 + $0x530] sm:$0xff]
        %v2481 = vld [vmem:[%s2313 + $0x538] sm:$0xff]
        %v2482 = vld [vmem:[%s2313 + $0x540] sm:$0xff]
        %v2483 = vld [vmem:[%s2313 + $0x548] sm:$0xff]
        %v2484 = vld [vmem:[%s2313 + $0x550] sm:$0xff]
        %v2485 = vld [vmem:[%s2313 + $0x558] sm:$0xff]
        %v2486 = vld [vmem:[%s2313 + $0x560] sm:$0xff]
        %v2487 = vld [vmem:[%s2313 + $0x568] sm:$0xff]
        %v2488 = vld [vmem:[%s2313 + $0x570] sm:$0xff]
        %v2489 = vld [vmem:[%s2313 + $0x578] sm:$0xff]
        %v2490 = vld [vmem:[%s2313 + $0x580] sm:$0xff]
        %v2491 = vld [vmem:[%s2313 + $0x588] sm:$0xff]
        %v2492 = vld [vmem:[%s2313 + $0x590] sm:$0xff]
        %v2493 = vld [vmem:[%s2313 + $0x598] sm:$0xff]
        %v2494 = vld [vmem:[%s2313 + $0x5a0] sm:$0xff]
        %v2495 = vld [vmem:[%s2313 + $0x5a8] sm:$0xff]
        %v2496 = vld [vmem:[%s2313 + $0x5b0] sm:$0xff]
        %v2497 = vld [vmem:[%s2313 + $0x5b8] sm:$0xff]
        %v2498 = vld [vmem:[%s2313 + $0x5c0] sm:$0xff]
        %v2499 = vld [vmem:[%s2313 + $0x5c8] sm:$0xff]
        %v2500 = vld [vmem:[%s2313 + $0x5d0] sm:$0xff]
        %v2501 = vld [vmem:[%s2313 + $0x5d8] sm:$0xff]
        %v2502 = vld [vmem:[%s2313 + $0x5e0] sm:$0xff]
        %v2503 = vld [vmem:[%s2313 + $0x5e8] sm:$0xff]
        %v2504 = vld [vmem:[%s2313 + $0x5f0] sm:$0xff]
        %v2505 = vld [vmem:[%s2313 + $0x5f8] sm:$0xff]
        %v2506 = vld [vmem:[%s2313 + $0x600] sm:$0xff]
        %v2507 = vld [vmem:[%s2313 + $0x608] sm:$0xff]
        %v2508 = vld [vmem:[%s2313 + $0x610] sm:$0xff]
        %v2509 = vld [vmem:[%s2313 + $0x618] sm:$0xff]
        %v2510 = vld [vmem:[%s2313 + $0x620] sm:$0xff]
        %v2511 = vld [vmem:[%s2313 + $0x628] sm:$0xff]
        %v2512 = vld [vmem:[%s2313 + $0x630] sm:$0xff]
        %v2513 = vld [vmem:[%s2313 + $0x638] sm:$0xff]
        %v2514 = vld [vmem:[%s2313 + $0x640] sm:$0xff]
        %v2515 = vld [vmem:[%s2313 + $0x648] sm:$0xff]
        %v2516 = vld [vmem:[%s2313 + $0x650] sm:$0xff]
        %v2517 = vld [vmem:[%s2313 + $0x658] sm:$0xff]
        %v2518 = vld [vmem:[%s2313 + $0x660] sm:$0xff]
        %v2519 = vld [vmem:[%s2313 + $0x668] sm:$0xff]
        %v2520 = vld [vmem:[%s2313 + $0x670] sm:$0xff]
        %v2521 = vld [vmem:[%s2313 + $0x678] sm:$0xff]
        %v2522 = vld [vmem:[%s2313 + $0x680] sm:$0xff]
        %v2523 = vld [vmem:[%s2313 + $0x688] sm:$0xff]
        %v2524 = vld [vmem:[%s2313 + $0x690] sm:$0xff]
        %v2525 = vld [vmem:[%s2313 + $0x698] sm:$0xff]
        %v2526 = vld [vmem:[%s2313 + $0x6a0] sm:$0xff]
        %v2527 = vld [vmem:[%s2313 + $0x6a8] sm:$0xff]
        %v2528 = vld [vmem:[%s2313 + $0x6b0] sm:$0xff]
        %v2529 = vld [vmem:[%s2313 + $0x6b8] sm:$0xff]
        %v2530 = vld [vmem:[%s2313 + $0x6c0] sm:$0xff]
        %v2531 = vld [vmem:[%s2313 + $0x6c8] sm:$0xff]
        %v2532 = vld [vmem:[%s2313 + $0x6d0] sm:$0xff]
        %v2533 = vld [vmem:[%s2313 + $0x6d8] sm:$0xff]
        %v2534 = vld [vmem:[%s2313 + $0x6e0] sm:$0xff]
        %v2535 = vld [vmem:[%s2313 + $0x6e8] sm:$0xff]
        %v2536 = vld [vmem:[%s2313 + $0x6f0] sm:$0xff]
        %v2537 = vld [vmem:[%s2313 + $0x6f8] sm:$0xff]
        %v2538 = vld [vmem:[%s2313 + $0x700] sm:$0xff]
        %v2539 = vld [vmem:[%s2313 + $0x708] sm:$0xff]
        %v2540 = vld [vmem:[%s2313 + $0x710] sm:$0xff]
        %v2541 = vld [vmem:[%s2313 + $0x718] sm:$0xff]
        %v2542 = vld [vmem:[%s2313 + $0x720] sm:$0xff]
        %v2543 = vld [vmem:[%s2313 + $0x728] sm:$0xff]
        %v2544 = vld [vmem:[%s2313 + $0x730] sm:$0xff]
        %v2545 = vld [vmem:[%s2313 + $0x738] sm:$0xff]
        %v2546 = vld [vmem:[%s2313 + $0x740] sm:$0xff]
        %v2547 = vld [vmem:[%s2313 + $0x748] sm:$0xff]
        %v2548 = vld [vmem:[%s2313 + $0x750] sm:$0xff]
        %v2549 = vld [vmem:[%s2313 + $0x758] sm:$0xff]
        %v2550 = vld [vmem:[%s2313 + $0x760] sm:$0xff]
        %v2551 = vld [vmem:[%s2313 + $0x768] sm:$0xff]
        %v2552 = vld [vmem:[%s2313 + $0x770] sm:$0xff]
        %v2553 = vld [vmem:[%s2313 + $0x778] sm:$0xff]
        %v2554 = vld [vmem:[%s2313 + $0x780] sm:$0xff]
        %v2555 = vld [vmem:[%s2313 + $0x788] sm:$0xff]
        %v2556 = vld [vmem:[%s2313 + $0x790] sm:$0xff]
        %v2557 = vld [vmem:[%s2313 + $0x798] sm:$0xff]
        %v2558 = vld [vmem:[%s2313 + $0x7a0] sm:$0xff]
        %v2559 = vld [vmem:[%s2313 + $0x7a8] sm:$0xff]
        %v2560 = vld [vmem:[%s2313 + $0x7b0] sm:$0xff]
        %v2561 = vld [vmem:[%s2313 + $0x7b8] sm:$0xff]
        %v2562 = vld [vmem:[%s2313 + $0x7c0] sm:$0xff]
        %v2563 = vld [vmem:[%s2313 + $0x7c8] sm:$0xff]
        %v2564 = vld [vmem:[%s2313 + $0x7d0] sm:$0xff]
        %v2565 = vld [vmem:[%s2313 + $0x7d8] sm:$0xff]
        %v2566 = vld [vmem:[%s2313 + $0x7e0] sm:$0xff]
        %v2567 = vld [vmem:[%s2313 + $0x7e8] sm:$0xff]
        %v2568 = vld [vmem:[%s2313 + $0x7f0] sm:$0xff]
        %v2569 = vld [vmem:[%s2313 + $0x7f8] sm:$0xff]
        %v2570 = vld [vmem:[%s2313 + $0x800] sm:$0xff]
        %v2571 = vld [vmem:[%s2313 + $0x808] sm:$0xff]
        %v2572 = vld [vmem:[%s2313 + $0x810] sm:$0xff]
        %v2573 = vld [vmem:[%s2313 + $0x818] sm:$0xff]
        %v2574 = vld [vmem:[%s2313 + $0x820] sm:$0xff]
        %v2575 = vld [vmem:[%s2313 + $0x828] sm:$0xff]
        %v2576 = vld [vmem:[%s2313 + $0x830] sm:$0xff]
        %v2577 = vld [vmem:[%s2313 + $0x838] sm:$0xff]
        %v2578 = vld [vmem:[%s2313 + $0x840] sm:$0xff]
        %v2579 = vld [vmem:[%s2313 + $0x848] sm:$0xff]
        %v2580 = vld [vmem:[%s2313 + $0x850] sm:$0xff]
        %v2581 = vld [vmem:[%s2313 + $0x858] sm:$0xff]
        %v2582 = vld [vmem:[%s2313 + $0x860] sm:$0xff]
        %v2583 = vld [vmem:[%s2313 + $0x868] sm:$0xff]
        %v2584 = vld [vmem:[%s2313 + $0x870] sm:$0xff]
        %v2585 = vld [vmem:[%s2313 + $0x878] sm:$0xff]
        %v2586 = vld [vmem:[%s2313 + $0x880] sm:$0xff]
        %v2587 = vld [vmem:[%s2313 + $0x888] sm:$0xff]
        %v2588 = vld [vmem:[%s2313 + $0x890] sm:$0xff]
        %v2589 = vld [vmem:[%s2313 + $0x898] sm:$0xff]
        %v2590 = vld [vmem:[%s2313 + $0x8a0] sm:$0xff]
        %v2591 = vld [vmem:[%s2313 + $0x8a8] sm:$0xff]
        %v2592 = vld [vmem:[%s2313 + $0x8b0] sm:$0xff]
        %v2593 = vld [vmem:[%s2313 + $0x8b8] sm:$0xff]
        %v2594 = vld [vmem:[%s2313 + $0x8c0] sm:$0xff]
        %v2595 = vld [vmem:[%s2313 + $0x8c8] sm:$0xff]
        %v2596 = vld [vmem:[%s2313 + $0x8d0] sm:$0xff]
        %v2597 = vld [vmem:[%s2313 + $0x8d8] sm:$0xff]
        %v2598 = vld [vmem:[%s2313 + $0x8e0] sm:$0xff]
        %v2599 = vld [vmem:[%s2313 + $0x8e8] sm:$0xff]
        %v2600 = vld [vmem:[%s2313 + $0x8f0] sm:$0xff]
        %v2601 = vld [vmem:[%s2313 + $0x8f8] sm:$0xff]
        %v2602 = vld [vmem:[%s2313 + $0x900] sm:$0xff]
        %v2603 = vld [vmem:[%s2313 + $0x908] sm:$0xff]
        %v2604 = vld [vmem:[%s2313 + $0x910] sm:$0xff]
        %v2605 = vld [vmem:[%s2313 + $0x918] sm:$0xff]
        %v2606 = vld [vmem:[%s2313 + $0x920] sm:$0xff]
        %v2607 = vld [vmem:[%s2313 + $0x928] sm:$0xff]
        %v2608 = vld [vmem:[%s2313 + $0x930] sm:$0xff]
        %v2609 = vld [vmem:[%s2313 + $0x938] sm:$0xff]
        %v2610 = vld [vmem:[%s2313 + $0x940] sm:$0xff]
        %v2611 = vld [vmem:[%s2313 + $0x948] sm:$0xff]
        %v2612 = vld [vmem:[%s2313 + $0x950] sm:$0xff]
        %v2613 = vld [vmem:[%s2313 + $0x958] sm:$0xff]
        %v2614 = vld [vmem:[%s2313 + $0x960] sm:$0xff]
        %v2615 = vld [vmem:[%s2313 + $0x968] sm:$0xff]
        %v2616 = vld [vmem:[%s2313 + $0x970] sm:$0xff]
        %v2617 = vld [vmem:[%s2313 + $0x978] sm:$0xff]
        %v2618 = vld [vmem:[%s2313 + $0x980] sm:$0xff]
        %v2619 = vld [vmem:[%s2313 + $0x988] sm:$0xff]
        %v2620 = vld [vmem:[%s2313 + $0x990] sm:$0xff]
        %v2621 = vld [vmem:[%s2313 + $0x998] sm:$0xff]
        %v2622 = vld [vmem:[%s2313 + $0x9a0] sm:$0xff]
        %v2623 = vld [vmem:[%s2313 + $0x9a8] sm:$0xff]
        %v2624 = vld [vmem:[%s2313 + $0x9b0] sm:$0xff]
        %v2625 = vld [vmem:[%s2313 + $0x9b8] sm:$0xff]
        %v2626 = vld [vmem:[%s2313 + $0x9c0] sm:$0xff]
        %v2627 = vld [vmem:[%s2313 + $0x9c8] sm:$0xff]
        %v2628 = vld [vmem:[%s2313 + $0x9d0] sm:$0xff]
        %v2629 = vld [vmem:[%s2313 + $0x9d8] sm:$0xff]
        %v2630 = vld [vmem:[%s2313 + $0x9e0] sm:$0xff]
        %v2631 = vld [vmem:[%s2313 + $0x9e8] sm:$0xff]
        %v2632 = vld [vmem:[%s2313 + $0x9f0] sm:$0xff]
        %v2633 = vld [vmem:[%s2313 + $0x9f8] sm:$0xff]
        %v2634 = vld [vmem:[%s2313 + $0xa00] sm:$0xff]
        %v2635 = vld [vmem:[%s2313 + $0xa08] sm:$0xff]
        %v2636 = vld [vmem:[%s2313 + $0xa10] sm:$0xff]
        %v2637 = vld [vmem:[%s2313 + $0xa18] sm:$0xff]
        %v2638 = vld [vmem:[%s2313 + $0xa20] sm:$0xff]
        %v2639 = vld [vmem:[%s2313 + $0xa28] sm:$0xff]
        %v2640 = vld [vmem:[%s2313 + $0xa30] sm:$0xff]
        %v2641 = vld [vmem:[%s2313 + $0xa38] sm:$0xff]
        %v2642 = vld [vmem:[%s2313 + $0xa40] sm:$0xff]
        %v2643 = vld [vmem:[%s2313 + $0xa48] sm:$0xff]
        %v2644 = vld [vmem:[%s2313 + $0xa50] sm:$0xff]
        %v2645 = vld [vmem:[%s2313 + $0xa58] sm:$0xff]
        %v2646 = vld [vmem:[%s2313 + $0xa60] sm:$0xff]
        %v2647 = vld [vmem:[%s2313 + $0xa68] sm:$0xff]
        %v2648 = vld [vmem:[%s2313 + $0xa70] sm:$0xff]
        %v2649 = vld [vmem:[%s2313 + $0xa78] sm:$0xff]
        %v2650 = vld [vmem:[%s2313 + $0xa80] sm:$0xff]
        %v2651 = vld [vmem:[%s2313 + $0xa88] sm:$0xff]
        %v2652 = vld [vmem:[%s2313 + $0xa90] sm:$0xff]
        %v2653 = vld [vmem:[%s2313 + $0xa98] sm:$0xff]
        %v2654 = vld [vmem:[%s2313 + $0xaa0] sm:$0xff]
        %v2655 = vld [vmem:[%s2313 + $0xaa8] sm:$0xff]
        %v2656 = vld [vmem:[%s2313 + $0xab0] sm:$0xff]
        %v2657 = vld [vmem:[%s2313 + $0xab8] sm:$0xff]
        %v2658 = vld [vmem:[%s2313 + $0xac0] sm:$0xff]
        %v2659 = vld [vmem:[%s2313 + $0xac8] sm:$0xff]
        %v2660 = vld [vmem:[%s2313 + $0xad0] sm:$0xff]
        %v2661 = vld [vmem:[%s2313 + $0xad8] sm:$0xff]
        %v2662 = vld [vmem:[%s2313 + $0xae0] sm:$0xff]
        %v2663 = vld [vmem:[%s2313 + $0xae8] sm:$0xff]
        %v2664 = vld [vmem:[%s2313 + $0xaf0] sm:$0xff]
        %v2665 = vld [vmem:[%s2313 + $0xaf8] sm:$0xff]
        %v2666 = vld [vmem:[%s2313 + $0xb00] sm:$0xff]
        %v2667 = vld [vmem:[%s2313 + $0xb08] sm:$0xff]
        %v2668 = vld [vmem:[%s2313 + $0xb10] sm:$0xff]
        %v2669 = vld [vmem:[%s2313 + $0xb18] sm:$0xff]
        %v2670 = vld [vmem:[%s2313 + $0xb20] sm:$0xff]
        %v2671 = vld [vmem:[%s2313 + $0xb28] sm:$0xff]
        %v2672 = vld [vmem:[%s2313 + $0xb30] sm:$0xff]
        %v2673 = vld [vmem:[%s2313 + $0xb38] sm:$0xff]
        %v2674 = vld [vmem:[%s2313 + $0xb40] sm:$0xff]
        %v2675 = vld [vmem:[%s2313 + $0xb48] sm:$0xff]
        %v2676 = vld [vmem:[%s2313 + $0xb50] sm:$0xff]
        %v2677 = vld [vmem:[%s2313 + $0xb58] sm:$0xff]
        %v2678 = vld [vmem:[%s2313 + $0xb60] sm:$0xff]
        %v2679 = vld [vmem:[%s2313 + $0xb68] sm:$0xff]
        %v2680 = vld [vmem:[%s2313 + $0xb70] sm:$0xff]
        %v2681 = vld [vmem:[%s2313 + $0xb78] sm:$0xff]
        %v2682 = vld [vmem:[%s2313 + $0xb80] sm:$0xff]
        %v2683 = vld [vmem:[%s2313 + $0xb88] sm:$0xff]
        %v2684 = vld [vmem:[%s2313 + $0xb90] sm:$0xff]
        %v2685 = vld [vmem:[%s2313 + $0xb98] sm:$0xff]
        %v2686 = vld [vmem:[%s2313 + $0xba0] sm:$0xff]
        %v2687 = vld [vmem:[%s2313 + $0xba8] sm:$0xff]
        %v2688 = vld [vmem:[%s2313 + $0xbb0] sm:$0xff]
        %v2689 = vld [vmem:[%s2313 + $0xbb8] sm:$0xff]
        %v2690 = vld [vmem:[%s2313 + $0xbc0] sm:$0xff]
        %v2691 = vld [vmem:[%s2313 + $0xbc8] sm:$0xff]
        %v2692 = vld [vmem:[%s2313 + $0xbd0] sm:$0xff]
        %v2693 = vld [vmem:[%s2313 + $0xbd8] sm:$0xff]
        %v2694 = vld [vmem:[%s2313 + $0xbe0] sm:$0xff]
        %v2695 = vld [vmem:[%s2313 + $0xbe8] sm:$0xff]
        %v2696 = vld [vmem:[%s2313 + $0xbf0] sm:$0xff]
        %v2697 = vld [vmem:[%s2313 + $0xbf8] sm:$0xff]
        %vm2710 = vcmask 1045504
        %v2711 = vrot.slane %v2301, 2
        %v2712 = vrot.slane %v529, 2
        %v2713 = vsel %vm2710, %v2711, %v2712
        %v2714 = vrot.slane %v2302, 2
        %v2715 = vrot.slane %v530, 2
        %v2716 = vsel %vm2710, %v2714, %v2715
        %v2717 = vrot.slane %v2303, 2
        %v2718 = vrot.slane %v531, 2
        %v2719 = vsel %vm2710, %v2717, %v2718
        %v2720 = vrot.slane %v2304, 2
        %v2721 = vrot.slane %v532, 2
        %v2722 = vsel %vm2710, %v2720, %v2721
        %v2723 = vrot.slane %v2305, 2
        %v2724 = vrot.slane %v533, 2
        %v2725 = vsel %vm2710, %v2723, %v2724
        %v2726 = vrot.slane %v2306, 2
        %v2727 = vrot.slane %v534, 2
        %v2728 = vsel %vm2710, %v2726, %v2727
        %v2729 = vrot.slane %v2307, 2
        %v2730 = vsel %vm2710, %v2712, %v2729
        %v2731 = vrot.slane %v2308, 2
        %v2732 = vsel %vm2710, %v2715, %v2731
        %v2733 = vrot.slane %v2309, 2
        %v2734 = vsel %vm2710, %v2718, %v2733
        %v2735 = vrot.slane %v2310, 2
        %v2736 = vsel %vm2710, %v2721, %v2735
        %v2737 = vrot.slane %v2311, 2
        %v2738 = vsel %vm2710, %v2724, %v2737
        %v2739 = vrot.slane %v2312, 2
        %v2740 = vsel %vm2710, %v2727, %v2739
        %2753 = vmatprep.subr.mxu0 %v2315
        %2754 = vmatpush1.msra.mxu0 %v2314
        %2755 = vmatprep.subr.mxu0 %v2319
        %2756 = vmatpush1.msra.mxu0 %v2318
        %2757 = vmatprep.subr.mxu0 %v2323
        %2758 = vmatpush1.msra.mxu0 %v2322
        %2759 = vmatprep.subr.mxu0 %v2327
        %2760 = vmatpush1.msra.mxu0 %v2326
        %2761 = vmatprep.subr.mxu0 %v2331
        %2762 = vmatpush1.msra.mxu0 %v2330
        %2763 = vmatprep.subr.mxu0 %v2335
        %2764 = vmatpush1.msra.mxu0 %v2334
        %2765 = vmatprep.subr.mxu0 %v2339
        %2766 = vmatpush1.msra.mxu0 %v2338
        %2767 = vmatprep.subr.mxu0 %v2343
        %2768 = vmatpush1.msra.mxu0 %v2342
        %2769 = vmatprep.subr.mxu0 %v2347
        %2770 = vmatpush1.msra.mxu0 %v2346
        %2771 = vmatprep.subr.mxu0 %v2351
        %2772 = vmatpush1.msra.mxu0 %v2350
        %2773 = vmatprep.subr.mxu0 %v2355
        %2774 = vmatpush1.msra.mxu0 %v2354
        %2775 = vmatprep.subr.mxu0 %v2359
        %2776 = vmatpush1.msra.mxu0 %v2358
        %2777 = vmatprep.subr.mxu0 %v2363
        %2778 = vmatpush1.msra.mxu0 %v2362
        %2779 = vmatprep.subr.mxu0 %v2367
        %2780 = vmatpush1.msra.mxu0 %v2366
        %2781 = vmatprep.subr.mxu0 %v2371
        %2782 = vmatpush1.msra.mxu0 %v2370
        %2783 = vmatprep.subr.mxu0 %v2375
        %2784 = vmatpush1.msra.mxu0 %v2374
        %2785 = vmatprep.subr.mxu0 %v2379
        %2786 = vmatpush1.msra.mxu0 %v2378
        %2787 = vmatprep.subr.mxu0 %v2383
        %2788 = vmatpush1.msra.mxu0 %v2382
        %2789 = vmatprep.subr.mxu0 %v2387
        %2790 = vmatpush1.msra.mxu0 %v2386
        %2791 = vmatprep.subr.mxu0 %v2391
        %2792 = vmatpush1.msra.mxu0 %v2390
        %2793 = vmatprep.subr.mxu0 %v2395
        %2794 = vmatpush1.msra.mxu0 %v2394
        %2795 = vmatprep.subr.mxu0 %v2399
        %2796 = vmatpush1.msra.mxu0 %v2398
        %2797 = vmatprep.subr.mxu0 %v2403
        %2798 = vmatpush1.msra.mxu0 %v2402
        %2799 = vmatprep.subr.mxu0 %v2407
        %2800 = vmatpush1.msra.mxu0 %v2406
        %2801 = vmatprep.subr.mxu0 %v2411
        %2802 = vmatpush1.msra.mxu0 %v2410
        %2803 = vmatprep.subr.mxu0 %v2415
        %2804 = vmatpush1.msra.mxu0 %v2414
        %2805 = vmatprep.subr.mxu0 %v2419
        %2806 = vmatpush1.msra.mxu0 %v2418
        %2807 = vmatprep.subr.mxu0 %v2423
        %2808 = vmatpush1.msra.mxu0 %v2422
        %2809 = vmatprep.subr.mxu0 %v2427
        %2810 = vmatpush1.msra.mxu0 %v2426
        %2811 = vmatprep.subr.mxu0 %v2431
        %2812 = vmatpush1.msra.mxu0 %v2430
        %2813 = vmatprep.subr.mxu0 %v2435
        %2814 = vmatpush1.msra.mxu0 %v2434
        %2815 = vmatprep.subr.mxu0 %v2439
        %2816 = vmatpush1.msra.mxu0 %v2438
        %2817 = vmatprep.mubr.f32.mxu0 %v2716
        %2818 = vmatmul.mubr.f32.gmra.mrb[0].mxu0 %v2713
        %v2819 = vpop.f32.mrb[0].mxu0
        %v2820 = vadd.f32 0.0, %v2819
        %v2821 = vpop.f32.mrb[0].mxu0
        %v2822 = vadd.f32 0.0, %v2821
        %2823 = vmatprep.mubr.f32.mxu0 %v2732
        %2824 = vmatmul.mubr.f32.gmra.mrb[0].mxu0 %v2730
        %v2825 = vpop.f32.mrb[0].mxu0
        %v2826 = vadd.f32 0.0, %v2825
        %v2827 = vpop.f32.mrb[0].mxu0
        %v2828 = vadd.f32 0.0, %v2827
        %2829 = vdwg.mxu0
        %2830 = vmatprep.subr.mxu0 %v2443
        %2831 = vmatpush1.msra.mxu0 %v2442
        %2832 = vmatprep.subr.mxu0 %v2447
        %2833 = vmatpush1.msra.mxu0 %v2446
        %2834 = vmatprep.subr.mxu0 %v2451
        %2835 = vmatpush1.msra.mxu0 %v2450
        %2836 = vmatprep.subr.mxu0 %v2455
        %2837 = vmatpush1.msra.mxu0 %v2454
        %2838 = vmatprep.subr.mxu0 %v2459
        %2839 = vmatpush1.msra.mxu0 %v2458
        %2840 = vmatprep.subr.mxu0 %v2463
        %2841 = vmatpush1.msra.mxu0 %v2462
        %2842 = vmatprep.subr.mxu0 %v2467
        %2843 = vmatpush1.msra.mxu0 %v2466
        %2844 = vmatprep.subr.mxu0 %v2471
        %2845 = vmatpush1.msra.mxu0 %v2470
        %2846 = vmatprep.subr.mxu0 %v2475
        %2847 = vmatpush1.msra.mxu0 %v2474
        %2848 = vmatprep.subr.mxu0 %v2479
        %2849 = vmatpush1.msra.mxu0 %v2478
        %2850 = vmatprep.subr.mxu0 %v2483
        %2851 = vmatpush1.msra.mxu0 %v2482
        %2852 = vmatprep.subr.mxu0 %v2487
        %2853 = vmatpush1.msra.mxu0 %v2486
        %2854 = vmatprep.subr.mxu0 %v2491
        %2855 = vmatpush1.msra.mxu0 %v2490
        %2856 = vmatprep.subr.mxu0 %v2495
        %2857 = vmatpush1.msra.mxu0 %v2494
        %2858 = vmatprep.subr.mxu0 %v2499
        %2859 = vmatpush1.msra.mxu0 %v2498
        %2860 = vmatprep.subr.mxu0 %v2503
        %2861 = vmatpush1.msra.mxu0 %v2502
        %2862 = vmatprep.subr.mxu0 %v2507
        %2863 = vmatpush1.msra.mxu0 %v2506
        %2864 = vmatprep.subr.mxu0 %v2511
        %2865 = vmatpush1.msra.mxu0 %v2510
        %2866 = vmatprep.subr.mxu0 %v2515
        %2867 = vmatpush1.msra.mxu0 %v2514
        %2868 = vmatprep.subr.mxu0 %v2519
        %2869 = vmatpush1.msra.mxu0 %v2518
        %2870 = vmatprep.subr.mxu0 %v2523
        %2871 = vmatpush1.msra.mxu0 %v2522
        %2872 = vmatprep.subr.mxu0 %v2527
        %2873 = vmatpush1.msra.mxu0 %v2526
        %2874 = vmatprep.subr.mxu0 %v2531
        %2875 = vmatpush1.msra.mxu0 %v2530
        %2876 = vmatprep.subr.mxu0 %v2535
        %2877 = vmatpush1.msra.mxu0 %v2534
        %2878 = vmatprep.subr.mxu0 %v2539
        %2879 = vmatpush1.msra.mxu0 %v2538
        %2880 = vmatprep.subr.mxu0 %v2543
        %2881 = vmatpush1.msra.mxu0 %v2542
        %2882 = vmatprep.subr.mxu0 %v2547
        %2883 = vmatpush1.msra.mxu0 %v2546
        %2884 = vmatprep.subr.mxu0 %v2551
        %2885 = vmatpush1.msra.mxu0 %v2550
        %2886 = vmatprep.subr.mxu0 %v2555
        %2887 = vmatpush1.msra.mxu0 %v2554
        %2888 = vmatprep.subr.mxu0 %v2559
        %2889 = vmatpush1.msra.mxu0 %v2558
        %2890 = vmatprep.subr.mxu0 %v2563
        %2891 = vmatpush1.msra.mxu0 %v2562
        %2892 = vmatprep.subr.mxu0 %v2567
        %2893 = vmatpush1.msra.mxu0 %v2566
        %2894 = vmatprep.mubr.f32.mxu0 %v2722
        %2895 = vmatmul.mubr.f32.gmra.mrb[0].mxu0 %v2719
        %v2896 = vpop.f32.mrb[0].mxu0
        %v2897 = vadd.f32 %v2820, %v2896
        %v2898 = vpop.f32.mrb[0].mxu0
        %v2899 = vadd.f32 %v2822, %v2898
        %2900 = vmatprep.mubr.f32.mxu0 %v2736
        %2901 = vmatmul.mubr.f32.gmra.mrb[0].mxu0 %v2734
        %v2902 = vpop.f32.mrb[0].mxu0
        %v2903 = vadd.f32 %v2826, %v2902
        %v2904 = vpop.f32.mrb[0].mxu0
        %v2905 = vadd.f32 %v2828, %v2904
        %2906 = vdwg.mxu0
        %2907 = vmatprep.subr.mxu0 %v2571
        %2908 = vmatpush1.msra.mxu0 %v2570
        %2909 = vmatprep.subr.mxu0 %v2575
        %2910 = vmatpush1.msra.mxu0 %v2574
        %2911 = vmatprep.subr.mxu0 %v2579
        %2912 = vmatpush1.msra.mxu0 %v2578
        %2913 = vmatprep.subr.mxu0 %v2583
        %2914 = vmatpush1.msra.mxu0 %v2582
        %2915 = vmatprep.subr.mxu0 %v2587
        %2916 = vmatpush1.msra.mxu0 %v2586
        %2917 = vmatprep.subr.mxu0 %v2591
        %2918 = vmatpush1.msra.mxu0 %v2590
        %2919 = vmatprep.subr.mxu0 %v2595
        %2920 = vmatpush1.msra.mxu0 %v2594
        %2921 = vmatprep.subr.mxu0 %v2599
        %2922 = vmatpush1.msra.mxu0 %v2598
        %2923 = vmatprep.subr.mxu0 %v2603
        %2924 = vmatpush1.msra.mxu0 %v2602
        %2925 = vmatprep.subr.mxu0 %v2607
        %2926 = vmatpush1.msra.mxu0 %v2606
        %2927 = vmatprep.subr.mxu0 %v2611
        %2928 = vmatpush1.msra.mxu0 %v2610
        %2929 = vmatprep.subr.mxu0 %v2615
        %2930 = vmatpush1.msra.mxu0 %v2614
        %2931 = vmatprep.subr.mxu0 %v2619
        %2932 = vmatpush1.msra.mxu0 %v2618
        %2933 = vmatprep.subr.mxu0 %v2623
        %2934 = vmatpush1.msra.mxu0 %v2622
        %2935 = vmatprep.subr.mxu0 %v2627
        %2936 = vmatpush1.msra.mxu0 %v2626
        %2937 = vmatprep.subr.mxu0 %v2631
        %2938 = vmatpush1.msra.mxu0 %v2630
        %2939 = vmatprep.subr.mxu0 %v2635
        %2940 = vmatpush1.msra.mxu0 %v2634
        %2941 = vmatprep.subr.mxu0 %v2639
        %2942 = vmatpush1.msra.mxu0 %v2638
        %2943 = vmatprep.subr.mxu0 %v2643
        %2944 = vmatpush1.msra.mxu0 %v2642
        %2945 = vmatprep.subr.mxu0 %v2647
        %2946 = vmatpush1.msra.mxu0 %v2646
        %2947 = vmatprep.subr.mxu0 %v2651
        %2948 = vmatpush1.msra.mxu0 %v2650
        %2949 = vmatprep.subr.mxu0 %v2655
        %2950 = vmatpush1.msra.mxu0 %v2654
        %2951 = vmatprep.subr.mxu0 %v2659
        %2952 = vmatpush1.msra.mxu0 %v2658
        %2953 = vmatprep.subr.mxu0 %v2663
        %2954 = vmatpush1.msra.mxu0 %v2662
        %2955 = vmatprep.subr.mxu0 %v2667
        %2956 = vmatpush1.msra.mxu0 %v2666
        %2957 = vmatprep.subr.mxu0 %v2671
        %2958 = vmatpush1.msra.mxu0 %v2670
        %2959 = vmatprep.subr.mxu0 %v2675
        %2960 = vmatpush1.msra.mxu0 %v2674
        %2961 = vmatprep.subr.mxu0 %v2679
        %2962 = vmatpush1.msra.mxu0 %v2678
        %2963 = vmatprep.subr.mxu0 %v2683
        %2964 = vmatpush1.msra.mxu0 %v2682
        %2965 = vmatprep.subr.mxu0 %v2687
        %2966 = vmatpush1.msra.mxu0 %v2686
        %2967 = vmatprep.subr.mxu0 %v2691
        %2968 = vmatpush1.msra.mxu0 %v2690
        %2969 = vmatprep.subr.mxu0 %v2695
        %2970 = vmatpush1.msra.mxu0 %v2694
        %2971 = vmatprep.mubr.f32.mxu0 %v2728
        %2972 = vmatmul.mubr.f32.gmra.mrb[0].mxu0 %v2725
        %v2973 = vpop.f32.mrb[0].mxu0
        %v2974 = vadd.f32 %v2897, %v2973
        %v2975 = vpop.f32.mrb[0].mxu0
        %v2976 = vadd.f32 %v2899, %v2975
        %2977 = vmatprep.mubr.f32.mxu0 %v2740
        %2978 = vmatmul.mubr.f32.gmra.mrb[0].mxu0 %v2738
        %v2979 = vpop.f32.mrb[0].mxu0
        %v2980 = vadd.f32 %v2903, %v2979
        %v2981 = vpop.f32.mrb[0].mxu0
        %v2982 = vadd.f32 %v2905, %v2981
        %2983 = vdwg.mxu0
        %2984 = vmatprep.subr.mxu0 %v2317
        %2985 = vmatpush1.msra.mxu0 %v2316
        %2986 = vmatprep.subr.mxu0 %v2321
        %2987 = vmatpush1.msra.mxu0 %v2320
        %2988 = vmatprep.subr.mxu0 %v2325
        %2989 = vmatpush1.msra.mxu0 %v2324
        %2990 = vmatprep.subr.mxu0 %v2329
        %2991 = vmatpush1.msra.mxu0 %v2328
        %2992 = vmatprep.subr.mxu0 %v2333
        %2993 = vmatpush1.msra.mxu0 %v2332
        %2994 = vmatprep.subr.mxu0 %v2337
        %2995 = vmatpush1.msra.mxu0 %v2336
        %2996 = vmatprep.subr.mxu0 %v2341
        %2997 = vmatpush1.msra.mxu0 %v2340
        %2998 = vmatprep.subr.mxu0 %v2345
        %2999 = vmatpush1.msra.mxu0 %v2344
        %3000 = vmatprep.subr.mxu0 %v2349
        %3001 = vmatpush1.msra.mxu0 %v2348
        %3002 = vmatprep.subr.mxu0 %v2353
        %3003 = vmatpush1.msra.mxu0 %v2352
        %3004 = vmatprep.subr.mxu0 %v2357
        %3005 = vmatpush1.msra.mxu0 %v2356
        %3006 = vmatprep.subr.mxu0 %v2361
        %3007 = vmatpush1.msra.mxu0 %v2360
        %3008 = vmatprep.subr.mxu0 %v2365
        %3009 = vmatpush1.msra.mxu0 %v2364
        %3010 = vmatprep.subr.mxu0 %v2369
        %3011 = vmatpush1.msra.mxu0 %v2368
        %3012 = vmatprep.subr.mxu0 %v2373
        %3013 = vmatpush1.msra.mxu0 %v2372
        %3014 = vmatprep.subr.mxu0 %v2377
        %3015 = vmatpush1.msra.mxu0 %v2376
        %3016 = vmatprep.subr.mxu0 %v2381
        %3017 = vmatpush1.msra.mxu0 %v2380
        %3018 = vmatprep.subr.mxu0 %v2385
        %3019 = vmatpush1.msra.mxu0 %v2384
        %3020 = vmatprep.subr.mxu0 %v2389
        %3021 = vmatpush1.msra.mxu0 %v2388
        %3022 = vmatprep.subr.mxu0 %v2393
        %3023 = vmatpush1.msra.mxu0 %v2392
        %3024 = vmatprep.subr.mxu0 %v2397
        %3025 = vmatpush1.msra.mxu0 %v2396
        %3026 = vmatprep.subr.mxu0 %v2401
        %3027 = vmatpush1.msra.mxu0 %v2400
        %3028 = vmatprep.subr.mxu0 %v2405
        %3029 = vmatpush1.msra.mxu0 %v2404
        %3030 = vmatprep.subr.mxu0 %v2409
        %3031 = vmatpush1.msra.mxu0 %v2408
        %3032 = vmatprep.subr.mxu0 %v2413
        %3033 = vmatpush1.msra.mxu0 %v2412
        %3034 = vmatprep.subr.mxu0 %v2417
        %3035 = vmatpush1.msra.mxu0 %v2416
        %3036 = vmatprep.subr.mxu0 %v2421
        %3037 = vmatpush1.msra.mxu0 %v2420
        %3038 = vmatprep.subr.mxu0 %v2425
        %3039 = vmatpush1.msra.mxu0 %v2424
        %3040 = vmatprep.subr.mxu0 %v2429
        %3041 = vmatpush1.msra.mxu0 %v2428
        %3042 = vmatprep.subr.mxu0 %v2433
        %3043 = vmatpush1.msra.mxu0 %v2432
        %3044 = vmatprep.subr.mxu0 %v2437
        %3045 = vmatpush1.msra.mxu0 %v2436
        %3046 = vmatprep.subr.mxu0 %v2441
        %3047 = vmatpush1.msra.mxu0 %v2440
        %3048 = vmatprep.mubr.f32.mxu0 %v2716
        %3049 = vmatmul.mubr.f32.gmra.mrb[0].mxu0 %v2713
        %v3050 = vpop.f32.mrb[0].mxu0
        %v3051 = vadd.f32 0.0, %v3050
        %v3052 = vpop.f32.mrb[0].mxu0
        %v3053 = vadd.f32 0.0, %v3052
        %3054 = vmatprep.mubr.f32.mxu0 %v2732
        %3055 = vmatmul.mubr.f32.gmra.mrb[0].mxu0 %v2730
        %v3056 = vpop.f32.mrb[0].mxu0
        %v3057 = vadd.f32 0.0, %v3056
        %v3058 = vpop.f32.mrb[0].mxu0
        %v3059 = vadd.f32 0.0, %v3058
        %3060 = vdwg.mxu0
        %3061 = vmatprep.subr.mxu0 %v2445
        %3062 = vmatpush1.msra.mxu0 %v2444
        %3063 = vmatprep.subr.mxu0 %v2449
        %3064 = vmatpush1.msra.mxu0 %v2448
        %3065 = vmatprep.subr.mxu0 %v2453
        %3066 = vmatpush1.msra.mxu0 %v2452
        %3067 = vmatprep.subr.mxu0 %v2457
        %3068 = vmatpush1.msra.mxu0 %v2456
        %3069 = vmatprep.subr.mxu0 %v2461
        %3070 = vmatpush1.msra.mxu0 %v2460
        %3071 = vmatprep.subr.mxu0 %v2465
        %3072 = vmatpush1.msra.mxu0 %v2464
        %3073 = vmatprep.subr.mxu0 %v2469
        %3074 = vmatpush1.msra.mxu0 %v2468
        %3075 = vmatprep.subr.mxu0 %v2473
        %3076 = vmatpush1.msra.mxu0 %v2472
        %3077 = vmatprep.subr.mxu0 %v2477
        %3078 = vmatpush1.msra.mxu0 %v2476
        %3079 = vmatprep.subr.mxu0 %v2481
        %3080 = vmatpush1.msra.mxu0 %v2480
        %3081 = vmatprep.subr.mxu0 %v2485
        %3082 = vmatpush1.msra.mxu0 %v2484
        %3083 = vmatprep.subr.mxu0 %v2489
        %3084 = vmatpush1.msra.mxu0 %v2488
        %3085 = vmatprep.subr.mxu0 %v2493
        %3086 = vmatpush1.msra.mxu0 %v2492
        %3087 = vmatprep.subr.mxu0 %v2497
        %3088 = vmatpush1.msra.mxu0 %v2496
        %3089 = vmatprep.subr.mxu0 %v2501
        %3090 = vmatpush1.msra.mxu0 %v2500
        %3091 = vmatprep.subr.mxu0 %v2505
        %3092 = vmatpush1.msra.mxu0 %v2504
        %3093 = vmatprep.subr.mxu0 %v2509
        %3094 = vmatpush1.msra.mxu0 %v2508
        %3095 = vmatprep.subr.mxu0 %v2513
        %3096 = vmatpush1.msra.mxu0 %v2512
        %3097 = vmatprep.subr.mxu0 %v2517
        %3098 = vmatpush1.msra.mxu0 %v2516
        %3099 = vmatprep.subr.mxu0 %v2521
        %3100 = vmatpush1.msra.mxu0 %v2520
        %3101 = vmatprep.subr.mxu0 %v2525
        %3102 = vmatpush1.msra.mxu0 %v2524
        %3103 = vmatprep.subr.mxu0 %v2529
        %3104 = vmatpush1.msra.mxu0 %v2528
        %3105 = vmatprep.subr.mxu0 %v2533
        %3106 = vmatpush1.msra.mxu0 %v2532
        %3107 = vmatprep.subr.mxu0 %v2537
        %3108 = vmatpush1.msra.mxu0 %v2536
        %3109 = vmatprep.subr.mxu0 %v2541
        %3110 = vmatpush1.msra.mxu0 %v2540
        %3111 = vmatprep.subr.mxu0 %v2545
        %3112 = vmatpush1.msra.mxu0 %v2544
        %3113 = vmatprep.subr.mxu0 %v2549
        %3114 = vmatpush1.msra.mxu0 %v2548
        %3115 = vmatprep.subr.mxu0 %v2553
        %3116 = vmatpush1.msra.mxu0 %v2552
        %3117 = vmatprep.subr.mxu0 %v2557
        %3118 = vmatpush1.msra.mxu0 %v2556
        %3119 = vmatprep.subr.mxu0 %v2561
        %3120 = vmatpush1.msra.mxu0 %v2560
        %3121 = vmatprep.subr.mxu0 %v2565
        %3122 = vmatpush1.msra.mxu0 %v2564
        %3123 = vmatprep.subr.mxu0 %v2569
        %3124 = vmatpush1.msra.mxu0 %v2568
        %3125 = vmatprep.mubr.f32.mxu0 %v2722
        %3126 = vmatmul.mubr.f32.gmra.mrb[0].mxu0 %v2719
        %v3127 = vpop.f32.mrb[0].mxu0
        %v3128 = vadd.f32 %v3051, %v3127
        %v3129 = vpop.f32.mrb[0].mxu0
        %v3130 = vadd.f32 %v3053, %v3129
        %3131 = vmatprep.mubr.f32.mxu0 %v2736
        %3132 = vmatmul.mubr.f32.gmra.mrb[0].mxu0 %v2734
        %v3133 = vpop.f32.mrb[0].mxu0
        %v3134 = vadd.f32 %v3057, %v3133
        %v3135 = vpop.f32.mrb[0].mxu0
        %v3136 = vadd.f32 %v3059, %v3135
        %3137 = vdwg.mxu0
        %3138 = vmatprep.subr.mxu0 %v2573
        %3139 = vmatpush1.msra.mxu0 %v2572
        %3140 = vmatprep.subr.mxu0 %v2577
        %3141 = vmatpush1.msra.mxu0 %v2576
        %3142 = vmatprep.subr.mxu0 %v2581
        %3143 = vmatpush1.msra.mxu0 %v2580
        %3144 = vmatprep.subr.mxu0 %v2585
        %3145 = vmatpush1.msra.mxu0 %v2584
        %3146 = vmatprep.subr.mxu0 %v2589
        %3147 = vmatpush1.msra.mxu0 %v2588
        %3148 = vmatprep.subr.mxu0 %v2593
        %3149 = vmatpush1.msra.mxu0 %v2592
        %3150 = vmatprep.subr.mxu0 %v2597
        %3151 = vmatpush1.msra.mxu0 %v2596
        %3152 = vmatprep.subr.mxu0 %v2601
        %3153 = vmatpush1.msra.mxu0 %v2600
        %3154 = vmatprep.subr.mxu0 %v2605
        %3155 = vmatpush1.msra.mxu0 %v2604
        %3156 = vmatprep.subr.mxu0 %v2609
        %3157 = vmatpush1.msra.mxu0 %v2608
        %3158 = vmatprep.subr.mxu0 %v2613
        %3159 = vmatpush1.msra.mxu0 %v2612
        %3160 = vmatprep.subr.mxu0 %v2617
        %3161 = vmatpush1.msra.mxu0 %v2616
        %3162 = vmatprep.subr.mxu0 %v2621
        %3163 = vmatpush1.msra.mxu0 %v2620
        %3164 = vmatprep.subr.mxu0 %v2625
        %3165 = vmatpush1.msra.mxu0 %v2624
        %3166 = vmatprep.subr.mxu0 %v2629
        %3167 = vmatpush1.msra.mxu0 %v2628
        %3168 = vmatprep.subr.mxu0 %v2633
        %3169 = vmatpush1.msra.mxu0 %v2632
        %3170 = vmatprep.subr.mxu0 %v2637
        %3171 = vmatpush1.msra.mxu0 %v2636
        %3172 = vmatprep.subr.mxu0 %v2641
        %3173 = vmatpush1.msra.mxu0 %v2640
        %3174 = vmatprep.subr.mxu0 %v2645
        %3175 = vmatpush1.msra.mxu0 %v2644
        %3176 = vmatprep.subr.mxu0 %v2649
        %3177 = vmatpush1.msra.mxu0 %v2648
        %3178 = vmatprep.subr.mxu0 %v2653
        %3179 = vmatpush1.msra.mxu0 %v2652
        %3180 = vmatprep.subr.mxu0 %v2657
        %3181 = vmatpush1.msra.mxu0 %v2656
        %3182 = vmatprep.subr.mxu0 %v2661
        %3183 = vmatpush1.msra.mxu0 %v2660
        %3184 = vmatprep.subr.mxu0 %v2665
        %3185 = vmatpush1.msra.mxu0 %v2664
        %3186 = vmatprep.subr.mxu0 %v2669
        %3187 = vmatpush1.msra.mxu0 %v2668
        %3188 = vmatprep.subr.mxu0 %v2673
        %3189 = vmatpush1.msra.mxu0 %v2672
        %3190 = vmatprep.subr.mxu0 %v2677
        %3191 = vmatpush1.msra.mxu0 %v2676
        %3192 = vmatprep.subr.mxu0 %v2681
        %3193 = vmatpush1.msra.mxu0 %v2680
        %3194 = vmatprep.subr.mxu0 %v2685
        %3195 = vmatpush1.msra.mxu0 %v2684
        %3196 = vmatprep.subr.mxu0 %v2689
        %3197 = vmatpush1.msra.mxu0 %v2688
        %3198 = vmatprep.subr.mxu0 %v2693
        %3199 = vmatpush1.msra.mxu0 %v2692
        %3200 = vmatprep.subr.mxu0 %v2697
        %3201 = vmatpush1.msra.mxu0 %v2696
        %3202 = vmatprep.mubr.f32.mxu0 %v2728
        %3203 = vmatmul.mubr.f32.gmra.mrb[0].mxu0 %v2725
        %v3204 = vpop.f32.mrb[0].mxu0
        %v3205 = vadd.f32 %v3128, %v3204
        %v3206 = vpop.f32.mrb[0].mxu0
        %v3207 = vadd.f32 %v3130, %v3206
        %3208 = vmatprep.mubr.f32.mxu0 %v2740
        %3209 = vmatmul.mubr.f32.gmra.mrb[0].mxu0 %v2738
        %v3210 = vpop.f32.mrb[0].mxu0
        %v3211 = vadd.f32 %v3134, %v3210
        %v3212 = vpop.f32.mrb[0].mxu0
        %v3213 = vadd.f32 %v3136, %v3212
        %3214 = vdwg.mxu0
        %v3215 = vadd.f32 %v2060, %v2974
        %v3216 = vadd.f32 %v2062, %v2976
        %v3217 = vadd.f32 %v2291, %v3205
        %v3218 = vadd.f32 %v2293, %v3207
        %v3219 = vadd.f32 %v2066, %v2980
        %v3220 = vadd.f32 %v2068, %v2982
        %v3221 = vadd.f32 %v2297, %v3211
        %v3222 = vadd.f32 %v2299, %v3213
        %v3223 = vld [vmem:[#allocation9] sm:$0xf]
        %v3225 = vlaneseq
        %v3226 = vshrl.u32 %v3225, 7
        %v3227 = vsub.s32 0, %v3226
        %v3228 = vrot.slane %v3223, %v3227
        %v3229 = vlaneseq
        %v3230 = vshrl.u32 %v3229, 7
        %v3231 = vsub.s32 1, %v3230
        %v3232 = vrot.slane %v3223, %v3231
        %v3233 = vlaneseq
        %v3234 = vshrl.u32 %v3233, 7
        %v3235 = vsub.s32 2, %v3234
        %v3236 = vrot.slane %v3223, %v3235
        %v3237 = vlaneseq
        %v3238 = vshrl.u32 %v3237, 7
        %v3239 = vsub.s32 3, %v3238
        %v3240 = vrot.slane %v3223, %v3239
        %v3245 = vadd.f32 %v3215, %v3228
        %v3246 = vadd.f32 %v3216, %v3232
        %v3247 = vadd.f32 %v3217, %v3236
        %v3248 = vadd.f32 %v3218, %v3240
        %v3249 = vadd.f32 %v3219, %v3228
        %v3250 = vadd.f32 %v3220, %v3232
        %v3251 = vadd.f32 %v3221, %v3236
        %v3252 = vadd.f32 %v3222, %v3240
        %v3253 = vmax.f32 %v3245, 0.0
        %v3254 = vmax.f32 %v3246, 0.0
        %v3255 = vmax.f32 %v3247, 0.0
        %v3256 = vmax.f32 %v3248, 0.0
        %v3257 = vmax.f32 %v3249, 0.0
        %v3258 = vmax.f32 %v3250, 0.0
        %v3259 = vmax.f32 %v3251, 0.0
        %v3260 = vmax.f32 %v3252, 0.0
        %3261 = vst.msk [vmem:[#allocation3] ss:$8 sm:$0xf] %vm466, 0.0
        %3262 = vst.msk [vmem:[#allocation3] ss:$8 sm:$0x30] %vm466, 0.0
        %s3263 = scalar_lea.vmem [#allocation3], 97
        %3264 = vst.msk [vmem:[%s3263] ss:$8 sm:$0xf] %vm466, 0.0
        %3265 = vst.msk [vmem:[%s3263] ss:$8 sm:$0x30] %vm466, 0.0
        %3266 = vst [vmem:[#allocation3] sm:$0xfe] 0.0
        %3267 = vst [vmem:[#allocation3 + $0x30] sm:$0xff] 0.0
        %3268 = vst [vmem:[#allocation3 + $0x60] sm:$0x1] 0.0
        %3269 = vst [vmem:[#allocation3 + $0x28] sm:$0xfe] 0.0
        %3270 = vst [vmem:[#allocation3 + $0x58] sm:$0xff] 0.0
        %3271 = vst [vmem:[#allocation3 + $0x88] sm:$0x1] 0.0
        %v3280 = vrot.slane %v3253, 7
        %v3281 = vrot.slane %v3254, 7
        %v3282 = vrot.slane %v3255, 7
        %v3283 = vrot.slane %v3256, 7
        %v3284 = vrot.slane %v3257, 7
        %v3285 = vsel %vm486, %v3280, %v3284
        %v3286 = vrot.slane %v3258, 7
        %v3287 = vsel %vm486, %v3281, %v3286
        %v3288 = vrot.slane %v3259, 7
        %v3289 = vsel %vm486, %v3282, %v3288
        %v3290 = vrot.slane %v3260, 7
        %v3291 = vsel %vm486, %v3283, %v3290
        %3304 = vst [vmem:[#allocation3 + $0x8] sm:$0xfe] %v3280
        %3305 = vst [vmem:[#allocation3 + $0x10] sm:$0xfe] %v3281
        %3306 = vst [vmem:[#allocation3 + $0x18] sm:$0xfe] %v3282
        %3307 = vst [vmem:[#allocation3 + $0x20] sm:$0xfe] %v3283
        %3308 = vst [vmem:[#allocation3 + $0x38] sm:$0xff] %v3285
        %3309 = vst [vmem:[#allocation3 + $0x40] sm:$0xff] %v3287
        %3310 = vst [vmem:[#allocation3 + $0x48] sm:$0xff] %v3289
        %3311 = vst [vmem:[#allocation3 + $0x50] sm:$0xff] %v3291
        %3312 = vst [vmem:[#allocation3 + $0x68] sm:$0x1] %v3284
        %3313 = vst [vmem:[#allocation3 + $0x70] sm:$0x1] %v3286
        %3314 = vst [vmem:[#allocation3 + $0x78] sm:$0x1] %v3288
        %3315 = vst [vmem:[#allocation3 + $0x80] sm:$0x1] %v3290
        %v3316 = vld [vmem:[#allocation3] sm:$0xff]
        %v3317 = vld [vmem:[#allocation3 + $0x8] sm:$0xff]
        %v3318 = vld [vmem:[#allocation3 + $0x10] sm:$0xff]
        %v3319 = vld [vmem:[#allocation3 + $0x18] sm:$0xff]
        %v3320 = vld [vmem:[#allocation3 + $0x20] sm:$0xff]
        %v3321 = vld [vmem:[#allocation3 + $0x28] sm:$0xff]
        %v3322 = vld [vmem:[#allocation3 + $0x30] sm:$0xff]
        %v3323 = vld [vmem:[#allocation3 + $0x38] sm:$0xff]
        %v3324 = vld [vmem:[#allocation3 + $0x40] sm:$0xff]
        %v3325 = vld [vmem:[#allocation3 + $0x48] sm:$0xff]
        %v3326 = vld [vmem:[#allocation3 + $0x50] sm:$0xff]
        %v3327 = vld [vmem:[#allocation3 + $0x58] sm:$0xff]
        %v3328 = vld [vmem:[#allocation10] sm:$0xff]
        %v3329 = vld [vmem:[#allocation10 + $0x8] sm:$0xff]
        %v3330 = vld [vmem:[#allocation10 + $0x10] sm:$0xff]
        %v3331 = vld [vmem:[#allocation10 + $0x18] sm:$0xff]
        %v3332 = vld [vmem:[#allocation10 + $0x20] sm:$0xff]
        %v3333 = vld [vmem:[#allocation10 + $0x28] sm:$0xff]
        %v3334 = vld [vmem:[#allocation10 + $0x30] sm:$0xff]
        %v3335 = vld [vmem:[#allocation10 + $0x38] sm:$0xff]
        %v3336 = vld [vmem:[#allocation10 + $0x40] sm:$0xff]
        %v3337 = vld [vmem:[#allocation10 + $0x48] sm:$0xff]
        %v3338 = vld [vmem:[#allocation10 + $0x50] sm:$0xff]
        %v3339 = vld [vmem:[#allocation10 + $0x58] sm:$0xff]
        %v3340 = vld [vmem:[#allocation10 + $0x60] sm:$0xff]
        %v3341 = vld [vmem:[#allocation10 + $0x68] sm:$0xff]
        %v3342 = vld [vmem:[#allocation10 + $0x70] sm:$0xff]
        %v3343 = vld [vmem:[#allocation10 + $0x78] sm:$0xff]
        %v3344 = vld [vmem:[#allocation10 + $0x80] sm:$0xff]
        %v3345 = vld [vmem:[#allocation10 + $0x88] sm:$0xff]
        %v3346 = vld [vmem:[#allocation10 + $0x90] sm:$0xff]
        %v3347 = vld [vmem:[#allocation10 + $0x98] sm:$0xff]
        %v3348 = vld [vmem:[#allocation10 + $0xa0] sm:$0xff]
        %v3349 = vld [vmem:[#allocation10 + $0xa8] sm:$0xff]
        %v3350 = vld [vmem:[#allocation10 + $0xb0] sm:$0xff]
        %v3351 = vld [vmem:[#allocation10 + $0xb8] sm:$0xff]
        %v3352 = vld [vmem:[#allocation10 + $0xc0] sm:$0xff]
        %v3353 = vld [vmem:[#allocation10 + $0xc8] sm:$0xff]
        %v3354 = vld [vmem:[#allocation10 + $0xd0] sm:$0xff]
        %v3355 = vld [vmem:[#allocation10 + $0xd8] sm:$0xff]
        %v3356 = vld [vmem:[#allocation10 + $0xe0] sm:$0xff]
        %v3357 = vld [vmem:[#allocation10 + $0xe8] sm:$0xff]
        %v3358 = vld [vmem:[#allocation10 + $0xf0] sm:$0xff]
        %v3359 = vld [vmem:[#allocation10 + $0xf8] sm:$0xff]
        %v3360 = vld [vmem:[#allocation10 + $0x100] sm:$0xff]
        %v3361 = vld [vmem:[#allocation10 + $0x108] sm:$0xff]
        %v3362 = vld [vmem:[#allocation10 + $0x110] sm:$0xff]
        %v3363 = vld [vmem:[#allocation10 + $0x118] sm:$0xff]
        %v3364 = vld [vmem:[#allocation10 + $0x120] sm:$0xff]
        %v3365 = vld [vmem:[#allocation10 + $0x128] sm:$0xff]
        %v3366 = vld [vmem:[#allocation10 + $0x130] sm:$0xff]
        %v3367 = vld [vmem:[#allocation10 + $0x138] sm:$0xff]
        %v3368 = vld [vmem:[#allocation10 + $0x140] sm:$0xff]
        %v3369 = vld [vmem:[#allocation10 + $0x148] sm:$0xff]
        %v3370 = vld [vmem:[#allocation10 + $0x150] sm:$0xff]
        %v3371 = vld [vmem:[#allocation10 + $0x158] sm:$0xff]
        %v3372 = vld [vmem:[#allocation10 + $0x160] sm:$0xff]
        %v3373 = vld [vmem:[#allocation10 + $0x168] sm:$0xff]
        %v3374 = vld [vmem:[#allocation10 + $0x170] sm:$0xff]
        %v3375 = vld [vmem:[#allocation10 + $0x178] sm:$0xff]
        %v3376 = vld [vmem:[#allocation10 + $0x180] sm:$0xff]
        %v3377 = vld [vmem:[#allocation10 + $0x188] sm:$0xff]
        %v3378 = vld [vmem:[#allocation10 + $0x190] sm:$0xff]
        %v3379 = vld [vmem:[#allocation10 + $0x198] sm:$0xff]
        %v3380 = vld [vmem:[#allocation10 + $0x1a0] sm:$0xff]
        %v3381 = vld [vmem:[#allocation10 + $0x1a8] sm:$0xff]
        %v3382 = vld [vmem:[#allocation10 + $0x1b0] sm:$0xff]
        %v3383 = vld [vmem:[#allocation10 + $0x1b8] sm:$0xff]
        %v3384 = vld [vmem:[#allocation10 + $0x1c0] sm:$0xff]
        %v3385 = vld [vmem:[#allocation10 + $0x1c8] sm:$0xff]
        %v3386 = vld [vmem:[#allocation10 + $0x1d0] sm:$0xff]
        %v3387 = vld [vmem:[#allocation10 + $0x1d8] sm:$0xff]
        %v3388 = vld [vmem:[#allocation10 + $0x1e0] sm:$0xff]
        %v3389 = vld [vmem:[#allocation10 + $0x1e8] sm:$0xff]
        %v3390 = vld [vmem:[#allocation10 + $0x1f0] sm:$0xff]
        %v3391 = vld [vmem:[#allocation10 + $0x1f8] sm:$0xff]
        %v3392 = vld [vmem:[#allocation10 + $0x200] sm:$0xff]
        %v3393 = vld [vmem:[#allocation10 + $0x208] sm:$0xff]
        %v3394 = vld [vmem:[#allocation10 + $0x210] sm:$0xff]
        %v3395 = vld [vmem:[#allocation10 + $0x218] sm:$0xff]
        %v3396 = vld [vmem:[#allocation10 + $0x220] sm:$0xff]
        %v3397 = vld [vmem:[#allocation10 + $0x228] sm:$0xff]
        %v3398 = vld [vmem:[#allocation10 + $0x230] sm:$0xff]
        %v3399 = vld [vmem:[#allocation10 + $0x238] sm:$0xff]
        %v3400 = vld [vmem:[#allocation10 + $0x240] sm:$0xff]
        %v3401 = vld [vmem:[#allocation10 + $0x248] sm:$0xff]
        %v3402 = vld [vmem:[#allocation10 + $0x250] sm:$0xff]
        %v3403 = vld [vmem:[#allocation10 + $0x258] sm:$0xff]
        %v3404 = vld [vmem:[#allocation10 + $0x260] sm:$0xff]
        %v3405 = vld [vmem:[#allocation10 + $0x268] sm:$0xff]
        %v3406 = vld [vmem:[#allocation10 + $0x270] sm:$0xff]
        %v3407 = vld [vmem:[#allocation10 + $0x278] sm:$0xff]
        %v3408 = vld [vmem:[#allocation10 + $0x280] sm:$0xff]
        %v3409 = vld [vmem:[#allocation10 + $0x288] sm:$0xff]
        %v3410 = vld [vmem:[#allocation10 + $0x290] sm:$0xff]
        %v3411 = vld [vmem:[#allocation10 + $0x298] sm:$0xff]
        %v3412 = vld [vmem:[#allocation10 + $0x2a0] sm:$0xff]
        %v3413 = vld [vmem:[#allocation10 + $0x2a8] sm:$0xff]
        %v3414 = vld [vmem:[#allocation10 + $0x2b0] sm:$0xff]
        %v3415 = vld [vmem:[#allocation10 + $0x2b8] sm:$0xff]
        %v3416 = vld [vmem:[#allocation10 + $0x2c0] sm:$0xff]
        %v3417 = vld [vmem:[#allocation10 + $0x2c8] sm:$0xff]
        %v3418 = vld [vmem:[#allocation10 + $0x2d0] sm:$0xff]
        %v3419 = vld [vmem:[#allocation10 + $0x2d8] sm:$0xff]
        %v3420 = vld [vmem:[#allocation10 + $0x2e0] sm:$0xff]
        %v3421 = vld [vmem:[#allocation10 + $0x2e8] sm:$0xff]
        %v3422 = vld [vmem:[#allocation10 + $0x2f0] sm:$0xff]
        %v3423 = vld [vmem:[#allocation10 + $0x2f8] sm:$0xff]
        %v3424 = vld [vmem:[#allocation10 + $0x300] sm:$0xff]
        %v3425 = vld [vmem:[#allocation10 + $0x308] sm:$0xff]
        %v3426 = vld [vmem:[#allocation10 + $0x310] sm:$0xff]
        %v3427 = vld [vmem:[#allocation10 + $0x318] sm:$0xff]
        %v3428 = vld [vmem:[#allocation10 + $0x320] sm:$0xff]
        %v3429 = vld [vmem:[#allocation10 + $0x328] sm:$0xff]
        %v3430 = vld [vmem:[#allocation10 + $0x330] sm:$0xff]
        %v3431 = vld [vmem:[#allocation10 + $0x338] sm:$0xff]
        %v3432 = vld [vmem:[#allocation10 + $0x340] sm:$0xff]
        %v3433 = vld [vmem:[#allocation10 + $0x348] sm:$0xff]
        %v3434 = vld [vmem:[#allocation10 + $0x350] sm:$0xff]
        %v3435 = vld [vmem:[#allocation10 + $0x358] sm:$0xff]
        %v3436 = vld [vmem:[#allocation10 + $0x360] sm:$0xff]
        %v3437 = vld [vmem:[#allocation10 + $0x368] sm:$0xff]
        %v3438 = vld [vmem:[#allocation10 + $0x370] sm:$0xff]
        %v3439 = vld [vmem:[#allocation10 + $0x378] sm:$0xff]
        %v3440 = vld [vmem:[#allocation10 + $0x380] sm:$0xff]
        %v3441 = vld [vmem:[#allocation10 + $0x388] sm:$0xff]
        %v3442 = vld [vmem:[#allocation10 + $0x390] sm:$0xff]
        %v3443 = vld [vmem:[#allocation10 + $0x398] sm:$0xff]
        %v3444 = vld [vmem:[#allocation10 + $0x3a0] sm:$0xff]
        %v3445 = vld [vmem:[#allocation10 + $0x3a8] sm:$0xff]
        %v3446 = vld [vmem:[#allocation10 + $0x3b0] sm:$0xff]
        %v3447 = vld [vmem:[#allocation10 + $0x3b8] sm:$0xff]
        %v3448 = vld [vmem:[#allocation10 + $0x3c0] sm:$0xff]
        %v3449 = vld [vmem:[#allocation10 + $0x3c8] sm:$0xff]
        %v3450 = vld [vmem:[#allocation10 + $0x3d0] sm:$0xff]
        %v3451 = vld [vmem:[#allocation10 + $0x3d8] sm:$0xff]
        %v3452 = vld [vmem:[#allocation10 + $0x3e0] sm:$0xff]
        %v3453 = vld [vmem:[#allocation10 + $0x3e8] sm:$0xff]
        %v3454 = vld [vmem:[#allocation10 + $0x3f0] sm:$0xff]
        %v3455 = vld [vmem:[#allocation10 + $0x3f8] sm:$0xff]
        %v3456 = vld [vmem:[#allocation10 + $0x400] sm:$0xff]
        %v3457 = vld [vmem:[#allocation10 + $0x408] sm:$0xff]
        %v3458 = vld [vmem:[#allocation10 + $0x410] sm:$0xff]
        %v3459 = vld [vmem:[#allocation10 + $0x418] sm:$0xff]
        %v3460 = vld [vmem:[#allocation10 + $0x420] sm:$0xff]
        %v3461 = vld [vmem:[#allocation10 + $0x428] sm:$0xff]
        %v3462 = vld [vmem:[#allocation10 + $0x430] sm:$0xff]
        %v3463 = vld [vmem:[#allocation10 + $0x438] sm:$0xff]
        %v3464 = vld [vmem:[#allocation10 + $0x440] sm:$0xff]
        %v3465 = vld [vmem:[#allocation10 + $0x448] sm:$0xff]
        %v3466 = vld [vmem:[#allocation10 + $0x450] sm:$0xff]
        %v3467 = vld [vmem:[#allocation10 + $0x458] sm:$0xff]
        %v3468 = vld [vmem:[#allocation10 + $0x460] sm:$0xff]
        %v3469 = vld [vmem:[#allocation10 + $0x468] sm:$0xff]
        %v3470 = vld [vmem:[#allocation10 + $0x470] sm:$0xff]
        %v3471 = vld [vmem:[#allocation10 + $0x478] sm:$0xff]
        %v3472 = vld [vmem:[#allocation10 + $0x480] sm:$0xff]
        %v3473 = vld [vmem:[#allocation10 + $0x488] sm:$0xff]
        %v3474 = vld [vmem:[#allocation10 + $0x490] sm:$0xff]
        %v3475 = vld [vmem:[#allocation10 + $0x498] sm:$0xff]
        %v3476 = vld [vmem:[#allocation10 + $0x4a0] sm:$0xff]
        %v3477 = vld [vmem:[#allocation10 + $0x4a8] sm:$0xff]
        %v3478 = vld [vmem:[#allocation10 + $0x4b0] sm:$0xff]
        %v3479 = vld [vmem:[#allocation10 + $0x4b8] sm:$0xff]
        %v3480 = vld [vmem:[#allocation10 + $0x4c0] sm:$0xff]
        %v3481 = vld [vmem:[#allocation10 + $0x4c8] sm:$0xff]
        %v3482 = vld [vmem:[#allocation10 + $0x4d0] sm:$0xff]
        %v3483 = vld [vmem:[#allocation10 + $0x4d8] sm:$0xff]
        %v3484 = vld [vmem:[#allocation10 + $0x4e0] sm:$0xff]
        %v3485 = vld [vmem:[#allocation10 + $0x4e8] sm:$0xff]
        %v3486 = vld [vmem:[#allocation10 + $0x4f0] sm:$0xff]
        %v3487 = vld [vmem:[#allocation10 + $0x4f8] sm:$0xff]
        %v3488 = vld [vmem:[#allocation10 + $0x500] sm:$0xff]
        %v3489 = vld [vmem:[#allocation10 + $0x508] sm:$0xff]
        %v3490 = vld [vmem:[#allocation10 + $0x510] sm:$0xff]
        %v3491 = vld [vmem:[#allocation10 + $0x518] sm:$0xff]
        %v3492 = vld [vmem:[#allocation10 + $0x520] sm:$0xff]
        %v3493 = vld [vmem:[#allocation10 + $0x528] sm:$0xff]
        %v3494 = vld [vmem:[#allocation10 + $0x530] sm:$0xff]
        %v3495 = vld [vmem:[#allocation10 + $0x538] sm:$0xff]
        %v3496 = vld [vmem:[#allocation10 + $0x540] sm:$0xff]
        %v3497 = vld [vmem:[#allocation10 + $0x548] sm:$0xff]
        %v3498 = vld [vmem:[#allocation10 + $0x550] sm:$0xff]
        %v3499 = vld [vmem:[#allocation10 + $0x558] sm:$0xff]
        %v3500 = vld [vmem:[#allocation10 + $0x560] sm:$0xff]
        %v3501 = vld [vmem:[#allocation10 + $0x568] sm:$0xff]
        %v3502 = vld [vmem:[#allocation10 + $0x570] sm:$0xff]
        %v3503 = vld [vmem:[#allocation10 + $0x578] sm:$0xff]
        %v3504 = vld [vmem:[#allocation10 + $0x580] sm:$0xff]
        %v3505 = vld [vmem:[#allocation10 + $0x588] sm:$0xff]
        %v3506 = vld [vmem:[#allocation10 + $0x590] sm:$0xff]
        %v3507 = vld [vmem:[#allocation10 + $0x598] sm:$0xff]
        %v3508 = vld [vmem:[#allocation10 + $0x5a0] sm:$0xff]
        %v3509 = vld [vmem:[#allocation10 + $0x5a8] sm:$0xff]
        %v3510 = vld [vmem:[#allocation10 + $0x5b0] sm:$0xff]
        %v3511 = vld [vmem:[#allocation10 + $0x5b8] sm:$0xff]
        %v3512 = vld [vmem:[#allocation10 + $0x5c0] sm:$0xff]
        %v3513 = vld [vmem:[#allocation10 + $0x5c8] sm:$0xff]
        %v3514 = vld [vmem:[#allocation10 + $0x5d0] sm:$0xff]
        %v3515 = vld [vmem:[#allocation10 + $0x5d8] sm:$0xff]
        %v3516 = vld [vmem:[#allocation10 + $0x5e0] sm:$0xff]
        %v3517 = vld [vmem:[#allocation10 + $0x5e8] sm:$0xff]
        %v3518 = vld [vmem:[#allocation10 + $0x5f0] sm:$0xff]
        %v3519 = vld [vmem:[#allocation10 + $0x5f8] sm:$0xff]
        %v3520 = vld [vmem:[#allocation10 + $0x600] sm:$0xff]
        %v3521 = vld [vmem:[#allocation10 + $0x608] sm:$0xff]
        %v3522 = vld [vmem:[#allocation10 + $0x610] sm:$0xff]
        %v3523 = vld [vmem:[#allocation10 + $0x618] sm:$0xff]
        %v3524 = vld [vmem:[#allocation10 + $0x620] sm:$0xff]
        %v3525 = vld [vmem:[#allocation10 + $0x628] sm:$0xff]
        %v3526 = vld [vmem:[#allocation10 + $0x630] sm:$0xff]
        %v3527 = vld [vmem:[#allocation10 + $0x638] sm:$0xff]
        %v3528 = vld [vmem:[#allocation10 + $0x640] sm:$0xff]
        %v3529 = vld [vmem:[#allocation10 + $0x648] sm:$0xff]
        %v3530 = vld [vmem:[#allocation10 + $0x650] sm:$0xff]
        %v3531 = vld [vmem:[#allocation10 + $0x658] sm:$0xff]
        %v3532 = vld [vmem:[#allocation10 + $0x660] sm:$0xff]
        %v3533 = vld [vmem:[#allocation10 + $0x668] sm:$0xff]
        %v3534 = vld [vmem:[#allocation10 + $0x670] sm:$0xff]
        %v3535 = vld [vmem:[#allocation10 + $0x678] sm:$0xff]
        %v3536 = vld [vmem:[#allocation10 + $0x680] sm:$0xff]
        %v3537 = vld [vmem:[#allocation10 + $0x688] sm:$0xff]
        %v3538 = vld [vmem:[#allocation10 + $0x690] sm:$0xff]
        %v3539 = vld [vmem:[#allocation10 + $0x698] sm:$0xff]
        %v3540 = vld [vmem:[#allocation10 + $0x6a0] sm:$0xff]
        %v3541 = vld [vmem:[#allocation10 + $0x6a8] sm:$0xff]
        %v3542 = vld [vmem:[#allocation10 + $0x6b0] sm:$0xff]
        %v3543 = vld [vmem:[#allocation10 + $0x6b8] sm:$0xff]
        %v3544 = vld [vmem:[#allocation10 + $0x6c0] sm:$0xff]
        %v3545 = vld [vmem:[#allocation10 + $0x6c8] sm:$0xff]
        %v3546 = vld [vmem:[#allocation10 + $0x6d0] sm:$0xff]
        %v3547 = vld [vmem:[#allocation10 + $0x6d8] sm:$0xff]
        %v3548 = vld [vmem:[#allocation10 + $0x6e0] sm:$0xff]
        %v3549 = vld [vmem:[#allocation10 + $0x6e8] sm:$0xff]
        %v3550 = vld [vmem:[#allocation10 + $0x6f0] sm:$0xff]
        %v3551 = vld [vmem:[#allocation10 + $0x6f8] sm:$0xff]
        %v3552 = vld [vmem:[#allocation10 + $0x700] sm:$0xff]
        %v3553 = vld [vmem:[#allocation10 + $0x708] sm:$0xff]
        %v3554 = vld [vmem:[#allocation10 + $0x710] sm:$0xff]
        %v3555 = vld [vmem:[#allocation10 + $0x718] sm:$0xff]
        %v3556 = vld [vmem:[#allocation10 + $0x720] sm:$0xff]
        %v3557 = vld [vmem:[#allocation10 + $0x728] sm:$0xff]
        %v3558 = vld [vmem:[#allocation10 + $0x730] sm:$0xff]
        %v3559 = vld [vmem:[#allocation10 + $0x738] sm:$0xff]
        %v3560 = vld [vmem:[#allocation10 + $0x740] sm:$0xff]
        %v3561 = vld [vmem:[#allocation10 + $0x748] sm:$0xff]
        %v3562 = vld [vmem:[#allocation10 + $0x750] sm:$0xff]
        %v3563 = vld [vmem:[#allocation10 + $0x758] sm:$0xff]
        %v3564 = vld [vmem:[#allocation10 + $0x760] sm:$0xff]
        %v3565 = vld [vmem:[#allocation10 + $0x768] sm:$0xff]
        %v3566 = vld [vmem:[#allocation10 + $0x770] sm:$0xff]
        %v3567 = vld [vmem:[#allocation10 + $0x778] sm:$0xff]
        %v3568 = vld [vmem:[#allocation10 + $0x780] sm:$0xff]
        %v3569 = vld [vmem:[#allocation10 + $0x788] sm:$0xff]
        %v3570 = vld [vmem:[#allocation10 + $0x790] sm:$0xff]
        %v3571 = vld [vmem:[#allocation10 + $0x798] sm:$0xff]
        %v3572 = vld [vmem:[#allocation10 + $0x7a0] sm:$0xff]
        %v3573 = vld [vmem:[#allocation10 + $0x7a8] sm:$0xff]
        %v3574 = vld [vmem:[#allocation10 + $0x7b0] sm:$0xff]
        %v3575 = vld [vmem:[#allocation10 + $0x7b8] sm:$0xff]
        %v3576 = vld [vmem:[#allocation10 + $0x7c0] sm:$0xff]
        %v3577 = vld [vmem:[#allocation10 + $0x7c8] sm:$0xff]
        %v3578 = vld [vmem:[#allocation10 + $0x7d0] sm:$0xff]
        %v3579 = vld [vmem:[#allocation10 + $0x7d8] sm:$0xff]
        %v3580 = vld [vmem:[#allocation10 + $0x7e0] sm:$0xff]
        %v3581 = vld [vmem:[#allocation10 + $0x7e8] sm:$0xff]
        %v3582 = vld [vmem:[#allocation10 + $0x7f0] sm:$0xff]
        %v3583 = vld [vmem:[#allocation10 + $0x7f8] sm:$0xff]
        %v3584 = vld [vmem:[#allocation10 + $0x800] sm:$0xff]
        %v3585 = vld [vmem:[#allocation10 + $0x808] sm:$0xff]
        %v3586 = vld [vmem:[#allocation10 + $0x810] sm:$0xff]
        %v3587 = vld [vmem:[#allocation10 + $0x818] sm:$0xff]
        %v3588 = vld [vmem:[#allocation10 + $0x820] sm:$0xff]
        %v3589 = vld [vmem:[#allocation10 + $0x828] sm:$0xff]
        %v3590 = vld [vmem:[#allocation10 + $0x830] sm:$0xff]
        %v3591 = vld [vmem:[#allocation10 + $0x838] sm:$0xff]
        %v3592 = vld [vmem:[#allocation10 + $0x840] sm:$0xff]
        %v3593 = vld [vmem:[#allocation10 + $0x848] sm:$0xff]
        %v3594 = vld [vmem:[#allocation10 + $0x850] sm:$0xff]
        %v3595 = vld [vmem:[#allocation10 + $0x858] sm:$0xff]
        %v3596 = vld [vmem:[#allocation10 + $0x860] sm:$0xff]
        %v3597 = vld [vmem:[#allocation10 + $0x868] sm:$0xff]
        %v3598 = vld [vmem:[#allocation10 + $0x870] sm:$0xff]
        %v3599 = vld [vmem:[#allocation10 + $0x878] sm:$0xff]
        %v3600 = vld [vmem:[#allocation10 + $0x880] sm:$0xff]
        %v3601 = vld [vmem:[#allocation10 + $0x888] sm:$0xff]
        %v3602 = vld [vmem:[#allocation10 + $0x890] sm:$0xff]
        %v3603 = vld [vmem:[#allocation10 + $0x898] sm:$0xff]
        %v3604 = vld [vmem:[#allocation10 + $0x8a0] sm:$0xff]
        %v3605 = vld [vmem:[#allocation10 + $0x8a8] sm:$0xff]
        %v3606 = vld [vmem:[#allocation10 + $0x8b0] sm:$0xff]
        %v3607 = vld [vmem:[#allocation10 + $0x8b8] sm:$0xff]
        %v3608 = vld [vmem:[#allocation10 + $0x8c0] sm:$0xff]
        %v3609 = vld [vmem:[#allocation10 + $0x8c8] sm:$0xff]
        %v3610 = vld [vmem:[#allocation10 + $0x8d0] sm:$0xff]
        %v3611 = vld [vmem:[#allocation10 + $0x8d8] sm:$0xff]
        %v3612 = vld [vmem:[#allocation10 + $0x8e0] sm:$0xff]
        %v3613 = vld [vmem:[#allocation10 + $0x8e8] sm:$0xff]
        %v3614 = vld [vmem:[#allocation10 + $0x8f0] sm:$0xff]
        %v3615 = vld [vmem:[#allocation10 + $0x8f8] sm:$0xff]
        %v3616 = vld [vmem:[#allocation10 + $0x900] sm:$0xff]
        %v3617 = vld [vmem:[#allocation10 + $0x908] sm:$0xff]
        %v3618 = vld [vmem:[#allocation10 + $0x910] sm:$0xff]
        %v3619 = vld [vmem:[#allocation10 + $0x918] sm:$0xff]
        %v3620 = vld [vmem:[#allocation10 + $0x920] sm:$0xff]
        %v3621 = vld [vmem:[#allocation10 + $0x928] sm:$0xff]
        %v3622 = vld [vmem:[#allocation10 + $0x930] sm:$0xff]
        %v3623 = vld [vmem:[#allocation10 + $0x938] sm:$0xff]
        %v3624 = vld [vmem:[#allocation10 + $0x940] sm:$0xff]
        %v3625 = vld [vmem:[#allocation10 + $0x948] sm:$0xff]
        %v3626 = vld [vmem:[#allocation10 + $0x950] sm:$0xff]
        %v3627 = vld [vmem:[#allocation10 + $0x958] sm:$0xff]
        %v3628 = vld [vmem:[#allocation10 + $0x960] sm:$0xff]
        %v3629 = vld [vmem:[#allocation10 + $0x968] sm:$0xff]
        %v3630 = vld [vmem:[#allocation10 + $0x970] sm:$0xff]
        %v3631 = vld [vmem:[#allocation10 + $0x978] sm:$0xff]
        %v3632 = vld [vmem:[#allocation10 + $0x980] sm:$0xff]
        %v3633 = vld [vmem:[#allocation10 + $0x988] sm:$0xff]
        %v3634 = vld [vmem:[#allocation10 + $0x990] sm:$0xff]
        %v3635 = vld [vmem:[#allocation10 + $0x998] sm:$0xff]
        %v3636 = vld [vmem:[#allocation10 + $0x9a0] sm:$0xff]
        %v3637 = vld [vmem:[#allocation10 + $0x9a8] sm:$0xff]
        %v3638 = vld [vmem:[#allocation10 + $0x9b0] sm:$0xff]
        %v3639 = vld [vmem:[#allocation10 + $0x9b8] sm:$0xff]
        %v3640 = vld [vmem:[#allocation10 + $0x9c0] sm:$0xff]
        %v3641 = vld [vmem:[#allocation10 + $0x9c8] sm:$0xff]
        %v3642 = vld [vmem:[#allocation10 + $0x9d0] sm:$0xff]
        %v3643 = vld [vmem:[#allocation10 + $0x9d8] sm:$0xff]
        %v3644 = vld [vmem:[#allocation10 + $0x9e0] sm:$0xff]
        %v3645 = vld [vmem:[#allocation10 + $0x9e8] sm:$0xff]
        %v3646 = vld [vmem:[#allocation10 + $0x9f0] sm:$0xff]
        %v3647 = vld [vmem:[#allocation10 + $0x9f8] sm:$0xff]
        %v3648 = vld [vmem:[#allocation10 + $0xa00] sm:$0xff]
        %v3649 = vld [vmem:[#allocation10 + $0xa08] sm:$0xff]
        %v3650 = vld [vmem:[#allocation10 + $0xa10] sm:$0xff]
        %v3651 = vld [vmem:[#allocation10 + $0xa18] sm:$0xff]
        %v3652 = vld [vmem:[#allocation10 + $0xa20] sm:$0xff]
        %v3653 = vld [vmem:[#allocation10 + $0xa28] sm:$0xff]
        %v3654 = vld [vmem:[#allocation10 + $0xa30] sm:$0xff]
        %v3655 = vld [vmem:[#allocation10 + $0xa38] sm:$0xff]
        %v3656 = vld [vmem:[#allocation10 + $0xa40] sm:$0xff]
        %v3657 = vld [vmem:[#allocation10 + $0xa48] sm:$0xff]
        %v3658 = vld [vmem:[#allocation10 + $0xa50] sm:$0xff]
        %v3659 = vld [vmem:[#allocation10 + $0xa58] sm:$0xff]
        %v3660 = vld [vmem:[#allocation10 + $0xa60] sm:$0xff]
        %v3661 = vld [vmem:[#allocation10 + $0xa68] sm:$0xff]
        %v3662 = vld [vmem:[#allocation10 + $0xa70] sm:$0xff]
        %v3663 = vld [vmem:[#allocation10 + $0xa78] sm:$0xff]
        %v3664 = vld [vmem:[#allocation10 + $0xa80] sm:$0xff]
        %v3665 = vld [vmem:[#allocation10 + $0xa88] sm:$0xff]
        %v3666 = vld [vmem:[#allocation10 + $0xa90] sm:$0xff]
        %v3667 = vld [vmem:[#allocation10 + $0xa98] sm:$0xff]
        %v3668 = vld [vmem:[#allocation10 + $0xaa0] sm:$0xff]
        %v3669 = vld [vmem:[#allocation10 + $0xaa8] sm:$0xff]
        %v3670 = vld [vmem:[#allocation10 + $0xab0] sm:$0xff]
        %v3671 = vld [vmem:[#allocation10 + $0xab8] sm:$0xff]
        %v3672 = vld [vmem:[#allocation10 + $0xac0] sm:$0xff]
        %v3673 = vld [vmem:[#allocation10 + $0xac8] sm:$0xff]
        %v3674 = vld [vmem:[#allocation10 + $0xad0] sm:$0xff]
        %v3675 = vld [vmem:[#allocation10 + $0xad8] sm:$0xff]
        %v3676 = vld [vmem:[#allocation10 + $0xae0] sm:$0xff]
        %v3677 = vld [vmem:[#allocation10 + $0xae8] sm:$0xff]
        %v3678 = vld [vmem:[#allocation10 + $0xaf0] sm:$0xff]
        %v3679 = vld [vmem:[#allocation10 + $0xaf8] sm:$0xff]
        %v3680 = vld [vmem:[#allocation10 + $0xb00] sm:$0xff]
        %v3681 = vld [vmem:[#allocation10 + $0xb08] sm:$0xff]
        %v3682 = vld [vmem:[#allocation10 + $0xb10] sm:$0xff]
        %v3683 = vld [vmem:[#allocation10 + $0xb18] sm:$0xff]
        %v3684 = vld [vmem:[#allocation10 + $0xb20] sm:$0xff]
        %v3685 = vld [vmem:[#allocation10 + $0xb28] sm:$0xff]
        %v3686 = vld [vmem:[#allocation10 + $0xb30] sm:$0xff]
        %v3687 = vld [vmem:[#allocation10 + $0xb38] sm:$0xff]
        %v3688 = vld [vmem:[#allocation10 + $0xb40] sm:$0xff]
        %v3689 = vld [vmem:[#allocation10 + $0xb48] sm:$0xff]
        %v3690 = vld [vmem:[#allocation10 + $0xb50] sm:$0xff]
        %v3691 = vld [vmem:[#allocation10 + $0xb58] sm:$0xff]
        %v3692 = vld [vmem:[#allocation10 + $0xb60] sm:$0xff]
        %v3693 = vld [vmem:[#allocation10 + $0xb68] sm:$0xff]
        %v3694 = vld [vmem:[#allocation10 + $0xb70] sm:$0xff]
        %v3695 = vld [vmem:[#allocation10 + $0xb78] sm:$0xff]
        %v3696 = vld [vmem:[#allocation10 + $0xb80] sm:$0xff]
        %v3697 = vld [vmem:[#allocation10 + $0xb88] sm:$0xff]
        %v3698 = vld [vmem:[#allocation10 + $0xb90] sm:$0xff]
        %v3699 = vld [vmem:[#allocation10 + $0xb98] sm:$0xff]
        %v3700 = vld [vmem:[#allocation10 + $0xba0] sm:$0xff]
        %v3701 = vld [vmem:[#allocation10 + $0xba8] sm:$0xff]
        %v3702 = vld [vmem:[#allocation10 + $0xbb0] sm:$0xff]
        %v3703 = vld [vmem:[#allocation10 + $0xbb8] sm:$0xff]
        %v3704 = vld [vmem:[#allocation10 + $0xbc0] sm:$0xff]
        %v3705 = vld [vmem:[#allocation10 + $0xbc8] sm:$0xff]
        %v3706 = vld [vmem:[#allocation10 + $0xbd0] sm:$0xff]
        %v3707 = vld [vmem:[#allocation10 + $0xbd8] sm:$0xff]
        %v3708 = vld [vmem:[#allocation10 + $0xbe0] sm:$0xff]
        %v3709 = vld [vmem:[#allocation10 + $0xbe8] sm:$0xff]
        %v3710 = vld [vmem:[#allocation10 + $0xbf0] sm:$0xff]
        %v3711 = vld [vmem:[#allocation10 + $0xbf8] sm:$0xff]
        %v3712 = vld [vmem:[#allocation3] sm:$0xfe]
        %v3713 = vld [vmem:[#allocation3 + $0x8] sm:$0xfe]
        %v3714 = vld [vmem:[#allocation3 + $0x10] sm:$0xfe]
        %v3715 = vld [vmem:[#allocation3 + $0x18] sm:$0xfe]
        %v3716 = vld [vmem:[#allocation3 + $0x20] sm:$0xfe]
        %v3717 = vld [vmem:[#allocation3 + $0x28] sm:$0xfe]
        %v3718 = vld [vmem:[#allocation3 + $0x60] sm:$0x1]
        %v3719 = vld [vmem:[#allocation3 + $0x68] sm:$0x1]
        %v3720 = vld [vmem:[#allocation3 + $0x70] sm:$0x1]
        %v3721 = vld [vmem:[#allocation3 + $0x78] sm:$0x1]
        %v3722 = vld [vmem:[#allocation3 + $0x80] sm:$0x1]
        %v3723 = vld [vmem:[#allocation3 + $0x88] sm:$0x1]
        %s3724 = scalar_lea.vmem [#allocation10], 3072
        %v3725 = vld [vmem:[%s3724] sm:$0xff]
        %v3726 = vld [vmem:[%s3724 + $0x8] sm:$0xff]
        %v3727 = vld [vmem:[%s3724 + $0x10] sm:$0xff]
        %v3728 = vld [vmem:[%s3724 + $0x18] sm:$0xff]
        %v3729 = vld [vmem:[%s3724 + $0x20] sm:$0xff]
        %v3730 = vld [vmem:[%s3724 + $0x28] sm:$0xff]
        %v3731 = vld [vmem:[%s3724 + $0x30] sm:$0xff]
        %v3732 = vld [vmem:[%s3724 + $0x38] sm:$0xff]
        %v3733 = vld [vmem:[%s3724 + $0x40] sm:$0xff]
        %v3734 = vld [vmem:[%s3724 + $0x48] sm:$0xff]
        %v3735 = vld [vmem:[%s3724 + $0x50] sm:$0xff]
        %v3736 = vld [vmem:[%s3724 + $0x58] sm:$0xff]
        %v3737 = vld [vmem:[%s3724 + $0x60] sm:$0xff]
        %v3738 = vld [vmem:[%s3724 + $0x68] sm:$0xff]
        %v3739 = vld [vmem:[%s3724 + $0x70] sm:$0xff]
        %v3740 = vld [vmem:[%s3724 + $0x78] sm:$0xff]
        %v3741 = vld [vmem:[%s3724 + $0x80] sm:$0xff]
        %v3742 = vld [vmem:[%s3724 + $0x88] sm:$0xff]
        %v3743 = vld [vmem:[%s3724 + $0x90] sm:$0xff]
        %v3744 = vld [vmem:[%s3724 + $0x98] sm:$0xff]
        %v3745 = vld [vmem:[%s3724 + $0xa0] sm:$0xff]
        %v3746 = vld [vmem:[%s3724 + $0xa8] sm:$0xff]
        %v3747 = vld [vmem:[%s3724 + $0xb0] sm:$0xff]
        %v3748 = vld [vmem:[%s3724 + $0xb8] sm:$0xff]
        %v3749 = vld [vmem:[%s3724 + $0xc0] sm:$0xff]
        %v3750 = vld [vmem:[%s3724 + $0xc8] sm:$0xff]
        %v3751 = vld [vmem:[%s3724 + $0xd0] sm:$0xff]
        %v3752 = vld [vmem:[%s3724 + $0xd8] sm:$0xff]
        %v3753 = vld [vmem:[%s3724 + $0xe0] sm:$0xff]
        %v3754 = vld [vmem:[%s3724 + $0xe8] sm:$0xff]
        %v3755 = vld [vmem:[%s3724 + $0xf0] sm:$0xff]
        %v3756 = vld [vmem:[%s3724 + $0xf8] sm:$0xff]
        %v3757 = vld [vmem:[%s3724 + $0x100] sm:$0xff]
        %v3758 = vld [vmem:[%s3724 + $0x108] sm:$0xff]
        %v3759 = vld [vmem:[%s3724 + $0x110] sm:$0xff]
        %v3760 = vld [vmem:[%s3724 + $0x118] sm:$0xff]
        %v3761 = vld [vmem:[%s3724 + $0x120] sm:$0xff]
        %v3762 = vld [vmem:[%s3724 + $0x128] sm:$0xff]
        %v3763 = vld [vmem:[%s3724 + $0x130] sm:$0xff]
        %v3764 = vld [vmem:[%s3724 + $0x138] sm:$0xff]
        %v3765 = vld [vmem:[%s3724 + $0x140] sm:$0xff]
        %v3766 = vld [vmem:[%s3724 + $0x148] sm:$0xff]
        %v3767 = vld [vmem:[%s3724 + $0x150] sm:$0xff]
        %v3768 = vld [vmem:[%s3724 + $0x158] sm:$0xff]
        %v3769 = vld [vmem:[%s3724 + $0x160] sm:$0xff]
        %v3770 = vld [vmem:[%s3724 + $0x168] sm:$0xff]
        %v3771 = vld [vmem:[%s3724 + $0x170] sm:$0xff]
        %v3772 = vld [vmem:[%s3724 + $0x178] sm:$0xff]
        %v3773 = vld [vmem:[%s3724 + $0x180] sm:$0xff]
        %v3774 = vld [vmem:[%s3724 + $0x188] sm:$0xff]
        %v3775 = vld [vmem:[%s3724 + $0x190] sm:$0xff]
        %v3776 = vld [vmem:[%s3724 + $0x198] sm:$0xff]
        %v3777 = vld [vmem:[%s3724 + $0x1a0] sm:$0xff]
        %v3778 = vld [vmem:[%s3724 + $0x1a8] sm:$0xff]
        %v3779 = vld [vmem:[%s3724 + $0x1b0] sm:$0xff]
        %v3780 = vld [vmem:[%s3724 + $0x1b8] sm:$0xff]
        %v3781 = vld [vmem:[%s3724 + $0x1c0] sm:$0xff]
        %v3782 = vld [vmem:[%s3724 + $0x1c8] sm:$0xff]
        %v3783 = vld [vmem:[%s3724 + $0x1d0] sm:$0xff]
        %v3784 = vld [vmem:[%s3724 + $0x1d8] sm:$0xff]
        %v3785 = vld [vmem:[%s3724 + $0x1e0] sm:$0xff]
        %v3786 = vld [vmem:[%s3724 + $0x1e8] sm:$0xff]
        %v3787 = vld [vmem:[%s3724 + $0x1f0] sm:$0xff]
        %v3788 = vld [vmem:[%s3724 + $0x1f8] sm:$0xff]
        %v3789 = vld [vmem:[%s3724 + $0x200] sm:$0xff]
        %v3790 = vld [vmem:[%s3724 + $0x208] sm:$0xff]
        %v3791 = vld [vmem:[%s3724 + $0x210] sm:$0xff]
        %v3792 = vld [vmem:[%s3724 + $0x218] sm:$0xff]
        %v3793 = vld [vmem:[%s3724 + $0x220] sm:$0xff]
        %v3794 = vld [vmem:[%s3724 + $0x228] sm:$0xff]
        %v3795 = vld [vmem:[%s3724 + $0x230] sm:$0xff]
        %v3796 = vld [vmem:[%s3724 + $0x238] sm:$0xff]
        %v3797 = vld [vmem:[%s3724 + $0x240] sm:$0xff]
        %v3798 = vld [vmem:[%s3724 + $0x248] sm:$0xff]
        %v3799 = vld [vmem:[%s3724 + $0x250] sm:$0xff]
        %v3800 = vld [vmem:[%s3724 + $0x258] sm:$0xff]
        %v3801 = vld [vmem:[%s3724 + $0x260] sm:$0xff]
        %v3802 = vld [vmem:[%s3724 + $0x268] sm:$0xff]
        %v3803 = vld [vmem:[%s3724 + $0x270] sm:$0xff]
        %v3804 = vld [vmem:[%s3724 + $0x278] sm:$0xff]
        %v3805 = vld [vmem:[%s3724 + $0x280] sm:$0xff]
        %v3806 = vld [vmem:[%s3724 + $0x288] sm:$0xff]
        %v3807 = vld [vmem:[%s3724 + $0x290] sm:$0xff]
        %v3808 = vld [vmem:[%s3724 + $0x298] sm:$0xff]
        %v3809 = vld [vmem:[%s3724 + $0x2a0] sm:$0xff]
        %v3810 = vld [vmem:[%s3724 + $0x2a8] sm:$0xff]
        %v3811 = vld [vmem:[%s3724 + $0x2b0] sm:$0xff]
        %v3812 = vld [vmem:[%s3724 + $0x2b8] sm:$0xff]
        %v3813 = vld [vmem:[%s3724 + $0x2c0] sm:$0xff]
        %v3814 = vld [vmem:[%s3724 + $0x2c8] sm:$0xff]
        %v3815 = vld [vmem:[%s3724 + $0x2d0] sm:$0xff]
        %v3816 = vld [vmem:[%s3724 + $0x2d8] sm:$0xff]
        %v3817 = vld [vmem:[%s3724 + $0x2e0] sm:$0xff]
        %v3818 = vld [vmem:[%s3724 + $0x2e8] sm:$0xff]
        %v3819 = vld [vmem:[%s3724 + $0x2f0] sm:$0xff]
        %v3820 = vld [vmem:[%s3724 + $0x2f8] sm:$0xff]
        %v3821 = vld [vmem:[%s3724 + $0x300] sm:$0xff]
        %v3822 = vld [vmem:[%s3724 + $0x308] sm:$0xff]
        %v3823 = vld [vmem:[%s3724 + $0x310] sm:$0xff]
        %v3824 = vld [vmem:[%s3724 + $0x318] sm:$0xff]
        %v3825 = vld [vmem:[%s3724 + $0x320] sm:$0xff]
        %v3826 = vld [vmem:[%s3724 + $0x328] sm:$0xff]
        %v3827 = vld [vmem:[%s3724 + $0x330] sm:$0xff]
        %v3828 = vld [vmem:[%s3724 + $0x338] sm:$0xff]
        %v3829 = vld [vmem:[%s3724 + $0x340] sm:$0xff]
        %v3830 = vld [vmem:[%s3724 + $0x348] sm:$0xff]
        %v3831 = vld [vmem:[%s3724 + $0x350] sm:$0xff]
        %v3832 = vld [vmem:[%s3724 + $0x358] sm:$0xff]
        %v3833 = vld [vmem:[%s3724 + $0x360] sm:$0xff]
        %v3834 = vld [vmem:[%s3724 + $0x368] sm:$0xff]
        %v3835 = vld [vmem:[%s3724 + $0x370] sm:$0xff]
        %v3836 = vld [vmem:[%s3724 + $0x378] sm:$0xff]
        %v3837 = vld [vmem:[%s3724 + $0x380] sm:$0xff]
        %v3838 = vld [vmem:[%s3724 + $0x388] sm:$0xff]
        %v3839 = vld [vmem:[%s3724 + $0x390] sm:$0xff]
        %v3840 = vld [vmem:[%s3724 + $0x398] sm:$0xff]
        %v3841 = vld [vmem:[%s3724 + $0x3a0] sm:$0xff]
        %v3842 = vld [vmem:[%s3724 + $0x3a8] sm:$0xff]
        %v3843 = vld [vmem:[%s3724 + $0x3b0] sm:$0xff]
        %v3844 = vld [vmem:[%s3724 + $0x3b8] sm:$0xff]
        %v3845 = vld [vmem:[%s3724 + $0x3c0] sm:$0xff]
        %v3846 = vld [vmem:[%s3724 + $0x3c8] sm:$0xff]
        %v3847 = vld [vmem:[%s3724 + $0x3d0] sm:$0xff]
        %v3848 = vld [vmem:[%s3724 + $0x3d8] sm:$0xff]
        %v3849 = vld [vmem:[%s3724 + $0x3e0] sm:$0xff]
        %v3850 = vld [vmem:[%s3724 + $0x3e8] sm:$0xff]
        %v3851 = vld [vmem:[%s3724 + $0x3f0] sm:$0xff]
        %v3852 = vld [vmem:[%s3724 + $0x3f8] sm:$0xff]
        %v3853 = vld [vmem:[%s3724 + $0x400] sm:$0xff]
        %v3854 = vld [vmem:[%s3724 + $0x408] sm:$0xff]
        %v3855 = vld [vmem:[%s3724 + $0x410] sm:$0xff]
        %v3856 = vld [vmem:[%s3724 + $0x418] sm:$0xff]
        %v3857 = vld [vmem:[%s3724 + $0x420] sm:$0xff]
        %v3858 = vld [vmem:[%s3724 + $0x428] sm:$0xff]
        %v3859 = vld [vmem:[%s3724 + $0x430] sm:$0xff]
        %v3860 = vld [vmem:[%s3724 + $0x438] sm:$0xff]
        %v3861 = vld [vmem:[%s3724 + $0x440] sm:$0xff]
        %v3862 = vld [vmem:[%s3724 + $0x448] sm:$0xff]
        %v3863 = vld [vmem:[%s3724 + $0x450] sm:$0xff]
        %v3864 = vld [vmem:[%s3724 + $0x458] sm:$0xff]
        %v3865 = vld [vmem:[%s3724 + $0x460] sm:$0xff]
        %v3866 = vld [vmem:[%s3724 + $0x468] sm:$0xff]
        %v3867 = vld [vmem:[%s3724 + $0x470] sm:$0xff]
        %v3868 = vld [vmem:[%s3724 + $0x478] sm:$0xff]
        %v3869 = vld [vmem:[%s3724 + $0x480] sm:$0xff]
        %v3870 = vld [vmem:[%s3724 + $0x488] sm:$0xff]
        %v3871 = vld [vmem:[%s3724 + $0x490] sm:$0xff]
        %v3872 = vld [vmem:[%s3724 + $0x498] sm:$0xff]
        %v3873 = vld [vmem:[%s3724 + $0x4a0] sm:$0xff]
        %v3874 = vld [vmem:[%s3724 + $0x4a8] sm:$0xff]
        %v3875 = vld [vmem:[%s3724 + $0x4b0] sm:$0xff]
        %v3876 = vld [vmem:[%s3724 + $0x4b8] sm:$0xff]
        %v3877 = vld [vmem:[%s3724 + $0x4c0] sm:$0xff]
        %v3878 = vld [vmem:[%s3724 + $0x4c8] sm:$0xff]
        %v3879 = vld [vmem:[%s3724 + $0x4d0] sm:$0xff]
        %v3880 = vld [vmem:[%s3724 + $0x4d8] sm:$0xff]
        %v3881 = vld [vmem:[%s3724 + $0x4e0] sm:$0xff]
        %v3882 = vld [vmem:[%s3724 + $0x4e8] sm:$0xff]
        %v3883 = vld [vmem:[%s3724 + $0x4f0] sm:$0xff]
        %v3884 = vld [vmem:[%s3724 + $0x4f8] sm:$0xff]
        %v3885 = vld [vmem:[%s3724 + $0x500] sm:$0xff]
        %v3886 = vld [vmem:[%s3724 + $0x508] sm:$0xff]
        %v3887 = vld [vmem:[%s3724 + $0x510] sm:$0xff]
        %v3888 = vld [vmem:[%s3724 + $0x518] sm:$0xff]
        %v3889 = vld [vmem:[%s3724 + $0x520] sm:$0xff]
        %v3890 = vld [vmem:[%s3724 + $0x528] sm:$0xff]
        %v3891 = vld [vmem:[%s3724 + $0x530] sm:$0xff]
        %v3892 = vld [vmem:[%s3724 + $0x538] sm:$0xff]
        %v3893 = vld [vmem:[%s3724 + $0x540] sm:$0xff]
        %v3894 = vld [vmem:[%s3724 + $0x548] sm:$0xff]
        %v3895 = vld [vmem:[%s3724 + $0x550] sm:$0xff]
        %v3896 = vld [vmem:[%s3724 + $0x558] sm:$0xff]
        %v3897 = vld [vmem:[%s3724 + $0x560] sm:$0xff]
        %v3898 = vld [vmem:[%s3724 + $0x568] sm:$0xff]
        %v3899 = vld [vmem:[%s3724 + $0x570] sm:$0xff]
        %v3900 = vld [vmem:[%s3724 + $0x578] sm:$0xff]
        %v3901 = vld [vmem:[%s3724 + $0x580] sm:$0xff]
        %v3902 = vld [vmem:[%s3724 + $0x588] sm:$0xff]
        %v3903 = vld [vmem:[%s3724 + $0x590] sm:$0xff]
        %v3904 = vld [vmem:[%s3724 + $0x598] sm:$0xff]
        %v3905 = vld [vmem:[%s3724 + $0x5a0] sm:$0xff]
        %v3906 = vld [vmem:[%s3724 + $0x5a8] sm:$0xff]
        %v3907 = vld [vmem:[%s3724 + $0x5b0] sm:$0xff]
        %v3908 = vld [vmem:[%s3724 + $0x5b8] sm:$0xff]
        %v3909 = vld [vmem:[%s3724 + $0x5c0] sm:$0xff]
        %v3910 = vld [vmem:[%s3724 + $0x5c8] sm:$0xff]
        %v3911 = vld [vmem:[%s3724 + $0x5d0] sm:$0xff]
        %v3912 = vld [vmem:[%s3724 + $0x5d8] sm:$0xff]
        %v3913 = vld [vmem:[%s3724 + $0x5e0] sm:$0xff]
        %v3914 = vld [vmem:[%s3724 + $0x5e8] sm:$0xff]
        %v3915 = vld [vmem:[%s3724 + $0x5f0] sm:$0xff]
        %v3916 = vld [vmem:[%s3724 + $0x5f8] sm:$0xff]
        %v3917 = vld [vmem:[%s3724 + $0x600] sm:$0xff]
        %v3918 = vld [vmem:[%s3724 + $0x608] sm:$0xff]
        %v3919 = vld [vmem:[%s3724 + $0x610] sm:$0xff]
        %v3920 = vld [vmem:[%s3724 + $0x618] sm:$0xff]
        %v3921 = vld [vmem:[%s3724 + $0x620] sm:$0xff]
        %v3922 = vld [vmem:[%s3724 + $0x628] sm:$0xff]
        %v3923 = vld [vmem:[%s3724 + $0x630] sm:$0xff]
        %v3924 = vld [vmem:[%s3724 + $0x638] sm:$0xff]
        %v3925 = vld [vmem:[%s3724 + $0x640] sm:$0xff]
        %v3926 = vld [vmem:[%s3724 + $0x648] sm:$0xff]
        %v3927 = vld [vmem:[%s3724 + $0x650] sm:$0xff]
        %v3928 = vld [vmem:[%s3724 + $0x658] sm:$0xff]
        %v3929 = vld [vmem:[%s3724 + $0x660] sm:$0xff]
        %v3930 = vld [vmem:[%s3724 + $0x668] sm:$0xff]
        %v3931 = vld [vmem:[%s3724 + $0x670] sm:$0xff]
        %v3932 = vld [vmem:[%s3724 + $0x678] sm:$0xff]
        %v3933 = vld [vmem:[%s3724 + $0x680] sm:$0xff]
        %v3934 = vld [vmem:[%s3724 + $0x688] sm:$0xff]
        %v3935 = vld [vmem:[%s3724 + $0x690] sm:$0xff]
        %v3936 = vld [vmem:[%s3724 + $0x698] sm:$0xff]
        %v3937 = vld [vmem:[%s3724 + $0x6a0] sm:$0xff]
        %v3938 = vld [vmem:[%s3724 + $0x6a8] sm:$0xff]
        %v3939 = vld [vmem:[%s3724 + $0x6b0] sm:$0xff]
        %v3940 = vld [vmem:[%s3724 + $0x6b8] sm:$0xff]
        %v3941 = vld [vmem:[%s3724 + $0x6c0] sm:$0xff]
        %v3942 = vld [vmem:[%s3724 + $0x6c8] sm:$0xff]
        %v3943 = vld [vmem:[%s3724 + $0x6d0] sm:$0xff]
        %v3944 = vld [vmem:[%s3724 + $0x6d8] sm:$0xff]
        %v3945 = vld [vmem:[%s3724 + $0x6e0] sm:$0xff]
        %v3946 = vld [vmem:[%s3724 + $0x6e8] sm:$0xff]
        %v3947 = vld [vmem:[%s3724 + $0x6f0] sm:$0xff]
        %v3948 = vld [vmem:[%s3724 + $0x6f8] sm:$0xff]
        %v3949 = vld [vmem:[%s3724 + $0x700] sm:$0xff]
        %v3950 = vld [vmem:[%s3724 + $0x708] sm:$0xff]
        %v3951 = vld [vmem:[%s3724 + $0x710] sm:$0xff]
        %v3952 = vld [vmem:[%s3724 + $0x718] sm:$0xff]
        %v3953 = vld [vmem:[%s3724 + $0x720] sm:$0xff]
        %v3954 = vld [vmem:[%s3724 + $0x728] sm:$0xff]
        %v3955 = vld [vmem:[%s3724 + $0x730] sm:$0xff]
        %v3956 = vld [vmem:[%s3724 + $0x738] sm:$0xff]
        %v3957 = vld [vmem:[%s3724 + $0x740] sm:$0xff]
        %v3958 = vld [vmem:[%s3724 + $0x748] sm:$0xff]
        %v3959 = vld [vmem:[%s3724 + $0x750] sm:$0xff]
        %v3960 = vld [vmem:[%s3724 + $0x758] sm:$0xff]
        %v3961 = vld [vmem:[%s3724 + $0x760] sm:$0xff]
        %v3962 = vld [vmem:[%s3724 + $0x768] sm:$0xff]
        %v3963 = vld [vmem:[%s3724 + $0x770] sm:$0xff]
        %v3964 = vld [vmem:[%s3724 + $0x778] sm:$0xff]
        %v3965 = vld [vmem:[%s3724 + $0x780] sm:$0xff]
        %v3966 = vld [vmem:[%s3724 + $0x788] sm:$0xff]
        %v3967 = vld [vmem:[%s3724 + $0x790] sm:$0xff]
        %v3968 = vld [vmem:[%s3724 + $0x798] sm:$0xff]
        %v3969 = vld [vmem:[%s3724 + $0x7a0] sm:$0xff]
        %v3970 = vld [vmem:[%s3724 + $0x7a8] sm:$0xff]
        %v3971 = vld [vmem:[%s3724 + $0x7b0] sm:$0xff]
        %v3972 = vld [vmem:[%s3724 + $0x7b8] sm:$0xff]
        %v3973 = vld [vmem:[%s3724 + $0x7c0] sm:$0xff]
        %v3974 = vld [vmem:[%s3724 + $0x7c8] sm:$0xff]
        %v3975 = vld [vmem:[%s3724 + $0x7d0] sm:$0xff]
        %v3976 = vld [vmem:[%s3724 + $0x7d8] sm:$0xff]
        %v3977 = vld [vmem:[%s3724 + $0x7e0] sm:$0xff]
        %v3978 = vld [vmem:[%s3724 + $0x7e8] sm:$0xff]
        %v3979 = vld [vmem:[%s3724 + $0x7f0] sm:$0xff]
        %v3980 = vld [vmem:[%s3724 + $0x7f8] sm:$0xff]
        %v3981 = vld [vmem:[%s3724 + $0x800] sm:$0xff]
        %v3982 = vld [vmem:[%s3724 + $0x808] sm:$0xff]
        %v3983 = vld [vmem:[%s3724 + $0x810] sm:$0xff]
        %v3984 = vld [vmem:[%s3724 + $0x818] sm:$0xff]
        %v3985 = vld [vmem:[%s3724 + $0x820] sm:$0xff]
        %v3986 = vld [vmem:[%s3724 + $0x828] sm:$0xff]
        %v3987 = vld [vmem:[%s3724 + $0x830] sm:$0xff]
        %v3988 = vld [vmem:[%s3724 + $0x838] sm:$0xff]
        %v3989 = vld [vmem:[%s3724 + $0x840] sm:$0xff]
        %v3990 = vld [vmem:[%s3724 + $0x848] sm:$0xff]
        %v3991 = vld [vmem:[%s3724 + $0x850] sm:$0xff]
        %v3992 = vld [vmem:[%s3724 + $0x858] sm:$0xff]
        %v3993 = vld [vmem:[%s3724 + $0x860] sm:$0xff]
        %v3994 = vld [vmem:[%s3724 + $0x868] sm:$0xff]
        %v3995 = vld [vmem:[%s3724 + $0x870] sm:$0xff]
        %v3996 = vld [vmem:[%s3724 + $0x878] sm:$0xff]
        %v3997 = vld [vmem:[%s3724 + $0x880] sm:$0xff]
        %v3998 = vld [vmem:[%s3724 + $0x888] sm:$0xff]
        %v3999 = vld [vmem:[%s3724 + $0x890] sm:$0xff]
        %v4000 = vld [vmem:[%s3724 + $0x898] sm:$0xff]
        %v4001 = vld [vmem:[%s3724 + $0x8a0] sm:$0xff]
        %v4002 = vld [vmem:[%s3724 + $0x8a8] sm:$0xff]
        %v4003 = vld [vmem:[%s3724 + $0x8b0] sm:$0xff]
        %v4004 = vld [vmem:[%s3724 + $0x8b8] sm:$0xff]
        %v4005 = vld [vmem:[%s3724 + $0x8c0] sm:$0xff]
        %v4006 = vld [vmem:[%s3724 + $0x8c8] sm:$0xff]
        %v4007 = vld [vmem:[%s3724 + $0x8d0] sm:$0xff]
        %v4008 = vld [vmem:[%s3724 + $0x8d8] sm:$0xff]
        %v4009 = vld [vmem:[%s3724 + $0x8e0] sm:$0xff]
        %v4010 = vld [vmem:[%s3724 + $0x8e8] sm:$0xff]
        %v4011 = vld [vmem:[%s3724 + $0x8f0] sm:$0xff]
        %v4012 = vld [vmem:[%s3724 + $0x8f8] sm:$0xff]
        %v4013 = vld [vmem:[%s3724 + $0x900] sm:$0xff]
        %v4014 = vld [vmem:[%s3724 + $0x908] sm:$0xff]
        %v4015 = vld [vmem:[%s3724 + $0x910] sm:$0xff]
        %v4016 = vld [vmem:[%s3724 + $0x918] sm:$0xff]
        %v4017 = vld [vmem:[%s3724 + $0x920] sm:$0xff]
        %v4018 = vld [vmem:[%s3724 + $0x928] sm:$0xff]
        %v4019 = vld [vmem:[%s3724 + $0x930] sm:$0xff]
        %v4020 = vld [vmem:[%s3724 + $0x938] sm:$0xff]
        %v4021 = vld [vmem:[%s3724 + $0x940] sm:$0xff]
        %v4022 = vld [vmem:[%s3724 + $0x948] sm:$0xff]
        %v4023 = vld [vmem:[%s3724 + $0x950] sm:$0xff]
        %v4024 = vld [vmem:[%s3724 + $0x958] sm:$0xff]
        %v4025 = vld [vmem:[%s3724 + $0x960] sm:$0xff]
        %v4026 = vld [vmem:[%s3724 + $0x968] sm:$0xff]
        %v4027 = vld [vmem:[%s3724 + $0x970] sm:$0xff]
        %v4028 = vld [vmem:[%s3724 + $0x978] sm:$0xff]
        %v4029 = vld [vmem:[%s3724 + $0x980] sm:$0xff]
        %v4030 = vld [vmem:[%s3724 + $0x988] sm:$0xff]
        %v4031 = vld [vmem:[%s3724 + $0x990] sm:$0xff]
        %v4032 = vld [vmem:[%s3724 + $0x998] sm:$0xff]
        %v4033 = vld [vmem:[%s3724 + $0x9a0] sm:$0xff]
        %v4034 = vld [vmem:[%s3724 + $0x9a8] sm:$0xff]
        %v4035 = vld [vmem:[%s3724 + $0x9b0] sm:$0xff]
        %v4036 = vld [vmem:[%s3724 + $0x9b8] sm:$0xff]
        %v4037 = vld [vmem:[%s3724 + $0x9c0] sm:$0xff]
        %v4038 = vld [vmem:[%s3724 + $0x9c8] sm:$0xff]
        %v4039 = vld [vmem:[%s3724 + $0x9d0] sm:$0xff]
        %v4040 = vld [vmem:[%s3724 + $0x9d8] sm:$0xff]
        %v4041 = vld [vmem:[%s3724 + $0x9e0] sm:$0xff]
        %v4042 = vld [vmem:[%s3724 + $0x9e8] sm:$0xff]
        %v4043 = vld [vmem:[%s3724 + $0x9f0] sm:$0xff]
        %v4044 = vld [vmem:[%s3724 + $0x9f8] sm:$0xff]
        %v4045 = vld [vmem:[%s3724 + $0xa00] sm:$0xff]
        %v4046 = vld [vmem:[%s3724 + $0xa08] sm:$0xff]
        %v4047 = vld [vmem:[%s3724 + $0xa10] sm:$0xff]
        %v4048 = vld [vmem:[%s3724 + $0xa18] sm:$0xff]
        %v4049 = vld [vmem:[%s3724 + $0xa20] sm:$0xff]
        %v4050 = vld [vmem:[%s3724 + $0xa28] sm:$0xff]
        %v4051 = vld [vmem:[%s3724 + $0xa30] sm:$0xff]
        %v4052 = vld [vmem:[%s3724 + $0xa38] sm:$0xff]
        %v4053 = vld [vmem:[%s3724 + $0xa40] sm:$0xff]
        %v4054 = vld [vmem:[%s3724 + $0xa48] sm:$0xff]
        %v4055 = vld [vmem:[%s3724 + $0xa50] sm:$0xff]
        %v4056 = vld [vmem:[%s3724 + $0xa58] sm:$0xff]
        %v4057 = vld [vmem:[%s3724 + $0xa60] sm:$0xff]
        %v4058 = vld [vmem:[%s3724 + $0xa68] sm:$0xff]
        %v4059 = vld [vmem:[%s3724 + $0xa70] sm:$0xff]
        %v4060 = vld [vmem:[%s3724 + $0xa78] sm:$0xff]
        %v4061 = vld [vmem:[%s3724 + $0xa80] sm:$0xff]
        %v4062 = vld [vmem:[%s3724 + $0xa88] sm:$0xff]
        %v4063 = vld [vmem:[%s3724 + $0xa90] sm:$0xff]
        %v4064 = vld [vmem:[%s3724 + $0xa98] sm:$0xff]
        %v4065 = vld [vmem:[%s3724 + $0xaa0] sm:$0xff]
        %v4066 = vld [vmem:[%s3724 + $0xaa8] sm:$0xff]
        %v4067 = vld [vmem:[%s3724 + $0xab0] sm:$0xff]
        %v4068 = vld [vmem:[%s3724 + $0xab8] sm:$0xff]
        %v4069 = vld [vmem:[%s3724 + $0xac0] sm:$0xff]
        %v4070 = vld [vmem:[%s3724 + $0xac8] sm:$0xff]
        %v4071 = vld [vmem:[%s3724 + $0xad0] sm:$0xff]
        %v4072 = vld [vmem:[%s3724 + $0xad8] sm:$0xff]
        %v4073 = vld [vmem:[%s3724 + $0xae0] sm:$0xff]
        %v4074 = vld [vmem:[%s3724 + $0xae8] sm:$0xff]
        %v4075 = vld [vmem:[%s3724 + $0xaf0] sm:$0xff]
        %v4076 = vld [vmem:[%s3724 + $0xaf8] sm:$0xff]
        %v4077 = vld [vmem:[%s3724 + $0xb00] sm:$0xff]
        %v4078 = vld [vmem:[%s3724 + $0xb08] sm:$0xff]
        %v4079 = vld [vmem:[%s3724 + $0xb10] sm:$0xff]
        %v4080 = vld [vmem:[%s3724 + $0xb18] sm:$0xff]
        %v4081 = vld [vmem:[%s3724 + $0xb20] sm:$0xff]
        %v4082 = vld [vmem:[%s3724 + $0xb28] sm:$0xff]
        %v4083 = vld [vmem:[%s3724 + $0xb30] sm:$0xff]
        %v4084 = vld [vmem:[%s3724 + $0xb38] sm:$0xff]
        %v4085 = vld [vmem:[%s3724 + $0xb40] sm:$0xff]
        %v4086 = vld [vmem:[%s3724 + $0xb48] sm:$0xff]
        %v4087 = vld [vmem:[%s3724 + $0xb50] sm:$0xff]
        %v4088 = vld [vmem:[%s3724 + $0xb58] sm:$0xff]
        %v4089 = vld [vmem:[%s3724 + $0xb60] sm:$0xff]
        %v4090 = vld [vmem:[%s3724 + $0xb68] sm:$0xff]
        %v4091 = vld [vmem:[%s3724 + $0xb70] sm:$0xff]
        %v4092 = vld [vmem:[%s3724 + $0xb78] sm:$0xff]
        %v4093 = vld [vmem:[%s3724 + $0xb80] sm:$0xff]
        %v4094 = vld [vmem:[%s3724 + $0xb88] sm:$0xff]
        %v4095 = vld [vmem:[%s3724 + $0xb90] sm:$0xff]
        %v4096 = vld [vmem:[%s3724 + $0xb98] sm:$0xff]
        %v4097 = vld [vmem:[%s3724 + $0xba0] sm:$0xff]
        %v4098 = vld [vmem:[%s3724 + $0xba8] sm:$0xff]
        %v4099 = vld [vmem:[%s3724 + $0xbb0] sm:$0xff]
        %v4100 = vld [vmem:[%s3724 + $0xbb8] sm:$0xff]
        %v4101 = vld [vmem:[%s3724 + $0xbc0] sm:$0xff]
        %v4102 = vld [vmem:[%s3724 + $0xbc8] sm:$0xff]
        %v4103 = vld [vmem:[%s3724 + $0xbd0] sm:$0xff]
        %v4104 = vld [vmem:[%s3724 + $0xbd8] sm:$0xff]
        %v4105 = vld [vmem:[%s3724 + $0xbe0] sm:$0xff]
        %v4106 = vld [vmem:[%s3724 + $0xbe8] sm:$0xff]
        %v4107 = vld [vmem:[%s3724 + $0xbf0] sm:$0xff]
        %v4108 = vld [vmem:[%s3724 + $0xbf8] sm:$0xff]
        %v4127 = vrot.slane %v3712, 1
        %v4128 = vrot.slane %v3322, 1
        %v4129 = vsel %vm1334, %v4127, %v4128
        %v4130 = vrot.slane %v3713, 1
        %v4131 = vrot.slane %v3323, 1
        %v4132 = vsel %vm1334, %v4130, %v4131
        %v4133 = vrot.slane %v3714, 1
        %v4134 = vrot.slane %v3324, 1
        %v4135 = vsel %vm1334, %v4133, %v4134
        %v4136 = vrot.slane %v3715, 1
        %v4137 = vrot.slane %v3325, 1
        %v4138 = vsel %vm1334, %v4136, %v4137
        %v4139 = vrot.slane %v3716, 1
        %v4140 = vrot.slane %v3326, 1
        %v4141 = vsel %vm1334, %v4139, %v4140
        %v4142 = vrot.slane %v3717, 1
        %v4143 = vrot.slane %v3327, 1
        %v4144 = vsel %vm1334, %v4142, %v4143
        %v4145 = vrot.slane %v3718, 1
        %v4146 = vsel %vm1334, %v4128, %v4145
        %v4147 = vrot.slane %v3719, 1
        %v4148 = vsel %vm1334, %v4131, %v4147
        %v4149 = vrot.slane %v3720, 1
        %v4150 = vsel %vm1334, %v4134, %v4149
        %v4151 = vrot.slane %v3721, 1
        %v4152 = vsel %vm1334, %v4137, %v4151
        %v4153 = vrot.slane %v3722, 1
        %v4154 = vsel %vm1334, %v4140, %v4153
        %v4155 = vrot.slane %v3723, 1
        %v4156 = vsel %vm1334, %v4143, %v4155
        %4169 = vmatprep.subr.mxu0 %v3726
        %4170 = vmatpush1.msra.mxu0 %v3725
        %4171 = vmatprep.subr.mxu0 %v3730
        %4172 = vmatpush1.msra.mxu0 %v3729
        %4173 = vmatprep.subr.mxu0 %v3734
        %4174 = vmatpush1.msra.mxu0 %v3733
        %4175 = vmatprep.subr.mxu0 %v3738
        %4176 = vmatpush1.msra.mxu0 %v3737
        %4177 = vmatprep.subr.mxu0 %v3742
        %4178 = vmatpush1.msra.mxu0 %v3741
        %4179 = vmatprep.subr.mxu0 %v3746
        %4180 = vmatpush1.msra.mxu0 %v3745
        %4181 = vmatprep.subr.mxu0 %v3750
        %4182 = vmatpush1.msra.mxu0 %v3749
        %4183 = vmatprep.subr.mxu0 %v3754
        %4184 = vmatpush1.msra.mxu0 %v3753
        %4185 = vmatprep.subr.mxu0 %v3758
        %4186 = vmatpush1.msra.mxu0 %v3757
        %4187 = vmatprep.subr.mxu0 %v3762
        %4188 = vmatpush1.msra.mxu0 %v3761
        %4189 = vmatprep.subr.mxu0 %v3766
        %4190 = vmatpush1.msra.mxu0 %v3765
        %4191 = vmatprep.subr.mxu0 %v3770
        %4192 = vmatpush1.msra.mxu0 %v3769
        %4193 = vmatprep.subr.mxu0 %v3774
        %4194 = vmatpush1.msra.mxu0 %v3773
        %4195 = vmatprep.subr.mxu0 %v3778
        %4196 = vmatpush1.msra.mxu0 %v3777
        %4197 = vmatprep.subr.mxu0 %v3782
        %4198 = vmatpush1.msra.mxu0 %v3781
        %4199 = vmatprep.subr.mxu0 %v3786
        %4200 = vmatpush1.msra.mxu0 %v3785
        %4201 = vmatprep.subr.mxu0 %v3790
        %4202 = vmatpush1.msra.mxu0 %v3789
        %4203 = vmatprep.subr.mxu0 %v3794
        %4204 = vmatpush1.msra.mxu0 %v3793
        %4205 = vmatprep.subr.mxu0 %v3798
        %4206 = vmatpush1.msra.mxu0 %v3797
        %4207 = vmatprep.subr.mxu0 %v3802
        %4208 = vmatpush1.msra.mxu0 %v3801
        %4209 = vmatprep.subr.mxu0 %v3806
        %4210 = vmatpush1.msra.mxu0 %v3805
        %4211 = vmatprep.subr.mxu0 %v3810
        %4212 = vmatpush1.msra.mxu0 %v3809
        %4213 = vmatprep.subr.mxu0 %v3814
        %4214 = vmatpush1.msra.mxu0 %v3813
        %4215 = vmatprep.subr.mxu0 %v3818
        %4216 = vmatpush1.msra.mxu0 %v3817
        %4217 = vmatprep.subr.mxu0 %v3822
        %4218 = vmatpush1.msra.mxu0 %v3821
        %4219 = vmatprep.subr.mxu0 %v3826
        %4220 = vmatpush1.msra.mxu0 %v3825
        %4221 = vmatprep.subr.mxu0 %v3830
        %4222 = vmatpush1.msra.mxu0 %v3829
        %4223 = vmatprep.subr.mxu0 %v3834
        %4224 = vmatpush1.msra.mxu0 %v3833
        %4225 = vmatprep.subr.mxu0 %v3838
        %4226 = vmatpush1.msra.mxu0 %v3837
        %4227 = vmatprep.subr.mxu0 %v3842
        %4228 = vmatpush1.msra.mxu0 %v3841
        %4229 = vmatprep.subr.mxu0 %v3846
        %4230 = vmatpush1.msra.mxu0 %v3845
        %4231 = vmatprep.subr.mxu0 %v3850
        %4232 = vmatpush1.msra.mxu0 %v3849
        %4233 = vmatprep.mubr.f32.mxu0 %v4132
        %4234 = vmatmul.mubr.f32.gmra.mrb[0].mxu0 %v4129
        %v4235 = vpop.f32.mrb[0].mxu0
        %v4236 = vadd.f32 0.0, %v4235
        %v4237 = vpop.f32.mrb[0].mxu0
        %v4238 = vadd.f32 0.0, %v4237
        %4239 = vmatprep.mubr.f32.mxu0 %v4148
        %4240 = vmatmul.mubr.f32.gmra.mrb[0].mxu0 %v4146
        %v4241 = vpop.f32.mrb[0].mxu0
        %v4242 = vadd.f32 0.0, %v4241
        %v4243 = vpop.f32.mrb[0].mxu0
        %v4244 = vadd.f32 0.0, %v4243
        %4245 = vdwg.mxu0
        %4246 = vmatprep.subr.mxu0 %v3854
        %4247 = vmatpush1.msra.mxu0 %v3853
        %4248 = vmatprep.subr.mxu0 %v3858
        %4249 = vmatpush1.msra.mxu0 %v3857
        %4250 = vmatprep.subr.mxu0 %v3862
        %4251 = vmatpush1.msra.mxu0 %v3861
        %4252 = vmatprep.subr.mxu0 %v3866
        %4253 = vmatpush1.msra.mxu0 %v3865
        %4254 = vmatprep.subr.mxu0 %v3870
        %4255 = vmatpush1.msra.mxu0 %v3869
        %4256 = vmatprep.subr.mxu0 %v3874
        %4257 = vmatpush1.msra.mxu0 %v3873
        %4258 = vmatprep.subr.mxu0 %v3878
        %4259 = vmatpush1.msra.mxu0 %v3877
        %4260 = vmatprep.subr.mxu0 %v3882
        %4261 = vmatpush1.msra.mxu0 %v3881
        %4262 = vmatprep.subr.mxu0 %v3886
        %4263 = vmatpush1.msra.mxu0 %v3885
        %4264 = vmatprep.subr.mxu0 %v3890
        %4265 = vmatpush1.msra.mxu0 %v3889
        %4266 = vmatprep.subr.mxu0 %v3894
        %4267 = vmatpush1.msra.mxu0 %v3893
        %4268 = vmatprep.subr.mxu0 %v3898
        %4269 = vmatpush1.msra.mxu0 %v3897
        %4270 = vmatprep.subr.mxu0 %v3902
        %4271 = vmatpush1.msra.mxu0 %v3901
        %4272 = vmatprep.subr.mxu0 %v3906
        %4273 = vmatpush1.msra.mxu0 %v3905
        %4274 = vmatprep.subr.mxu0 %v3910
        %4275 = vmatpush1.msra.mxu0 %v3909
        %4276 = vmatprep.subr.mxu0 %v3914
        %4277 = vmatpush1.msra.mxu0 %v3913
        %4278 = vmatprep.subr.mxu0 %v3918
        %4279 = vmatpush1.msra.mxu0 %v3917
        %4280 = vmatprep.subr.mxu0 %v3922
        %4281 = vmatpush1.msra.mxu0 %v3921
        %4282 = vmatprep.subr.mxu0 %v3926
        %4283 = vmatpush1.msra.mxu0 %v3925
        %4284 = vmatprep.subr.mxu0 %v3930
        %4285 = vmatpush1.msra.mxu0 %v3929
        %4286 = vmatprep.subr.mxu0 %v3934
        %4287 = vmatpush1.msra.mxu0 %v3933
        %4288 = vmatprep.subr.mxu0 %v3938
        %4289 = vmatpush1.msra.mxu0 %v3937
        %4290 = vmatprep.subr.mxu0 %v3942
        %4291 = vmatpush1.msra.mxu0 %v3941
        %4292 = vmatprep.subr.mxu0 %v3946
        %4293 = vmatpush1.msra.mxu0 %v3945
        %4294 = vmatprep.subr.mxu0 %v3950
        %4295 = vmatpush1.msra.mxu0 %v3949
        %4296 = vmatprep.subr.mxu0 %v3954
        %4297 = vmatpush1.msra.mxu0 %v3953
        %4298 = vmatprep.subr.mxu0 %v3958
        %4299 = vmatpush1.msra.mxu0 %v3957
        %4300 = vmatprep.subr.mxu0 %v3962
        %4301 = vmatpush1.msra.mxu0 %v3961
        %4302 = vmatprep.subr.mxu0 %v3966
        %4303 = vmatpush1.msra.mxu0 %v3965
        %4304 = vmatprep.subr.mxu0 %v3970
        %4305 = vmatpush1.msra.mxu0 %v3969
        %4306 = vmatprep.subr.mxu0 %v3974
        %4307 = vmatpush1.msra.mxu0 %v3973
        %4308 = vmatprep.subr.mxu0 %v3978
        %4309 = vmatpush1.msra.mxu0 %v3977
        %4310 = vmatprep.mubr.f32.mxu0 %v4138
        %4311 = vmatmul.mubr.f32.gmra.mrb[0].mxu0 %v4135
        %v4312 = vpop.f32.mrb[0].mxu0
        %v4313 = vadd.f32 %v4236, %v4312
        %v4314 = vpop.f32.mrb[0].mxu0
        %v4315 = vadd.f32 %v4238, %v4314
        %4316 = vmatprep.mubr.f32.mxu0 %v4152
        %4317 = vmatmul.mubr.f32.gmra.mrb[0].mxu0 %v4150
        %v4318 = vpop.f32.mrb[0].mxu0
        %v4319 = vadd.f32 %v4242, %v4318
        %v4320 = vpop.f32.mrb[0].mxu0
        %v4321 = vadd.f32 %v4244, %v4320
        %4322 = vdwg.mxu0
        %4323 = vmatprep.subr.mxu0 %v3982
        %4324 = vmatpush1.msra.mxu0 %v3981
        %4325 = vmatprep.subr.mxu0 %v3986
        %4326 = vmatpush1.msra.mxu0 %v3985
        %4327 = vmatprep.subr.mxu0 %v3990
        %4328 = vmatpush1.msra.mxu0 %v3989
        %4329 = vmatprep.subr.mxu0 %v3994
        %4330 = vmatpush1.msra.mxu0 %v3993
        %4331 = vmatprep.subr.mxu0 %v3998
        %4332 = vmatpush1.msra.mxu0 %v3997
        %4333 = vmatprep.subr.mxu0 %v4002
        %4334 = vmatpush1.msra.mxu0 %v4001
        %4335 = vmatprep.subr.mxu0 %v4006
        %4336 = vmatpush1.msra.mxu0 %v4005
        %4337 = vmatprep.subr.mxu0 %v4010
        %4338 = vmatpush1.msra.mxu0 %v4009
        %4339 = vmatprep.subr.mxu0 %v4014
        %4340 = vmatpush1.msra.mxu0 %v4013
        %4341 = vmatprep.subr.mxu0 %v4018
        %4342 = vmatpush1.msra.mxu0 %v4017
        %4343 = vmatprep.subr.mxu0 %v4022
        %4344 = vmatpush1.msra.mxu0 %v4021
        %4345 = vmatprep.subr.mxu0 %v4026
        %4346 = vmatpush1.msra.mxu0 %v4025
        %4347 = vmatprep.subr.mxu0 %v4030
        %4348 = vmatpush1.msra.mxu0 %v4029
        %4349 = vmatprep.subr.mxu0 %v4034
        %4350 = vmatpush1.msra.mxu0 %v4033
        %4351 = vmatprep.subr.mxu0 %v4038
        %4352 = vmatpush1.msra.mxu0 %v4037
        %4353 = vmatprep.subr.mxu0 %v4042
        %4354 = vmatpush1.msra.mxu0 %v4041
        %4355 = vmatprep.subr.mxu0 %v4046
        %4356 = vmatpush1.msra.mxu0 %v4045
        %4357 = vmatprep.subr.mxu0 %v4050
        %4358 = vmatpush1.msra.mxu0 %v4049
        %4359 = vmatprep.subr.mxu0 %v4054
        %4360 = vmatpush1.msra.mxu0 %v4053
        %4361 = vmatprep.subr.mxu0 %v4058
        %4362 = vmatpush1.msra.mxu0 %v4057
        %4363 = vmatprep.subr.mxu0 %v4062
        %4364 = vmatpush1.msra.mxu0 %v4061
        %4365 = vmatprep.subr.mxu0 %v4066
        %4366 = vmatpush1.msra.mxu0 %v4065
        %4367 = vmatprep.subr.mxu0 %v4070
        %4368 = vmatpush1.msra.mxu0 %v4069
        %4369 = vmatprep.subr.mxu0 %v4074
        %4370 = vmatpush1.msra.mxu0 %v4073
        %4371 = vmatprep.subr.mxu0 %v4078
        %4372 = vmatpush1.msra.mxu0 %v4077
        %4373 = vmatprep.subr.mxu0 %v4082
        %4374 = vmatpush1.msra.mxu0 %v4081
        %4375 = vmatprep.subr.mxu0 %v4086
        %4376 = vmatpush1.msra.mxu0 %v4085
        %4377 = vmatprep.subr.mxu0 %v4090
        %4378 = vmatpush1.msra.mxu0 %v4089
        %4379 = vmatprep.subr.mxu0 %v4094
        %4380 = vmatpush1.msra.mxu0 %v4093
        %4381 = vmatprep.subr.mxu0 %v4098
        %4382 = vmatpush1.msra.mxu0 %v4097
        %4383 = vmatprep.subr.mxu0 %v4102
        %4384 = vmatpush1.msra.mxu0 %v4101
        %4385 = vmatprep.subr.mxu0 %v4106
        %4386 = vmatpush1.msra.mxu0 %v4105
        %4387 = vmatprep.mubr.f32.mxu0 %v4144
        %4388 = vmatmul.mubr.f32.gmra.mrb[0].mxu0 %v4141
        %v4389 = vpop.f32.mrb[0].mxu0
        %v4390 = vadd.f32 %v4313, %v4389
        %v4391 = vpop.f32.mrb[0].mxu0
        %v4392 = vadd.f32 %v4315, %v4391
        %4393 = vmatprep.mubr.f32.mxu0 %v4156
        %4394 = vmatmul.mubr.f32.gmra.mrb[0].mxu0 %v4154
        %v4395 = vpop.f32.mrb[0].mxu0
        %v4396 = vadd.f32 %v4319, %v4395
        %v4397 = vpop.f32.mrb[0].mxu0
        %v4398 = vadd.f32 %v4321, %v4397
        %4399 = vdwg.mxu0
        %4400 = vmatprep.subr.mxu0 %v3728
        %4401 = vmatpush1.msra.mxu0 %v3727
        %4402 = vmatprep.subr.mxu0 %v3732
        %4403 = vmatpush1.msra.mxu0 %v3731
        %4404 = vmatprep.subr.mxu0 %v3736
        %4405 = vmatpush1.msra.mxu0 %v3735
        %4406 = vmatprep.subr.mxu0 %v3740
        %4407 = vmatpush1.msra.mxu0 %v3739
        %4408 = vmatprep.subr.mxu0 %v3744
        %4409 = vmatpush1.msra.mxu0 %v3743
        %4410 = vmatprep.subr.mxu0 %v3748
        %4411 = vmatpush1.msra.mxu0 %v3747
        %4412 = vmatprep.subr.mxu0 %v3752
        %4413 = vmatpush1.msra.mxu0 %v3751
        %4414 = vmatprep.subr.mxu0 %v3756
        %4415 = vmatpush1.msra.mxu0 %v3755
        %4416 = vmatprep.subr.mxu0 %v3760
        %4417 = vmatpush1.msra.mxu0 %v3759
        %4418 = vmatprep.subr.mxu0 %v3764
        %4419 = vmatpush1.msra.mxu0 %v3763
        %4420 = vmatprep.subr.mxu0 %v3768
        %4421 = vmatpush1.msra.mxu0 %v3767
        %4422 = vmatprep.subr.mxu0 %v3772
        %4423 = vmatpush1.msra.mxu0 %v3771
        %4424 = vmatprep.subr.mxu0 %v3776
        %4425 = vmatpush1.msra.mxu0 %v3775
        %4426 = vmatprep.subr.mxu0 %v3780
        %4427 = vmatpush1.msra.mxu0 %v3779
        %4428 = vmatprep.subr.mxu0 %v3784
        %4429 = vmatpush1.msra.mxu0 %v3783
        %4430 = vmatprep.subr.mxu0 %v3788
        %4431 = vmatpush1.msra.mxu0 %v3787
        %4432 = vmatprep.subr.mxu0 %v3792
        %4433 = vmatpush1.msra.mxu0 %v3791
        %4434 = vmatprep.subr.mxu0 %v3796
        %4435 = vmatpush1.msra.mxu0 %v3795
        %4436 = vmatprep.subr.mxu0 %v3800
        %4437 = vmatpush1.msra.mxu0 %v3799
        %4438 = vmatprep.subr.mxu0 %v3804
        %4439 = vmatpush1.msra.mxu0 %v3803
        %4440 = vmatprep.subr.mxu0 %v3808
        %4441 = vmatpush1.msra.mxu0 %v3807
        %4442 = vmatprep.subr.mxu0 %v3812
        %4443 = vmatpush1.msra.mxu0 %v3811
        %4444 = vmatprep.subr.mxu0 %v3816
        %4445 = vmatpush1.msra.mxu0 %v3815
        %4446 = vmatprep.subr.mxu0 %v3820
        %4447 = vmatpush1.msra.mxu0 %v3819
        %4448 = vmatprep.subr.mxu0 %v3824
        %4449 = vmatpush1.msra.mxu0 %v3823
        %4450 = vmatprep.subr.mxu0 %v3828
        %4451 = vmatpush1.msra.mxu0 %v3827
        %4452 = vmatprep.subr.mxu0 %v3832
        %4453 = vmatpush1.msra.mxu0 %v3831
        %4454 = vmatprep.subr.mxu0 %v3836
        %4455 = vmatpush1.msra.mxu0 %v3835
        %4456 = vmatprep.subr.mxu0 %v3840
        %4457 = vmatpush1.msra.mxu0 %v3839
        %4458 = vmatprep.subr.mxu0 %v3844
        %4459 = vmatpush1.msra.mxu0 %v3843
        %4460 = vmatprep.subr.mxu0 %v3848
        %4461 = vmatpush1.msra.mxu0 %v3847
        %4462 = vmatprep.subr.mxu0 %v3852
        %4463 = vmatpush1.msra.mxu0 %v3851
        %4464 = vmatprep.mubr.f32.mxu0 %v4132
        %4465 = vmatmul.mubr.f32.gmra.mrb[0].mxu0 %v4129
        %v4466 = vpop.f32.mrb[0].mxu0
        %v4467 = vadd.f32 0.0, %v4466
        %v4468 = vpop.f32.mrb[0].mxu0
        %v4469 = vadd.f32 0.0, %v4468
        %4470 = vmatprep.mubr.f32.mxu0 %v4148
        %4471 = vmatmul.mubr.f32.gmra.mrb[0].mxu0 %v4146
        %v4472 = vpop.f32.mrb[0].mxu0
        %v4473 = vadd.f32 0.0, %v4472
        %v4474 = vpop.f32.mrb[0].mxu0
        %v4475 = vadd.f32 0.0, %v4474
        %4476 = vdwg.mxu0
        %4477 = vmatprep.subr.mxu0 %v3856
        %4478 = vmatpush1.msra.mxu0 %v3855
        %4479 = vmatprep.subr.mxu0 %v3860
        %4480 = vmatpush1.msra.mxu0 %v3859
        %4481 = vmatprep.subr.mxu0 %v3864
        %4482 = vmatpush1.msra.mxu0 %v3863
        %4483 = vmatprep.subr.mxu0 %v3868
        %4484 = vmatpush1.msra.mxu0 %v3867
        %4485 = vmatprep.subr.mxu0 %v3872
        %4486 = vmatpush1.msra.mxu0 %v3871
        %4487 = vmatprep.subr.mxu0 %v3876
        %4488 = vmatpush1.msra.mxu0 %v3875
        %4489 = vmatprep.subr.mxu0 %v3880
        %4490 = vmatpush1.msra.mxu0 %v3879
        %4491 = vmatprep.subr.mxu0 %v3884
        %4492 = vmatpush1.msra.mxu0 %v3883
        %4493 = vmatprep.subr.mxu0 %v3888
        %4494 = vmatpush1.msra.mxu0 %v3887
        %4495 = vmatprep.subr.mxu0 %v3892
        %4496 = vmatpush1.msra.mxu0 %v3891
        %4497 = vmatprep.subr.mxu0 %v3896
        %4498 = vmatpush1.msra.mxu0 %v3895
        %4499 = vmatprep.subr.mxu0 %v3900
        %4500 = vmatpush1.msra.mxu0 %v3899
        %4501 = vmatprep.subr.mxu0 %v3904
        %4502 = vmatpush1.msra.mxu0 %v3903
        %4503 = vmatprep.subr.mxu0 %v3908
        %4504 = vmatpush1.msra.mxu0 %v3907
        %4505 = vmatprep.subr.mxu0 %v3912
        %4506 = vmatpush1.msra.mxu0 %v3911
        %4507 = vmatprep.subr.mxu0 %v3916
        %4508 = vmatpush1.msra.mxu0 %v3915
        %4509 = vmatprep.subr.mxu0 %v3920
        %4510 = vmatpush1.msra.mxu0 %v3919
        %4511 = vmatprep.subr.mxu0 %v3924
        %4512 = vmatpush1.msra.mxu0 %v3923
        %4513 = vmatprep.subr.mxu0 %v3928
        %4514 = vmatpush1.msra.mxu0 %v3927
        %4515 = vmatprep.subr.mxu0 %v3932
        %4516 = vmatpush1.msra.mxu0 %v3931
        %4517 = vmatprep.subr.mxu0 %v3936
        %4518 = vmatpush1.msra.mxu0 %v3935
        %4519 = vmatprep.subr.mxu0 %v3940
        %4520 = vmatpush1.msra.mxu0 %v3939
        %4521 = vmatprep.subr.mxu0 %v3944
        %4522 = vmatpush1.msra.mxu0 %v3943
        %4523 = vmatprep.subr.mxu0 %v3948
        %4524 = vmatpush1.msra.mxu0 %v3947
        %4525 = vmatprep.subr.mxu0 %v3952
        %4526 = vmatpush1.msra.mxu0 %v3951
        %4527 = vmatprep.subr.mxu0 %v3956
        %4528 = vmatpush1.msra.mxu0 %v3955
        %4529 = vmatprep.subr.mxu0 %v3960
        %4530 = vmatpush1.msra.mxu0 %v3959
        %4531 = vmatprep.subr.mxu0 %v3964
        %4532 = vmatpush1.msra.mxu0 %v3963
        %4533 = vmatprep.subr.mxu0 %v3968
        %4534 = vmatpush1.msra.mxu0 %v3967
        %4535 = vmatprep.subr.mxu0 %v3972
        %4536 = vmatpush1.msra.mxu0 %v3971
        %4537 = vmatprep.subr.mxu0 %v3976
        %4538 = vmatpush1.msra.mxu0 %v3975
        %4539 = vmatprep.subr.mxu0 %v3980
        %4540 = vmatpush1.msra.mxu0 %v3979
        %4541 = vmatprep.mubr.f32.mxu0 %v4138
        %4542 = vmatmul.mubr.f32.gmra.mrb[0].mxu0 %v4135
        %v4543 = vpop.f32.mrb[0].mxu0
        %v4544 = vadd.f32 %v4467, %v4543
        %v4545 = vpop.f32.mrb[0].mxu0
        %v4546 = vadd.f32 %v4469, %v4545
        %4547 = vmatprep.mubr.f32.mxu0 %v4152
        %4548 = vmatmul.mubr.f32.gmra.mrb[0].mxu0 %v4150
        %v4549 = vpop.f32.mrb[0].mxu0
        %v4550 = vadd.f32 %v4473, %v4549
        %v4551 = vpop.f32.mrb[0].mxu0
        %v4552 = vadd.f32 %v4475, %v4551
        %4553 = vdwg.mxu0
        %4554 = vmatprep.subr.mxu0 %v3984
        %4555 = vmatpush1.msra.mxu0 %v3983
        %4556 = vmatprep.subr.mxu0 %v3988
        %4557 = vmatpush1.msra.mxu0 %v3987
        %4558 = vmatprep.subr.mxu0 %v3992
        %4559 = vmatpush1.msra.mxu0 %v3991
        %4560 = vmatprep.subr.mxu0 %v3996
        %4561 = vmatpush1.msra.mxu0 %v3995
        %4562 = vmatprep.subr.mxu0 %v4000
        %4563 = vmatpush1.msra.mxu0 %v3999
        %4564 = vmatprep.subr.mxu0 %v4004
        %4565 = vmatpush1.msra.mxu0 %v4003
        %4566 = vmatprep.subr.mxu0 %v4008
        %4567 = vmatpush1.msra.mxu0 %v4007
        %4568 = vmatprep.subr.mxu0 %v4012
        %4569 = vmatpush1.msra.mxu0 %v4011
        %4570 = vmatprep.subr.mxu0 %v4016
        %4571 = vmatpush1.msra.mxu0 %v4015
        %4572 = vmatprep.subr.mxu0 %v4020
        %4573 = vmatpush1.msra.mxu0 %v4019
        %4574 = vmatprep.subr.mxu0 %v4024
        %4575 = vmatpush1.msra.mxu0 %v4023
        %4576 = vmatprep.subr.mxu0 %v4028
        %4577 = vmatpush1.msra.mxu0 %v4027
        %4578 = vmatprep.subr.mxu0 %v4032
        %4579 = vmatpush1.msra.mxu0 %v4031
        %4580 = vmatprep.subr.mxu0 %v4036
        %4581 = vmatpush1.msra.mxu0 %v4035
        %4582 = vmatprep.subr.mxu0 %v4040
        %4583 = vmatpush1.msra.mxu0 %v4039
        %4584 = vmatprep.subr.mxu0 %v4044
        %4585 = vmatpush1.msra.mxu0 %v4043
        %4586 = vmatprep.subr.mxu0 %v4048
        %4587 = vmatpush1.msra.mxu0 %v4047
        %4588 = vmatprep.subr.mxu0 %v4052
        %4589 = vmatpush1.msra.mxu0 %v4051
        %4590 = vmatprep.subr.mxu0 %v4056
        %4591 = vmatpush1.msra.mxu0 %v4055
        %4592 = vmatprep.subr.mxu0 %v4060
        %4593 = vmatpush1.msra.mxu0 %v4059
        %4594 = vmatprep.subr.mxu0 %v4064
        %4595 = vmatpush1.msra.mxu0 %v4063
        %4596 = vmatprep.subr.mxu0 %v4068
        %4597 = vmatpush1.msra.mxu0 %v4067
        %4598 = vmatprep.subr.mxu0 %v4072
        %4599 = vmatpush1.msra.mxu0 %v4071
        %4600 = vmatprep.subr.mxu0 %v4076
        %4601 = vmatpush1.msra.mxu0 %v4075
        %4602 = vmatprep.subr.mxu0 %v4080
        %4603 = vmatpush1.msra.mxu0 %v4079
        %4604 = vmatprep.subr.mxu0 %v4084
        %4605 = vmatpush1.msra.mxu0 %v4083
        %4606 = vmatprep.subr.mxu0 %v4088
        %4607 = vmatpush1.msra.mxu0 %v4087
        %4608 = vmatprep.subr.mxu0 %v4092
        %4609 = vmatpush1.msra.mxu0 %v4091
        %4610 = vmatprep.subr.mxu0 %v4096
        %4611 = vmatpush1.msra.mxu0 %v4095
        %4612 = vmatprep.subr.mxu0 %v4100
        %4613 = vmatpush1.msra.mxu0 %v4099
        %4614 = vmatprep.subr.mxu0 %v4104
        %4615 = vmatpush1.msra.mxu0 %v4103
        %4616 = vmatprep.subr.mxu0 %v4108
        %4617 = vmatpush1.msra.mxu0 %v4107
        %4618 = vmatprep.mubr.f32.mxu0 %v4144
        %4619 = vmatmul.mubr.f32.gmra.mrb[0].mxu0 %v4141
        %v4620 = vpop.f32.mrb[0].mxu0
        %v4621 = vadd.f32 %v4544, %v4620
        %v4622 = vpop.f32.mrb[0].mxu0
        %v4623 = vadd.f32 %v4546, %v4622
        %4624 = vmatprep.mubr.f32.mxu0 %v4156
        %4625 = vmatmul.mubr.f32.gmra.mrb[0].mxu0 %v4154
        %v4626 = vpop.f32.mrb[0].mxu0
        %v4627 = vadd.f32 %v4550, %v4626
        %v4628 = vpop.f32.mrb[0].mxu0
        %v4629 = vadd.f32 %v4552, %v4628
        %4630 = vdwg.mxu0
        %4631 = vmatprep.subr.mxu0 %v3329
        %4632 = vmatpush1.msra.mxu0 %v3328
        %4633 = vmatprep.subr.mxu0 %v3333
        %4634 = vmatpush1.msra.mxu0 %v3332
        %4635 = vmatprep.subr.mxu0 %v3337
        %4636 = vmatpush1.msra.mxu0 %v3336
        %4637 = vmatprep.subr.mxu0 %v3341
        %4638 = vmatpush1.msra.mxu0 %v3340
        %4639 = vmatprep.subr.mxu0 %v3345
        %4640 = vmatpush1.msra.mxu0 %v3344
        %4641 = vmatprep.subr.mxu0 %v3349
        %4642 = vmatpush1.msra.mxu0 %v3348
        %4643 = vmatprep.subr.mxu0 %v3353
        %4644 = vmatpush1.msra.mxu0 %v3352
        %4645 = vmatprep.subr.mxu0 %v3357
        %4646 = vmatpush1.msra.mxu0 %v3356
        %4647 = vmatprep.subr.mxu0 %v3361
        %4648 = vmatpush1.msra.mxu0 %v3360
        %4649 = vmatprep.subr.mxu0 %v3365
        %4650 = vmatpush1.msra.mxu0 %v3364
        %4651 = vmatprep.subr.mxu0 %v3369
        %4652 = vmatpush1.msra.mxu0 %v3368
        %4653 = vmatprep.subr.mxu0 %v3373
        %4654 = vmatpush1.msra.mxu0 %v3372
        %4655 = vmatprep.subr.mxu0 %v3377
        %4656 = vmatpush1.msra.mxu0 %v3376
        %4657 = vmatprep.subr.mxu0 %v3381
        %4658 = vmatpush1.msra.mxu0 %v3380
        %4659 = vmatprep.subr.mxu0 %v3385
        %4660 = vmatpush1.msra.mxu0 %v3384
        %4661 = vmatprep.subr.mxu0 %v3389
        %4662 = vmatpush1.msra.mxu0 %v3388
        %4663 = vmatprep.subr.mxu0 %v3393
        %4664 = vmatpush1.msra.mxu0 %v3392
        %4665 = vmatprep.subr.mxu0 %v3397
        %4666 = vmatpush1.msra.mxu0 %v3396
        %4667 = vmatprep.subr.mxu0 %v3401
        %4668 = vmatpush1.msra.mxu0 %v3400
        %4669 = vmatprep.subr.mxu0 %v3405
        %4670 = vmatpush1.msra.mxu0 %v3404
        %4671 = vmatprep.subr.mxu0 %v3409
        %4672 = vmatpush1.msra.mxu0 %v3408
        %4673 = vmatprep.subr.mxu0 %v3413
        %4674 = vmatpush1.msra.mxu0 %v3412
        %4675 = vmatprep.subr.mxu0 %v3417
        %4676 = vmatpush1.msra.mxu0 %v3416
        %4677 = vmatprep.subr.mxu0 %v3421
        %4678 = vmatpush1.msra.mxu0 %v3420
        %4679 = vmatprep.subr.mxu0 %v3425
        %4680 = vmatpush1.msra.mxu0 %v3424
        %4681 = vmatprep.subr.mxu0 %v3429
        %4682 = vmatpush1.msra.mxu0 %v3428
        %4683 = vmatprep.subr.mxu0 %v3433
        %4684 = vmatpush1.msra.mxu0 %v3432
        %4685 = vmatprep.subr.mxu0 %v3437
        %4686 = vmatpush1.msra.mxu0 %v3436
        %4687 = vmatprep.subr.mxu0 %v3441
        %4688 = vmatpush1.msra.mxu0 %v3440
        %4689 = vmatprep.subr.mxu0 %v3445
        %4690 = vmatpush1.msra.mxu0 %v3444
        %4691 = vmatprep.subr.mxu0 %v3449
        %4692 = vmatpush1.msra.mxu0 %v3448
        %4693 = vmatprep.subr.mxu0 %v3453
        %4694 = vmatpush1.msra.mxu0 %v3452
        %4695 = vmatprep.mubr.f32.mxu0 %v3317
        %4696 = vmatmul.mubr.f32.gmra.mrb[0].mxu0 %v3316
        %v4697 = vpop.f32.mrb[0].mxu0
        %v4698 = vadd.f32 %v4390, %v4697
        %v4699 = vpop.f32.mrb[0].mxu0
        %v4700 = vadd.f32 %v4392, %v4699
        %4701 = vmatprep.mubr.f32.mxu0 %v3323
        %4702 = vmatmul.mubr.f32.gmra.mrb[0].mxu0 %v3322
        %v4703 = vpop.f32.mrb[0].mxu0
        %v4704 = vadd.f32 %v4396, %v4703
        %v4705 = vpop.f32.mrb[0].mxu0
        %v4706 = vadd.f32 %v4398, %v4705
        %4707 = vdwg.mxu0
        %4708 = vmatprep.subr.mxu0 %v3457
        %4709 = vmatpush1.msra.mxu0 %v3456
        %4710 = vmatprep.subr.mxu0 %v3461
        %4711 = vmatpush1.msra.mxu0 %v3460
        %4712 = vmatprep.subr.mxu0 %v3465
        %4713 = vmatpush1.msra.mxu0 %v3464
        %4714 = vmatprep.subr.mxu0 %v3469
        %4715 = vmatpush1.msra.mxu0 %v3468
        %4716 = vmatprep.subr.mxu0 %v3473
        %4717 = vmatpush1.msra.mxu0 %v3472
        %4718 = vmatprep.subr.mxu0 %v3477
        %4719 = vmatpush1.msra.mxu0 %v3476
        %4720 = vmatprep.subr.mxu0 %v3481
        %4721 = vmatpush1.msra.mxu0 %v3480
        %4722 = vmatprep.subr.mxu0 %v3485
        %4723 = vmatpush1.msra.mxu0 %v3484
        %4724 = vmatprep.subr.mxu0 %v3489
        %4725 = vmatpush1.msra.mxu0 %v3488
        %4726 = vmatprep.subr.mxu0 %v3493
        %4727 = vmatpush1.msra.mxu0 %v3492
        %4728 = vmatprep.subr.mxu0 %v3497
        %4729 = vmatpush1.msra.mxu0 %v3496
        %4730 = vmatprep.subr.mxu0 %v3501
        %4731 = vmatpush1.msra.mxu0 %v3500
        %4732 = vmatprep.subr.mxu0 %v3505
        %4733 = vmatpush1.msra.mxu0 %v3504
        %4734 = vmatprep.subr.mxu0 %v3509
        %4735 = vmatpush1.msra.mxu0 %v3508
        %4736 = vmatprep.subr.mxu0 %v3513
        %4737 = vmatpush1.msra.mxu0 %v3512
        %4738 = vmatprep.subr.mxu0 %v3517
        %4739 = vmatpush1.msra.mxu0 %v3516
        %4740 = vmatprep.subr.mxu0 %v3521
        %4741 = vmatpush1.msra.mxu0 %v3520
        %4742 = vmatprep.subr.mxu0 %v3525
        %4743 = vmatpush1.msra.mxu0 %v3524
        %4744 = vmatprep.subr.mxu0 %v3529
        %4745 = vmatpush1.msra.mxu0 %v3528
        %4746 = vmatprep.subr.mxu0 %v3533
        %4747 = vmatpush1.msra.mxu0 %v3532
        %4748 = vmatprep.subr.mxu0 %v3537
        %4749 = vmatpush1.msra.mxu0 %v3536
        %4750 = vmatprep.subr.mxu0 %v3541
        %4751 = vmatpush1.msra.mxu0 %v3540
        %4752 = vmatprep.subr.mxu0 %v3545
        %4753 = vmatpush1.msra.mxu0 %v3544
        %4754 = vmatprep.subr.mxu0 %v3549
        %4755 = vmatpush1.msra.mxu0 %v3548
        %4756 = vmatprep.subr.mxu0 %v3553
        %4757 = vmatpush1.msra.mxu0 %v3552
        %4758 = vmatprep.subr.mxu0 %v3557
        %4759 = vmatpush1.msra.mxu0 %v3556
        %4760 = vmatprep.subr.mxu0 %v3561
        %4761 = vmatpush1.msra.mxu0 %v3560
        %4762 = vmatprep.subr.mxu0 %v3565
        %4763 = vmatpush1.msra.mxu0 %v3564
        %4764 = vmatprep.subr.mxu0 %v3569
        %4765 = vmatpush1.msra.mxu0 %v3568
        %4766 = vmatprep.subr.mxu0 %v3573
        %4767 = vmatpush1.msra.mxu0 %v3572
        %4768 = vmatprep.subr.mxu0 %v3577
        %4769 = vmatpush1.msra.mxu0 %v3576
        %4770 = vmatprep.subr.mxu0 %v3581
        %4771 = vmatpush1.msra.mxu0 %v3580
        %4772 = vmatprep.mubr.f32.mxu0 %v3319
        %4773 = vmatmul.mubr.f32.gmra.mrb[0].mxu0 %v3318
        %v4774 = vpop.f32.mrb[0].mxu0
        %v4775 = vadd.f32 %v4698, %v4774
        %v4776 = vpop.f32.mrb[0].mxu0
        %v4777 = vadd.f32 %v4700, %v4776
        %4778 = vmatprep.mubr.f32.mxu0 %v3325
        %4779 = vmatmul.mubr.f32.gmra.mrb[0].mxu0 %v3324
        %v4780 = vpop.f32.mrb[0].mxu0
        %v4781 = vadd.f32 %v4704, %v4780
        %v4782 = vpop.f32.mrb[0].mxu0
        %v4783 = vadd.f32 %v4706, %v4782
        %4784 = vdwg.mxu0
        %4785 = vmatprep.subr.mxu0 %v3585
        %4786 = vmatpush1.msra.mxu0 %v3584
        %4787 = vmatprep.subr.mxu0 %v3589
        %4788 = vmatpush1.msra.mxu0 %v3588
        %4789 = vmatprep.subr.mxu0 %v3593
        %4790 = vmatpush1.msra.mxu0 %v3592
        %4791 = vmatprep.subr.mxu0 %v3597
        %4792 = vmatpush1.msra.mxu0 %v3596
        %4793 = vmatprep.subr.mxu0 %v3601
        %4794 = vmatpush1.msra.mxu0 %v3600
        %4795 = vmatprep.subr.mxu0 %v3605
        %4796 = vmatpush1.msra.mxu0 %v3604
        %4797 = vmatprep.subr.mxu0 %v3609
        %4798 = vmatpush1.msra.mxu0 %v3608
        %4799 = vmatprep.subr.mxu0 %v3613
        %4800 = vmatpush1.msra.mxu0 %v3612
        %4801 = vmatprep.subr.mxu0 %v3617
        %4802 = vmatpush1.msra.mxu0 %v3616
        %4803 = vmatprep.subr.mxu0 %v3621
        %4804 = vmatpush1.msra.mxu0 %v3620
        %4805 = vmatprep.subr.mxu0 %v3625
        %4806 = vmatpush1.msra.mxu0 %v3624
        %4807 = vmatprep.subr.mxu0 %v3629
        %4808 = vmatpush1.msra.mxu0 %v3628
        %4809 = vmatprep.subr.mxu0 %v3633
        %4810 = vmatpush1.msra.mxu0 %v3632
        %4811 = vmatprep.subr.mxu0 %v3637
        %4812 = vmatpush1.msra.mxu0 %v3636
        %4813 = vmatprep.subr.mxu0 %v3641
        %4814 = vmatpush1.msra.mxu0 %v3640
        %4815 = vmatprep.subr.mxu0 %v3645
        %4816 = vmatpush1.msra.mxu0 %v3644
        %4817 = vmatprep.subr.mxu0 %v3649
        %4818 = vmatpush1.msra.mxu0 %v3648
        %4819 = vmatprep.subr.mxu0 %v3653
        %4820 = vmatpush1.msra.mxu0 %v3652
        %4821 = vmatprep.subr.mxu0 %v3657
        %4822 = vmatpush1.msra.mxu0 %v3656
        %4823 = vmatprep.subr.mxu0 %v3661
        %4824 = vmatpush1.msra.mxu0 %v3660
        %4825 = vmatprep.subr.mxu0 %v3665
        %4826 = vmatpush1.msra.mxu0 %v3664
        %4827 = vmatprep.subr.mxu0 %v3669
        %4828 = vmatpush1.msra.mxu0 %v3668
        %4829 = vmatprep.subr.mxu0 %v3673
        %4830 = vmatpush1.msra.mxu0 %v3672
        %4831 = vmatprep.subr.mxu0 %v3677
        %4832 = vmatpush1.msra.mxu0 %v3676
        %4833 = vmatprep.subr.mxu0 %v3681
        %4834 = vmatpush1.msra.mxu0 %v3680
        %4835 = vmatprep.subr.mxu0 %v3685
        %4836 = vmatpush1.msra.mxu0 %v3684
        %4837 = vmatprep.subr.mxu0 %v3689
        %4838 = vmatpush1.msra.mxu0 %v3688
        %4839 = vmatprep.subr.mxu0 %v3693
        %4840 = vmatpush1.msra.mxu0 %v3692
        %4841 = vmatprep.subr.mxu0 %v3697
        %4842 = vmatpush1.msra.mxu0 %v3696
        %4843 = vmatprep.subr.mxu0 %v3701
        %4844 = vmatpush1.msra.mxu0 %v3700
        %4845 = vmatprep.subr.mxu0 %v3705
        %4846 = vmatpush1.msra.mxu0 %v3704
        %4847 = vmatprep.subr.mxu0 %v3709
        %4848 = vmatpush1.msra.mxu0 %v3708
        %4849 = vmatprep.mubr.f32.mxu0 %v3321
        %4850 = vmatmul.mubr.f32.gmra.mrb[0].mxu0 %v3320
        %v4851 = vpop.f32.mrb[0].mxu0
        %v4852 = vadd.f32 %v4775, %v4851
        %v4853 = vpop.f32.mrb[0].mxu0
        %v4854 = vadd.f32 %v4777, %v4853
        %4855 = vmatprep.mubr.f32.mxu0 %v3327
        %4856 = vmatmul.mubr.f32.gmra.mrb[0].mxu0 %v3326
        %v4857 = vpop.f32.mrb[0].mxu0
        %v4858 = vadd.f32 %v4781, %v4857
        %v4859 = vpop.f32.mrb[0].mxu0
        %v4860 = vadd.f32 %v4783, %v4859
        %4861 = vdwg.mxu0
        %4862 = vmatprep.subr.mxu0 %v3331
        %4863 = vmatpush1.msra.mxu0 %v3330
        %4864 = vmatprep.subr.mxu0 %v3335
        %4865 = vmatpush1.msra.mxu0 %v3334
        %4866 = vmatprep.subr.mxu0 %v3339
        %4867 = vmatpush1.msra.mxu0 %v3338
        %4868 = vmatprep.subr.mxu0 %v3343
        %4869 = vmatpush1.msra.mxu0 %v3342
        %4870 = vmatprep.subr.mxu0 %v3347
        %4871 = vmatpush1.msra.mxu0 %v3346
        %4872 = vmatprep.subr.mxu0 %v3351
        %4873 = vmatpush1.msra.mxu0 %v3350
        %4874 = vmatprep.subr.mxu0 %v3355
        %4875 = vmatpush1.msra.mxu0 %v3354
        %4876 = vmatprep.subr.mxu0 %v3359
        %4877 = vmatpush1.msra.mxu0 %v3358
        %4878 = vmatprep.subr.mxu0 %v3363
        %4879 = vmatpush1.msra.mxu0 %v3362
        %4880 = vmatprep.subr.mxu0 %v3367
        %4881 = vmatpush1.msra.mxu0 %v3366
        %4882 = vmatprep.subr.mxu0 %v3371
        %4883 = vmatpush1.msra.mxu0 %v3370
        %4884 = vmatprep.subr.mxu0 %v3375
        %4885 = vmatpush1.msra.mxu0 %v3374
        %4886 = vmatprep.subr.mxu0 %v3379
        %4887 = vmatpush1.msra.mxu0 %v3378
        %4888 = vmatprep.subr.mxu0 %v3383
        %4889 = vmatpush1.msra.mxu0 %v3382
        %4890 = vmatprep.subr.mxu0 %v3387
        %4891 = vmatpush1.msra.mxu0 %v3386
        %4892 = vmatprep.subr.mxu0 %v3391
        %4893 = vmatpush1.msra.mxu0 %v3390
        %4894 = vmatprep.subr.mxu0 %v3395
        %4895 = vmatpush1.msra.mxu0 %v3394
        %4896 = vmatprep.subr.mxu0 %v3399
        %4897 = vmatpush1.msra.mxu0 %v3398
        %4898 = vmatprep.subr.mxu0 %v3403
        %4899 = vmatpush1.msra.mxu0 %v3402
        %4900 = vmatprep.subr.mxu0 %v3407
        %4901 = vmatpush1.msra.mxu0 %v3406
        %4902 = vmatprep.subr.mxu0 %v3411
        %4903 = vmatpush1.msra.mxu0 %v3410
        %4904 = vmatprep.subr.mxu0 %v3415
        %4905 = vmatpush1.msra.mxu0 %v3414
        %4906 = vmatprep.subr.mxu0 %v3419
        %4907 = vmatpush1.msra.mxu0 %v3418
        %4908 = vmatprep.subr.mxu0 %v3423
        %4909 = vmatpush1.msra.mxu0 %v3422
        %4910 = vmatprep.subr.mxu0 %v3427
        %4911 = vmatpush1.msra.mxu0 %v3426
        %4912 = vmatprep.subr.mxu0 %v3431
        %4913 = vmatpush1.msra.mxu0 %v3430
        %4914 = vmatprep.subr.mxu0 %v3435
        %4915 = vmatpush1.msra.mxu0 %v3434
        %4916 = vmatprep.subr.mxu0 %v3439
        %4917 = vmatpush1.msra.mxu0 %v3438
        %4918 = vmatprep.subr.mxu0 %v3443
        %4919 = vmatpush1.msra.mxu0 %v3442
        %4920 = vmatprep.subr.mxu0 %v3447
        %4921 = vmatpush1.msra.mxu0 %v3446
        %4922 = vmatprep.subr.mxu0 %v3451
        %4923 = vmatpush1.msra.mxu0 %v3450
        %4924 = vmatprep.subr.mxu0 %v3455
        %4925 = vmatpush1.msra.mxu0 %v3454
        %4926 = vmatprep.mubr.f32.mxu0 %v3317
        %4927 = vmatmul.mubr.f32.gmra.mrb[0].mxu0 %v3316
        %v4928 = vpop.f32.mrb[0].mxu0
        %v4929 = vadd.f32 %v4621, %v4928
        %v4930 = vpop.f32.mrb[0].mxu0
        %v4931 = vadd.f32 %v4623, %v4930
        %4932 = vmatprep.mubr.f32.mxu0 %v3323
        %4933 = vmatmul.mubr.f32.gmra.mrb[0].mxu0 %v3322
        %v4934 = vpop.f32.mrb[0].mxu0
        %v4935 = vadd.f32 %v4627, %v4934
        %v4936 = vpop.f32.mrb[0].mxu0
        %v4937 = vadd.f32 %v4629, %v4936
        %4938 = vdwg.mxu0
        %4939 = vmatprep.subr.mxu0 %v3459
        %4940 = vmatpush1.msra.mxu0 %v3458
        %4941 = vmatprep.subr.mxu0 %v3463
        %4942 = vmatpush1.msra.mxu0 %v3462
        %4943 = vmatprep.subr.mxu0 %v3467
        %4944 = vmatpush1.msra.mxu0 %v3466
        %4945 = vmatprep.subr.mxu0 %v3471
        %4946 = vmatpush1.msra.mxu0 %v3470
        %4947 = vmatprep.subr.mxu0 %v3475
        %4948 = vmatpush1.msra.mxu0 %v3474
        %4949 = vmatprep.subr.mxu0 %v3479
        %4950 = vmatpush1.msra.mxu0 %v3478
        %4951 = vmatprep.subr.mxu0 %v3483
        %4952 = vmatpush1.msra.mxu0 %v3482
        %4953 = vmatprep.subr.mxu0 %v3487
        %4954 = vmatpush1.msra.mxu0 %v3486
        %4955 = vmatprep.subr.mxu0 %v3491
        %4956 = vmatpush1.msra.mxu0 %v3490
        %4957 = vmatprep.subr.mxu0 %v3495
        %4958 = vmatpush1.msra.mxu0 %v3494
        %4959 = vmatprep.subr.mxu0 %v3499
        %4960 = vmatpush1.msra.mxu0 %v3498
        %4961 = vmatprep.subr.mxu0 %v3503
        %4962 = vmatpush1.msra.mxu0 %v3502
        %4963 = vmatprep.subr.mxu0 %v3507
        %4964 = vmatpush1.msra.mxu0 %v3506
        %4965 = vmatprep.subr.mxu0 %v3511
        %4966 = vmatpush1.msra.mxu0 %v3510
        %4967 = vmatprep.subr.mxu0 %v3515
        %4968 = vmatpush1.msra.mxu0 %v3514
        %4969 = vmatprep.subr.mxu0 %v3519
        %4970 = vmatpush1.msra.mxu0 %v3518
        %4971 = vmatprep.subr.mxu0 %v3523
        %4972 = vmatpush1.msra.mxu0 %v3522
        %4973 = vmatprep.subr.mxu0 %v3527
        %4974 = vmatpush1.msra.mxu0 %v3526
        %4975 = vmatprep.subr.mxu0 %v3531
        %4976 = vmatpush1.msra.mxu0 %v3530
        %4977 = vmatprep.subr.mxu0 %v3535
        %4978 = vmatpush1.msra.mxu0 %v3534
        %4979 = vmatprep.subr.mxu0 %v3539
        %4980 = vmatpush1.msra.mxu0 %v3538
        %4981 = vmatprep.subr.mxu0 %v3543
        %4982 = vmatpush1.msra.mxu0 %v3542
        %4983 = vmatprep.subr.mxu0 %v3547
        %4984 = vmatpush1.msra.mxu0 %v3546
        %4985 = vmatprep.subr.mxu0 %v3551
        %4986 = vmatpush1.msra.mxu0 %v3550
        %4987 = vmatprep.subr.mxu0 %v3555
        %4988 = vmatpush1.msra.mxu0 %v3554
        %4989 = vmatprep.subr.mxu0 %v3559
        %4990 = vmatpush1.msra.mxu0 %v3558
        %4991 = vmatprep.subr.mxu0 %v3563
        %4992 = vmatpush1.msra.mxu0 %v3562
        %4993 = vmatprep.subr.mxu0 %v3567
        %4994 = vmatpush1.msra.mxu0 %v3566
        %4995 = vmatprep.subr.mxu0 %v3571
        %4996 = vmatpush1.msra.mxu0 %v3570
        %4997 = vmatprep.subr.mxu0 %v3575
        %4998 = vmatpush1.msra.mxu0 %v3574
        %4999 = vmatprep.subr.mxu0 %v3579
        %5000 = vmatpush1.msra.mxu0 %v3578
        %5001 = vmatprep.subr.mxu0 %v3583
        %5002 = vmatpush1.msra.mxu0 %v3582
        %5003 = vmatprep.mubr.f32.mxu0 %v3319
        %5004 = vmatmul.mubr.f32.gmra.mrb[0].mxu0 %v3318
        %v5005 = vpop.f32.mrb[0].mxu0
        %v5006 = vadd.f32 %v4929, %v5005
        %v5007 = vpop.f32.mrb[0].mxu0
        %v5008 = vadd.f32 %v4931, %v5007
        %5009 = vmatprep.mubr.f32.mxu0 %v3325
        %5010 = vmatmul.mubr.f32.gmra.mrb[0].mxu0 %v3324
        %v5011 = vpop.f32.mrb[0].mxu0
        %v5012 = vadd.f32 %v4935, %v5011
        %v5013 = vpop.f32.mrb[0].mxu0
        %v5014 = vadd.f32 %v4937, %v5013
        %5015 = vdwg.mxu0
        %5016 = vmatprep.subr.mxu0 %v3587
        %5017 = vmatpush1.msra.mxu0 %v3586
        %5018 = vmatprep.subr.mxu0 %v3591
        %5019 = vmatpush1.msra.mxu0 %v3590
        %5020 = vmatprep.subr.mxu0 %v3595
        %5021 = vmatpush1.msra.mxu0 %v3594
        %5022 = vmatprep.subr.mxu0 %v3599
        %5023 = vmatpush1.msra.mxu0 %v3598
        %5024 = vmatprep.subr.mxu0 %v3603
        %5025 = vmatpush1.msra.mxu0 %v3602
        %5026 = vmatprep.subr.mxu0 %v3607
        %5027 = vmatpush1.msra.mxu0 %v3606
        %5028 = vmatprep.subr.mxu0 %v3611
        %5029 = vmatpush1.msra.mxu0 %v3610
        %5030 = vmatprep.subr.mxu0 %v3615
        %5031 = vmatpush1.msra.mxu0 %v3614
        %5032 = vmatprep.subr.mxu0 %v3619
        %5033 = vmatpush1.msra.mxu0 %v3618
        %5034 = vmatprep.subr.mxu0 %v3623
        %5035 = vmatpush1.msra.mxu0 %v3622
        %5036 = vmatprep.subr.mxu0 %v3627
        %5037 = vmatpush1.msra.mxu0 %v3626
        %5038 = vmatprep.subr.mxu0 %v3631
        %5039 = vmatpush1.msra.mxu0 %v3630
        %5040 = vmatprep.subr.mxu0 %v3635
        %5041 = vmatpush1.msra.mxu0 %v3634
        %5042 = vmatprep.subr.mxu0 %v3639
        %5043 = vmatpush1.msra.mxu0 %v3638
        %5044 = vmatprep.subr.mxu0 %v3643
        %5045 = vmatpush1.msra.mxu0 %v3642
        %5046 = vmatprep.subr.mxu0 %v3647
        %5047 = vmatpush1.msra.mxu0 %v3646
        %5048 = vmatprep.subr.mxu0 %v3651
        %5049 = vmatpush1.msra.mxu0 %v3650
        %5050 = vmatprep.subr.mxu0 %v3655
        %5051 = vmatpush1.msra.mxu0 %v3654
        %5052 = vmatprep.subr.mxu0 %v3659
        %5053 = vmatpush1.msra.mxu0 %v3658
        %5054 = vmatprep.subr.mxu0 %v3663
        %5055 = vmatpush1.msra.mxu0 %v3662
        %5056 = vmatprep.subr.mxu0 %v3667
        %5057 = vmatpush1.msra.mxu0 %v3666
        %5058 = vmatprep.subr.mxu0 %v3671
        %5059 = vmatpush1.msra.mxu0 %v3670
        %5060 = vmatprep.subr.mxu0 %v3675
        %5061 = vmatpush1.msra.mxu0 %v3674
        %5062 = vmatprep.subr.mxu0 %v3679
        %5063 = vmatpush1.msra.mxu0 %v3678
        %5064 = vmatprep.subr.mxu0 %v3683
        %5065 = vmatpush1.msra.mxu0 %v3682
        %5066 = vmatprep.subr.mxu0 %v3687
        %5067 = vmatpush1.msra.mxu0 %v3686
        %5068 = vmatprep.subr.mxu0 %v3691
        %5069 = vmatpush1.msra.mxu0 %v3690
        %5070 = vmatprep.subr.mxu0 %v3695
        %5071 = vmatpush1.msra.mxu0 %v3694
        %5072 = vmatprep.subr.mxu0 %v3699
        %5073 = vmatpush1.msra.mxu0 %v3698
        %5074 = vmatprep.subr.mxu0 %v3703
        %5075 = vmatpush1.msra.mxu0 %v3702
        %5076 = vmatprep.subr.mxu0 %v3707
        %5077 = vmatpush1.msra.mxu0 %v3706
        %5078 = vmatprep.subr.mxu0 %v3711
        %5079 = vmatpush1.msra.mxu0 %v3710
        %5080 = vmatprep.mubr.f32.mxu0 %v3321
        %5081 = vmatmul.mubr.f32.gmra.mrb[0].mxu0 %v3320
        %v5082 = vpop.f32.mrb[0].mxu0
        %v5083 = vadd.f32 %v5006, %v5082
        %v5084 = vpop.f32.mrb[0].mxu0
        %v5085 = vadd.f32 %v5008, %v5084
        %5086 = vmatprep.mubr.f32.mxu0 %v3327
        %5087 = vmatmul.mubr.f32.gmra.mrb[0].mxu0 %v3326
        %v5088 = vpop.f32.mrb[0].mxu0
        %v5089 = vadd.f32 %v5012, %v5088
        %v5090 = vpop.f32.mrb[0].mxu0
        %v5091 = vadd.f32 %v5014, %v5090
        %5092 = vdwg.mxu0
        %v5093 = vld [vmem:[#allocation3] sm:$0xfc]
        %v5094 = vld [vmem:[#allocation3 + $0x8] sm:$0xfc]
        %v5095 = vld [vmem:[#allocation3 + $0x10] sm:$0xfc]
        %v5096 = vld [vmem:[#allocation3 + $0x18] sm:$0xfc]
        %v5097 = vld [vmem:[#allocation3 + $0x20] sm:$0xfc]
        %v5098 = vld [vmem:[#allocation3 + $0x28] sm:$0xfc]
        %v5099 = vld [vmem:[#allocation3 + $0x60] sm:$0x3]
        %v5100 = vld [vmem:[#allocation3 + $0x68] sm:$0x3]
        %v5101 = vld [vmem:[#allocation3 + $0x70] sm:$0x3]
        %v5102 = vld [vmem:[#allocation3 + $0x78] sm:$0x3]
        %v5103 = vld [vmem:[#allocation3 + $0x80] sm:$0x3]
        %v5104 = vld [vmem:[#allocation3 + $0x88] sm:$0x3]
        %s5105 = scalar_lea.vmem [#allocation10], 6144
        %v5106 = vld [vmem:[%s5105] sm:$0xff]
        %v5107 = vld [vmem:[%s5105 + $0x8] sm:$0xff]
        %v5108 = vld [vmem:[%s5105 + $0x10] sm:$0xff]
        %v5109 = vld [vmem:[%s5105 + $0x18] sm:$0xff]
        %v5110 = vld [vmem:[%s5105 + $0x20] sm:$0xff]
        %v5111 = vld [vmem:[%s5105 + $0x28] sm:$0xff]
        %v5112 = vld [vmem:[%s5105 + $0x30] sm:$0xff]
        %v5113 = vld [vmem:[%s5105 + $0x38] sm:$0xff]
        %v5114 = vld [vmem:[%s5105 + $0x40] sm:$0xff]
        %v5115 = vld [vmem:[%s5105 + $0x48] sm:$0xff]
        %v5116 = vld [vmem:[%s5105 + $0x50] sm:$0xff]
        %v5117 = vld [vmem:[%s5105 + $0x58] sm:$0xff]
        %v5118 = vld [vmem:[%s5105 + $0x60] sm:$0xff]
        %v5119 = vld [vmem:[%s5105 + $0x68] sm:$0xff]
        %v5120 = vld [vmem:[%s5105 + $0x70] sm:$0xff]
        %v5121 = vld [vmem:[%s5105 + $0x78] sm:$0xff]
        %v5122 = vld [vmem:[%s5105 + $0x80] sm:$0xff]
        %v5123 = vld [vmem:[%s5105 + $0x88] sm:$0xff]
        %v5124 = vld [vmem:[%s5105 + $0x90] sm:$0xff]
        %v5125 = vld [vmem:[%s5105 + $0x98] sm:$0xff]
        %v5126 = vld [vmem:[%s5105 + $0xa0] sm:$0xff]
        %v5127 = vld [vmem:[%s5105 + $0xa8] sm:$0xff]
        %v5128 = vld [vmem:[%s5105 + $0xb0] sm:$0xff]
        %v5129 = vld [vmem:[%s5105 + $0xb8] sm:$0xff]
        %v5130 = vld [vmem:[%s5105 + $0xc0] sm:$0xff]
        %v5131 = vld [vmem:[%s5105 + $0xc8] sm:$0xff]
        %v5132 = vld [vmem:[%s5105 + $0xd0] sm:$0xff]
        %v5133 = vld [vmem:[%s5105 + $0xd8] sm:$0xff]
        %v5134 = vld [vmem:[%s5105 + $0xe0] sm:$0xff]
        %v5135 = vld [vmem:[%s5105 + $0xe8] sm:$0xff]
        %v5136 = vld [vmem:[%s5105 + $0xf0] sm:$0xff]
        %v5137 = vld [vmem:[%s5105 + $0xf8] sm:$0xff]
        %v5138 = vld [vmem:[%s5105 + $0x100] sm:$0xff]
        %v5139 = vld [vmem:[%s5105 + $0x108] sm:$0xff]
        %v5140 = vld [vmem:[%s5105 + $0x110] sm:$0xff]
        %v5141 = vld [vmem:[%s5105 + $0x118] sm:$0xff]
        %v5142 = vld [vmem:[%s5105 + $0x120] sm:$0xff]
        %v5143 = vld [vmem:[%s5105 + $0x128] sm:$0xff]
        %v5144 = vld [vmem:[%s5105 + $0x130] sm:$0xff]
        %v5145 = vld [vmem:[%s5105 + $0x138] sm:$0xff]
        %v5146 = vld [vmem:[%s5105 + $0x140] sm:$0xff]
        %v5147 = vld [vmem:[%s5105 + $0x148] sm:$0xff]
        %v5148 = vld [vmem:[%s5105 + $0x150] sm:$0xff]
        %v5149 = vld [vmem:[%s5105 + $0x158] sm:$0xff]
        %v5150 = vld [vmem:[%s5105 + $0x160] sm:$0xff]
        %v5151 = vld [vmem:[%s5105 + $0x168] sm:$0xff]
        %v5152 = vld [vmem:[%s5105 + $0x170] sm:$0xff]
        %v5153 = vld [vmem:[%s5105 + $0x178] sm:$0xff]
        %v5154 = vld [vmem:[%s5105 + $0x180] sm:$0xff]
        %v5155 = vld [vmem:[%s5105 + $0x188] sm:$0xff]
        %v5156 = vld [vmem:[%s5105 + $0x190] sm:$0xff]
        %v5157 = vld [vmem:[%s5105 + $0x198] sm:$0xff]
        %v5158 = vld [vmem:[%s5105 + $0x1a0] sm:$0xff]
        %v5159 = vld [vmem:[%s5105 + $0x1a8] sm:$0xff]
        %v5160 = vld [vmem:[%s5105 + $0x1b0] sm:$0xff]
        %v5161 = vld [vmem:[%s5105 + $0x1b8] sm:$0xff]
        %v5162 = vld [vmem:[%s5105 + $0x1c0] sm:$0xff]
        %v5163 = vld [vmem:[%s5105 + $0x1c8] sm:$0xff]
        %v5164 = vld [vmem:[%s5105 + $0x1d0] sm:$0xff]
        %v5165 = vld [vmem:[%s5105 + $0x1d8] sm:$0xff]
        %v5166 = vld [vmem:[%s5105 + $0x1e0] sm:$0xff]
        %v5167 = vld [vmem:[%s5105 + $0x1e8] sm:$0xff]
        %v5168 = vld [vmem:[%s5105 + $0x1f0] sm:$0xff]
        %v5169 = vld [vmem:[%s5105 + $0x1f8] sm:$0xff]
        %v5170 = vld [vmem:[%s5105 + $0x200] sm:$0xff]
        %v5171 = vld [vmem:[%s5105 + $0x208] sm:$0xff]
        %v5172 = vld [vmem:[%s5105 + $0x210] sm:$0xff]
        %v5173 = vld [vmem:[%s5105 + $0x218] sm:$0xff]
        %v5174 = vld [vmem:[%s5105 + $0x220] sm:$0xff]
        %v5175 = vld [vmem:[%s5105 + $0x228] sm:$0xff]
        %v5176 = vld [vmem:[%s5105 + $0x230] sm:$0xff]
        %v5177 = vld [vmem:[%s5105 + $0x238] sm:$0xff]
        %v5178 = vld [vmem:[%s5105 + $0x240] sm:$0xff]
        %v5179 = vld [vmem:[%s5105 + $0x248] sm:$0xff]
        %v5180 = vld [vmem:[%s5105 + $0x250] sm:$0xff]
        %v5181 = vld [vmem:[%s5105 + $0x258] sm:$0xff]
        %v5182 = vld [vmem:[%s5105 + $0x260] sm:$0xff]
        %v5183 = vld [vmem:[%s5105 + $0x268] sm:$0xff]
        %v5184 = vld [vmem:[%s5105 + $0x270] sm:$0xff]
        %v5185 = vld [vmem:[%s5105 + $0x278] sm:$0xff]
        %v5186 = vld [vmem:[%s5105 + $0x280] sm:$0xff]
        %v5187 = vld [vmem:[%s5105 + $0x288] sm:$0xff]
        %v5188 = vld [vmem:[%s5105 + $0x290] sm:$0xff]
        %v5189 = vld [vmem:[%s5105 + $0x298] sm:$0xff]
        %v5190 = vld [vmem:[%s5105 + $0x2a0] sm:$0xff]
        %v5191 = vld [vmem:[%s5105 + $0x2a8] sm:$0xff]
        %v5192 = vld [vmem:[%s5105 + $0x2b0] sm:$0xff]
        %v5193 = vld [vmem:[%s5105 + $0x2b8] sm:$0xff]
        %v5194 = vld [vmem:[%s5105 + $0x2c0] sm:$0xff]
        %v5195 = vld [vmem:[%s5105 + $0x2c8] sm:$0xff]
        %v5196 = vld [vmem:[%s5105 + $0x2d0] sm:$0xff]
        %v5197 = vld [vmem:[%s5105 + $0x2d8] sm:$0xff]
        %v5198 = vld [vmem:[%s5105 + $0x2e0] sm:$0xff]
        %v5199 = vld [vmem:[%s5105 + $0x2e8] sm:$0xff]
        %v5200 = vld [vmem:[%s5105 + $0x2f0] sm:$0xff]
        %v5201 = vld [vmem:[%s5105 + $0x2f8] sm:$0xff]
        %v5202 = vld [vmem:[%s5105 + $0x300] sm:$0xff]
        %v5203 = vld [vmem:[%s5105 + $0x308] sm:$0xff]
        %v5204 = vld [vmem:[%s5105 + $0x310] sm:$0xff]
        %v5205 = vld [vmem:[%s5105 + $0x318] sm:$0xff]
        %v5206 = vld [vmem:[%s5105 + $0x320] sm:$0xff]
        %v5207 = vld [vmem:[%s5105 + $0x328] sm:$0xff]
        %v5208 = vld [vmem:[%s5105 + $0x330] sm:$0xff]
        %v5209 = vld [vmem:[%s5105 + $0x338] sm:$0xff]
        %v5210 = vld [vmem:[%s5105 + $0x340] sm:$0xff]
        %v5211 = vld [vmem:[%s5105 + $0x348] sm:$0xff]
        %v5212 = vld [vmem:[%s5105 + $0x350] sm:$0xff]
        %v5213 = vld [vmem:[%s5105 + $0x358] sm:$0xff]
        %v5214 = vld [vmem:[%s5105 + $0x360] sm:$0xff]
        %v5215 = vld [vmem:[%s5105 + $0x368] sm:$0xff]
        %v5216 = vld [vmem:[%s5105 + $0x370] sm:$0xff]
        %v5217 = vld [vmem:[%s5105 + $0x378] sm:$0xff]
        %v5218 = vld [vmem:[%s5105 + $0x380] sm:$0xff]
        %v5219 = vld [vmem:[%s5105 + $0x388] sm:$0xff]
        %v5220 = vld [vmem:[%s5105 + $0x390] sm:$0xff]
        %v5221 = vld [vmem:[%s5105 + $0x398] sm:$0xff]
        %v5222 = vld [vmem:[%s5105 + $0x3a0] sm:$0xff]
        %v5223 = vld [vmem:[%s5105 + $0x3a8] sm:$0xff]
        %v5224 = vld [vmem:[%s5105 + $0x3b0] sm:$0xff]
        %v5225 = vld [vmem:[%s5105 + $0x3b8] sm:$0xff]
        %v5226 = vld [vmem:[%s5105 + $0x3c0] sm:$0xff]
        %v5227 = vld [vmem:[%s5105 + $0x3c8] sm:$0xff]
        %v5228 = vld [vmem:[%s5105 + $0x3d0] sm:$0xff]
        %v5229 = vld [vmem:[%s5105 + $0x3d8] sm:$0xff]
        %v5230 = vld [vmem:[%s5105 + $0x3e0] sm:$0xff]
        %v5231 = vld [vmem:[%s5105 + $0x3e8] sm:$0xff]
        %v5232 = vld [vmem:[%s5105 + $0x3f0] sm:$0xff]
        %v5233 = vld [vmem:[%s5105 + $0x3f8] sm:$0xff]
        %v5234 = vld [vmem:[%s5105 + $0x400] sm:$0xff]
        %v5235 = vld [vmem:[%s5105 + $0x408] sm:$0xff]
        %v5236 = vld [vmem:[%s5105 + $0x410] sm:$0xff]
        %v5237 = vld [vmem:[%s5105 + $0x418] sm:$0xff]
        %v5238 = vld [vmem:[%s5105 + $0x420] sm:$0xff]
        %v5239 = vld [vmem:[%s5105 + $0x428] sm:$0xff]
        %v5240 = vld [vmem:[%s5105 + $0x430] sm:$0xff]
        %v5241 = vld [vmem:[%s5105 + $0x438] sm:$0xff]
        %v5242 = vld [vmem:[%s5105 + $0x440] sm:$0xff]
        %v5243 = vld [vmem:[%s5105 + $0x448] sm:$0xff]
        %v5244 = vld [vmem:[%s5105 + $0x450] sm:$0xff]
        %v5245 = vld [vmem:[%s5105 + $0x458] sm:$0xff]
        %v5246 = vld [vmem:[%s5105 + $0x460] sm:$0xff]
        %v5247 = vld [vmem:[%s5105 + $0x468] sm:$0xff]
        %v5248 = vld [vmem:[%s5105 + $0x470] sm:$0xff]
        %v5249 = vld [vmem:[%s5105 + $0x478] sm:$0xff]
        %v5250 = vld [vmem:[%s5105 + $0x480] sm:$0xff]
        %v5251 = vld [vmem:[%s5105 + $0x488] sm:$0xff]
        %v5252 = vld [vmem:[%s5105 + $0x490] sm:$0xff]
        %v5253 = vld [vmem:[%s5105 + $0x498] sm:$0xff]
        %v5254 = vld [vmem:[%s5105 + $0x4a0] sm:$0xff]
        %v5255 = vld [vmem:[%s5105 + $0x4a8] sm:$0xff]
        %v5256 = vld [vmem:[%s5105 + $0x4b0] sm:$0xff]
        %v5257 = vld [vmem:[%s5105 + $0x4b8] sm:$0xff]
        %v5258 = vld [vmem:[%s5105 + $0x4c0] sm:$0xff]
        %v5259 = vld [vmem:[%s5105 + $0x4c8] sm:$0xff]
        %v5260 = vld [vmem:[%s5105 + $0x4d0] sm:$0xff]
        %v5261 = vld [vmem:[%s5105 + $0x4d8] sm:$0xff]
        %v5262 = vld [vmem:[%s5105 + $0x4e0] sm:$0xff]
        %v5263 = vld [vmem:[%s5105 + $0x4e8] sm:$0xff]
        %v5264 = vld [vmem:[%s5105 + $0x4f0] sm:$0xff]
        %v5265 = vld [vmem:[%s5105 + $0x4f8] sm:$0xff]
        %v5266 = vld [vmem:[%s5105 + $0x500] sm:$0xff]
        %v5267 = vld [vmem:[%s5105 + $0x508] sm:$0xff]
        %v5268 = vld [vmem:[%s5105 + $0x510] sm:$0xff]
        %v5269 = vld [vmem:[%s5105 + $0x518] sm:$0xff]
        %v5270 = vld [vmem:[%s5105 + $0x520] sm:$0xff]
        %v5271 = vld [vmem:[%s5105 + $0x528] sm:$0xff]
        %v5272 = vld [vmem:[%s5105 + $0x530] sm:$0xff]
        %v5273 = vld [vmem:[%s5105 + $0x538] sm:$0xff]
        %v5274 = vld [vmem:[%s5105 + $0x540] sm:$0xff]
        %v5275 = vld [vmem:[%s5105 + $0x548] sm:$0xff]
        %v5276 = vld [vmem:[%s5105 + $0x550] sm:$0xff]
        %v5277 = vld [vmem:[%s5105 + $0x558] sm:$0xff]
        %v5278 = vld [vmem:[%s5105 + $0x560] sm:$0xff]
        %v5279 = vld [vmem:[%s5105 + $0x568] sm:$0xff]
        %v5280 = vld [vmem:[%s5105 + $0x570] sm:$0xff]
        %v5281 = vld [vmem:[%s5105 + $0x578] sm:$0xff]
        %v5282 = vld [vmem:[%s5105 + $0x580] sm:$0xff]
        %v5283 = vld [vmem:[%s5105 + $0x588] sm:$0xff]
        %v5284 = vld [vmem:[%s5105 + $0x590] sm:$0xff]
        %v5285 = vld [vmem:[%s5105 + $0x598] sm:$0xff]
        %v5286 = vld [vmem:[%s5105 + $0x5a0] sm:$0xff]
        %v5287 = vld [vmem:[%s5105 + $0x5a8] sm:$0xff]
        %v5288 = vld [vmem:[%s5105 + $0x5b0] sm:$0xff]
        %v5289 = vld [vmem:[%s5105 + $0x5b8] sm:$0xff]
        %v5290 = vld [vmem:[%s5105 + $0x5c0] sm:$0xff]
        %v5291 = vld [vmem:[%s5105 + $0x5c8] sm:$0xff]
        %v5292 = vld [vmem:[%s5105 + $0x5d0] sm:$0xff]
        %v5293 = vld [vmem:[%s5105 + $0x5d8] sm:$0xff]
        %v5294 = vld [vmem:[%s5105 + $0x5e0] sm:$0xff]
        %v5295 = vld [vmem:[%s5105 + $0x5e8] sm:$0xff]
        %v5296 = vld [vmem:[%s5105 + $0x5f0] sm:$0xff]
        %v5297 = vld [vmem:[%s5105 + $0x5f8] sm:$0xff]
        %v5298 = vld [vmem:[%s5105 + $0x600] sm:$0xff]
        %v5299 = vld [vmem:[%s5105 + $0x608] sm:$0xff]
        %v5300 = vld [vmem:[%s5105 + $0x610] sm:$0xff]
        %v5301 = vld [vmem:[%s5105 + $0x618] sm:$0xff]
        %v5302 = vld [vmem:[%s5105 + $0x620] sm:$0xff]
        %v5303 = vld [vmem:[%s5105 + $0x628] sm:$0xff]
        %v5304 = vld [vmem:[%s5105 + $0x630] sm:$0xff]
        %v5305 = vld [vmem:[%s5105 + $0x638] sm:$0xff]
        %v5306 = vld [vmem:[%s5105 + $0x640] sm:$0xff]
        %v5307 = vld [vmem:[%s5105 + $0x648] sm:$0xff]
        %v5308 = vld [vmem:[%s5105 + $0x650] sm:$0xff]
        %v5309 = vld [vmem:[%s5105 + $0x658] sm:$0xff]
        %v5310 = vld [vmem:[%s5105 + $0x660] sm:$0xff]
        %v5311 = vld [vmem:[%s5105 + $0x668] sm:$0xff]
        %v5312 = vld [vmem:[%s5105 + $0x670] sm:$0xff]
        %v5313 = vld [vmem:[%s5105 + $0x678] sm:$0xff]
        %v5314 = vld [vmem:[%s5105 + $0x680] sm:$0xff]
        %v5315 = vld [vmem:[%s5105 + $0x688] sm:$0xff]
        %v5316 = vld [vmem:[%s5105 + $0x690] sm:$0xff]
        %v5317 = vld [vmem:[%s5105 + $0x698] sm:$0xff]
        %v5318 = vld [vmem:[%s5105 + $0x6a0] sm:$0xff]
        %v5319 = vld [vmem:[%s5105 + $0x6a8] sm:$0xff]
        %v5320 = vld [vmem:[%s5105 + $0x6b0] sm:$0xff]
        %v5321 = vld [vmem:[%s5105 + $0x6b8] sm:$0xff]
        %v5322 = vld [vmem:[%s5105 + $0x6c0] sm:$0xff]
        %v5323 = vld [vmem:[%s5105 + $0x6c8] sm:$0xff]
        %v5324 = vld [vmem:[%s5105 + $0x6d0] sm:$0xff]
        %v5325 = vld [vmem:[%s5105 + $0x6d8] sm:$0xff]
        %v5326 = vld [vmem:[%s5105 + $0x6e0] sm:$0xff]
        %v5327 = vld [vmem:[%s5105 + $0x6e8] sm:$0xff]
        %v5328 = vld [vmem:[%s5105 + $0x6f0] sm:$0xff]
        %v5329 = vld [vmem:[%s5105 + $0x6f8] sm:$0xff]
        %v5330 = vld [vmem:[%s5105 + $0x700] sm:$0xff]
        %v5331 = vld [vmem:[%s5105 + $0x708] sm:$0xff]
        %v5332 = vld [vmem:[%s5105 + $0x710] sm:$0xff]
        %v5333 = vld [vmem:[%s5105 + $0x718] sm:$0xff]
        %v5334 = vld [vmem:[%s5105 + $0x720] sm:$0xff]
        %v5335 = vld [vmem:[%s5105 + $0x728] sm:$0xff]
        %v5336 = vld [vmem:[%s5105 + $0x730] sm:$0xff]
        %v5337 = vld [vmem:[%s5105 + $0x738] sm:$0xff]
        %v5338 = vld [vmem:[%s5105 + $0x740] sm:$0xff]
        %v5339 = vld [vmem:[%s5105 + $0x748] sm:$0xff]
        %v5340 = vld [vmem:[%s5105 + $0x750] sm:$0xff]
        %v5341 = vld [vmem:[%s5105 + $0x758] sm:$0xff]
        %v5342 = vld [vmem:[%s5105 + $0x760] sm:$0xff]
        %v5343 = vld [vmem:[%s5105 + $0x768] sm:$0xff]
        %v5344 = vld [vmem:[%s5105 + $0x770] sm:$0xff]
        %v5345 = vld [vmem:[%s5105 + $0x778] sm:$0xff]
        %v5346 = vld [vmem:[%s5105 + $0x780] sm:$0xff]
        %v5347 = vld [vmem:[%s5105 + $0x788] sm:$0xff]
        %v5348 = vld [vmem:[%s5105 + $0x790] sm:$0xff]
        %v5349 = vld [vmem:[%s5105 + $0x798] sm:$0xff]
        %v5350 = vld [vmem:[%s5105 + $0x7a0] sm:$0xff]
        %v5351 = vld [vmem:[%s5105 + $0x7a8] sm:$0xff]
        %v5352 = vld [vmem:[%s5105 + $0x7b0] sm:$0xff]
        %v5353 = vld [vmem:[%s5105 + $0x7b8] sm:$0xff]
        %v5354 = vld [vmem:[%s5105 + $0x7c0] sm:$0xff]
        %v5355 = vld [vmem:[%s5105 + $0x7c8] sm:$0xff]
        %v5356 = vld [vmem:[%s5105 + $0x7d0] sm:$0xff]
        %v5357 = vld [vmem:[%s5105 + $0x7d8] sm:$0xff]
        %v5358 = vld [vmem:[%s5105 + $0x7e0] sm:$0xff]
        %v5359 = vld [vmem:[%s5105 + $0x7e8] sm:$0xff]
        %v5360 = vld [vmem:[%s5105 + $0x7f0] sm:$0xff]
        %v5361 = vld [vmem:[%s5105 + $0x7f8] sm:$0xff]
        %v5362 = vld [vmem:[%s5105 + $0x800] sm:$0xff]
        %v5363 = vld [vmem:[%s5105 + $0x808] sm:$0xff]
        %v5364 = vld [vmem:[%s5105 + $0x810] sm:$0xff]
        %v5365 = vld [vmem:[%s5105 + $0x818] sm:$0xff]
        %v5366 = vld [vmem:[%s5105 + $0x820] sm:$0xff]
        %v5367 = vld [vmem:[%s5105 + $0x828] sm:$0xff]
        %v5368 = vld [vmem:[%s5105 + $0x830] sm:$0xff]
        %v5369 = vld [vmem:[%s5105 + $0x838] sm:$0xff]
        %v5370 = vld [vmem:[%s5105 + $0x840] sm:$0xff]
        %v5371 = vld [vmem:[%s5105 + $0x848] sm:$0xff]
        %v5372 = vld [vmem:[%s5105 + $0x850] sm:$0xff]
        %v5373 = vld [vmem:[%s5105 + $0x858] sm:$0xff]
        %v5374 = vld [vmem:[%s5105 + $0x860] sm:$0xff]
        %v5375 = vld [vmem:[%s5105 + $0x868] sm:$0xff]
        %v5376 = vld [vmem:[%s5105 + $0x870] sm:$0xff]
        %v5377 = vld [vmem:[%s5105 + $0x878] sm:$0xff]
        %v5378 = vld [vmem:[%s5105 + $0x880] sm:$0xff]
        %v5379 = vld [vmem:[%s5105 + $0x888] sm:$0xff]
        %v5380 = vld [vmem:[%s5105 + $0x890] sm:$0xff]
        %v5381 = vld [vmem:[%s5105 + $0x898] sm:$0xff]
        %v5382 = vld [vmem:[%s5105 + $0x8a0] sm:$0xff]
        %v5383 = vld [vmem:[%s5105 + $0x8a8] sm:$0xff]
        %v5384 = vld [vmem:[%s5105 + $0x8b0] sm:$0xff]
        %v5385 = vld [vmem:[%s5105 + $0x8b8] sm:$0xff]
        %v5386 = vld [vmem:[%s5105 + $0x8c0] sm:$0xff]
        %v5387 = vld [vmem:[%s5105 + $0x8c8] sm:$0xff]
        %v5388 = vld [vmem:[%s5105 + $0x8d0] sm:$0xff]
        %v5389 = vld [vmem:[%s5105 + $0x8d8] sm:$0xff]
        %v5390 = vld [vmem:[%s5105 + $0x8e0] sm:$0xff]
        %v5391 = vld [vmem:[%s5105 + $0x8e8] sm:$0xff]
        %v5392 = vld [vmem:[%s5105 + $0x8f0] sm:$0xff]
        %v5393 = vld [vmem:[%s5105 + $0x8f8] sm:$0xff]
        %v5394 = vld [vmem:[%s5105 + $0x900] sm:$0xff]
        %v5395 = vld [vmem:[%s5105 + $0x908] sm:$0xff]
        %v5396 = vld [vmem:[%s5105 + $0x910] sm:$0xff]
        %v5397 = vld [vmem:[%s5105 + $0x918] sm:$0xff]
        %v5398 = vld [vmem:[%s5105 + $0x920] sm:$0xff]
        %v5399 = vld [vmem:[%s5105 + $0x928] sm:$0xff]
        %v5400 = vld [vmem:[%s5105 + $0x930] sm:$0xff]
        %v5401 = vld [vmem:[%s5105 + $0x938] sm:$0xff]
        %v5402 = vld [vmem:[%s5105 + $0x940] sm:$0xff]
        %v5403 = vld [vmem:[%s5105 + $0x948] sm:$0xff]
        %v5404 = vld [vmem:[%s5105 + $0x950] sm:$0xff]
        %v5405 = vld [vmem:[%s5105 + $0x958] sm:$0xff]
        %v5406 = vld [vmem:[%s5105 + $0x960] sm:$0xff]
        %v5407 = vld [vmem:[%s5105 + $0x968] sm:$0xff]
        %v5408 = vld [vmem:[%s5105 + $0x970] sm:$0xff]
        %v5409 = vld [vmem:[%s5105 + $0x978] sm:$0xff]
        %v5410 = vld [vmem:[%s5105 + $0x980] sm:$0xff]
        %v5411 = vld [vmem:[%s5105 + $0x988] sm:$0xff]
        %v5412 = vld [vmem:[%s5105 + $0x990] sm:$0xff]
        %v5413 = vld [vmem:[%s5105 + $0x998] sm:$0xff]
        %v5414 = vld [vmem:[%s5105 + $0x9a0] sm:$0xff]
        %v5415 = vld [vmem:[%s5105 + $0x9a8] sm:$0xff]
        %v5416 = vld [vmem:[%s5105 + $0x9b0] sm:$0xff]
        %v5417 = vld [vmem:[%s5105 + $0x9b8] sm:$0xff]
        %v5418 = vld [vmem:[%s5105 + $0x9c0] sm:$0xff]
        %v5419 = vld [vmem:[%s5105 + $0x9c8] sm:$0xff]
        %v5420 = vld [vmem:[%s5105 + $0x9d0] sm:$0xff]
        %v5421 = vld [vmem:[%s5105 + $0x9d8] sm:$0xff]
        %v5422 = vld [vmem:[%s5105 + $0x9e0] sm:$0xff]
        %v5423 = vld [vmem:[%s5105 + $0x9e8] sm:$0xff]
        %v5424 = vld [vmem:[%s5105 + $0x9f0] sm:$0xff]
        %v5425 = vld [vmem:[%s5105 + $0x9f8] sm:$0xff]
        %v5426 = vld [vmem:[%s5105 + $0xa00] sm:$0xff]
        %v5427 = vld [vmem:[%s5105 + $0xa08] sm:$0xff]
        %v5428 = vld [vmem:[%s5105 + $0xa10] sm:$0xff]
        %v5429 = vld [vmem:[%s5105 + $0xa18] sm:$0xff]
        %v5430 = vld [vmem:[%s5105 + $0xa20] sm:$0xff]
        %v5431 = vld [vmem:[%s5105 + $0xa28] sm:$0xff]
        %v5432 = vld [vmem:[%s5105 + $0xa30] sm:$0xff]
        %v5433 = vld [vmem:[%s5105 + $0xa38] sm:$0xff]
        %v5434 = vld [vmem:[%s5105 + $0xa40] sm:$0xff]
        %v5435 = vld [vmem:[%s5105 + $0xa48] sm:$0xff]
        %v5436 = vld [vmem:[%s5105 + $0xa50] sm:$0xff]
        %v5437 = vld [vmem:[%s5105 + $0xa58] sm:$0xff]
        %v5438 = vld [vmem:[%s5105 + $0xa60] sm:$0xff]
        %v5439 = vld [vmem:[%s5105 + $0xa68] sm:$0xff]
        %v5440 = vld [vmem:[%s5105 + $0xa70] sm:$0xff]
        %v5441 = vld [vmem:[%s5105 + $0xa78] sm:$0xff]
        %v5442 = vld [vmem:[%s5105 + $0xa80] sm:$0xff]
        %v5443 = vld [vmem:[%s5105 + $0xa88] sm:$0xff]
        %v5444 = vld [vmem:[%s5105 + $0xa90] sm:$0xff]
        %v5445 = vld [vmem:[%s5105 + $0xa98] sm:$0xff]
        %v5446 = vld [vmem:[%s5105 + $0xaa0] sm:$0xff]
        %v5447 = vld [vmem:[%s5105 + $0xaa8] sm:$0xff]
        %v5448 = vld [vmem:[%s5105 + $0xab0] sm:$0xff]
        %v5449 = vld [vmem:[%s5105 + $0xab8] sm:$0xff]
        %v5450 = vld [vmem:[%s5105 + $0xac0] sm:$0xff]
        %v5451 = vld [vmem:[%s5105 + $0xac8] sm:$0xff]
        %v5452 = vld [vmem:[%s5105 + $0xad0] sm:$0xff]
        %v5453 = vld [vmem:[%s5105 + $0xad8] sm:$0xff]
        %v5454 = vld [vmem:[%s5105 + $0xae0] sm:$0xff]
        %v5455 = vld [vmem:[%s5105 + $0xae8] sm:$0xff]
        %v5456 = vld [vmem:[%s5105 + $0xaf0] sm:$0xff]
        %v5457 = vld [vmem:[%s5105 + $0xaf8] sm:$0xff]
        %v5458 = vld [vmem:[%s5105 + $0xb00] sm:$0xff]
        %v5459 = vld [vmem:[%s5105 + $0xb08] sm:$0xff]
        %v5460 = vld [vmem:[%s5105 + $0xb10] sm:$0xff]
        %v5461 = vld [vmem:[%s5105 + $0xb18] sm:$0xff]
        %v5462 = vld [vmem:[%s5105 + $0xb20] sm:$0xff]
        %v5463 = vld [vmem:[%s5105 + $0xb28] sm:$0xff]
        %v5464 = vld [vmem:[%s5105 + $0xb30] sm:$0xff]
        %v5465 = vld [vmem:[%s5105 + $0xb38] sm:$0xff]
        %v5466 = vld [vmem:[%s5105 + $0xb40] sm:$0xff]
        %v5467 = vld [vmem:[%s5105 + $0xb48] sm:$0xff]
        %v5468 = vld [vmem:[%s5105 + $0xb50] sm:$0xff]
        %v5469 = vld [vmem:[%s5105 + $0xb58] sm:$0xff]
        %v5470 = vld [vmem:[%s5105 + $0xb60] sm:$0xff]
        %v5471 = vld [vmem:[%s5105 + $0xb68] sm:$0xff]
        %v5472 = vld [vmem:[%s5105 + $0xb70] sm:$0xff]
        %v5473 = vld [vmem:[%s5105 + $0xb78] sm:$0xff]
        %v5474 = vld [vmem:[%s5105 + $0xb80] sm:$0xff]
        %v5475 = vld [vmem:[%s5105 + $0xb88] sm:$0xff]
        %v5476 = vld [vmem:[%s5105 + $0xb90] sm:$0xff]
        %v5477 = vld [vmem:[%s5105 + $0xb98] sm:$0xff]
        %v5478 = vld [vmem:[%s5105 + $0xba0] sm:$0xff]
        %v5479 = vld [vmem:[%s5105 + $0xba8] sm:$0xff]
        %v5480 = vld [vmem:[%s5105 + $0xbb0] sm:$0xff]
        %v5481 = vld [vmem:[%s5105 + $0xbb8] sm:$0xff]
        %v5482 = vld [vmem:[%s5105 + $0xbc0] sm:$0xff]
        %v5483 = vld [vmem:[%s5105 + $0xbc8] sm:$0xff]
        %v5484 = vld [vmem:[%s5105 + $0xbd0] sm:$0xff]
        %v5485 = vld [vmem:[%s5105 + $0xbd8] sm:$0xff]
        %v5486 = vld [vmem:[%s5105 + $0xbe0] sm:$0xff]
        %v5487 = vld [vmem:[%s5105 + $0xbe8] sm:$0xff]
        %v5488 = vld [vmem:[%s5105 + $0xbf0] sm:$0xff]
        %v5489 = vld [vmem:[%s5105 + $0xbf8] sm:$0xff]
        %v5502 = vrot.slane %v5093, 2
        %v5503 = vrot.slane %v3322, 2
        %v5504 = vsel %vm2710, %v5502, %v5503
        %v5505 = vrot.slane %v5094, 2
        %v5506 = vrot.slane %v3323, 2
        %v5507 = vsel %vm2710, %v5505, %v5506
        %v5508 = vrot.slane %v5095, 2
        %v5509 = vrot.slane %v3324, 2
        %v5510 = vsel %vm2710, %v5508, %v5509
        %v5511 = vrot.slane %v5096, 2
        %v5512 = vrot.slane %v3325, 2
        %v5513 = vsel %vm2710, %v5511, %v5512
        %v5514 = vrot.slane %v5097, 2
        %v5515 = vrot.slane %v3326, 2
        %v5516 = vsel %vm2710, %v5514, %v5515
        %v5517 = vrot.slane %v5098, 2
        %v5518 = vrot.slane %v3327, 2
        %v5519 = vsel %vm2710, %v5517, %v5518
        %v5520 = vrot.slane %v5099, 2
        %v5521 = vsel %vm2710, %v5503, %v5520
        %v5522 = vrot.slane %v5100, 2
        %v5523 = vsel %vm2710, %v5506, %v5522
        %v5524 = vrot.slane %v5101, 2
        %v5525 = vsel %vm2710, %v5509, %v5524
        %v5526 = vrot.slane %v5102, 2
        %v5527 = vsel %vm2710, %v5512, %v5526
        %v5528 = vrot.slane %v5103, 2
        %v5529 = vsel %vm2710, %v5515, %v5528
        %v5530 = vrot.slane %v5104, 2
        %v5531 = vsel %vm2710, %v5518, %v5530
        %5544 = vmatprep.subr.mxu0 %v5107
        %5545 = vmatpush1.msra.mxu0 %v5106
        %5546 = vmatprep.subr.mxu0 %v5111
        %5547 = vmatpush1.msra.mxu0 %v5110
        %5548 = vmatprep.subr.mxu0 %v5115
        %5549 = vmatpush1.msra.mxu0 %v5114
        %5550 = vmatprep.subr.mxu0 %v5119
        %5551 = vmatpush1.msra.mxu0 %v5118
        %5552 = vmatprep.subr.mxu0 %v5123
        %5553 = vmatpush1.msra.mxu0 %v5122
        %5554 = vmatprep.subr.mxu0 %v5127
        %5555 = vmatpush1.msra.mxu0 %v5126
        %5556 = vmatprep.subr.mxu0 %v5131
        %5557 = vmatpush1.msra.mxu0 %v5130
        %5558 = vmatprep.subr.mxu0 %v5135
        %5559 = vmatpush1.msra.mxu0 %v5134
        %5560 = vmatprep.subr.mxu0 %v5139
        %5561 = vmatpush1.msra.mxu0 %v5138
        %5562 = vmatprep.subr.mxu0 %v5143
        %5563 = vmatpush1.msra.mxu0 %v5142
        %5564 = vmatprep.subr.mxu0 %v5147
        %5565 = vmatpush1.msra.mxu0 %v5146
        %5566 = vmatprep.subr.mxu0 %v5151
        %5567 = vmatpush1.msra.mxu0 %v5150
        %5568 = vmatprep.subr.mxu0 %v5155
        %5569 = vmatpush1.msra.mxu0 %v5154
        %5570 = vmatprep.subr.mxu0 %v5159
        %5571 = vmatpush1.msra.mxu0 %v5158
        %5572 = vmatprep.subr.mxu0 %v5163
        %5573 = vmatpush1.msra.mxu0 %v5162
        %5574 = vmatprep.subr.mxu0 %v5167
        %5575 = vmatpush1.msra.mxu0 %v5166
        %5576 = vmatprep.subr.mxu0 %v5171
        %5577 = vmatpush1.msra.mxu0 %v5170
        %5578 = vmatprep.subr.mxu0 %v5175
        %5579 = vmatpush1.msra.mxu0 %v5174
        %5580 = vmatprep.subr.mxu0 %v5179
        %5581 = vmatpush1.msra.mxu0 %v5178
        %5582 = vmatprep.subr.mxu0 %v5183
        %5583 = vmatpush1.msra.mxu0 %v5182
        %5584 = vmatprep.subr.mxu0 %v5187
        %5585 = vmatpush1.msra.mxu0 %v5186
        %5586 = vmatprep.subr.mxu0 %v5191
        %5587 = vmatpush1.msra.mxu0 %v5190
        %5588 = vmatprep.subr.mxu0 %v5195
        %5589 = vmatpush1.msra.mxu0 %v5194
        %5590 = vmatprep.subr.mxu0 %v5199
        %5591 = vmatpush1.msra.mxu0 %v5198
        %5592 = vmatprep.subr.mxu0 %v5203
        %5593 = vmatpush1.msra.mxu0 %v5202
        %5594 = vmatprep.subr.mxu0 %v5207
        %5595 = vmatpush1.msra.mxu0 %v5206
        %5596 = vmatprep.subr.mxu0 %v5211
        %5597 = vmatpush1.msra.mxu0 %v5210
        %5598 = vmatprep.subr.mxu0 %v5215
        %5599 = vmatpush1.msra.mxu0 %v5214
        %5600 = vmatprep.subr.mxu0 %v5219
        %5601 = vmatpush1.msra.mxu0 %v5218
        %5602 = vmatprep.subr.mxu0 %v5223
        %5603 = vmatpush1.msra.mxu0 %v5222
        %5604 = vmatprep.subr.mxu0 %v5227
        %5605 = vmatpush1.msra.mxu0 %v5226
        %5606 = vmatprep.subr.mxu0 %v5231
        %5607 = vmatpush1.msra.mxu0 %v5230
        %5608 = vmatprep.mubr.f32.mxu0 %v5507
        %5609 = vmatmul.mubr.f32.gmra.mrb[0].mxu0 %v5504
        %v5610 = vpop.f32.mrb[0].mxu0
        %v5611 = vadd.f32 0.0, %v5610
        %v5612 = vpop.f32.mrb[0].mxu0
        %v5613 = vadd.f32 0.0, %v5612
        %5614 = vmatprep.mubr.f32.mxu0 %v5523
        %5615 = vmatmul.mubr.f32.gmra.mrb[0].mxu0 %v5521
        %v5616 = vpop.f32.mrb[0].mxu0
        %v5617 = vadd.f32 0.0, %v5616
        %v5618 = vpop.f32.mrb[0].mxu0
        %v5619 = vadd.f32 0.0, %v5618
        %5620 = vdwg.mxu0
        %5621 = vmatprep.subr.mxu0 %v5235
        %5622 = vmatpush1.msra.mxu0 %v5234
        %5623 = vmatprep.subr.mxu0 %v5239
        %5624 = vmatpush1.msra.mxu0 %v5238
        %5625 = vmatprep.subr.mxu0 %v5243
        %5626 = vmatpush1.msra.mxu0 %v5242
        %5627 = vmatprep.subr.mxu0 %v5247
        %5628 = vmatpush1.msra.mxu0 %v5246
        %5629 = vmatprep.subr.mxu0 %v5251
        %5630 = vmatpush1.msra.mxu0 %v5250
        %5631 = vmatprep.subr.mxu0 %v5255
        %5632 = vmatpush1.msra.mxu0 %v5254
        %5633 = vmatprep.subr.mxu0 %v5259
        %5634 = vmatpush1.msra.mxu0 %v5258
        %5635 = vmatprep.subr.mxu0 %v5263
        %5636 = vmatpush1.msra.mxu0 %v5262
        %5637 = vmatprep.subr.mxu0 %v5267
        %5638 = vmatpush1.msra.mxu0 %v5266
        %5639 = vmatprep.subr.mxu0 %v5271
        %5640 = vmatpush1.msra.mxu0 %v5270
        %5641 = vmatprep.subr.mxu0 %v5275
        %5642 = vmatpush1.msra.mxu0 %v5274
        %5643 = vmatprep.subr.mxu0 %v5279
        %5644 = vmatpush1.msra.mxu0 %v5278
        %5645 = vmatprep.subr.mxu0 %v5283
        %5646 = vmatpush1.msra.mxu0 %v5282
        %5647 = vmatprep.subr.mxu0 %v5287
        %5648 = vmatpush1.msra.mxu0 %v5286
        %5649 = vmatprep.subr.mxu0 %v5291
        %5650 = vmatpush1.msra.mxu0 %v5290
        %5651 = vmatprep.subr.mxu0 %v5295
        %5652 = vmatpush1.msra.mxu0 %v5294
        %5653 = vmatprep.subr.mxu0 %v5299
        %5654 = vmatpush1.msra.mxu0 %v5298
        %5655 = vmatprep.subr.mxu0 %v5303
        %5656 = vmatpush1.msra.mxu0 %v5302
        %5657 = vmatprep.subr.mxu0 %v5307
        %5658 = vmatpush1.msra.mxu0 %v5306
        %5659 = vmatprep.subr.mxu0 %v5311
        %5660 = vmatpush1.msra.mxu0 %v5310
        %5661 = vmatprep.subr.mxu0 %v5315
        %5662 = vmatpush1.msra.mxu0 %v5314
        %5663 = vmatprep.subr.mxu0 %v5319
        %5664 = vmatpush1.msra.mxu0 %v5318
        %5665 = vmatprep.subr.mxu0 %v5323
        %5666 = vmatpush1.msra.mxu0 %v5322
        %5667 = vmatprep.subr.mxu0 %v5327
        %5668 = vmatpush1.msra.mxu0 %v5326
        %5669 = vmatprep.subr.mxu0 %v5331
        %5670 = vmatpush1.msra.mxu0 %v5330
        %5671 = vmatprep.subr.mxu0 %v5335
        %5672 = vmatpush1.msra.mxu0 %v5334
        %5673 = vmatprep.subr.mxu0 %v5339
        %5674 = vmatpush1.msra.mxu0 %v5338
        %5675 = vmatprep.subr.mxu0 %v5343
        %5676 = vmatpush1.msra.mxu0 %v5342
        %5677 = vmatprep.subr.mxu0 %v5347
        %5678 = vmatpush1.msra.mxu0 %v5346
        %5679 = vmatprep.subr.mxu0 %v5351
        %5680 = vmatpush1.msra.mxu0 %v5350
        %5681 = vmatprep.subr.mxu0 %v5355
        %5682 = vmatpush1.msra.mxu0 %v5354
        %5683 = vmatprep.subr.mxu0 %v5359
        %5684 = vmatpush1.msra.mxu0 %v5358
        %5685 = vmatprep.mubr.f32.mxu0 %v5513
        %5686 = vmatmul.mubr.f32.gmra.mrb[0].mxu0 %v5510
        %v5687 = vpop.f32.mrb[0].mxu0
        %v5688 = vadd.f32 %v5611, %v5687
        %v5689 = vpop.f32.mrb[0].mxu0
        %v5690 = vadd.f32 %v5613, %v5689
        %5691 = vmatprep.mubr.f32.mxu0 %v5527
        %5692 = vmatmul.mubr.f32.gmra.mrb[0].mxu0 %v5525
        %v5693 = vpop.f32.mrb[0].mxu0
        %v5694 = vadd.f32 %v5617, %v5693
        %v5695 = vpop.f32.mrb[0].mxu0
        %v5696 = vadd.f32 %v5619, %v5695
        %5697 = vdwg.mxu0
        %5698 = vmatprep.subr.mxu0 %v5363
        %5699 = vmatpush1.msra.mxu0 %v5362
        %5700 = vmatprep.subr.mxu0 %v5367
        %5701 = vmatpush1.msra.mxu0 %v5366
        %5702 = vmatprep.subr.mxu0 %v5371
        %5703 = vmatpush1.msra.mxu0 %v5370
        %5704 = vmatprep.subr.mxu0 %v5375
        %5705 = vmatpush1.msra.mxu0 %v5374
        %5706 = vmatprep.subr.mxu0 %v5379
        %5707 = vmatpush1.msra.mxu0 %v5378
        %5708 = vmatprep.subr.mxu0 %v5383
        %5709 = vmatpush1.msra.mxu0 %v5382
        %5710 = vmatprep.subr.mxu0 %v5387
        %5711 = vmatpush1.msra.mxu0 %v5386
        %5712 = vmatprep.subr.mxu0 %v5391
        %5713 = vmatpush1.msra.mxu0 %v5390
        %5714 = vmatprep.subr.mxu0 %v5395
        %5715 = vmatpush1.msra.mxu0 %v5394
        %5716 = vmatprep.subr.mxu0 %v5399
        %5717 = vmatpush1.msra.mxu0 %v5398
        %5718 = vmatprep.subr.mxu0 %v5403
        %5719 = vmatpush1.msra.mxu0 %v5402
        %5720 = vmatprep.subr.mxu0 %v5407
        %5721 = vmatpush1.msra.mxu0 %v5406
        %5722 = vmatprep.subr.mxu0 %v5411
        %5723 = vmatpush1.msra.mxu0 %v5410
        %5724 = vmatprep.subr.mxu0 %v5415
        %5725 = vmatpush1.msra.mxu0 %v5414
        %5726 = vmatprep.subr.mxu0 %v5419
        %5727 = vmatpush1.msra.mxu0 %v5418
        %5728 = vmatprep.subr.mxu0 %v5423
        %5729 = vmatpush1.msra.mxu0 %v5422
        %5730 = vmatprep.subr.mxu0 %v5427
        %5731 = vmatpush1.msra.mxu0 %v5426
        %5732 = vmatprep.subr.mxu0 %v5431
        %5733 = vmatpush1.msra.mxu0 %v5430
        %5734 = vmatprep.subr.mxu0 %v5435
        %5735 = vmatpush1.msra.mxu0 %v5434
        %5736 = vmatprep.subr.mxu0 %v5439
        %5737 = vmatpush1.msra.mxu0 %v5438
        %5738 = vmatprep.subr.mxu0 %v5443
        %5739 = vmatpush1.msra.mxu0 %v5442
        %5740 = vmatprep.subr.mxu0 %v5447
        %5741 = vmatpush1.msra.mxu0 %v5446
        %5742 = vmatprep.subr.mxu0 %v5451
        %5743 = vmatpush1.msra.mxu0 %v5450
        %5744 = vmatprep.subr.mxu0 %v5455
        %5745 = vmatpush1.msra.mxu0 %v5454
        %5746 = vmatprep.subr.mxu0 %v5459
        %5747 = vmatpush1.msra.mxu0 %v5458
        %5748 = vmatprep.subr.mxu0 %v5463
        %5749 = vmatpush1.msra.mxu0 %v5462
        %5750 = vmatprep.subr.mxu0 %v5467
        %5751 = vmatpush1.msra.mxu0 %v5466
        %5752 = vmatprep.subr.mxu0 %v5471
        %5753 = vmatpush1.msra.mxu0 %v5470
        %5754 = vmatprep.subr.mxu0 %v5475
        %5755 = vmatpush1.msra.mxu0 %v5474
        %5756 = vmatprep.subr.mxu0 %v5479
        %5757 = vmatpush1.msra.mxu0 %v5478
        %5758 = vmatprep.subr.mxu0 %v5483
        %5759 = vmatpush1.msra.mxu0 %v5482
        %5760 = vmatprep.subr.mxu0 %v5487
        %5761 = vmatpush1.msra.mxu0 %v5486
        %5762 = vmatprep.mubr.f32.mxu0 %v5519
        %5763 = vmatmul.mubr.f32.gmra.mrb[0].mxu0 %v5516
        %v5764 = vpop.f32.mrb[0].mxu0
        %v5765 = vadd.f32 %v5688, %v5764
        %v5766 = vpop.f32.mrb[0].mxu0
        %v5767 = vadd.f32 %v5690, %v5766
        %5768 = vmatprep.mubr.f32.mxu0 %v5531
        %5769 = vmatmul.mubr.f32.gmra.mrb[0].mxu0 %v5529
        %v5770 = vpop.f32.mrb[0].mxu0
        %v5771 = vadd.f32 %v5694, %v5770
        %v5772 = vpop.f32.mrb[0].mxu0
        %v5773 = vadd.f32 %v5696, %v5772
        %5774 = vdwg.mxu0
        %5775 = vmatprep.subr.mxu0 %v5109
        %5776 = vmatpush1.msra.mxu0 %v5108
        %5777 = vmatprep.subr.mxu0 %v5113
        %5778 = vmatpush1.msra.mxu0 %v5112
        %5779 = vmatprep.subr.mxu0 %v5117
        %5780 = vmatpush1.msra.mxu0 %v5116
        %5781 = vmatprep.subr.mxu0 %v5121
        %5782 = vmatpush1.msra.mxu0 %v5120
        %5783 = vmatprep.subr.mxu0 %v5125
        %5784 = vmatpush1.msra.mxu0 %v5124
        %5785 = vmatprep.subr.mxu0 %v5129
        %5786 = vmatpush1.msra.mxu0 %v5128
        %5787 = vmatprep.subr.mxu0 %v5133
        %5788 = vmatpush1.msra.mxu0 %v5132
        %5789 = vmatprep.subr.mxu0 %v5137
        %5790 = vmatpush1.msra.mxu0 %v5136
        %5791 = vmatprep.subr.mxu0 %v5141
        %5792 = vmatpush1.msra.mxu0 %v5140
        %5793 = vmatprep.subr.mxu0 %v5145
        %5794 = vmatpush1.msra.mxu0 %v5144
        %5795 = vmatprep.subr.mxu0 %v5149
        %5796 = vmatpush1.msra.mxu0 %v5148
        %5797 = vmatprep.subr.mxu0 %v5153
        %5798 = vmatpush1.msra.mxu0 %v5152
        %5799 = vmatprep.subr.mxu0 %v5157
        %5800 = vmatpush1.msra.mxu0 %v5156
        %5801 = vmatprep.subr.mxu0 %v5161
        %5802 = vmatpush1.msra.mxu0 %v5160
        %5803 = vmatprep.subr.mxu0 %v5165
        %5804 = vmatpush1.msra.mxu0 %v5164
        %5805 = vmatprep.subr.mxu0 %v5169
        %5806 = vmatpush1.msra.mxu0 %v5168
        %5807 = vmatprep.subr.mxu0 %v5173
        %5808 = vmatpush1.msra.mxu0 %v5172
        %5809 = vmatprep.subr.mxu0 %v5177
        %5810 = vmatpush1.msra.mxu0 %v5176
        %5811 = vmatprep.subr.mxu0 %v5181
        %5812 = vmatpush1.msra.mxu0 %v5180
        %5813 = vmatprep.subr.mxu0 %v5185
        %5814 = vmatpush1.msra.mxu0 %v5184
        %5815 = vmatprep.subr.mxu0 %v5189
        %5816 = vmatpush1.msra.mxu0 %v5188
        %5817 = vmatprep.subr.mxu0 %v5193
        %5818 = vmatpush1.msra.mxu0 %v5192
        %5819 = vmatprep.subr.mxu0 %v5197
        %5820 = vmatpush1.msra.mxu0 %v5196
        %5821 = vmatprep.subr.mxu0 %v5201
        %5822 = vmatpush1.msra.mxu0 %v5200
        %5823 = vmatprep.subr.mxu0 %v5205
        %5824 = vmatpush1.msra.mxu0 %v5204
        %5825 = vmatprep.subr.mxu0 %v5209
        %5826 = vmatpush1.msra.mxu0 %v5208
        %5827 = vmatprep.subr.mxu0 %v5213
        %5828 = vmatpush1.msra.mxu0 %v5212
        %5829 = vmatprep.subr.mxu0 %v5217
        %5830 = vmatpush1.msra.mxu0 %v5216
        %5831 = vmatprep.subr.mxu0 %v5221
        %5832 = vmatpush1.msra.mxu0 %v5220
        %5833 = vmatprep.subr.mxu0 %v5225
        %5834 = vmatpush1.msra.mxu0 %v5224
        %5835 = vmatprep.subr.mxu0 %v5229
        %5836 = vmatpush1.msra.mxu0 %v5228
        %5837 = vmatprep.subr.mxu0 %v5233
        %5838 = vmatpush1.msra.mxu0 %v5232
        %5839 = vmatprep.mubr.f32.mxu0 %v5507
        %5840 = vmatmul.mubr.f32.gmra.mrb[0].mxu0 %v5504
        %v5841 = vpop.f32.mrb[0].mxu0
        %v5842 = vadd.f32 0.0, %v5841
        %v5843 = vpop.f32.mrb[0].mxu0
        %v5844 = vadd.f32 0.0, %v5843
        %5845 = vmatprep.mubr.f32.mxu0 %v5523
        %5846 = vmatmul.mubr.f32.gmra.mrb[0].mxu0 %v5521
        %v5847 = vpop.f32.mrb[0].mxu0
        %v5848 = vadd.f32 0.0, %v5847
        %v5849 = vpop.f32.mrb[0].mxu0
        %v5850 = vadd.f32 0.0, %v5849
        %5851 = vdwg.mxu0
        %5852 = vmatprep.subr.mxu0 %v5237
        %5853 = vmatpush1.msra.mxu0 %v5236
        %5854 = vmatprep.subr.mxu0 %v5241
        %5855 = vmatpush1.msra.mxu0 %v5240
        %5856 = vmatprep.subr.mxu0 %v5245
        %5857 = vmatpush1.msra.mxu0 %v5244
        %5858 = vmatprep.subr.mxu0 %v5249
        %5859 = vmatpush1.msra.mxu0 %v5248
        %5860 = vmatprep.subr.mxu0 %v5253
        %5861 = vmatpush1.msra.mxu0 %v5252
        %5862 = vmatprep.subr.mxu0 %v5257
        %5863 = vmatpush1.msra.mxu0 %v5256
        %5864 = vmatprep.subr.mxu0 %v5261
        %5865 = vmatpush1.msra.mxu0 %v5260
        %5866 = vmatprep.subr.mxu0 %v5265
        %5867 = vmatpush1.msra.mxu0 %v5264
        %5868 = vmatprep.subr.mxu0 %v5269
        %5869 = vmatpush1.msra.mxu0 %v5268
        %5870 = vmatprep.subr.mxu0 %v5273
        %5871 = vmatpush1.msra.mxu0 %v5272
        %5872 = vmatprep.subr.mxu0 %v5277
        %5873 = vmatpush1.msra.mxu0 %v5276
        %5874 = vmatprep.subr.mxu0 %v5281
        %5875 = vmatpush1.msra.mxu0 %v5280
        %5876 = vmatprep.subr.mxu0 %v5285
        %5877 = vmatpush1.msra.mxu0 %v5284
        %5878 = vmatprep.subr.mxu0 %v5289
        %5879 = vmatpush1.msra.mxu0 %v5288
        %5880 = vmatprep.subr.mxu0 %v5293
        %5881 = vmatpush1.msra.mxu0 %v5292
        %5882 = vmatprep.subr.mxu0 %v5297
        %5883 = vmatpush1.msra.mxu0 %v5296
        %5884 = vmatprep.subr.mxu0 %v5301
        %5885 = vmatpush1.msra.mxu0 %v5300
        %5886 = vmatprep.subr.mxu0 %v5305
        %5887 = vmatpush1.msra.mxu0 %v5304
        %5888 = vmatprep.subr.mxu0 %v5309
        %5889 = vmatpush1.msra.mxu0 %v5308
        %5890 = vmatprep.subr.mxu0 %v5313
        %5891 = vmatpush1.msra.mxu0 %v5312
        %5892 = vmatprep.subr.mxu0 %v5317
        %5893 = vmatpush1.msra.mxu0 %v5316
        %5894 = vmatprep.subr.mxu0 %v5321
        %5895 = vmatpush1.msra.mxu0 %v5320
        %5896 = vmatprep.subr.mxu0 %v5325
        %5897 = vmatpush1.msra.mxu0 %v5324
        %5898 = vmatprep.subr.mxu0 %v5329
        %5899 = vmatpush1.msra.mxu0 %v5328
        %5900 = vmatprep.subr.mxu0 %v5333
        %5901 = vmatpush1.msra.mxu0 %v5332
        %5902 = vmatprep.subr.mxu0 %v5337
        %5903 = vmatpush1.msra.mxu0 %v5336
        %5904 = vmatprep.subr.mxu0 %v5341
        %5905 = vmatpush1.msra.mxu0 %v5340
        %5906 = vmatprep.subr.mxu0 %v5345
        %5907 = vmatpush1.msra.mxu0 %v5344
        %5908 = vmatprep.subr.mxu0 %v5349
        %5909 = vmatpush1.msra.mxu0 %v5348
        %5910 = vmatprep.subr.mxu0 %v5353
        %5911 = vmatpush1.msra.mxu0 %v5352
        %5912 = vmatprep.subr.mxu0 %v5357
        %5913 = vmatpush1.msra.mxu0 %v5356
        %5914 = vmatprep.subr.mxu0 %v5361
        %5915 = vmatpush1.msra.mxu0 %v5360
        %5916 = vmatprep.mubr.f32.mxu0 %v5513
        %5917 = vmatmul.mubr.f32.gmra.mrb[0].mxu0 %v5510
        %v5918 = vpop.f32.mrb[0].mxu0
        %v5919 = vadd.f32 %v5842, %v5918
        %v5920 = vpop.f32.mrb[0].mxu0
        %v5921 = vadd.f32 %v5844, %v5920
        %5922 = vmatprep.mubr.f32.mxu0 %v5527
        %5923 = vmatmul.mubr.f32.gmra.mrb[0].mxu0 %v5525
        %v5924 = vpop.f32.mrb[0].mxu0
        %v5925 = vadd.f32 %v5848, %v5924
        %v5926 = vpop.f32.mrb[0].mxu0
        %v5927 = vadd.f32 %v5850, %v5926
        %5928 = vdwg.mxu0
        %5929 = vmatprep.subr.mxu0 %v5365
        %5930 = vmatpush1.msra.mxu0 %v5364
        %5931 = vmatprep.subr.mxu0 %v5369
        %5932 = vmatpush1.msra.mxu0 %v5368
        %5933 = vmatprep.subr.mxu0 %v5373
        %5934 = vmatpush1.msra.mxu0 %v5372
        %5935 = vmatprep.subr.mxu0 %v5377
        %5936 = vmatpush1.msra.mxu0 %v5376
        %5937 = vmatprep.subr.mxu0 %v5381
        %5938 = vmatpush1.msra.mxu0 %v5380
        %5939 = vmatprep.subr.mxu0 %v5385
        %5940 = vmatpush1.msra.mxu0 %v5384
        %5941 = vmatprep.subr.mxu0 %v5389
        %5942 = vmatpush1.msra.mxu0 %v5388
        %5943 = vmatprep.subr.mxu0 %v5393
        %5944 = vmatpush1.msra.mxu0 %v5392
        %5945 = vmatprep.subr.mxu0 %v5397
        %5946 = vmatpush1.msra.mxu0 %v5396
        %5947 = vmatprep.subr.mxu0 %v5401
        %5948 = vmatpush1.msra.mxu0 %v5400
        %5949 = vmatprep.subr.mxu0 %v5405
        %5950 = vmatpush1.msra.mxu0 %v5404
        %5951 = vmatprep.subr.mxu0 %v5409
        %5952 = vmatpush1.msra.mxu0 %v5408
        %5953 = vmatprep.subr.mxu0 %v5413
        %5954 = vmatpush1.msra.mxu0 %v5412
        %5955 = vmatprep.subr.mxu0 %v5417
        %5956 = vmatpush1.msra.mxu0 %v5416
        %5957 = vmatprep.subr.mxu0 %v5421
        %5958 = vmatpush1.msra.mxu0 %v5420
        %5959 = vmatprep.subr.mxu0 %v5425
        %5960 = vmatpush1.msra.mxu0 %v5424
        %5961 = vmatprep.subr.mxu0 %v5429
        %5962 = vmatpush1.msra.mxu0 %v5428
        %5963 = vmatprep.subr.mxu0 %v5433
        %5964 = vmatpush1.msra.mxu0 %v5432
        %5965 = vmatprep.subr.mxu0 %v5437
        %5966 = vmatpush1.msra.mxu0 %v5436
        %5967 = vmatprep.subr.mxu0 %v5441
        %5968 = vmatpush1.msra.mxu0 %v5440
        %5969 = vmatprep.subr.mxu0 %v5445
        %5970 = vmatpush1.msra.mxu0 %v5444
        %5971 = vmatprep.subr.mxu0 %v5449
        %5972 = vmatpush1.msra.mxu0 %v5448
        %5973 = vmatprep.subr.mxu0 %v5453
        %5974 = vmatpush1.msra.mxu0 %v5452
        %5975 = vmatprep.subr.mxu0 %v5457
        %5976 = vmatpush1.msra.mxu0 %v5456
        %5977 = vmatprep.subr.mxu0 %v5461
        %5978 = vmatpush1.msra.mxu0 %v5460
        %5979 = vmatprep.subr.mxu0 %v5465
        %5980 = vmatpush1.msra.mxu0 %v5464
        %5981 = vmatprep.subr.mxu0 %v5469
        %5982 = vmatpush1.msra.mxu0 %v5468
        %5983 = vmatprep.subr.mxu0 %v5473
        %5984 = vmatpush1.msra.mxu0 %v5472
        %5985 = vmatprep.subr.mxu0 %v5477
        %5986 = vmatpush1.msra.mxu0 %v5476
        %5987 = vmatprep.subr.mxu0 %v5481
        %5988 = vmatpush1.msra.mxu0 %v5480
        %5989 = vmatprep.subr.mxu0 %v5485
        %5990 = vmatpush1.msra.mxu0 %v5484
        %5991 = vmatprep.subr.mxu0 %v5489
        %5992 = vmatpush1.msra.mxu0 %v5488
        %5993 = vmatprep.mubr.f32.mxu0 %v5519
        %5994 = vmatmul.mubr.f32.gmra.mrb[0].mxu0 %v5516
        %v5995 = vpop.f32.mrb[0].mxu0
        %v5996 = vadd.f32 %v5919, %v5995
        %v5997 = vpop.f32.mrb[0].mxu0
        %v5998 = vadd.f32 %v5921, %v5997
        %5999 = vmatprep.mubr.f32.mxu0 %v5531
        %6000 = vmatmul.mubr.f32.gmra.mrb[0].mxu0 %v5529
        %v6001 = vpop.f32.mrb[0].mxu0
        %v6002 = vadd.f32 %v5925, %v6001
        %v6003 = vpop.f32.mrb[0].mxu0
        %v6004 = vadd.f32 %v5927, %v6003
        %6005 = vdwg.mxu0
        %v6006 = vadd.f32 %v4852, %v5765
        %v6007 = vadd.f32 %v4854, %v5767
        %v6008 = vadd.f32 %v5083, %v5996
        %v6009 = vadd.f32 %v5085, %v5998
        %v6010 = vadd.f32 %v4858, %v5771
        %v6011 = vadd.f32 %v4860, %v5773
        %v6012 = vadd.f32 %v5089, %v6002
        %v6013 = vadd.f32 %v5091, %v6004
        %v6014 = vld [vmem:[#allocation12] sm:$0xf]
        %v6016 = vlaneseq
        %v6017 = vshrl.u32 %v6016, 7
        %v6018 = vsub.s32 0, %v6017
        %v6019 = vrot.slane %v6014, %v6018
        %v6020 = vlaneseq
        %v6021 = vshrl.u32 %v6020, 7
        %v6022 = vsub.s32 1, %v6021
        %v6023 = vrot.slane %v6014, %v6022
        %v6024 = vlaneseq
        %v6025 = vshrl.u32 %v6024, 7
        %v6026 = vsub.s32 2, %v6025
        %v6027 = vrot.slane %v6014, %v6026
        %v6028 = vlaneseq
        %v6029 = vshrl.u32 %v6028, 7
        %v6030 = vsub.s32 3, %v6029
        %v6031 = vrot.slane %v6014, %v6030
        %v6036 = vadd.f32 %v6006, %v6019
        %v6037 = vadd.f32 %v6007, %v6023
        %v6038 = vadd.f32 %v6008, %v6027
        %v6039 = vadd.f32 %v6009, %v6031
        %v6040 = vadd.f32 %v6010, %v6019
        %v6041 = vadd.f32 %v6011, %v6023
        %v6042 = vadd.f32 %v6012, %v6027
        %v6043 = vadd.f32 %v6013, %v6031
        %v6044 = vadd.f32 %v6036, %v6040
        %v6045 = vrot.slane %v6044, 4
        %v6046 = vadd.f32 %v6044, %v6045
        %v6047 = vrot.slane %v6046, 2
        %v6048 = vadd.f32 %v6046, %v6047
        %v6049 = vrot.slane %v6048, 1
        %v6050 = vadd.f32 %v6048, %v6049
        %v6051 = vadd.f32 %v6037, %v6041
        %v6052 = vrot.slane %v6051, 4
        %v6053 = vadd.f32 %v6051, %v6052
        %v6054 = vrot.slane %v6053, 2
        %v6055 = vadd.f32 %v6053, %v6054
        %v6056 = vrot.slane %v6055, 1
        %v6057 = vadd.f32 %v6055, %v6056
        %v6058 = vadd.f32 %v6038, %v6042
        %v6059 = vrot.slane %v6058, 4
        %v6060 = vadd.f32 %v6058, %v6059
        %v6061 = vrot.slane %v6060, 2
        %v6062 = vadd.f32 %v6060, %v6061
        %v6063 = vrot.slane %v6062, 1
        %v6064 = vadd.f32 %v6062, %v6063
        %v6065 = vadd.f32 %v6039, %v6043
        %v6066 = vrot.slane %v6065, 4
        %v6067 = vadd.f32 %v6065, %v6066
        %v6068 = vrot.slane %v6067, 2
        %v6069 = vadd.f32 %v6067, %v6068
        %v6070 = vrot.slane %v6069, 1
        %v6071 = vadd.f32 %v6069, %v6070
        %v6072 = vadd.f32 %v6050, %v6064
        %v6073 = vadd.f32 %v6057, %v6071
        %v6074 = vadd.f32 %v6072, %v6073
        %6076 = vrot.lane.b32.xlu0 %v6074, 64
        %v6077 = vpop.permute.xlu0 %6076
        %v6079 = vadd.f32 %v6074, %v6077
        %6081 = vrot.lane.b32.xlu0 %v6079, 96
        %v6082 = vpop.permute.xlu0 %6081
        %v6084 = vadd.f32 %v6079, %v6082
        %v6085 = vmul.f32 %v6084, 0.00390625
        %v6086 = vld [vmem:[#allocation13] sm:$0x3]
        %v6087 = vlaneseq
        %v6088 = vshrl.u32 %v6087, 7
        %v6089 = vsub.s32 0, %v6088
        %v6090 = vrot.slane %v6085, %v6089
        %v6091 = vmul.f32 %v6090, %v6086
        %vm6092 = vcmask 254976
        %v6093 = vsel %vm6092, %v6091, 0.0
        %6094 = vadd.xlane.f32.xlu0 %v6093
        %v6095 = vpop.xlane.xlu0 %6094
        %v6096 = vld [vmem:[#allocation15] sm:$0x1]
        %v6098 = vlaneseq
        %v6099 = vshrl.u32 %v6098, 7
        %v6100 = vsub.s32 0, %v6099
        %v6101 = vrot.slane %v6096, %v6100
        %6103 = vbcast.lane.b32.xlu0 %v6101, 256
        %v6104 = vpop.permute.xlu0 %6103
        %v6106 = vadd.f32 %v6095, %v6104
        %v6107 = vmax.f32 %v6106, 0.0
        %v6108 = vld [vmem:[#allocation16] sm:$0x3]
        %6110 = vset.pattern.permute.xlu0 0
        %6111 = vperm.xlu0 %6110, %v6107
        %v6112 = vpop.permute.xlu0 %6111
        %v6114 = vmul.f32 %v6112, %v6108
        %v6115 = vsel %vm6092, %v6114, 0.0
        %v6116 = vrot.slane %v6115, 4
        %v6117 = vadd.f32 %v6115, %v6116
        %v6118 = vrot.slane %v6117, 2
        %v6119 = vadd.f32 %v6117, %v6118
        %v6120 = vrot.slane %v6119, 1
        %v6121 = vadd.f32 %v6119, %v6120
        %v6122 = vld [vmem:[#allocation18] sm:$0x1]
        %v6123 = vadd.f32 %v6121, %v6122
        %v6124 = vxor.u32 %v6123, 2147483648
        %v6125 = vmul.f32 %v6124, 1.442695
        %v6126 = vpow.pop %v6125
        %v6127 = vadd.f32 %v6126, 1.0
        %v6128 = vrcp.pop %v6127
        %v6129 = vmul.f32 1.0, %v6128
        %6131 = vrot.lane.b32.xlu0 %v6129, 32
        %v6132 = vpop.permute.xlu0 %6131
        %6134 = vrot.lane.b32.xlu0 %v6129, 64
        %v6135 = vpop.permute.xlu0 %6134
        %6137 = vrot.lane.b32.xlu0 %v6129, 96
        %v6138 = vpop.permute.xlu0 %6137
        %vm6140 = vcmask 261120
        %v6141 = vsel %vm6140, %v6129, %v6132
        %vm6142 = vcmask 523264
        %v6143 = vsel %vm6142, %v6141, %v6135
        %vm6144 = vcmask 785408
        %v6145 = vsel %vm6144, %v6143, %v6138
        %v6146 = vlaneseq
        %v6147 = vshrl.u32 %v6146, 7
        %v6148 = vsub.s32 0, %v6147
        %v6149 = vrot.slane %v6145, %v6148
        %v6150 = vmul.f32 %v6036, %v6149
        %v6151 = vmul.f32 %v6037, %v6149
        %v6152 = vmul.f32 %v6038, %v6149
        %v6153 = vmul.f32 %v6039, %v6149
        %v6154 = vmul.f32 %v6040, %v6149
        %v6155 = vmul.f32 %v6041, %v6149
        %v6156 = vmul.f32 %v6042, %v6149
        %v6157 = vmul.f32 %v6043, %v6149
        %v6158 = vadd.f32 %v6150, %v455
        %v6159 = vadd.f32 %v6151, %v456
        %v6160 = vadd.f32 %v6152, %v457
        %v6161 = vadd.f32 %v6153, %v458
        %v6162 = vadd.f32 %v6154, %v459
        %v6163 = vadd.f32 %v6155, %v460
        %v6164 = vadd.f32 %v6156, %v461
        %v6165 = vadd.f32 %v6157, %v462
        %v6166 = vmax.f32 %v6158, 0.0
        %v6167 = vmax.f32 %v6159, 0.0
        %v6168 = vmax.f32 %v6160, 0.0
        %v6169 = vmax.f32 %v6161, 0.0
        %v6170 = vmax.f32 %v6162, 0.0
        %v6171 = vmax.f32 %v6163, 0.0
        %v6172 = vmax.f32 %v6164, 0.0
        %v6173 = vmax.f32 %v6165, 0.0
        %6174 = vst [vmem:[%s454] sm:$0xff] %v6166
        %6175 = vst [vmem:[%s454 + $0x8] sm:$0xff] %v6167
        %6176 = vst [vmem:[%s454 + $0x10] sm:$0xff] %v6168
        %6177 = vst [vmem:[%s454 + $0x18] sm:$0xff] %v6169
        %6178 = vst [vmem:[%s454 + $0x20] sm:$0xff] %v6170
        %6179 = vst [vmem:[%s454 + $0x28] sm:$0xff] %v6171
        %6180 = vst [vmem:[%s454 + $0x30] sm:$0xff] %v6172
        %6181 = vst [vmem:[%s454 + $0x38] sm:$0xff] %v6173
        %s6182 = sand.u32 %s232, 1
        %s6183 = scalar_lea.sflag [#allocation6], %s6182
        %s6184 = sand.u32 %s232, 1
        %s6185 = smul.addr %s6184, 64
        %s6186 = scalar_lea.vmem [#allocation19], %s6185
        // Predicated region
        $region93: #{tpu_custom_call.1} parent=55 // pred_check
          %p6187 = pneg %p242
        $region94: #{tpu_custom_call.1} parent=55 // pred_check_branch
          %6189 = sbr.rel (%p6187) target = $region96
        $region95: #{tpu_custom_call.1} parent=55 // pred_region
          %s6191 = ssub.s32 1024, 1024
          %6192 = vsyncadd %s6183, %s6191
          %s6193 = smul.addr %s30, 8
          %s6194 = smul.addr %s6193, 128
          %s6195 = scalar_lea.hbm %s9, %s6194
          %s6196 = sshll.u32 %s6186, 4
          %s6197 = int_to_ptr.vmem [resolvable:$true] %s6196
          %6202 = dma.vmem_to_hbm [thread:$0]  %s6197, 1024, %s6195, %s6183, 512, 512, 32
        $region96: #{tpu_custom_call.1} parent=55 // pred_fallthru
          _
      $region56: #{tpu_custom_call.1} parent=5 // pred_fallthru
        _
      %p6203 = scmp.le.s32.totalorder 2, %s25
      // Predicated region
      $region97: #{tpu_custom_call.1} parent=5 // pred_check
        %p6204 = pneg %p6203
      $region98: #{tpu_custom_call.1} parent=5 // pred_check_branch
        %6206 = sbr.rel (%p6204) target = $region100
      $region99: #{tpu_custom_call.1} parent=5 // pred_region
        %s6207 = ssub.s32 %s25, 2
        // Predicated region
        $region101: #{tpu_custom_call.1} parent=99 // pred_check
          %p6208 = pneg %p248
        $region102: #{tpu_custom_call.1} parent=99 // pred_check_branch
          %6210 = sbr.rel (%p6208) target = $region104
        $region103: #{tpu_custom_call.1} parent=99 // pred_region
          %s6211 = sand.u32 %s233, 1
          %s6212 = scalar_lea.sflag [#allocation6], %s6211
          %s6213 = sand.u32 %s233, 1
          %s6214 = smul.addr %s6213, 64
          %s6215 = scalar_lea.vmem [#allocation19], %s6214
          %6216 = dma.done %s6212, 1024
        $region104: #{tpu_custom_call.1} parent=99 // pred_fallthru
          _
      $region100: #{tpu_custom_call.1} parent=5 // pred_fallthru
        _
    $region6: #{tpu_custom_call.1} parent=1 // loop_footer
      %s29 = sadd.s32 1, %s25
    $region7: #{tpu_custom_call.1} parent=1 // loop_footer_branch
      %24 = sbr.rel target = $region3
    $region8: #{tpu_custom_call.1} parent=1 // loop_exit
      _
    %6217 = vsyncpa [#allocation5], 1
    %s6218 = scalar_lea.sflag [#allocation5], 1
    %6219 = vsyncpa %s6218, 1
    %6220 = vsyncpa [#allocation8], 1
    %6221 = vsyncpa [#allocation11], 1
    %6222 = vsyncpa [#allocation14], 1
    %6223 = vsyncpa [#allocation17], 1
    %6224 = vsyncpa [#allocation6], 1
    %s6225 = scalar_lea.sflag [#allocation6], 1
    %6226 = vsyncpa %s6225, 1

</llo_original>
